<compile_context>
chip_gen: v7x
topology: tpu7x:2x2x1
jax: 0.10.0
libtpu: 0.0.40
codegen_flags: <defaults>
</compile_context>

<pallas_src>
import numpy as np
import jax
import jax.numpy as jnp
from jax.experimental import pallas as pl
from jax.experimental.pallas import tpu as pltpu

num_classes = 10


def _round_up(x, m):
    return (x + m - 1) // m * m


# ---------------------------------------------------------------------------
# Pallas kernels
# ---------------------------------------------------------------------------
def conv_bn_relu_pool_kernel(x_ref, t_ref, scale_ref, shift_ref, o_ref):
    """Fused Conv2d(5x5, pad=2) + BatchNorm(eval) + ReLU + MaxPool(2x2).

    x_ref:     (Bm, K)       bf16  K-folded input rows; each row holds the 6
                                   padded image rows feeding one pooled row.
    t_ref:     (K, 4*Q)      bf16  block-Toeplitz weight; the 4 lane groups of
                                   width Q are the (h,w) phases of the 2x2
                                   pooling window; within a group the lane
                                   layout is w2*Cout + o (zero-padded to Q).
    scale_ref: (1, 4*Q)      f32   folded BN scale (0 on pad lanes)
    shift_ref: (1, 4*Q)      f32   folded BN shift incl. conv bias (0 on pads)
    o_ref:     (Bm, Q)       bf16  pooled activation rows
    """
    acc = jnp.dot(x_ref[...], t_ref[...],
                  preferred_element_type=jnp.float32)          # (Bm, 4*Q) f32
    act = jnp.maximum(acc * scale_ref[...] + shift_ref[...], 0.0)
    q = o_ref.shape[-1]
    pooled = jnp.maximum(jnp.maximum(act[:, 0 * q:1 * q], act[:, 1 * q:2 * q]),
                         jnp.maximum(act[:, 2 * q:3 * q], act[:, 3 * q:4 * q]))
    o_ref[...] = pooled.astype(o_ref.dtype)


def fc_kernel(x_ref, w_ref, b_ref, o_ref):
    """o = x @ w + b ; x:(TM,K) bf16, w:(K,128) bf16, b:(1,128)/o:(TM,128) f32."""
    o_ref[...] = (jnp.dot(x_ref[...], w_ref[...],
                          preferred_element_type=jnp.float32) + b_ref[...])


# ---------------------------------------------------------------------------
# Pallas wrappers
# ---------------------------------------------------------------------------
def _pick_rows_block(m_rows):
    """Choose a 16-aligned row block (<=256); aim for >=2 grid steps when the
    problem allows it so v7x's two TensorCores both get work."""
    m16 = _round_up(m_rows, 16)
    if m16 <= 16:
        return m16, m16
    if m16 <= 512:
        bm = _round_up(m16 // 2, 16)
    else:
        bm = 256
    return bm, _round_up(m16, bm)


def _conv_layer(u, T, scale_v, shift_v):
    """u: (M, K) bf16 K-folded rows -> (M, Q) bf16 pooled activation rows."""
    M, K = u.shape
    n_out = T.shape[1]            # 4 * Q
    q = n_out // 4                # lane-padded (W//2)*Cout  (= 256)
    bm, m_pad = _pick_rows_block(M)
    up = jnp.pad(u, ((0, m_pad - M), (0, 0)))

    cost = pl.CostEstimate(
        flops=2 * m_pad * K * n_out,
        transcendentals=0,
        bytes_accessed=(m_pad * K * 2          # input rows (bf16)
                        + K * n_out * 2        # resident Toeplitz weight (bf16)
                        + m_pad * q * 2        # pooled output (bf16)
                        + 2 * n_out * 4))      # scale / shift (f32)

    out = pl.pallas_call(
        conv_bn_relu_pool_kernel,
        out_shape=jax.ShapeDtypeStruct((m_pad, q), jnp.bfloat16),
        grid=(m_pad // bm,),
        in_specs=[
            pl.BlockSpec((bm, K), lambda i: (i, 0)),
            pl.BlockSpec((K, n_out), lambda i: (0, 0)),
            pl.BlockSpec((1, n_out), lambda i: (0, 0)),
            pl.BlockSpec((1, n_out), lambda i: (0, 0)),
        ],
        out_specs=pl.BlockSpec((bm, q), lambda i: (i, 0)),
        compiler_params=pltpu.CompilerParams(
            dimension_semantics=("parallel",),          # megacore over rows
            vmem_limit_bytes=48 * 1024 * 1024),
        cost_estimate=cost,
    )(up, T, scale_v, shift_v)
    return out[:M]


def _linear(x2d, w_pad, b_pad, num_out):
    N, K = x2d.shape
    Cpad = w_pad.shape[1]                       # 128 (lane-dense)
    n_pad = _round_up(N, 16)
    tile_m = n_pad if n_pad <= 256 else 256
    n_pad = _round_up(n_pad, tile_m)
    xp = jnp.pad(x2d, ((0, n_pad - N), (0, 0)))

    cost = pl.CostEstimate(
        flops=2 * n_pad * K * Cpad, transcendentals=0,
        bytes_accessed=n_pad * K * 2 + K * Cpad * 2 + n_pad * Cpad * 4)

    out = pl.pallas_call(
        fc_kernel,
        out_shape=jax.ShapeDtypeStruct((n_pad, Cpad), jnp.float32),
        grid=(n_pad // tile_m,),
        in_specs=[
            pl.BlockSpec((tile_m, K), lambda i: (i, 0)),
            pl.BlockSpec((K, Cpad), lambda i: (0, 0)),
            pl.BlockSpec((1, Cpad), lambda i: (0, 0)),
        ],
        out_specs=pl.BlockSpec((tile_m, Cpad), lambda i: (i, 0)),
        compiler_params=pltpu.CompilerParams(
            dimension_semantics=("parallel",),
            vmem_limit_bytes=48 * 1024 * 1024),
        cost_estimate=cost,
    )(xp, w_pad, b_pad)
    return out[:N, :num_out]


# ---------------------------------------------------------------------------
# Load-time weight folding (host-side, done once; not part of the forward)
# ---------------------------------------------------------------------------
def _build_fused_toeplitz(w_conv, H, W, pad=2, lane_tile=128):
    """Fold a torch (Cout, Cin, 5, 5) conv weight into a single block-Toeplitz
    operand of shape (6*Wp*Cin, 4*Q), Q = round_up((W//2)*Cout, 128), whose
    4 output-lane groups are the (h-phase, w-phase) members of each 2x2
    pooling window.  Row layout: r*Wp*Cin + x*Cin + c  (r = padded image row
    offset within the 6-row window, x = padded column)."""
    Cout, Cin, k, _ = w_conv.shape
    Wp = W + 2 * pad
    W2 = W // 2
    half = W2 * Cout
    q = _round_up(half, lane_tile)
    K = (k + 1) * Wp * Cin
    wnp = np.asarray(w_conv, np.float32)
    T = np.zeros((K, 4 * q), np.float32)
    for hp in range(2):
        for wp in range(2):
            p = 2 * hp + wp
            for i in range(k):
                r = hp + i
                for j in range(k):
                    blk = wnp[:, :, i, j].T                  # (Cin, Cout)
                    for w2 in range(W2):
                        x = 2 * w2 + wp + j                  # padded column
                        row0 = (r * Wp + x) * Cin
                        col0 = p * q + w2 * Cout
                        T[row0:row0 + Cin, col0:col0 + Cout] = blk
    return T, half, q


def prepare_params(params):
    """Fold BN(eval)+conv-bias into per-lane scale/shift, conv weights into
    bf16 pool-phase-merged block-Toeplitz operands, and the FC weight into the
    layer-2 output layout (h2*256 + w2*32 + c, zero rows on pad lanes) padded
    to 128 output lanes."""
    def fold_layer(w, b, gamma, beta, mean, var, H, W):
        W2 = W // 2
        scale_c = np.asarray(gamma) / np.sqrt(np.asarray(var) + 1e-5)
        shift_c = np.asarray(beta) + scale_c * (np.asarray(b) - np.asarray(mean))
        T, half, q = _build_fused_toeplitz(w, H, W)
        sc = np.zeros(q, np.float32); sc[:half] = np.tile(scale_c, W2)
        sh = np.zeros(q, np.float32); sh[:half] = np.tile(shift_c, W2)
        return (jnp.asarray(T, jnp.bfloat16),
                jnp.asarray(np.tile(sc, 4).reshape(1, -1)),
                jnp.asarray(np.tile(sh, 4).reshape(1, -1)))

    l1 = fold_layer(*params["l1"], H=28, W=28)
    l2 = fold_layer(*params["l2"], H=14, W=14)

    # FC: reorder columns from NCHW-flatten (c,h,w) to layer-2's stored layout
    # h2*q2 + w2*Cout + c, with zero rows for the lane-pad positions.
    wfc = np.asarray(params["fc"][0], np.float32)   # (10, 1568)
    bfc = np.asarray(params["fc"][1], np.float32)
    n_cls = wfc.shape[0]
    Cout2, H2, W2 = 32, 7, 7
    q2 = _round_up(W2 * Cout2, 128)                 # 256
    w_perm = wfc.reshape(n_cls, Cout2, H2, W2).transpose(0, 2, 3, 1)  # (k,h,w,c)
    W_full = np.zeros((H2 * q2, 128), np.float32)
    for h in range(H2):
        W_full[h * q2:h * q2 + W2 * Cout2, :n_cls] = \
            w_perm[:, h].reshape(n_cls, W2 * Cout2).T
    b_pad = np.zeros((1, 128), np.float32)
    b_pad[0, :n_cls] = bfc
    return {"l1": l1, "l2": l2,
            "fc": (jnp.asarray(W_full, jnp.bfloat16), jnp.asarray(b_pad))}


# ---------------------------------------------------------------------------
# Forward pass
# ---------------------------------------------------------------------------
def _unroll_rows(xpad, h2):
    """(N, Hp, L) padded slab -> (N*h2, 6*L) K-folded rows (strided slices +
    one concat in XLA; a few KB per image)."""
    n = xpad.shape[0]
    u = jnp.concatenate([xpad[:, r:r + 2 * h2:2, :] for r in range(6)], axis=-1)
    return u.reshape(n * h2, 6 * xpad.shape[2])


def convnet_forward(x_nchw, prep):
    N = x_nchw.shape[0]
    # Layer 1 glue: NCHW -> zero-padded NHWC slab -> K-folded rows (bf16).
    x = jnp.transpose(x_nchw, (0, 2, 3, 1))                       # (N,28,28,1)
    xp = jnp.pad(x, ((0, 0), (2, 2), (2, 2), (0, 0)))
    xp = xp.reshape(N, 32, 32).astype(jnp.bfloat16)               # lane = x*Cin+c
    u1 = _unroll_rows(xp, 14)                                     # (N*14, 192)
    p1 = _conv_layer(u1, *prep["l1"])                             # (N*14, 256) bf16

    # Layer 2 glue: pooled L1 rows -> padded (18, 288) slab -> K-folded rows.
    a1 = p1.reshape(N, 14, 256)[:, :, :224]                       # w2*16 + c
    a1 = jnp.pad(a1, ((0, 0), (2, 2), (32, 32)))                  # (N, 18, 288)
    u2 = _unroll_rows(a1, 7)                                      # (N*7, 1728)
    p2 = _conv_layer(u2, *prep["l2"])                             # (N*7, 256) bf16

    # FC consumes layer-2's stored layout directly (pad lanes have zero weight
    # rows), so the only glue is a reshape.
    flat = p2.reshape(N, 7 * 256)
    return _linear(flat, *prep["fc"], num_classes)                # (N, 10)


# ---------------------------------------------------------------------------
# Pure-JAX reference (mirrors the PyTorch forward, eval-mode BatchNorm)
# ---------------------------------------------------------------------------
def reference_forward(x, params):
    def layer(x, w, b, gamma, beta, mean, var):
        y = jax.lax.conv_general_dilated(
            x, w, (1, 1), ((2, 2), (2, 2)),
            dimension_numbers=("NCHW", "OIHW", "NCHW"))
        y = y + b[None, :, None, None]
        y = (gamma[None, :, None, None] * (y - mean[None, :, None, None])
             / jnp.sqrt(var[None, :, None, None] + 1e-5)
             + beta[None, :, None, None])
        y = jnp.maximum(y, 0.0)
        N, C, H, W = y.shape
        return y.reshape(N, C, H // 2, 2, W // 2, 2).max(axis=(3, 5))

    o = layer(x, *params["l1"])
    o = layer(o, *params["l2"])
    o = o.reshape(o.shape[0], -1)
    return o @ params["fc"][0].T + params["fc"][1]


# ---------------------------------------------------------------------------
# Deterministic parameter construction (shapes from ConvNet.__init__)
# ---------------------------------------------------------------------------
def make_params(key):
    ks = jax.random.split(key, 14)

    def bn(kg, kb, km, kv, c):
        gamma = 1.0 + 0.1 * jax.random.normal(kg, (c,), jnp.float32)
        beta = 0.1 * jax.random.normal(kb, (c,), jnp.float32)
        mean = 0.1 * jax.random.normal(km, (c,), jnp.float32)
        var = 0.5 + jax.random.uniform(kv, (c,), jnp.float32)
        return gamma, beta, mean, var

    w1 = 0.1 * jax.random.normal(ks[0], (16, 1, 5, 5), jnp.float32)
    b1 = 0.1 * jax.random.normal(ks[1], (16,), jnp.float32)
    w2 = 0.1 * jax.random.normal(ks[2], (32, 16, 5, 5), jnp.float32)
    b2 = 0.1 * jax.random.normal(ks[3], (32,), jnp.float32)
    wfc = 0.05 * jax.random.normal(ks[4], (10, 7 * 7 * 32), jnp.float32)
    bfc = 0.05 * jax.random.normal(ks[5], (10,), jnp.float32)
    return {
        "l1": (w1, b1) + bn(ks[6], ks[7], ks[8], ks[9], 16),
        "l2": (w2, b2) + bn(ks[10], ks[11], ks[12], ks[13], 32),
        "fc": (wfc, bfc),
    }


if __name__ == "__main__":
    key = jax.random.PRNGKey(0)
    params = make_params(key)
    prep = prepare_params(params)          # one-time host-side weight folding
    # MNIST-shaped input (the 7*7*32 fc layer implies 28x28 spatial), small batch.
    x = jax.random.normal(jax.random.PRNGKey(1), (2, 1, 28, 28), jnp.float32)

    fwd = jax.jit(convnet_forward)
    logits = jax.block_until_ready(fwd(x, prep))

    assert logits.shape == (2, 10), logits.shape
    ref = jax.block_until_ready(reference_forward(x, params))
    assert jnp.all(jnp.isfinite(logits))
    assert jnp.allclose(logits, ref, rtol=5e-2, atol=5e-2), (
        float(jnp.max(jnp.abs(logits - ref))))

    print("KERNEL_OK")
</pallas_src>

<mosaic_0001>
module attributes {stable_mosaic.version = 11 : i64} {
  func.func @conv_bn_relu_pool_kernel(%arg0: i32, %arg1: memref<16x192xbf16, #tpu.memory_space<vmem>>, %arg2: memref<192x1024xbf16, #tpu.memory_space<vmem>>, %arg3: memref<1x1024xf32, #tpu.memory_space<vmem>>, %arg4: memref<1x1024xf32, #tpu.memory_space<vmem>>, %arg5: memref<16x256xbf16, #tpu.memory_space<vmem>>) attributes {dimension_semantics = [#tpu.dimension_semantics<parallel>], iteration_bounds = array<i64: 2>, scalar_prefetch = 0 : i64, scratch_operands = 0 : i64, tpu.core_type = #tpu.core_type<tc>, window_params = [{transform_indices = @transform_0, window_bounds = array<i64: 16, 192>}, {pipeline_mode = #tpu.pipeline_mode<synchronous>, transform_indices = @transform_1, window_bounds = array<i64: 192, 1024>}, {pipeline_mode = #tpu.pipeline_mode<synchronous>, transform_indices = @transform_2, window_bounds = array<i64: 1, 1024>}, {pipeline_mode = #tpu.pipeline_mode<synchronous>, transform_indices = @transform_3, window_bounds = array<i64: 1, 1024>}, {transform_indices = @transform_4, window_bounds = array<i64: 16, 256>}]} {
    %c0 = arith.constant 0 : index
    %c0_0 = arith.constant 0 : index
    %0 = vector.load %arg1[%c0, %c0_0] : memref<16x192xbf16, #tpu.memory_space<vmem>>, vector<16x192xbf16>
    %c0_1 = arith.constant 0 : index
    %c0_2 = arith.constant 0 : index
    %1 = vector.load %arg2[%c0_1, %c0_2] : memref<192x1024xbf16, #tpu.memory_space<vmem>>, vector<192x1024xbf16>
    %cst = arith.constant dense<0.000000e+00> : vector<16x1024xf32>
    %2 = tpu.matmul %0, %1, %cst {dimension_numbers = #tpu.dot_dimension_numbers<[1], [0], [0], [1], [0, 0, 1, 1], [], []>} : vector<16x192xbf16>, vector<192x1024xbf16>, vector<16x1024xf32> -> vector<16x1024xf32>
    %c0_3 = arith.constant 0 : index
    %c0_4 = arith.constant 0 : index
    %3 = vector.load %arg3[%c0_3, %c0_4] : memref<1x1024xf32, #tpu.memory_space<vmem>>, vector<1x1024xf32>
    %4 = vector.broadcast %3 : vector<1x1024xf32> to vector<16x1024xf32>
    %5 = arith.mulf %2, %4 : vector<16x1024xf32>
    %c0_5 = arith.constant 0 : index
    %c0_6 = arith.constant 0 : index
    %6 = vector.load %arg4[%c0_5, %c0_6] : memref<1x1024xf32, #tpu.memory_space<vmem>>, vector<1x1024xf32>
    %7 = vector.broadcast %6 : vector<1x1024xf32> to vector<16x1024xf32>
    %8 = arith.addf %5, %7 : vector<16x1024xf32>
    %cst_7 = arith.constant 0.000000e+00 : f32
    %9 = vector.broadcast %cst_7 : f32 to vector<16x1024xf32>
    %10 = arith.maximumf %8, %9 : vector<16x1024xf32>
    %11 = vector.extract_strided_slice %10 {offsets = [0, 0], sizes = [16, 256], strides = [1, 1]} : vector<16x1024xf32> to vector<16x256xf32>
    %12 = vector.extract_strided_slice %10 {offsets = [0, 256], sizes = [16, 256], strides = [1, 1]} : vector<16x1024xf32> to vector<16x256xf32>
    %13 = arith.maximumf %11, %12 : vector<16x256xf32>
    %14 = vector.extract_strided_slice %10 {offsets = [0, 512], sizes = [16, 256], strides = [1, 1]} : vector<16x1024xf32> to vector<16x256xf32>
    %15 = vector.extract_strided_slice %10 {offsets = [0, 768], sizes = [16, 256], strides = [1, 1]} : vector<16x1024xf32> to vector<16x256xf32>
    %16 = arith.maximumf %14, %15 : vector<16x256xf32>
    %17 = arith.maximumf %13, %16 : vector<16x256xf32>
    %18 = arith.truncf %17 : vector<16x256xf32> to vector<16x256xbf16>
    %c0_8 = arith.constant 0 : index
    %c0_9 = arith.constant 0 : index
    %19 = vector.load %arg5[%c0_8, %c0_9] : memref<16x256xbf16, #tpu.memory_space<vmem>>, vector<16x256xbf16>
    tpu.vector_store %arg5[%c0_8, %c0_9], %18 {strides = array<i32>} : memref<16x256xbf16, #tpu.memory_space<vmem>>, vector<16x256xbf16>,
    return
  }
  func.func @transform_0(%arg0: i32) -> (i32, i32) {
    %c0_i32 = arith.constant 0 : i32
    %c0_i32_0 = arith.constant 0 : i32
    return %arg0, %c0_i32 : i32, i32
  }
  func.func @transform_1(%arg0: i32) -> (i32, i32) {
    %c0_i32 = arith.constant 0 : i32
    %c0_i32_0 = arith.constant 0 : i32
    %c0_i32_1 = arith.constant 0 : i32
    return %c0_i32, %c0_i32_0 : i32, i32
  }
  func.func @transform_2(%arg0: i32) -> (i32, i32) {
    %c0_i32 = arith.constant 0 : i32
    %c0_i32_0 = arith.constant 0 : i32
    %c0_i32_1 = arith.constant 0 : i32
    return %c0_i32, %c0_i32_0 : i32, i32
  }
  func.func @transform_3(%arg0: i32) -> (i32, i32) {
    %c0_i32 = arith.constant 0 : i32
    %c0_i32_0 = arith.constant 0 : i32
    %c0_i32_1 = arith.constant 0 : i32
    return %c0_i32, %c0_i32_0 : i32, i32
  }
  func.func @transform_4(%arg0: i32) -> (i32, i32) {
    %c0_i32 = arith.constant 0 : i32
    %c0_i32_0 = arith.constant 0 : i32
    return %arg0, %c0_i32 : i32, i32
  }
}

module attributes {stable_mosaic.version = 11 : i64} {
  func.func @conv_bn_relu_pool_kernel(%arg0: i32, %arg1: memref<16x1728xbf16, #tpu.memory_space<vmem>>, %arg2: memref<1728x1024xbf16, #tpu.memory_space<vmem>>, %arg3: memref<1x1024xf32, #tpu.memory_space<vmem>>, %arg4: memref<1x1024xf32, #tpu.memory_space<vmem>>, %arg5: memref<16x256xbf16, #tpu.memory_space<vmem>>) attributes {dimension_semantics = [#tpu.dimension_semantics<parallel>], iteration_bounds = array<i64: 1>, scalar_prefetch = 0 : i64, scratch_operands = 0 : i64, tpu.core_type = #tpu.core_type<tc>, window_params = [{transform_indices = @transform_0, window_bounds = array<i64: 16, 1728>}, {pipeline_mode = #tpu.pipeline_mode<synchronous>, transform_indices = @transform_1, window_bounds = array<i64: 1728, 1024>}, {pipeline_mode = #tpu.pipeline_mode<synchronous>, transform_indices = @transform_2, window_bounds = array<i64: 1, 1024>}, {pipeline_mode = #tpu.pipeline_mode<synchronous>, transform_indices = @transform_3, window_bounds = array<i64: 1, 1024>}, {transform_indices = @transform_4, window_bounds = array<i64: 16, 256>}]} {
    %c0 = arith.constant 0 : index
    %c0_0 = arith.constant 0 : index
    %0 = vector.load %arg1[%c0, %c0_0] : memref<16x1728xbf16, #tpu.memory_space<vmem>>, vector<16x1728xbf16>
    %c0_1 = arith.constant 0 : index
    %c0_2 = arith.constant 0 : index
    %1 = vector.load %arg2[%c0_1, %c0_2] : memref<1728x1024xbf16, #tpu.memory_space<vmem>>, vector<1728x1024xbf16>
    %cst = arith.constant dense<0.000000e+00> : vector<16x1024xf32>
    %2 = tpu.matmul %0, %1, %cst {dimension_numbers = #tpu.dot_dimension_numbers<[1], [0], [0], [1], [0, 0, 1, 1], [], []>} : vector<16x1728xbf16>, vector<1728x1024xbf16>, vector<16x1024xf32> -> vector<16x1024xf32>
    %c0_3 = arith.constant 0 : index
    %c0_4 = arith.constant 0 : index
    %3 = vector.load %arg3[%c0_3, %c0_4] : memref<1x1024xf32, #tpu.memory_space<vmem>>, vector<1x1024xf32>
    %4 = vector.broadcast %3 : vector<1x1024xf32> to vector<16x1024xf32>
    %5 = arith.mulf %2, %4 : vector<16x1024xf32>
    %c0_5 = arith.constant 0 : index
    %c0_6 = arith.constant 0 : index
    %6 = vector.load %arg4[%c0_5, %c0_6] : memref<1x1024xf32, #tpu.memory_space<vmem>>, vector<1x1024xf32>
    %7 = vector.broadcast %6 : vector<1x1024xf32> to vector<16x1024xf32>
    %8 = arith.addf %5, %7 : vector<16x1024xf32>
    %cst_7 = arith.constant 0.000000e+00 : f32
    %9 = vector.broadcast %cst_7 : f32 to vector<16x1024xf32>
    %10 = arith.maximumf %8, %9 : vector<16x1024xf32>
    %11 = vector.extract_strided_slice %10 {offsets = [0, 0], sizes = [16, 256], strides = [1, 1]} : vector<16x1024xf32> to vector<16x256xf32>
    %12 = vector.extract_strided_slice %10 {offsets = [0, 256], sizes = [16, 256], strides = [1, 1]} : vector<16x1024xf32> to vector<16x256xf32>
    %13 = arith.maximumf %11, %12 : vector<16x256xf32>
    %14 = vector.extract_strided_slice %10 {offsets = [0, 512], sizes = [16, 256], strides = [1, 1]} : vector<16x1024xf32> to vector<16x256xf32>
    %15 = vector.extract_strided_slice %10 {offsets = [0, 768], sizes = [16, 256], strides = [1, 1]} : vector<16x1024xf32> to vector<16x256xf32>
    %16 = arith.maximumf %14, %15 : vector<16x256xf32>
    %17 = arith.maximumf %13, %16 : vector<16x256xf32>
    %18 = arith.truncf %17 : vector<16x256xf32> to vector<16x256xbf16>
    %c0_8 = arith.constant 0 : index
    %c0_9 = arith.constant 0 : index
    %19 = vector.load %arg5[%c0_8, %c0_9] : memref<16x256xbf16, #tpu.memory_space<vmem>>, vector<16x256xbf16>
    tpu.vector_store %arg5[%c0_8, %c0_9], %18 {strides = array<i32>} : memref<16x256xbf16, #tpu.memory_space<vmem>>, vector<16x256xbf16>,
    return
  }
  func.func @transform_0(%arg0: i32) -> (i32, i32) {
    %c0_i32 = arith.constant 0 : i32
    %c0_i32_0 = arith.constant 0 : i32
    return %arg0, %c0_i32 : i32, i32
  }
  func.func @transform_1(%arg0: i32) -> (i32, i32) {
    %c0_i32 = arith.constant 0 : i32
    %c0_i32_0 = arith.constant 0 : i32
    %c0_i32_1 = arith.constant 0 : i32
    return %c0_i32, %c0_i32_0 : i32, i32
  }
  func.func @transform_2(%arg0: i32) -> (i32, i32) {
    %c0_i32 = arith.constant 0 : i32
    %c0_i32_0 = arith.constant 0 : i32
    %c0_i32_1 = arith.constant 0 : i32
    return %c0_i32, %c0_i32_0 : i32, i32
  }
  func.func @transform_3(%arg0: i32) -> (i32, i32) {
    %c0_i32 = arith.constant 0 : i32
    %c0_i32_0 = arith.constant 0 : i32
    %c0_i32_1 = arith.constant 0 : i32
    return %c0_i32, %c0_i32_0 : i32, i32
  }
  func.func @transform_4(%arg0: i32) -> (i32, i32) {
    %c0_i32 = arith.constant 0 : i32
    %c0_i32_0 = arith.constant 0 : i32
    return %arg0, %c0_i32 : i32, i32
  }
}

module attributes {stable_mosaic.version = 11 : i64} {
  func.func @fc_kernel(%arg0: i32, %arg1: memref<16x1792xbf16, #tpu.memory_space<vmem>>, %arg2: memref<1792x128xbf16, #tpu.memory_space<vmem>>, %arg3: memref<1x128xf32, #tpu.memory_space<vmem>>, %arg4: memref<16x128xf32, #tpu.memory_space<vmem>>) attributes {dimension_semantics = [#tpu.dimension_semantics<parallel>], iteration_bounds = array<i64: 1>, scalar_prefetch = 0 : i64, scratch_operands = 0 : i64, tpu.core_type = #tpu.core_type<tc>, window_params = [{transform_indices = @transform_0, window_bounds = array<i64: 16, 1792>}, {pipeline_mode = #tpu.pipeline_mode<synchronous>, transform_indices = @transform_1, window_bounds = array<i64: 1792, 128>}, {pipeline_mode = #tpu.pipeline_mode<synchronous>, transform_indices = @transform_2, window_bounds = array<i64: 1, 128>}, {transform_indices = @transform_3, window_bounds = array<i64: 16, 128>}]} {
    %c0 = arith.constant 0 : index
    %c0_0 = arith.constant 0 : index
    %0 = vector.load %arg1[%c0, %c0_0] : memref<16x1792xbf16, #tpu.memory_space<vmem>>, vector<16x1792xbf16>
    %c0_1 = arith.constant 0 : index
    %c0_2 = arith.constant 0 : index
    %1 = vector.load %arg2[%c0_1, %c0_2] : memref<1792x128xbf16, #tpu.memory_space<vmem>>, vector<1792x128xbf16>
    %cst = arith.constant dense<0.000000e+00> : vector<16x128xf32>
    %2 = tpu.matmul %0, %1, %cst {dimension_numbers = #tpu.dot_dimension_numbers<[1], [0], [0], [1], [0, 0, 1, 1], [], []>} : vector<16x1792xbf16>, vector<1792x128xbf16>, vector<16x128xf32> -> vector<16x128xf32>
    %c0_3 = arith.constant 0 : index
    %c0_4 = arith.constant 0 : index
    %3 = vector.load %arg3[%c0_3, %c0_4] : memref<1x128xf32, #tpu.memory_space<vmem>>, vector<1x128xf32>
    %4 = vector.broadcast %3 : vector<1x128xf32> to vector<16x128xf32>
    %5 = arith.addf %2, %4 : vector<16x128xf32>
    %c0_5 = arith.constant 0 : index
    %c0_6 = arith.constant 0 : index
    %6 = vector.load %arg4[%c0_5, %c0_6] : memref<16x128xf32, #tpu.memory_space<vmem>>, vector<16x128xf32>
    tpu.vector_store %arg4[%c0_5, %c0_6], %5 {strides = array<i32>} : memref<16x128xf32, #tpu.memory_space<vmem>>, vector<16x128xf32>,
    return
  }
  func.func @transform_0(%arg0: i32) -> (i32, i32) {
    %c0_i32 = arith.constant 0 : i32
    %c0_i32_0 = arith.constant 0 : i32
    return %arg0, %c0_i32 : i32, i32
  }
  func.func @transform_1(%arg0: i32) -> (i32, i32) {
    %c0_i32 = arith.constant 0 : i32
    %c0_i32_0 = arith.constant 0 : i32
    %c0_i32_1 = arith.constant 0 : i32
    return %c0_i32, %c0_i32_0 : i32, i32
  }
  func.func @transform_2(%arg0: i32) -> (i32, i32) {
    %c0_i32 = arith.constant 0 : i32
    %c0_i32_0 = arith.constant 0 : i32
    %c0_i32_1 = arith.constant 0 : i32
    return %c0_i32, %c0_i32_0 : i32, i32
  }
  func.func @transform_3(%arg0: i32) -> (i32, i32) {
    %c0_i32 = arith.constant 0 : i32
    %c0_i32_0 = arith.constant 0 : i32
    return %arg0, %c0_i32 : i32, i32
  }
}

</mosaic_0001>

<llo_original>
// kernel: convnet_forward.3
$region0: #{convnet_forward.3}
  #allocation0 [shape = 'u32[]', space=smem, size = 0x4, offset = 0x4, fixed_abs, tag = 'smem constant byte address 0x4 - core index']
  #allocation1 [shape = 'u32[144,128]{1,0:T(1,128)}', space=vmem, size = 0x12000, scoped, tag = 'internal scratch']
  %s0 = inlined_call_operand.vmem [shape: bf16[32,192], index: 0, kind: input, shape index: {}]
  %s1 = inlined_call_operand.hbm [shape: bf16[192,1024], index: 1, kind: input, shape index: {}]
  %s2 = inlined_call_operand.hbm [shape: f32[1,1024], index: 2, kind: input, shape index: {}]
  %s3 = inlined_call_operand.hbm [shape: f32[1,1024], index: 3, kind: input, shape index: {}]
  %s4 = inlined_call_operand.vmem [shape: bf16[32,256], index: 4, kind: output, shape index: {}]
  %s5 = sld [smem:[#allocation0]]
  $region61: #{convnet_forward.3} parent=0
    _
  %s7 = ssub.s32 1, %s5
  %s8 = scalar_select 0, %s7, %s5
  $region1: #{convnet_forward.3} parent=0
    #allocation2 [shape = 'u8[393216]{0}', space=vmem, size = 0x60000, scoped, tag = 'input window, operand 1, single buffered']
    #allocation3 [shape = 's32[2]{0}', space=sflag, size = 0x8, scoped, tag = 'scoped memory for convnet_forward.3']
    #allocation4 [shape = 'u8[4096]{0}', space=vmem, size = 0x1000, scoped, tag = 'input window, operand 2, single buffered']
    #allocation5 [shape = 's32[1]{0}', space=sflag, size = 0x4, scoped, tag = 'scoped memory for convnet_forward.3']
    #allocation6 [shape = 'u8[4096]{0}', space=vmem, size = 0x1000, scoped, tag = 'input window, operand 3, single buffered']
    %9 = vsyncpa [#allocation3], 0
    %10 = vsyncpa [#allocation5], 0
    loop: start=0, step=1, limit=4
    $region2: #{convnet_forward.3} parent=1 // loop_pre_header
      _
    $region3: #{convnet_forward.3} parent=1 // loop_header
      %s12 = sphi 0, %s16
      %p13 = scmp.ge.s32.totalorder %s12, 4
      %s22 = sphi 0, %s24
      %s25 = sphi 0, %s22
      %s26 = sphi 0, %s25
      %s42 = sphi 0, %s26
      %s46 = sphi 0, %s46
      %s48 = sphi 0, %s46
      %s49 = sphi 0, %s48
      %s63 = sphi 0, %s49
      %s67 = sphi 0, %s67
      %s69 = sphi 0, %s67
      %s70 = sphi 0, %s69
      %s84 = sphi 0, %s70
      %s88 = sphi 0, %s88
      %s90 = sphi 0, %s88
      %s91 = sphi 0, %s90
      %s105 = sphi 0, %s91
      %s111 = sphi 0, %s113
      %s114 = sphi 0, %s111
      %s115 = sphi 0, %s114
      %s131 = sphi 0, %s115
    $region4: #{convnet_forward.3} parent=1 // loop_header_branch
      %15 = sbr.rel (%p13) target = $region8
    $region5: #{convnet_forward.3} parent=1 // loop_body
      %s17 = ssub.s32 %s12, 1
      %s18 = ssub.s32 %s12, 2
      %s19 = sadd.s32 %s12, 1
      %s20 = ssub.s32 %s12, %s19
      %p21 = scmp.eq.s32.totalorder %s20, 0
      %s23 = sadd.s32 %s22, 1
      %s24 = scalar_select %p21, %s22, %s23
      %p27 = pneg %p21
      %p28 = scmp.eq.s32.totalorder %s12, 1
      %p29 = por %p27, %p28
      %p30 = scmp.ne.s32.totalorder %s22, %s25
      %p31 = scmp.eq.s32.totalorder %s12, 0
      %p32 = por %p30, %p31
      %p33 = scmp.ne.s32.totalorder %s22, %s25
      %p34 = scmp.eq.s32.totalorder %s17, 1
      %p35 = por %p33, %p34
      %p36 = scmp.ne.s32.totalorder %s25, %s26
      %p37 = scmp.eq.s32.totalorder %s17, 0
      %p38 = por %p36, %p37
      %p39 = scmp.ne.s32.totalorder %s25, %s26
      %p40 = scmp.eq.s32.totalorder %s18, 1
      %p41 = por %p39, %p40
      %p43 = scmp.ne.s32.totalorder %s26, %s42
      %p44 = scmp.eq.s32.totalorder %s18, 0
      %p45 = por %p43, %p44
      %s47 = sadd.s32 %s46, 1
      %p50 = scmp.eq.s32.totalorder %s12, 1
      %p51 = scmp.ne.s32.totalorder %s46, %s48
      %p52 = scmp.eq.s32.totalorder %s12, 0
      %p53 = por %p51, %p52
      %p54 = scmp.ne.s32.totalorder %s46, %s48
      %p55 = scmp.eq.s32.totalorder %s17, 1
      %p56 = por %p54, %p55
      %p57 = scmp.ne.s32.totalorder %s48, %s49
      %p58 = scmp.eq.s32.totalorder %s17, 0
      %p59 = por %p57, %p58
      %p60 = scmp.ne.s32.totalorder %s48, %s49
      %p61 = scmp.eq.s32.totalorder %s18, 1
      %p62 = por %p60, %p61
      %p64 = scmp.ne.s32.totalorder %s49, %s63
      %p65 = scmp.eq.s32.totalorder %s18, 0
      %p66 = por %p64, %p65
      %s68 = sadd.s32 %s67, 1
      %p71 = scmp.eq.s32.totalorder %s12, 1
      %p72 = scmp.ne.s32.totalorder %s67, %s69
      %p73 = scmp.eq.s32.totalorder %s12, 0
      %p74 = por %p72, %p73
      %p75 = scmp.ne.s32.totalorder %s67, %s69
      %p76 = scmp.eq.s32.totalorder %s17, 1
      %p77 = por %p75, %p76
      %p78 = scmp.ne.s32.totalorder %s69, %s70
      %p79 = scmp.eq.s32.totalorder %s17, 0
      %p80 = por %p78, %p79
      %p81 = scmp.ne.s32.totalorder %s69, %s70
      %p82 = scmp.eq.s32.totalorder %s18, 1
      %p83 = por %p81, %p82
      %p85 = scmp.ne.s32.totalorder %s70, %s84
      %p86 = scmp.eq.s32.totalorder %s18, 0
      %p87 = por %p85, %p86
      %s89 = sadd.s32 %s88, 1
      %p92 = scmp.eq.s32.totalorder %s12, 1
      %p93 = scmp.ne.s32.totalorder %s88, %s90
      %p94 = scmp.eq.s32.totalorder %s12, 0
      %p95 = por %p93, %p94
      %p96 = scmp.ne.s32.totalorder %s88, %s90
      %p97 = scmp.eq.s32.totalorder %s17, 1
      %p98 = por %p96, %p97
      %p99 = scmp.ne.s32.totalorder %s90, %s91
      %p100 = scmp.eq.s32.totalorder %s17, 0
      %p101 = por %p99, %p100
      %p102 = scmp.ne.s32.totalorder %s90, %s91
      %p103 = scmp.eq.s32.totalorder %s18, 1
      %p104 = por %p102, %p103
      %p106 = scmp.ne.s32.totalorder %s91, %s105
      %p107 = scmp.eq.s32.totalorder %s18, 0
      %p108 = por %p106, %p107
      %s109 = ssub.s32 %s12, %s19
      %p110 = scmp.eq.s32.totalorder %s109, 0
      %s112 = sadd.s32 %s111, 1
      %s113 = scalar_select %p110, %s111, %s112
      %p116 = pneg %p110
      %p117 = scmp.eq.s32.totalorder %s12, 1
      %p118 = por %p116, %p117
      %p119 = scmp.ne.s32.totalorder %s111, %s114
      %p120 = scmp.eq.s32.totalorder %s12, 0
      %p121 = por %p119, %p120
      %p122 = scmp.ne.s32.totalorder %s111, %s114
      %p123 = scmp.eq.s32.totalorder %s17, 1
      %p124 = por %p122, %p123
      %p125 = scmp.ne.s32.totalorder %s114, %s115
      %p126 = scmp.eq.s32.totalorder %s17, 0
      %p127 = por %p125, %p126
      %p128 = scmp.ne.s32.totalorder %s114, %s115
      %p129 = scmp.eq.s32.totalorder %s18, 1
      %p130 = por %p128, %p129
      %p132 = scmp.ne.s32.totalorder %s115, %s131
      %p133 = scmp.eq.s32.totalorder %s18, 0
      %p134 = por %p132, %p133
      %p135 = scmp.le.s32.totalorder 1, %s12
      %p136 = scmp.lt.s32.totalorder %s12, 3
      %p137 = pnand %p135, %p136
      %p138 = pneg %p137
      // Predicated region
      $region9: #{convnet_forward.3} parent=5 // pred_check
        _
      $region10: #{convnet_forward.3} parent=5 // pred_check_branch
        %140 = sbr.rel (%p137) target = $region12
      $region11: #{convnet_forward.3} parent=5 // pred_region
        %s141 = ssub.s32 %s12, 1
        // Predicated region
        $region13: #{convnet_forward.3} parent=11 // pred_check
          %p142 = pneg %p59
        $region14: #{convnet_forward.3} parent=11 // pred_check_branch
          %144 = sbr.rel (%p142) target = $region16
        $region15: #{convnet_forward.3} parent=11 // pred_region
          %s146 = ssub.s32 12288, 12288
          %147 = vsyncadd [#allocation3], %s146
          %s148 = sshll.u32 [#allocation2], 4
          %s149 = int_to_ptr.vmem [resolvable:$true] %s148
          %154 = dma.hbm_to_vmem [thread:$0]  %s1, 12288, %s149, [#allocation3], 512, 512, 32
        $region16: #{convnet_forward.3} parent=11 // pred_fallthru
          _
        // Predicated region
        $region17: #{convnet_forward.3} parent=11 // pred_check
          %p155 = pneg %p80
        $region18: #{convnet_forward.3} parent=11 // pred_check_branch
          %157 = sbr.rel (%p155) target = $region20
        $region19: #{convnet_forward.3} parent=11 // pred_region
          %s159 = ssub.s32 128, 128
          %160 = vsyncadd [#allocation5], %s159
          %s162 = sshll.u32 [#allocation4], 4
          %s163 = int_to_ptr.vmem [resolvable:$true] %s162
          %165 = dma.hbm_to_vmem [thread:$0]  %s2, 128, %s163, [#allocation5]
        $region20: #{convnet_forward.3} parent=11 // pred_fallthru
          _
        // Predicated region
        $region21: #{convnet_forward.3} parent=11 // pred_check
          %p166 = pneg %p101
        $region22: #{convnet_forward.3} parent=11 // pred_check_branch
          %168 = sbr.rel (%p166) target = $region24
        $region23: #{convnet_forward.3} parent=11 // pred_region
          %s170 = ssub.s32 128, 128
          %171 = vsyncadd [#allocation5], %s170
          %s173 = sshll.u32 [#allocation6], 4
          %s174 = int_to_ptr.vmem [resolvable:$true] %s173
          %176 = dma.hbm_to_vmem [thread:$0]  %s3, 128, %s174, [#allocation5]
        $region24: #{convnet_forward.3} parent=11 // pred_fallthru
          _
      $region12: #{convnet_forward.3} parent=5 // pred_fallthru
        _
      %p177 = scmp.lt.s32.totalorder %s12, 2
      // Predicated region
      $region25: #{convnet_forward.3} parent=5 // pred_check
        %p178 = pneg %p177
      $region26: #{convnet_forward.3} parent=5 // pred_check_branch
        %180 = sbr.rel (%p178) target = $region28
      $region27: #{convnet_forward.3} parent=5 // pred_region
        // Predicated region
        $region29: #{convnet_forward.3} parent=27 // pred_check
          %p181 = pneg %p32
        $region30: #{convnet_forward.3} parent=27 // pred_check_branch
          %183 = sbr.rel (%p181) target = $region32
        $region31: #{convnet_forward.3} parent=27 // pred_region
          %s184 = smul.u32 2, %s12
          %p185 = scmp.lt.s32.totalorder %s184, 3
          %s186 = scalar_select %p185, %s184, 3
          %s187 = smul.addr %s186, 2
          %s188 = smul.addr %s187, 4
          %s189 = scalar_lea.vmem %s0, %s188
          %s190 = smul.u32 2, %s12
        $region32: #{convnet_forward.3} parent=27 // pred_fallthru
          _
      $region28: #{convnet_forward.3} parent=5 // pred_fallthru
        _
      %p191 = scmp.le.s32.totalorder 1, %s12
      %p192 = scmp.lt.s32.totalorder %s12, 3
      %p193 = pnand %p191, %p192
      %p194 = pneg %p193
      // Predicated region
      $region33: #{convnet_forward.3} parent=5 // pred_check
        _
      $region34: #{convnet_forward.3} parent=5 // pred_check_branch
        %196 = sbr.rel (%p193) target = $region36
      $region35: #{convnet_forward.3} parent=5 // pred_region
        %s197 = ssub.s32 %s12, 1
        // Predicated region
        $region37: #{convnet_forward.3} parent=35 // pred_check
          %p198 = pneg %p59
        $region38: #{convnet_forward.3} parent=35 // pred_check_branch
          %200 = sbr.rel (%p198) target = $region40
        $region39: #{convnet_forward.3} parent=35 // pred_region
          %201 = dma.done [#allocation3], 12288
        $region40: #{convnet_forward.3} parent=35 // pred_fallthru
          _
        // Predicated region
        $region41: #{convnet_forward.3} parent=35 // pred_check
          %p202 = pneg %p80
        $region42: #{convnet_forward.3} parent=35 // pred_check_branch
          %204 = sbr.rel (%p202) target = $region44
        $region43: #{convnet_forward.3} parent=35 // pred_region
          %205 = dma.done [#allocation5], 128
        $region44: #{convnet_forward.3} parent=35 // pred_fallthru
          _
        // Predicated region
        $region45: #{convnet_forward.3} parent=35 // pred_check
          %p206 = pneg %p101
        $region46: #{convnet_forward.3} parent=35 // pred_check_branch
          %208 = sbr.rel (%p206) target = $region48
        $region47: #{convnet_forward.3} parent=35 // pred_region
          %209 = dma.done [#allocation5], 128
        $region48: #{convnet_forward.3} parent=35 // pred_fallthru
          _
        %s210 = smul.u32 2, %s17
        %p211 = scmp.lt.s32.totalorder %s210, 3
        %s212 = scalar_select %p211, %s210, 3
        %s213 = smul.addr %s212, 2
        %s214 = smul.addr %s213, 4
        %s215 = scalar_lea.vmem %s0, %s214
        %p216 = pneg %p38
        %p217 = pneg %p35
        %p218 = pneg %p59
        %p219 = pneg %p56
        %p220 = pneg %p80
        %p221 = pneg %p77
        %p222 = pneg %p101
        %p223 = pneg %p98
        %p224 = pneg %p127
        %p225 = pneg %p124
        %s226 = smul.u32 2, %s17
        %p227 = scmp.lt.s32.totalorder %s226, 3
        %s228 = scalar_select %p227, %s226, 3
        %s229 = smul.addr %s228, 2
        %s230 = smul.addr %s229, 4
        %s231 = scalar_lea.vmem %s4, %s230
        %s232 = smul.u32 2, %s17
        %p233 = scmp.lt.s32.totalorder %s232, 3
        %s234 = scalar_select %p233, %s232, 3
        %s235 = smul.addr %s234, 2
        %s236 = smul.addr %s235, 4
        %s237 = scalar_lea.vmem %s0, %s236
        %s238 = smul.u32 2, %s17
        %s239 = smul.u32 2, %s17
        %p240 = scmp.lt.s32.totalorder %s239, 3
        %s241 = scalar_select %p240, %s239, 3
        %s242 = smul.addr %s241, 2
        %s243 = smul.addr %s242, 4
        %s244 = scalar_lea.vmem %s4, %s243
        %s245 = smul.u32 2, %s17
        %v247 = vld [vmem:[%s237] sm:$0xff]
        %v248 = vld [vmem:[%s237 + $0x8] sm:$0xff]
        %v249 = vld [vmem:[#allocation2] sm:$0xff]
        %v250 = vld [vmem:[#allocation2 + $0x8] sm:$0xff]
        %v251 = vld [vmem:[#allocation2 + $0x10] sm:$0xff]
        %v252 = vld [vmem:[#allocation2 + $0x18] sm:$0xff]
        %v253 = vld [vmem:[#allocation2 + $0x20] sm:$0xff]
        %v254 = vld [vmem:[#allocation2 + $0x28] sm:$0xff]
        %v255 = vld [vmem:[#allocation2 + $0x30] sm:$0xff]
        %v256 = vld [vmem:[#allocation2 + $0x38] sm:$0xff]
        %v257 = vld [vmem:[#allocation2 + $0x40] sm:$0xff]
        %v258 = vld [vmem:[#allocation2 + $0x48] sm:$0xff]
        %v259 = vld [vmem:[#allocation2 + $0x50] sm:$0xff]
        %v260 = vld [vmem:[#allocation2 + $0x58] sm:$0xff]
        %v261 = vld [vmem:[#allocation2 + $0x60] sm:$0xff]
        %v262 = vld [vmem:[#allocation2 + $0x68] sm:$0xff]
        %v263 = vld [vmem:[#allocation2 + $0x70] sm:$0xff]
        %v264 = vld [vmem:[#allocation2 + $0x78] sm:$0xff]
        %v265 = vld [vmem:[#allocation2 + $0x80] sm:$0xff]
        %v266 = vld [vmem:[#allocation2 + $0x88] sm:$0xff]
        %v267 = vld [vmem:[#allocation2 + $0x90] sm:$0xff]
        %v268 = vld [vmem:[#allocation2 + $0x98] sm:$0xff]
        %v269 = vld [vmem:[#allocation2 + $0xa0] sm:$0xff]
        %v270 = vld [vmem:[#allocation2 + $0xa8] sm:$0xff]
        %v271 = vld [vmem:[#allocation2 + $0xb0] sm:$0xff]
        %v272 = vld [vmem:[#allocation2 + $0xb8] sm:$0xff]
        %v273 = vld [vmem:[#allocation2 + $0xc0] sm:$0xff]
        %v274 = vld [vmem:[#allocation2 + $0xc8] sm:$0xff]
        %v275 = vld [vmem:[#allocation2 + $0xd0] sm:$0xff]
        %v276 = vld [vmem:[#allocation2 + $0xd8] sm:$0xff]
        %v277 = vld [vmem:[#allocation2 + $0xe0] sm:$0xff]
        %v278 = vld [vmem:[#allocation2 + $0xe8] sm:$0xff]
        %v279 = vld [vmem:[#allocation2 + $0xf0] sm:$0xff]
        %v280 = vld [vmem:[#allocation2 + $0xf8] sm:$0xff]
        %v281 = vld [vmem:[#allocation2 + $0x100] sm:$0xff]
        %v282 = vld [vmem:[#allocation2 + $0x108] sm:$0xff]
        %v283 = vld [vmem:[#allocation2 + $0x110] sm:$0xff]
        %v284 = vld [vmem:[#allocation2 + $0x118] sm:$0xff]
        %v285 = vld [vmem:[#allocation2 + $0x120] sm:$0xff]
        %v286 = vld [vmem:[#allocation2 + $0x128] sm:$0xff]
        %v287 = vld [vmem:[#allocation2 + $0x130] sm:$0xff]
        %v288 = vld [vmem:[#allocation2 + $0x138] sm:$0xff]
        %v289 = vld [vmem:[#allocation2 + $0x140] sm:$0xff]
        %v290 = vld [vmem:[#allocation2 + $0x148] sm:$0xff]
        %v291 = vld [vmem:[#allocation2 + $0x150] sm:$0xff]
        %v292 = vld [vmem:[#allocation2 + $0x158] sm:$0xff]
        %v293 = vld [vmem:[#allocation2 + $0x160] sm:$0xff]
        %v294 = vld [vmem:[#allocation2 + $0x168] sm:$0xff]
        %v295 = vld [vmem:[#allocation2 + $0x170] sm:$0xff]
        %v296 = vld [vmem:[#allocation2 + $0x178] sm:$0xff]
        %v297 = vld [vmem:[#allocation2 + $0x180] sm:$0xff]
        %v298 = vld [vmem:[#allocation2 + $0x188] sm:$0xff]
        %v299 = vld [vmem:[#allocation2 + $0x190] sm:$0xff]
        %v300 = vld [vmem:[#allocation2 + $0x198] sm:$0xff]
        %v301 = vld [vmem:[#allocation2 + $0x1a0] sm:$0xff]
        %v302 = vld [vmem:[#allocation2 + $0x1a8] sm:$0xff]
        %v303 = vld [vmem:[#allocation2 + $0x1b0] sm:$0xff]
        %v304 = vld [vmem:[#allocation2 + $0x1b8] sm:$0xff]
        %v305 = vld [vmem:[#allocation2 + $0x1c0] sm:$0xff]
        %v306 = vld [vmem:[#allocation2 + $0x1c8] sm:$0xff]
        %v307 = vld [vmem:[#allocation2 + $0x1d0] sm:$0xff]
        %v308 = vld [vmem:[#allocation2 + $0x1d8] sm:$0xff]
        %v309 = vld [vmem:[#allocation2 + $0x1e0] sm:$0xff]
        %v310 = vld [vmem:[#allocation2 + $0x1e8] sm:$0xff]
        %v311 = vld [vmem:[#allocation2 + $0x1f0] sm:$0xff]
        %v312 = vld [vmem:[#allocation2 + $0x1f8] sm:$0xff]
        %v313 = vld [vmem:[#allocation2 + $0x200] sm:$0xff]
        %v314 = vld [vmem:[#allocation2 + $0x208] sm:$0xff]
        %v315 = vld [vmem:[#allocation2 + $0x210] sm:$0xff]
        %v316 = vld [vmem:[#allocation2 + $0x218] sm:$0xff]
        %v317 = vld [vmem:[#allocation2 + $0x220] sm:$0xff]
        %v318 = vld [vmem:[#allocation2 + $0x228] sm:$0xff]
        %v319 = vld [vmem:[#allocation2 + $0x230] sm:$0xff]
        %v320 = vld [vmem:[#allocation2 + $0x238] sm:$0xff]
        %v321 = vld [vmem:[#allocation2 + $0x240] sm:$0xff]
        %v322 = vld [vmem:[#allocation2 + $0x248] sm:$0xff]
        %v323 = vld [vmem:[#allocation2 + $0x250] sm:$0xff]
        %v324 = vld [vmem:[#allocation2 + $0x258] sm:$0xff]
        %v325 = vld [vmem:[#allocation2 + $0x260] sm:$0xff]
        %v326 = vld [vmem:[#allocation2 + $0x268] sm:$0xff]
        %v327 = vld [vmem:[#allocation2 + $0x270] sm:$0xff]
        %v328 = vld [vmem:[#allocation2 + $0x278] sm:$0xff]
        %v329 = vld [vmem:[#allocation2 + $0x280] sm:$0xff]
        %v330 = vld [vmem:[#allocation2 + $0x288] sm:$0xff]
        %v331 = vld [vmem:[#allocation2 + $0x290] sm:$0xff]
        %v332 = vld [vmem:[#allocation2 + $0x298] sm:$0xff]
        %v333 = vld [vmem:[#allocation2 + $0x2a0] sm:$0xff]
        %v334 = vld [vmem:[#allocation2 + $0x2a8] sm:$0xff]
        %v335 = vld [vmem:[#allocation2 + $0x2b0] sm:$0xff]
        %v336 = vld [vmem:[#allocation2 + $0x2b8] sm:$0xff]
        %v337 = vld [vmem:[#allocation2 + $0x2c0] sm:$0xff]
        %v338 = vld [vmem:[#allocation2 + $0x2c8] sm:$0xff]
        %v339 = vld [vmem:[#allocation2 + $0x2d0] sm:$0xff]
        %v340 = vld [vmem:[#allocation2 + $0x2d8] sm:$0xff]
        %v341 = vld [vmem:[#allocation2 + $0x2e0] sm:$0xff]
        %v342 = vld [vmem:[#allocation2 + $0x2e8] sm:$0xff]
        %v343 = vld [vmem:[#allocation2 + $0x2f0] sm:$0xff]
        %v344 = vld [vmem:[#allocation2 + $0x2f8] sm:$0xff]
        %v347 = vunpack.c.l.b16 %v247
        %v348 = vunpack.c.h.b16 %v247
        %v349 = vunpack.c.l.b16 %v248
        %v350 = vunpack.c.h.b16 %v248
        %v351 = vpack.c.b16 %v349, %v347
        %v352 = vpack.c.b16 %v350, %v348
        %v450 = vunpack.c.l.b16 %v249
        %v451 = vunpack.c.h.b16 %v249
        %v452 = vunpack.c.l.b16 %v250
        %v453 = vunpack.c.h.b16 %v250
        %v454 = vunpack.c.l.b16 %v251
        %v455 = vunpack.c.h.b16 %v251
        %v456 = vunpack.c.l.b16 %v252
        %v457 = vunpack.c.h.b16 %v252
        %v458 = vunpack.c.l.b16 %v253
        %v459 = vunpack.c.h.b16 %v253
        %v460 = vunpack.c.l.b16 %v254
        %v461 = vunpack.c.h.b16 %v254
        %v462 = vunpack.c.l.b16 %v255
        %v463 = vunpack.c.h.b16 %v255
        %v464 = vunpack.c.l.b16 %v256
        %v465 = vunpack.c.h.b16 %v256
        %v466 = vunpack.c.l.b16 %v257
        %v467 = vunpack.c.h.b16 %v257
        %v468 = vunpack.c.l.b16 %v258
        %v469 = vunpack.c.h.b16 %v258
        %v470 = vunpack.c.l.b16 %v259
        %v471 = vunpack.c.h.b16 %v259
        %v472 = vunpack.c.l.b16 %v260
        %v473 = vunpack.c.h.b16 %v260
        %v474 = vunpack.c.l.b16 %v261
        %v475 = vunpack.c.h.b16 %v261
        %v476 = vunpack.c.l.b16 %v262
        %v477 = vunpack.c.h.b16 %v262
        %v478 = vunpack.c.l.b16 %v263
        %v479 = vunpack.c.h.b16 %v263
        %v480 = vunpack.c.l.b16 %v264
        %v481 = vunpack.c.h.b16 %v264
        %v482 = vunpack.c.l.b16 %v265
        %v483 = vunpack.c.h.b16 %v265
        %v484 = vunpack.c.l.b16 %v266
        %v485 = vunpack.c.h.b16 %v266
        %v486 = vunpack.c.l.b16 %v267
        %v487 = vunpack.c.h.b16 %v267
        %v488 = vunpack.c.l.b16 %v268
        %v489 = vunpack.c.h.b16 %v268
        %v490 = vunpack.c.l.b16 %v269
        %v491 = vunpack.c.h.b16 %v269
        %v492 = vunpack.c.l.b16 %v270
        %v493 = vunpack.c.h.b16 %v270
        %v494 = vunpack.c.l.b16 %v271
        %v495 = vunpack.c.h.b16 %v271
        %v496 = vunpack.c.l.b16 %v272
        %v497 = vunpack.c.h.b16 %v272
        %v498 = vunpack.c.l.b16 %v273
        %v499 = vunpack.c.h.b16 %v273
        %v500 = vunpack.c.l.b16 %v274
        %v501 = vunpack.c.h.b16 %v274
        %v502 = vunpack.c.l.b16 %v275
        %v503 = vunpack.c.h.b16 %v275
        %v504 = vunpack.c.l.b16 %v276
        %v505 = vunpack.c.h.b16 %v276
        %v506 = vunpack.c.l.b16 %v277
        %v507 = vunpack.c.h.b16 %v277
        %v508 = vunpack.c.l.b16 %v278
        %v509 = vunpack.c.h.b16 %v278
        %v510 = vunpack.c.l.b16 %v279
        %v511 = vunpack.c.h.b16 %v279
        %v512 = vunpack.c.l.b16 %v280
        %v513 = vunpack.c.h.b16 %v280
        %v514 = vunpack.c.l.b16 %v281
        %v515 = vunpack.c.h.b16 %v281
        %v516 = vunpack.c.l.b16 %v282
        %v517 = vunpack.c.h.b16 %v282
        %v518 = vunpack.c.l.b16 %v283
        %v519 = vunpack.c.h.b16 %v283
        %v520 = vunpack.c.l.b16 %v284
        %v521 = vunpack.c.h.b16 %v284
        %v522 = vunpack.c.l.b16 %v285
        %v523 = vunpack.c.h.b16 %v285
        %v524 = vunpack.c.l.b16 %v286
        %v525 = vunpack.c.h.b16 %v286
        %v526 = vunpack.c.l.b16 %v287
        %v527 = vunpack.c.h.b16 %v287
        %v528 = vunpack.c.l.b16 %v288
        %v529 = vunpack.c.h.b16 %v288
        %v530 = vunpack.c.l.b16 %v289
        %v531 = vunpack.c.h.b16 %v289
        %v532 = vunpack.c.l.b16 %v290
        %v533 = vunpack.c.h.b16 %v290
        %v534 = vunpack.c.l.b16 %v291
        %v535 = vunpack.c.h.b16 %v291
        %v536 = vunpack.c.l.b16 %v292
        %v537 = vunpack.c.h.b16 %v292
        %v538 = vunpack.c.l.b16 %v293
        %v539 = vunpack.c.h.b16 %v293
        %v540 = vunpack.c.l.b16 %v294
        %v541 = vunpack.c.h.b16 %v294
        %v542 = vunpack.c.l.b16 %v295
        %v543 = vunpack.c.h.b16 %v295
        %v544 = vunpack.c.l.b16 %v296
        %v545 = vunpack.c.h.b16 %v296
        %v546 = vunpack.c.l.b16 %v297
        %v547 = vunpack.c.h.b16 %v297
        %v548 = vunpack.c.l.b16 %v298
        %v549 = vunpack.c.h.b16 %v298
        %v550 = vunpack.c.l.b16 %v299
        %v551 = vunpack.c.h.b16 %v299
        %v552 = vunpack.c.l.b16 %v300
        %v553 = vunpack.c.h.b16 %v300
        %v554 = vunpack.c.l.b16 %v301
        %v555 = vunpack.c.h.b16 %v301
        %v556 = vunpack.c.l.b16 %v302
        %v557 = vunpack.c.h.b16 %v302
        %v558 = vunpack.c.l.b16 %v303
        %v559 = vunpack.c.h.b16 %v303
        %v560 = vunpack.c.l.b16 %v304
        %v561 = vunpack.c.h.b16 %v304
        %v562 = vunpack.c.l.b16 %v305
        %v563 = vunpack.c.h.b16 %v305
        %v564 = vunpack.c.l.b16 %v306
        %v565 = vunpack.c.h.b16 %v306
        %v566 = vunpack.c.l.b16 %v307
        %v567 = vunpack.c.h.b16 %v307
        %v568 = vunpack.c.l.b16 %v308
        %v569 = vunpack.c.h.b16 %v308
        %v570 = vunpack.c.l.b16 %v309
        %v571 = vunpack.c.h.b16 %v309
        %v572 = vunpack.c.l.b16 %v310
        %v573 = vunpack.c.h.b16 %v310
        %v574 = vunpack.c.l.b16 %v311
        %v575 = vunpack.c.h.b16 %v311
        %v576 = vunpack.c.l.b16 %v312
        %v577 = vunpack.c.h.b16 %v312
        %v578 = vunpack.c.l.b16 %v313
        %v579 = vunpack.c.h.b16 %v313
        %v580 = vunpack.c.l.b16 %v314
        %v581 = vunpack.c.h.b16 %v314
        %v582 = vunpack.c.l.b16 %v315
        %v583 = vunpack.c.h.b16 %v315
        %v584 = vunpack.c.l.b16 %v316
        %v585 = vunpack.c.h.b16 %v316
        %v586 = vunpack.c.l.b16 %v317
        %v587 = vunpack.c.h.b16 %v317
        %v588 = vunpack.c.l.b16 %v318
        %v589 = vunpack.c.h.b16 %v318
        %v590 = vunpack.c.l.b16 %v319
        %v591 = vunpack.c.h.b16 %v319
        %v592 = vunpack.c.l.b16 %v320
        %v593 = vunpack.c.h.b16 %v320
        %v594 = vunpack.c.l.b16 %v321
        %v595 = vunpack.c.h.b16 %v321
        %v596 = vunpack.c.l.b16 %v322
        %v597 = vunpack.c.h.b16 %v322
        %v598 = vunpack.c.l.b16 %v323
        %v599 = vunpack.c.h.b16 %v323
        %v600 = vunpack.c.l.b16 %v324
        %v601 = vunpack.c.h.b16 %v324
        %v602 = vunpack.c.l.b16 %v325
        %v603 = vunpack.c.h.b16 %v325
        %v604 = vunpack.c.l.b16 %v326
        %v605 = vunpack.c.h.b16 %v326
        %v606 = vunpack.c.l.b16 %v327
        %v607 = vunpack.c.h.b16 %v327
        %v608 = vunpack.c.l.b16 %v328
        %v609 = vunpack.c.h.b16 %v328
        %v610 = vunpack.c.l.b16 %v329
        %v611 = vunpack.c.h.b16 %v329
        %v612 = vunpack.c.l.b16 %v330
        %v613 = vunpack.c.h.b16 %v330
        %v614 = vunpack.c.l.b16 %v331
        %v615 = vunpack.c.h.b16 %v331
        %v616 = vunpack.c.l.b16 %v332
        %v617 = vunpack.c.h.b16 %v332
        %v618 = vunpack.c.l.b16 %v333
        %v619 = vunpack.c.h.b16 %v333
        %v620 = vunpack.c.l.b16 %v334
        %v621 = vunpack.c.h.b16 %v334
        %v622 = vunpack.c.l.b16 %v335
        %v623 = vunpack.c.h.b16 %v335
        %v624 = vunpack.c.l.b16 %v336
        %v625 = vunpack.c.h.b16 %v336
        %v626 = vunpack.c.l.b16 %v337
        %v627 = vunpack.c.h.b16 %v337
        %v628 = vunpack.c.l.b16 %v338
        %v629 = vunpack.c.h.b16 %v338
        %v630 = vunpack.c.l.b16 %v339
        %v631 = vunpack.c.h.b16 %v339
        %v632 = vunpack.c.l.b16 %v340
        %v633 = vunpack.c.h.b16 %v340
        %v634 = vunpack.c.l.b16 %v341
        %v635 = vunpack.c.h.b16 %v341
        %v636 = vunpack.c.l.b16 %v342
        %v637 = vunpack.c.h.b16 %v342
        %v638 = vunpack.c.l.b16 %v343
        %v639 = vunpack.c.h.b16 %v343
        %v640 = vunpack.c.l.b16 %v344
        %v641 = vunpack.c.h.b16 %v344
        %v642 = vpack.c.b16 %v458, %v450
        %v643 = vpack.c.b16 %v459, %v451
        %v644 = vpack.c.b16 %v460, %v452
        %v645 = vpack.c.b16 %v461, %v453
        %v646 = vpack.c.b16 %v462, %v454
        %v647 = vpack.c.b16 %v463, %v455
        %v648 = vpack.c.b16 %v464, %v456
        %v649 = vpack.c.b16 %v465, %v457
        %v650 = vpack.c.b16 %v474, %v466
        %v651 = vpack.c.b16 %v475, %v467
        %v652 = vpack.c.b16 %v476, %v468
        %v653 = vpack.c.b16 %v477, %v469
        %v654 = vpack.c.b16 %v478, %v470
        %v655 = vpack.c.b16 %v479, %v471
        %v656 = vpack.c.b16 %v480, %v472
        %v657 = vpack.c.b16 %v481, %v473
        %v658 = vpack.c.b16 %v490, %v482
        %v659 = vpack.c.b16 %v491, %v483
        %v660 = vpack.c.b16 %v492, %v484
        %v661 = vpack.c.b16 %v493, %v485
        %v662 = vpack.c.b16 %v494, %v486
        %v663 = vpack.c.b16 %v495, %v487
        %v664 = vpack.c.b16 %v496, %v488
        %v665 = vpack.c.b16 %v497, %v489
        %v666 = vpack.c.b16 %v506, %v498
        %v667 = vpack.c.b16 %v507, %v499
        %v668 = vpack.c.b16 %v508, %v500
        %v669 = vpack.c.b16 %v509, %v501
        %v670 = vpack.c.b16 %v510, %v502
        %v671 = vpack.c.b16 %v511, %v503
        %v672 = vpack.c.b16 %v512, %v504
        %v673 = vpack.c.b16 %v513, %v505
        %v674 = vpack.c.b16 %v522, %v514
        %v675 = vpack.c.b16 %v523, %v515
        %v676 = vpack.c.b16 %v524, %v516
        %v677 = vpack.c.b16 %v525, %v517
        %v678 = vpack.c.b16 %v526, %v518
        %v679 = vpack.c.b16 %v527, %v519
        %v680 = vpack.c.b16 %v528, %v520
        %v681 = vpack.c.b16 %v529, %v521
        %v682 = vpack.c.b16 %v538, %v530
        %v683 = vpack.c.b16 %v539, %v531
        %v684 = vpack.c.b16 %v540, %v532
        %v685 = vpack.c.b16 %v541, %v533
        %v686 = vpack.c.b16 %v542, %v534
        %v687 = vpack.c.b16 %v543, %v535
        %v688 = vpack.c.b16 %v544, %v536
        %v689 = vpack.c.b16 %v545, %v537
        %v690 = vpack.c.b16 %v554, %v546
        %v691 = vpack.c.b16 %v555, %v547
        %v692 = vpack.c.b16 %v556, %v548
        %v693 = vpack.c.b16 %v557, %v549
        %v694 = vpack.c.b16 %v558, %v550
        %v695 = vpack.c.b16 %v559, %v551
        %v696 = vpack.c.b16 %v560, %v552
        %v697 = vpack.c.b16 %v561, %v553
        %v698 = vpack.c.b16 %v570, %v562
        %v699 = vpack.c.b16 %v571, %v563
        %v700 = vpack.c.b16 %v572, %v564
        %v701 = vpack.c.b16 %v573, %v565
        %v702 = vpack.c.b16 %v574, %v566
        %v703 = vpack.c.b16 %v575, %v567
        %v704 = vpack.c.b16 %v576, %v568
        %v705 = vpack.c.b16 %v577, %v569
        %v706 = vpack.c.b16 %v586, %v578
        %v707 = vpack.c.b16 %v587, %v579
        %v708 = vpack.c.b16 %v588, %v580
        %v709 = vpack.c.b16 %v589, %v581
        %v710 = vpack.c.b16 %v590, %v582
        %v711 = vpack.c.b16 %v591, %v583
        %v712 = vpack.c.b16 %v592, %v584
        %v713 = vpack.c.b16 %v593, %v585
        %v714 = vpack.c.b16 %v602, %v594
        %v715 = vpack.c.b16 %v603, %v595
        %v716 = vpack.c.b16 %v604, %v596
        %v717 = vpack.c.b16 %v605, %v597
        %v718 = vpack.c.b16 %v606, %v598
        %v719 = vpack.c.b16 %v607, %v599
        %v720 = vpack.c.b16 %v608, %v600
        %v721 = vpack.c.b16 %v609, %v601
        %v722 = vpack.c.b16 %v618, %v610
        %v723 = vpack.c.b16 %v619, %v611
        %v724 = vpack.c.b16 %v620, %v612
        %v725 = vpack.c.b16 %v621, %v613
        %v726 = vpack.c.b16 %v622, %v614
        %v727 = vpack.c.b16 %v623, %v615
        %v728 = vpack.c.b16 %v624, %v616
        %v729 = vpack.c.b16 %v625, %v617
        %v730 = vpack.c.b16 %v634, %v626
        %v731 = vpack.c.b16 %v635, %v627
        %v732 = vpack.c.b16 %v636, %v628
        %v733 = vpack.c.b16 %v637, %v629
        %v734 = vpack.c.b16 %v638, %v630
        %v735 = vpack.c.b16 %v639, %v631
        %v736 = vpack.c.b16 %v640, %v632
        %v737 = vpack.c.b16 %v641, %v633
        %vm834 = vcmask 523264
        %v836 = vsel %vm834, %v352, 0
        %838 = vmatprep.subr.bf16.mxu0 %v643
        %839 = vmatpush1.bf16.msra.mxu0 %v642
        %840 = vmatprep.subr.bf16.mxu0 %v651
        %841 = vmatpush1.bf16.msra.mxu0 %v650
        %842 = vmatprep.subr.bf16.mxu0 %v659
        %843 = vmatpush1.bf16.msra.mxu0 %v658
        %844 = vmatprep.subr.bf16.mxu0 %v667
        %845 = vmatpush1.bf16.msra.mxu0 %v666
        %846 = vmatprep.subr.bf16.mxu0 %v675
        %847 = vmatpush1.bf16.msra.mxu0 %v674
        %848 = vmatprep.subr.bf16.mxu0 %v683
        %849 = vmatpush1.bf16.msra.mxu0 %v682
        %850 = vmatprep.subr.bf16.mxu0 %v691
        %851 = vmatpush1.bf16.msra.mxu0 %v690
        %852 = vmatprep.subr.bf16.mxu0 %v699
        %853 = vmatpush1.bf16.msra.mxu0 %v698
        %854 = vmatprep.subr.bf16.mxu0 %v707
        %855 = vmatpush1.bf16.msra.mxu0 %v706
        %856 = vmatprep.subr.bf16.mxu0 %v715
        %857 = vmatpush1.bf16.msra.mxu0 %v714
        %858 = vmatprep.subr.bf16.mxu0 %v723
        %859 = vmatpush1.bf16.msra.mxu0 %v722
        %860 = vmatprep.subr.bf16.mxu0 %v731
        %861 = vmatpush1.bf16.msra.mxu0 %v730
        %862 = vmatprep.subr.bf16.mxu0 0
        %863 = vmatpush1.bf16.msra.mxu0 0
        %864 = vmatprep.subr.bf16.mxu0 0
        %865 = vmatpush1.bf16.msra.mxu0 0
        %866 = vmatprep.subr.bf16.mxu0 0
        %867 = vmatpush1.bf16.msra.mxu0 0
        %868 = vmatprep.subr.bf16.mxu0 0
        %869 = vmatpush1.bf16.msra.mxu0 0
        %870 = vmatprep.mubr.bf16.mxu0 %v836
        %871 = vmatmul.mubr.bf16.gmra.mrb[0].mxu0 %v351
        %v872 = vpop.f32.mrb[0].mxu0
        %v873 = vadd.f32 0.0, %v872
        %v874 = vpop.f32.mrb[0].mxu0
        %v875 = vadd.f32 0.0, %v874
        %v876 = vpop.f32.mrb[0].mxu0
        %v877 = vadd.f32 0.0, %v876
        %v878 = vpop.f32.mrb[0].mxu0
        %v879 = vadd.f32 0.0, %v878
        %880 = vdwg.mxu0
        %881 = vmatprep.subr.bf16.mxu0 %v645
        %882 = vmatpush1.bf16.msra.mxu0 %v644
        %883 = vmatprep.subr.bf16.mxu0 %v653
        %884 = vmatpush1.bf16.msra.mxu0 %v652
        %885 = vmatprep.subr.bf16.mxu0 %v661
        %886 = vmatpush1.bf16.msra.mxu0 %v660
        %887 = vmatprep.subr.bf16.mxu0 %v669
        %888 = vmatpush1.bf16.msra.mxu0 %v668
        %889 = vmatprep.subr.bf16.mxu0 %v677
        %890 = vmatpush1.bf16.msra.mxu0 %v676
        %891 = vmatprep.subr.bf16.mxu0 %v685
        %892 = vmatpush1.bf16.msra.mxu0 %v684
        %893 = vmatprep.subr.bf16.mxu0 %v693
        %894 = vmatpush1.bf16.msra.mxu0 %v692
        %895 = vmatprep.subr.bf16.mxu0 %v701
        %896 = vmatpush1.bf16.msra.mxu0 %v700
        %897 = vmatprep.subr.bf16.mxu0 %v709
        %898 = vmatpush1.bf16.msra.mxu0 %v708
        %899 = vmatprep.subr.bf16.mxu0 %v717
        %900 = vmatpush1.bf16.msra.mxu0 %v716
        %901 = vmatprep.subr.bf16.mxu0 %v725
        %902 = vmatpush1.bf16.msra.mxu0 %v724
        %903 = vmatprep.subr.bf16.mxu0 %v733
        %904 = vmatpush1.bf16.msra.mxu0 %v732
        %905 = vmatprep.subr.bf16.mxu0 0
        %906 = vmatpush1.bf16.msra.mxu0 0
        %907 = vmatprep.subr.bf16.mxu0 0
        %908 = vmatpush1.bf16.msra.mxu0 0
        %909 = vmatprep.subr.bf16.mxu0 0
        %910 = vmatpush1.bf16.msra.mxu0 0
        %911 = vmatprep.subr.bf16.mxu0 0
        %912 = vmatpush1.bf16.msra.mxu0 0
        %913 = vmatprep.mubr.bf16.mxu0 %v836
        %914 = vmatmul.mubr.bf16.gmra.mrb[0].mxu0 %v351
        %v915 = vpop.f32.mrb[0].mxu0
        %v916 = vadd.f32 0.0, %v915
        %v917 = vpop.f32.mrb[0].mxu0
        %v918 = vadd.f32 0.0, %v917
        %v919 = vpop.f32.mrb[0].mxu0
        %v920 = vadd.f32 0.0, %v919
        %v921 = vpop.f32.mrb[0].mxu0
        %v922 = vadd.f32 0.0, %v921
        %923 = vdwg.mxu0
        %924 = vmatprep.subr.bf16.mxu0 %v647
        %925 = vmatpush1.bf16.msra.mxu0 %v646
        %926 = vmatprep.subr.bf16.mxu0 %v655
        %927 = vmatpush1.bf16.msra.mxu0 %v654
        %928 = vmatprep.subr.bf16.mxu0 %v663
        %929 = vmatpush1.bf16.msra.mxu0 %v662
        %930 = vmatprep.subr.bf16.mxu0 %v671
        %931 = vmatpush1.bf16.msra.mxu0 %v670
        %932 = vmatprep.subr.bf16.mxu0 %v679
        %933 = vmatpush1.bf16.msra.mxu0 %v678
        %934 = vmatprep.subr.bf16.mxu0 %v687
        %935 = vmatpush1.bf16.msra.mxu0 %v686
        %936 = vmatprep.subr.bf16.mxu0 %v695
        %937 = vmatpush1.bf16.msra.mxu0 %v694
        %938 = vmatprep.subr.bf16.mxu0 %v703
        %939 = vmatpush1.bf16.msra.mxu0 %v702
        %940 = vmatprep.subr.bf16.mxu0 %v711
        %941 = vmatpush1.bf16.msra.mxu0 %v710
        %942 = vmatprep.subr.bf16.mxu0 %v719
        %943 = vmatpush1.bf16.msra.mxu0 %v718
        %944 = vmatprep.subr.bf16.mxu0 %v727
        %945 = vmatpush1.bf16.msra.mxu0 %v726
        %946 = vmatprep.subr.bf16.mxu0 %v735
        %947 = vmatpush1.bf16.msra.mxu0 %v734
        %948 = vmatprep.subr.bf16.mxu0 0
        %949 = vmatpush1.bf16.msra.mxu0 0
        %950 = vmatprep.subr.bf16.mxu0 0
        %951 = vmatpush1.bf16.msra.mxu0 0
        %952 = vmatprep.subr.bf16.mxu0 0
        %953 = vmatpush1.bf16.msra.mxu0 0
        %954 = vmatprep.subr.bf16.mxu0 0
        %955 = vmatpush1.bf16.msra.mxu0 0
        %956 = vmatprep.mubr.bf16.mxu0 %v836
        %957 = vmatmul.mubr.bf16.gmra.mrb[0].mxu0 %v351
        %v958 = vpop.f32.mrb[0].mxu0
        %v959 = vadd.f32 0.0, %v958
        %v960 = vpop.f32.mrb[0].mxu0
        %v961 = vadd.f32 0.0, %v960
        %v962 = vpop.f32.mrb[0].mxu0
        %v963 = vadd.f32 0.0, %v962
        %v964 = vpop.f32.mrb[0].mxu0
        %v965 = vadd.f32 0.0, %v964
        %966 = vdwg.mxu0
        %967 = vmatprep.subr.bf16.mxu0 %v649
        %968 = vmatpush1.bf16.msra.mxu0 %v648
        %969 = vmatprep.subr.bf16.mxu0 %v657
        %970 = vmatpush1.bf16.msra.mxu0 %v656
        %971 = vmatprep.subr.bf16.mxu0 %v665
        %972 = vmatpush1.bf16.msra.mxu0 %v664
        %973 = vmatprep.subr.bf16.mxu0 %v673
        %974 = vmatpush1.bf16.msra.mxu0 %v672
        %975 = vmatprep.subr.bf16.mxu0 %v681
        %976 = vmatpush1.bf16.msra.mxu0 %v680
        %977 = vmatprep.subr.bf16.mxu0 %v689
        %978 = vmatpush1.bf16.msra.mxu0 %v688
        %979 = vmatprep.subr.bf16.mxu0 %v697
        %980 = vmatpush1.bf16.msra.mxu0 %v696
        %981 = vmatprep.subr.bf16.mxu0 %v705
        %982 = vmatpush1.bf16.msra.mxu0 %v704
        %983 = vmatprep.subr.bf16.mxu0 %v713
        %984 = vmatpush1.bf16.msra.mxu0 %v712
        %985 = vmatprep.subr.bf16.mxu0 %v721
        %986 = vmatpush1.bf16.msra.mxu0 %v720
        %987 = vmatprep.subr.bf16.mxu0 %v729
        %988 = vmatpush1.bf16.msra.mxu0 %v728
        %989 = vmatprep.subr.bf16.mxu0 %v737
        %990 = vmatpush1.bf16.msra.mxu0 %v736
        %991 = vmatprep.subr.bf16.mxu0 0
        %992 = vmatpush1.bf16.msra.mxu0 0
        %993 = vmatprep.subr.bf16.mxu0 0
        %994 = vmatpush1.bf16.msra.mxu0 0
        %995 = vmatprep.subr.bf16.mxu0 0
        %996 = vmatpush1.bf16.msra.mxu0 0
        %997 = vmatprep.subr.bf16.mxu0 0
        %998 = vmatpush1.bf16.msra.mxu0 0
        %999 = vmatprep.mubr.bf16.mxu0 %v836
        %1000 = vmatmul.mubr.bf16.gmra.mrb[0].mxu0 %v351
        %v1001 = vpop.f32.mrb[0].mxu0
        %v1002 = vadd.f32 0.0, %v1001
        %v1003 = vpop.f32.mrb[0].mxu0
        %v1004 = vadd.f32 0.0, %v1003
        %v1005 = vpop.f32.mrb[0].mxu0
        %v1006 = vadd.f32 0.0, %v1005
        %v1007 = vpop.f32.mrb[0].mxu0
        %v1008 = vadd.f32 0.0, %v1007
        %1009 = vdwg.mxu0
        %v1010 = vld [vmem:[#allocation4] sm:$0xff]
        %v1012 = vlaneseq
        %v1013 = vshrl.u32 %v1012, 7
        %v1014 = vsub.s32 0, %v1013
        %v1015 = vrot.slane %v1010, %v1014
        %v1016 = vlaneseq
        %v1017 = vshrl.u32 %v1016, 7
        %v1018 = vsub.s32 1, %v1017
        %v1019 = vrot.slane %v1010, %v1018
        %v1020 = vlaneseq
        %v1021 = vshrl.u32 %v1020, 7
        %v1022 = vsub.s32 2, %v1021
        %v1023 = vrot.slane %v1010, %v1022
        %v1024 = vlaneseq
        %v1025 = vshrl.u32 %v1024, 7
        %v1026 = vsub.s32 3, %v1025
        %v1027 = vrot.slane %v1010, %v1026
        %v1028 = vlaneseq
        %v1029 = vshrl.u32 %v1028, 7
        %v1030 = vsub.s32 4, %v1029
        %v1031 = vrot.slane %v1010, %v1030
        %v1032 = vlaneseq
        %v1033 = vshrl.u32 %v1032, 7
        %v1034 = vsub.s32 5, %v1033
        %v1035 = vrot.slane %v1010, %v1034
        %v1036 = vlaneseq
        %v1037 = vshrl.u32 %v1036, 7
        %v1038 = vsub.s32 6, %v1037
        %v1039 = vrot.slane %v1010, %v1038
        %v1040 = vlaneseq
        %v1041 = vshrl.u32 %v1040, 7
        %v1042 = vsub.s32 7, %v1041
        %v1043 = vrot.slane %v1010, %v1042
        %v1052 = vmul.f32 %v873, %v1015
        %v1053 = vmul.f32 %v875, %v1019
        %v1054 = vmul.f32 %v916, %v1023
        %v1055 = vmul.f32 %v918, %v1027
        %v1056 = vmul.f32 %v959, %v1031
        %v1057 = vmul.f32 %v961, %v1035
        %v1058 = vmul.f32 %v1002, %v1039
        %v1059 = vmul.f32 %v1004, %v1043
        %v1060 = vmul.f32 %v877, %v1015
        %v1061 = vmul.f32 %v879, %v1019
        %v1062 = vmul.f32 %v920, %v1023
        %v1063 = vmul.f32 %v922, %v1027
        %v1064 = vmul.f32 %v963, %v1031
        %v1065 = vmul.f32 %v965, %v1035
        %v1066 = vmul.f32 %v1006, %v1039
        %v1067 = vmul.f32 %v1008, %v1043
        %v1068 = vld [vmem:[#allocation6] sm:$0xff]
        %v1070 = vlaneseq
        %v1071 = vshrl.u32 %v1070, 7
        %v1072 = vsub.s32 0, %v1071
        %v1073 = vrot.slane %v1068, %v1072
        %v1074 = vlaneseq
        %v1075 = vshrl.u32 %v1074, 7
        %v1076 = vsub.s32 1, %v1075
        %v1077 = vrot.slane %v1068, %v1076
        %v1078 = vlaneseq
        %v1079 = vshrl.u32 %v1078, 7
        %v1080 = vsub.s32 2, %v1079
        %v1081 = vrot.slane %v1068, %v1080
        %v1082 = vlaneseq
        %v1083 = vshrl.u32 %v1082, 7
        %v1084 = vsub.s32 3, %v1083
        %v1085 = vrot.slane %v1068, %v1084
        %v1086 = vlaneseq
        %v1087 = vshrl.u32 %v1086, 7
        %v1088 = vsub.s32 4, %v1087
        %v1089 = vrot.slane %v1068, %v1088
        %v1090 = vlaneseq
        %v1091 = vshrl.u32 %v1090, 7
        %v1092 = vsub.s32 5, %v1091
        %v1093 = vrot.slane %v1068, %v1092
        %v1094 = vlaneseq
        %v1095 = vshrl.u32 %v1094, 7
        %v1096 = vsub.s32 6, %v1095
        %v1097 = vrot.slane %v1068, %v1096
        %v1098 = vlaneseq
        %v1099 = vshrl.u32 %v1098, 7
        %v1100 = vsub.s32 7, %v1099
        %v1101 = vrot.slane %v1068, %v1100
        %v1110 = vadd.f32 %v1052, %v1073
        %v1111 = vadd.f32 %v1053, %v1077
        %v1112 = vadd.f32 %v1054, %v1081
        %v1113 = vadd.f32 %v1055, %v1085
        %v1114 = vadd.f32 %v1056, %v1089
        %v1115 = vadd.f32 %v1057, %v1093
        %v1116 = vadd.f32 %v1058, %v1097
        %v1117 = vadd.f32 %v1059, %v1101
        %v1118 = vadd.f32 %v1060, %v1073
        %v1119 = vadd.f32 %v1061, %v1077
        %v1120 = vadd.f32 %v1062, %v1081
        %v1121 = vadd.f32 %v1063, %v1085
        %v1122 = vadd.f32 %v1064, %v1089
        %v1123 = vadd.f32 %v1065, %v1093
        %v1124 = vadd.f32 %v1066, %v1097
        %v1125 = vadd.f32 %v1067, %v1101
        %v1126 = vmax.f32 %v1110, 0.0
        %v1127 = vmax.f32 %v1111, 0.0
        %v1128 = vmax.f32 %v1112, 0.0
        %v1129 = vmax.f32 %v1113, 0.0
        %v1130 = vmax.f32 %v1114, 0.0
        %v1131 = vmax.f32 %v1115, 0.0
        %v1132 = vmax.f32 %v1116, 0.0
        %v1133 = vmax.f32 %v1117, 0.0
        %v1134 = vmax.f32 %v1118, 0.0
        %v1135 = vmax.f32 %v1119, 0.0
        %v1136 = vmax.f32 %v1120, 0.0
        %v1137 = vmax.f32 %v1121, 0.0
        %v1138 = vmax.f32 %v1122, 0.0
        %v1139 = vmax.f32 %v1123, 0.0
        %v1140 = vmax.f32 %v1124, 0.0
        %v1141 = vmax.f32 %v1125, 0.0
        %v1142 = vmax.f32 %v1126, %v1128
        %v1143 = vmax.f32 %v1127, %v1129
        %v1144 = vmax.f32 %v1134, %v1136
        %v1145 = vmax.f32 %v1135, %v1137
        %v1146 = vmax.f32 %v1130, %v1132
        %v1147 = vmax.f32 %v1131, %v1133
        %v1148 = vmax.f32 %v1138, %v1140
        %v1149 = vmax.f32 %v1139, %v1141
        %v1150 = vmax.f32 %v1142, %v1146
        %v1151 = vmax.f32 %v1143, %v1147
        %v1152 = vmax.f32 %v1144, %v1148
        %v1153 = vmax.f32 %v1145, %v1149
        %v1154 = vpack.c.bf16 %v1152, %v1150
        %v1155 = vpack.c.bf16 %v1153, %v1151
        %v1158 = vunpack.c.l.b16 %v1154
        %v1159 = vunpack.c.l.b16 %v1155
        %v1160 = vunpack.c.h.b16 %v1154
        %v1161 = vunpack.c.h.b16 %v1155
        %v1162 = vpack.c.b16 %v1159, %v1158
        %v1163 = vpack.c.b16 %v1161, %v1160
        %1166 = vst [vmem:[%s244] sm:$0xff] %v1162
        %1167 = vst [vmem:[%s244 + $0x8] sm:$0xff] %v1163
        %s1168 = smul.u32 2, %s17
        %p1169 = scmp.lt.s32.totalorder %s1168, 3
        %s1170 = scalar_select %p1169, %s1168, 3
        %s1171 = smul.addr %s1170, 2
        %s1172 = smul.addr %s1171, 4
        %s1173 = scalar_lea.vmem %s4, %s1172
        // Predicated region
        $region49: #{convnet_forward.3} parent=35 // pred_check
          %p1174 = pneg %p124
        $region50: #{convnet_forward.3} parent=35 // pred_check_branch
          %1176 = sbr.rel (%p1174) target = $region52
        $region51: #{convnet_forward.3} parent=35 // pred_region
          %s1177 = smul.u32 2, %s17
        $region52: #{convnet_forward.3} parent=35 // pred_fallthru
          _
      $region36: #{convnet_forward.3} parent=5 // pred_fallthru
        _
      %p1178 = scmp.le.s32.totalorder 2, %s12
      // Predicated region
      $region53: #{convnet_forward.3} parent=5 // pred_check
        %p1179 = pneg %p1178
      $region54: #{convnet_forward.3} parent=5 // pred_check_branch
        %1181 = sbr.rel (%p1179) target = $region56
      $region55: #{convnet_forward.3} parent=5 // pred_region
        %s1182 = ssub.s32 %s12, 2
        // Predicated region
        $region57: #{convnet_forward.3} parent=55 // pred_check
          %p1183 = pneg %p130
        $region58: #{convnet_forward.3} parent=55 // pred_check_branch
          %1185 = sbr.rel (%p1183) target = $region60
        $region59: #{convnet_forward.3} parent=55 // pred_region
          %s1186 = smul.u32 2, %s18
          %p1187 = scmp.lt.s32.totalorder %s1186, 3
          %s1188 = scalar_select %p1187, %s1186, 3
          %s1189 = smul.addr %s1188, 2
          %s1190 = smul.addr %s1189, 4
          %s1191 = scalar_lea.vmem %s4, %s1190
        $region60: #{convnet_forward.3} parent=55 // pred_fallthru
          _
      $region56: #{convnet_forward.3} parent=5 // pred_fallthru
        _
    $region6: #{convnet_forward.3} parent=1 // loop_footer
      %s16 = sadd.s32 1, %s12
    $region7: #{convnet_forward.3} parent=1 // loop_footer_branch
      %11 = sbr.rel target = $region3
    $region8: #{convnet_forward.3} parent=1 // loop_exit
      _
    %1192 = vsyncpa [#allocation3], 1
    %s1193 = scalar_lea.sflag [#allocation3], 1
    %1194 = vsyncpa %s1193, 1
    %1195 = vsyncpa [#allocation5], 1

// kernel: convnet_forward.5
$region0: #{convnet_forward.5}
  #allocation0 [shape = 'u32[]', space=smem, size = 0x4, offset = 0x4, fixed_abs, tag = 'smem constant byte address 0x4 - core index']
  #allocation1 [shape = 'u32[144,128]{1,0:T(1,128)}', space=vmem, size = 0x12000, scoped, tag = 'internal scratch']
  %s0 = inlined_call_operand.vmem [shape: bf16[16,1792], index: 0, kind: input, shape index: {}]
  %s1 = inlined_call_operand.vmem [shape: bf16[1792,128], index: 1, kind: input, shape index: {}]
  %s2 = inlined_call_operand.vmem [shape: f32[1,128], index: 2, kind: input, shape index: {}]
  %s3 = inlined_call_operand.vmem [shape: f32[16,128], index: 3, kind: output, shape index: {}]
  %s4 = sld [smem:[#allocation0]]
  $region22: #{convnet_forward.5} parent=0
    _
  %s6 = ssub.s32 1, %s4
  %s7 = scalar_select 0, %s6, %s4
  // Predicated region
  $region2: #{convnet_forward.5} parent=0 // pred_check
    _
  $region3: #{convnet_forward.5} parent=0 // pred_check_branch
    %9 = sbr.rel (0) target = $region5
  $region4: #{convnet_forward.5} parent=0 // pred_region
    _
  $region5: #{convnet_forward.5} parent=0 // pred_fallthru
    _
  // Predicated region
  $region6: #{convnet_forward.5} parent=0 // pred_check
    _
  $region7: #{convnet_forward.5} parent=0 // pred_check_branch
    %11 = sbr.rel (0) target = $region9
  $region8: #{convnet_forward.5} parent=0 // pred_region
    _
  $region9: #{convnet_forward.5} parent=0 // pred_fallthru
    _
  // Predicated region
  $region10: #{convnet_forward.5} parent=0 // pred_check
    _
  $region11: #{convnet_forward.5} parent=0 // pred_check_branch
    %13 = sbr.rel (0) target = $region13
  $region12: #{convnet_forward.5} parent=0 // pred_region
    _
  $region13: #{convnet_forward.5} parent=0 // pred_fallthru
    _
  %v15 = vld [vmem:[%s0] sm:$0xff]
  %v16 = vld [vmem:[%s0 + $0x8] sm:$0xff]
  %v17 = vld [vmem:[%s0 + $0x10] sm:$0xff]
  %v18 = vld [vmem:[%s0 + $0x18] sm:$0xff]
  %v19 = vld [vmem:[%s0 + $0x20] sm:$0xff]
  %v20 = vld [vmem:[%s0 + $0x28] sm:$0xff]
  %v21 = vld [vmem:[%s0 + $0x30] sm:$0xff]
  %v22 = vld [vmem:[%s0 + $0x38] sm:$0xff]
  %v23 = vld [vmem:[%s0 + $0x40] sm:$0xff]
  %v24 = vld [vmem:[%s0 + $0x48] sm:$0xff]
  %v25 = vld [vmem:[%s0 + $0x50] sm:$0xff]
  %v26 = vld [vmem:[%s0 + $0x58] sm:$0xff]
  %v27 = vld [vmem:[%s0 + $0x60] sm:$0xff]
  %v28 = vld [vmem:[%s0 + $0x68] sm:$0xff]
  %v29 = vld [vmem:[%s1] sm:$0xf]
  %v30 = vld [vmem:[%s1 + $0x4] sm:$0xf]
  %v31 = vld [vmem:[%s1 + $0x8] sm:$0xf]
  %v32 = vld [vmem:[%s1 + $0xc] sm:$0xf]
  %v33 = vld [vmem:[%s1 + $0x10] sm:$0xf]
  %v34 = vld [vmem:[%s1 + $0x14] sm:$0xf]
  %v35 = vld [vmem:[%s1 + $0x18] sm:$0xf]
  %v36 = vld [vmem:[%s1 + $0x1c] sm:$0xf]
  %v37 = vld [vmem:[%s1 + $0x20] sm:$0xf]
  %v38 = vld [vmem:[%s1 + $0x24] sm:$0xf]
  %v39 = vld [vmem:[%s1 + $0x28] sm:$0xf]
  %v40 = vld [vmem:[%s1 + $0x2c] sm:$0xf]
  %v41 = vld [vmem:[%s1 + $0x30] sm:$0xf]
  %v42 = vld [vmem:[%s1 + $0x34] sm:$0xf]
  %v43 = vld [vmem:[%s1 + $0x38] sm:$0xf]
  %v44 = vld [vmem:[%s1 + $0x3c] sm:$0xf]
  %v45 = vld [vmem:[%s1 + $0x40] sm:$0xf]
  %v46 = vld [vmem:[%s1 + $0x44] sm:$0xf]
  %v47 = vld [vmem:[%s1 + $0x48] sm:$0xf]
  %v48 = vld [vmem:[%s1 + $0x4c] sm:$0xf]
  %v49 = vld [vmem:[%s1 + $0x50] sm:$0xf]
  %v50 = vld [vmem:[%s1 + $0x54] sm:$0xf]
  %v51 = vld [vmem:[%s1 + $0x58] sm:$0xf]
  %v52 = vld [vmem:[%s1 + $0x5c] sm:$0xf]
  %v53 = vld [vmem:[%s1 + $0x60] sm:$0xf]
  %v54 = vld [vmem:[%s1 + $0x64] sm:$0xf]
  %v55 = vld [vmem:[%s1 + $0x68] sm:$0xf]
  %v56 = vld [vmem:[%s1 + $0x6c] sm:$0xf]
  %v57 = vld [vmem:[%s1 + $0x70] sm:$0xf]
  %v58 = vld [vmem:[%s1 + $0x74] sm:$0xf]
  %v59 = vld [vmem:[%s1 + $0x78] sm:$0xf]
  %v60 = vld [vmem:[%s1 + $0x7c] sm:$0xf]
  %v61 = vld [vmem:[%s1 + $0x80] sm:$0xf]
  %v62 = vld [vmem:[%s1 + $0x84] sm:$0xf]
  %v63 = vld [vmem:[%s1 + $0x88] sm:$0xf]
  %v64 = vld [vmem:[%s1 + $0x8c] sm:$0xf]
  %v65 = vld [vmem:[%s1 + $0x90] sm:$0xf]
  %v66 = vld [vmem:[%s1 + $0x94] sm:$0xf]
  %v67 = vld [vmem:[%s1 + $0x98] sm:$0xf]
  %v68 = vld [vmem:[%s1 + $0x9c] sm:$0xf]
  %v69 = vld [vmem:[%s1 + $0xa0] sm:$0xf]
  %v70 = vld [vmem:[%s1 + $0xa4] sm:$0xf]
  %v71 = vld [vmem:[%s1 + $0xa8] sm:$0xf]
  %v72 = vld [vmem:[%s1 + $0xac] sm:$0xf]
  %v73 = vld [vmem:[%s1 + $0xb0] sm:$0xf]
  %v74 = vld [vmem:[%s1 + $0xb4] sm:$0xf]
  %v75 = vld [vmem:[%s1 + $0xb8] sm:$0xf]
  %v76 = vld [vmem:[%s1 + $0xbc] sm:$0xf]
  %v77 = vld [vmem:[%s1 + $0xc0] sm:$0xf]
  %v78 = vld [vmem:[%s1 + $0xc4] sm:$0xf]
  %v79 = vld [vmem:[%s1 + $0xc8] sm:$0xf]
  %v80 = vld [vmem:[%s1 + $0xcc] sm:$0xf]
  %v81 = vld [vmem:[%s1 + $0xd0] sm:$0xf]
  %v82 = vld [vmem:[%s1 + $0xd4] sm:$0xf]
  %v83 = vld [vmem:[%s1 + $0xd8] sm:$0xf]
  %v84 = vld [vmem:[%s1 + $0xdc] sm:$0xf]
  %v85 = vld [vmem:[%s1 + $0xe0] sm:$0xf]
  %v86 = vld [vmem:[%s1 + $0xe4] sm:$0xf]
  %v87 = vld [vmem:[%s1 + $0xe8] sm:$0xf]
  %v88 = vld [vmem:[%s1 + $0xec] sm:$0xf]
  %v89 = vld [vmem:[%s1 + $0xf0] sm:$0xf]
  %v90 = vld [vmem:[%s1 + $0xf4] sm:$0xf]
  %v91 = vld [vmem:[%s1 + $0xf8] sm:$0xf]
  %v92 = vld [vmem:[%s1 + $0xfc] sm:$0xf]
  %v93 = vld [vmem:[%s1 + $0x100] sm:$0xf]
  %v94 = vld [vmem:[%s1 + $0x104] sm:$0xf]
  %v95 = vld [vmem:[%s1 + $0x108] sm:$0xf]
  %v96 = vld [vmem:[%s1 + $0x10c] sm:$0xf]
  %v97 = vld [vmem:[%s1 + $0x110] sm:$0xf]
  %v98 = vld [vmem:[%s1 + $0x114] sm:$0xf]
  %v99 = vld [vmem:[%s1 + $0x118] sm:$0xf]
  %v100 = vld [vmem:[%s1 + $0x11c] sm:$0xf]
  %v101 = vld [vmem:[%s1 + $0x120] sm:$0xf]
  %v102 = vld [vmem:[%s1 + $0x124] sm:$0xf]
  %v103 = vld [vmem:[%s1 + $0x128] sm:$0xf]
  %v104 = vld [vmem:[%s1 + $0x12c] sm:$0xf]
  %v105 = vld [vmem:[%s1 + $0x130] sm:$0xf]
  %v106 = vld [vmem:[%s1 + $0x134] sm:$0xf]
  %v107 = vld [vmem:[%s1 + $0x138] sm:$0xf]
  %v108 = vld [vmem:[%s1 + $0x13c] sm:$0xf]
  %v109 = vld [vmem:[%s1 + $0x140] sm:$0xf]
  %v110 = vld [vmem:[%s1 + $0x144] sm:$0xf]
  %v111 = vld [vmem:[%s1 + $0x148] sm:$0xf]
  %v112 = vld [vmem:[%s1 + $0x14c] sm:$0xf]
  %v113 = vld [vmem:[%s1 + $0x150] sm:$0xf]
  %v114 = vld [vmem:[%s1 + $0x154] sm:$0xf]
  %v115 = vld [vmem:[%s1 + $0x158] sm:$0xf]
  %v116 = vld [vmem:[%s1 + $0x15c] sm:$0xf]
  %v117 = vld [vmem:[%s1 + $0x160] sm:$0xf]
  %v118 = vld [vmem:[%s1 + $0x164] sm:$0xf]
  %v119 = vld [vmem:[%s1 + $0x168] sm:$0xf]
  %v120 = vld [vmem:[%s1 + $0x16c] sm:$0xf]
  %v121 = vld [vmem:[%s1 + $0x170] sm:$0xf]
  %v122 = vld [vmem:[%s1 + $0x174] sm:$0xf]
  %v123 = vld [vmem:[%s1 + $0x178] sm:$0xf]
  %v124 = vld [vmem:[%s1 + $0x17c] sm:$0xf]
  %v125 = vld [vmem:[%s1 + $0x180] sm:$0xf]
  %v126 = vld [vmem:[%s1 + $0x184] sm:$0xf]
  %v127 = vld [vmem:[%s1 + $0x188] sm:$0xf]
  %v128 = vld [vmem:[%s1 + $0x18c] sm:$0xf]
  %v129 = vld [vmem:[%s1 + $0x190] sm:$0xf]
  %v130 = vld [vmem:[%s1 + $0x194] sm:$0xf]
  %v131 = vld [vmem:[%s1 + $0x198] sm:$0xf]
  %v132 = vld [vmem:[%s1 + $0x19c] sm:$0xf]
  %v133 = vld [vmem:[%s1 + $0x1a0] sm:$0xf]
  %v134 = vld [vmem:[%s1 + $0x1a4] sm:$0xf]
  %v135 = vld [vmem:[%s1 + $0x1a8] sm:$0xf]
  %v136 = vld [vmem:[%s1 + $0x1ac] sm:$0xf]
  %v137 = vld [vmem:[%s1 + $0x1b0] sm:$0xf]
  %v138 = vld [vmem:[%s1 + $0x1b4] sm:$0xf]
  %v139 = vld [vmem:[%s1 + $0x1b8] sm:$0xf]
  %v140 = vld [vmem:[%s1 + $0x1bc] sm:$0xf]
  %v141 = vld [vmem:[%s1 + $0x1c0] sm:$0xf]
  %v142 = vld [vmem:[%s1 + $0x1c4] sm:$0xf]
  %v143 = vld [vmem:[%s1 + $0x1c8] sm:$0xf]
  %v144 = vld [vmem:[%s1 + $0x1cc] sm:$0xf]
  %v145 = vld [vmem:[%s1 + $0x1d0] sm:$0xf]
  %v146 = vld [vmem:[%s1 + $0x1d4] sm:$0xf]
  %v147 = vld [vmem:[%s1 + $0x1d8] sm:$0xf]
  %v148 = vld [vmem:[%s1 + $0x1dc] sm:$0xf]
  %v149 = vld [vmem:[%s1 + $0x1e0] sm:$0xf]
  %v150 = vld [vmem:[%s1 + $0x1e4] sm:$0xf]
  %v151 = vld [vmem:[%s1 + $0x1e8] sm:$0xf]
  %v152 = vld [vmem:[%s1 + $0x1ec] sm:$0xf]
  %v153 = vld [vmem:[%s1 + $0x1f0] sm:$0xf]
  %v154 = vld [vmem:[%s1 + $0x1f4] sm:$0xf]
  %v155 = vld [vmem:[%s1 + $0x1f8] sm:$0xf]
  %v156 = vld [vmem:[%s1 + $0x1fc] sm:$0xf]
  %v157 = vld [vmem:[%s1 + $0x200] sm:$0xf]
  %v158 = vld [vmem:[%s1 + $0x204] sm:$0xf]
  %v159 = vld [vmem:[%s1 + $0x208] sm:$0xf]
  %v160 = vld [vmem:[%s1 + $0x20c] sm:$0xf]
  %v161 = vld [vmem:[%s1 + $0x210] sm:$0xf]
  %v162 = vld [vmem:[%s1 + $0x214] sm:$0xf]
  %v163 = vld [vmem:[%s1 + $0x218] sm:$0xf]
  %v164 = vld [vmem:[%s1 + $0x21c] sm:$0xf]
  %v165 = vld [vmem:[%s1 + $0x220] sm:$0xf]
  %v166 = vld [vmem:[%s1 + $0x224] sm:$0xf]
  %v167 = vld [vmem:[%s1 + $0x228] sm:$0xf]
  %v168 = vld [vmem:[%s1 + $0x22c] sm:$0xf]
  %v169 = vld [vmem:[%s1 + $0x230] sm:$0xf]
  %v170 = vld [vmem:[%s1 + $0x234] sm:$0xf]
  %v171 = vld [vmem:[%s1 + $0x238] sm:$0xf]
  %v172 = vld [vmem:[%s1 + $0x23c] sm:$0xf]
  %v173 = vld [vmem:[%s1 + $0x240] sm:$0xf]
  %v174 = vld [vmem:[%s1 + $0x244] sm:$0xf]
  %v175 = vld [vmem:[%s1 + $0x248] sm:$0xf]
  %v176 = vld [vmem:[%s1 + $0x24c] sm:$0xf]
  %v177 = vld [vmem:[%s1 + $0x250] sm:$0xf]
  %v178 = vld [vmem:[%s1 + $0x254] sm:$0xf]
  %v179 = vld [vmem:[%s1 + $0x258] sm:$0xf]
  %v180 = vld [vmem:[%s1 + $0x25c] sm:$0xf]
  %v181 = vld [vmem:[%s1 + $0x260] sm:$0xf]
  %v182 = vld [vmem:[%s1 + $0x264] sm:$0xf]
  %v183 = vld [vmem:[%s1 + $0x268] sm:$0xf]
  %v184 = vld [vmem:[%s1 + $0x26c] sm:$0xf]
  %v185 = vld [vmem:[%s1 + $0x270] sm:$0xf]
  %v186 = vld [vmem:[%s1 + $0x274] sm:$0xf]
  %v187 = vld [vmem:[%s1 + $0x278] sm:$0xf]
  %v188 = vld [vmem:[%s1 + $0x27c] sm:$0xf]
  %v189 = vld [vmem:[%s1 + $0x280] sm:$0xf]
  %v190 = vld [vmem:[%s1 + $0x284] sm:$0xf]
  %v191 = vld [vmem:[%s1 + $0x288] sm:$0xf]
  %v192 = vld [vmem:[%s1 + $0x28c] sm:$0xf]
  %v193 = vld [vmem:[%s1 + $0x290] sm:$0xf]
  %v194 = vld [vmem:[%s1 + $0x294] sm:$0xf]
  %v195 = vld [vmem:[%s1 + $0x298] sm:$0xf]
  %v196 = vld [vmem:[%s1 + $0x29c] sm:$0xf]
  %v197 = vld [vmem:[%s1 + $0x2a0] sm:$0xf]
  %v198 = vld [vmem:[%s1 + $0x2a4] sm:$0xf]
  %v199 = vld [vmem:[%s1 + $0x2a8] sm:$0xf]
  %v200 = vld [vmem:[%s1 + $0x2ac] sm:$0xf]
  %v201 = vld [vmem:[%s1 + $0x2b0] sm:$0xf]
  %v202 = vld [vmem:[%s1 + $0x2b4] sm:$0xf]
  %v203 = vld [vmem:[%s1 + $0x2b8] sm:$0xf]
  %v204 = vld [vmem:[%s1 + $0x2bc] sm:$0xf]
  %v205 = vld [vmem:[%s1 + $0x2c0] sm:$0xf]
  %v206 = vld [vmem:[%s1 + $0x2c4] sm:$0xf]
  %v207 = vld [vmem:[%s1 + $0x2c8] sm:$0xf]
  %v208 = vld [vmem:[%s1 + $0x2cc] sm:$0xf]
  %v209 = vld [vmem:[%s1 + $0x2d0] sm:$0xf]
  %v210 = vld [vmem:[%s1 + $0x2d4] sm:$0xf]
  %v211 = vld [vmem:[%s1 + $0x2d8] sm:$0xf]
  %v212 = vld [vmem:[%s1 + $0x2dc] sm:$0xf]
  %v213 = vld [vmem:[%s1 + $0x2e0] sm:$0xf]
  %v214 = vld [vmem:[%s1 + $0x2e4] sm:$0xf]
  %v215 = vld [vmem:[%s1 + $0x2e8] sm:$0xf]
  %v216 = vld [vmem:[%s1 + $0x2ec] sm:$0xf]
  %v217 = vld [vmem:[%s1 + $0x2f0] sm:$0xf]
  %v218 = vld [vmem:[%s1 + $0x2f4] sm:$0xf]
  %v219 = vld [vmem:[%s1 + $0x2f8] sm:$0xf]
  %v220 = vld [vmem:[%s1 + $0x2fc] sm:$0xf]
  %v221 = vld [vmem:[%s1 + $0x300] sm:$0xf]
  %v222 = vld [vmem:[%s1 + $0x304] sm:$0xf]
  %v223 = vld [vmem:[%s1 + $0x308] sm:$0xf]
  %v224 = vld [vmem:[%s1 + $0x30c] sm:$0xf]
  %v225 = vld [vmem:[%s1 + $0x310] sm:$0xf]
  %v226 = vld [vmem:[%s1 + $0x314] sm:$0xf]
  %v227 = vld [vmem:[%s1 + $0x318] sm:$0xf]
  %v228 = vld [vmem:[%s1 + $0x31c] sm:$0xf]
  %v229 = vld [vmem:[%s1 + $0x320] sm:$0xf]
  %v230 = vld [vmem:[%s1 + $0x324] sm:$0xf]
  %v231 = vld [vmem:[%s1 + $0x328] sm:$0xf]
  %v232 = vld [vmem:[%s1 + $0x32c] sm:$0xf]
  %v233 = vld [vmem:[%s1 + $0x330] sm:$0xf]
  %v234 = vld [vmem:[%s1 + $0x334] sm:$0xf]
  %v235 = vld [vmem:[%s1 + $0x338] sm:$0xf]
  %v236 = vld [vmem:[%s1 + $0x33c] sm:$0xf]
  %v237 = vld [vmem:[%s1 + $0x340] sm:$0xf]
  %v238 = vld [vmem:[%s1 + $0x344] sm:$0xf]
  %v239 = vld [vmem:[%s1 + $0x348] sm:$0xf]
  %v240 = vld [vmem:[%s1 + $0x34c] sm:$0xf]
  %v241 = vld [vmem:[%s1 + $0x350] sm:$0xf]
  %v242 = vld [vmem:[%s1 + $0x354] sm:$0xf]
  %v243 = vld [vmem:[%s1 + $0x358] sm:$0xf]
  %v244 = vld [vmem:[%s1 + $0x35c] sm:$0xf]
  %v245 = vld [vmem:[%s1 + $0x360] sm:$0xf]
  %v246 = vld [vmem:[%s1 + $0x364] sm:$0xf]
  %v247 = vld [vmem:[%s1 + $0x368] sm:$0xf]
  %v248 = vld [vmem:[%s1 + $0x36c] sm:$0xf]
  %v249 = vld [vmem:[%s1 + $0x370] sm:$0xf]
  %v250 = vld [vmem:[%s1 + $0x374] sm:$0xf]
  %v251 = vld [vmem:[%s1 + $0x378] sm:$0xf]
  %v252 = vld [vmem:[%s1 + $0x37c] sm:$0xf]
  %v253 = vld [vmem:[%s2] sm:$0x1]
  %v255 = vlaneseq
  %v256 = vshrl.u32 %v255, 7
  %v257 = vsub.s32 0, %v256
  %v258 = vrot.slane %v253, %v257
  %v274 = vunpack.c.l.b16 %v15
  %v275 = vunpack.c.h.b16 %v15
  %v276 = vunpack.c.l.b16 %v16
  %v277 = vunpack.c.h.b16 %v16
  %v278 = vunpack.c.l.b16 %v17
  %v279 = vunpack.c.h.b16 %v17
  %v280 = vunpack.c.l.b16 %v18
  %v281 = vunpack.c.h.b16 %v18
  %v282 = vunpack.c.l.b16 %v19
  %v283 = vunpack.c.h.b16 %v19
  %v284 = vunpack.c.l.b16 %v20
  %v285 = vunpack.c.h.b16 %v20
  %v286 = vunpack.c.l.b16 %v21
  %v287 = vunpack.c.h.b16 %v21
  %v288 = vunpack.c.l.b16 %v22
  %v289 = vunpack.c.h.b16 %v22
  %v290 = vunpack.c.l.b16 %v23
  %v291 = vunpack.c.h.b16 %v23
  %v292 = vunpack.c.l.b16 %v24
  %v293 = vunpack.c.h.b16 %v24
  %v294 = vunpack.c.l.b16 %v25
  %v295 = vunpack.c.h.b16 %v25
  %v296 = vunpack.c.l.b16 %v26
  %v297 = vunpack.c.h.b16 %v26
  %v298 = vunpack.c.l.b16 %v27
  %v299 = vunpack.c.h.b16 %v27
  %v300 = vunpack.c.l.b16 %v28
  %v301 = vunpack.c.h.b16 %v28
  %v302 = vpack.c.b16 %v288, %v274
  %v303 = vpack.c.b16 %v289, %v275
  %v304 = vpack.c.b16 %v290, %v276
  %v305 = vpack.c.b16 %v291, %v277
  %v306 = vpack.c.b16 %v292, %v278
  %v307 = vpack.c.b16 %v293, %v279
  %v308 = vpack.c.b16 %v294, %v280
  %v309 = vpack.c.b16 %v295, %v281
  %v310 = vpack.c.b16 %v296, %v282
  %v311 = vpack.c.b16 %v297, %v283
  %v312 = vpack.c.b16 %v298, %v284
  %v313 = vpack.c.b16 %v299, %v285
  %v314 = vpack.c.b16 %v300, %v286
  %v315 = vpack.c.b16 %v301, %v287
  %v554 = vunpack.c.l.b16 %v29
  %v555 = vunpack.c.l.b16 %v30
  %v556 = vunpack.c.l.b16 %v31
  %v557 = vunpack.c.l.b16 %v32
  %v558 = vunpack.c.l.b16 %v33
  %v559 = vunpack.c.l.b16 %v34
  %v560 = vunpack.c.l.b16 %v35
  %v561 = vunpack.c.l.b16 %v36
  %v562 = vunpack.c.l.b16 %v37
  %v563 = vunpack.c.l.b16 %v38
  %v564 = vunpack.c.l.b16 %v39
  %v565 = vunpack.c.l.b16 %v40
  %v566 = vunpack.c.l.b16 %v41
  %v567 = vunpack.c.l.b16 %v42
  %v568 = vunpack.c.l.b16 %v43
  %v569 = vunpack.c.l.b16 %v44
  %v570 = vunpack.c.l.b16 %v45
  %v571 = vunpack.c.l.b16 %v46
  %v572 = vunpack.c.l.b16 %v47
  %v573 = vunpack.c.l.b16 %v48
  %v574 = vunpack.c.l.b16 %v49
  %v575 = vunpack.c.l.b16 %v50
  %v576 = vunpack.c.l.b16 %v51
  %v577 = vunpack.c.l.b16 %v52
  %v578 = vunpack.c.l.b16 %v53
  %v579 = vunpack.c.l.b16 %v54
  %v580 = vunpack.c.l.b16 %v55
  %v581 = vunpack.c.l.b16 %v56
  %v582 = vunpack.c.l.b16 %v57
  %v583 = vunpack.c.l.b16 %v58
  %v584 = vunpack.c.l.b16 %v59
  %v585 = vunpack.c.l.b16 %v60
  %v586 = vunpack.c.l.b16 %v61
  %v587 = vunpack.c.l.b16 %v62
  %v588 = vunpack.c.l.b16 %v63
  %v589 = vunpack.c.l.b16 %v64
  %v590 = vunpack.c.l.b16 %v65
  %v591 = vunpack.c.l.b16 %v66
  %v592 = vunpack.c.l.b16 %v67
  %v593 = vunpack.c.l.b16 %v68
  %v594 = vunpack.c.l.b16 %v69
  %v595 = vunpack.c.l.b16 %v70
  %v596 = vunpack.c.l.b16 %v71
  %v597 = vunpack.c.l.b16 %v72
  %v598 = vunpack.c.l.b16 %v73
  %v599 = vunpack.c.l.b16 %v74
  %v600 = vunpack.c.l.b16 %v75
  %v601 = vunpack.c.l.b16 %v76
  %v602 = vunpack.c.l.b16 %v77
  %v603 = vunpack.c.l.b16 %v78
  %v604 = vunpack.c.l.b16 %v79
  %v605 = vunpack.c.l.b16 %v80
  %v606 = vunpack.c.l.b16 %v81
  %v607 = vunpack.c.l.b16 %v82
  %v608 = vunpack.c.l.b16 %v83
  %v609 = vunpack.c.l.b16 %v84
  %v610 = vunpack.c.l.b16 %v85
  %v611 = vunpack.c.l.b16 %v86
  %v612 = vunpack.c.l.b16 %v87
  %v613 = vunpack.c.l.b16 %v88
  %v614 = vunpack.c.l.b16 %v89
  %v615 = vunpack.c.l.b16 %v90
  %v616 = vunpack.c.l.b16 %v91
  %v617 = vunpack.c.l.b16 %v92
  %v618 = vunpack.c.l.b16 %v93
  %v619 = vunpack.c.l.b16 %v94
  %v620 = vunpack.c.l.b16 %v95
  %v621 = vunpack.c.l.b16 %v96
  %v622 = vunpack.c.l.b16 %v97
  %v623 = vunpack.c.l.b16 %v98
  %v624 = vunpack.c.l.b16 %v99
  %v625 = vunpack.c.l.b16 %v100
  %v626 = vunpack.c.l.b16 %v101
  %v627 = vunpack.c.l.b16 %v102
  %v628 = vunpack.c.l.b16 %v103
  %v629 = vunpack.c.l.b16 %v104
  %v630 = vunpack.c.l.b16 %v105
  %v631 = vunpack.c.l.b16 %v106
  %v632 = vunpack.c.l.b16 %v107
  %v633 = vunpack.c.l.b16 %v108
  %v634 = vunpack.c.l.b16 %v109
  %v635 = vunpack.c.l.b16 %v110
  %v636 = vunpack.c.l.b16 %v111
  %v637 = vunpack.c.l.b16 %v112
  %v638 = vunpack.c.l.b16 %v113
  %v639 = vunpack.c.l.b16 %v114
  %v640 = vunpack.c.l.b16 %v115
  %v641 = vunpack.c.l.b16 %v116
  %v642 = vunpack.c.l.b16 %v117
  %v643 = vunpack.c.l.b16 %v118
  %v644 = vunpack.c.l.b16 %v119
  %v645 = vunpack.c.l.b16 %v120
  %v646 = vunpack.c.l.b16 %v121
  %v647 = vunpack.c.l.b16 %v122
  %v648 = vunpack.c.l.b16 %v123
  %v649 = vunpack.c.l.b16 %v124
  %v650 = vunpack.c.l.b16 %v125
  %v651 = vunpack.c.l.b16 %v126
  %v652 = vunpack.c.l.b16 %v127
  %v653 = vunpack.c.l.b16 %v128
  %v654 = vunpack.c.l.b16 %v129
  %v655 = vunpack.c.l.b16 %v130
  %v656 = vunpack.c.l.b16 %v131
  %v657 = vunpack.c.l.b16 %v132
  %v658 = vunpack.c.l.b16 %v133
  %v659 = vunpack.c.l.b16 %v134
  %v660 = vunpack.c.l.b16 %v135
  %v661 = vunpack.c.l.b16 %v136
  %v662 = vunpack.c.l.b16 %v137
  %v663 = vunpack.c.l.b16 %v138
  %v664 = vunpack.c.l.b16 %v139
  %v665 = vunpack.c.l.b16 %v140
  %v666 = vunpack.c.l.b16 %v141
  %v667 = vunpack.c.l.b16 %v142
  %v668 = vunpack.c.l.b16 %v143
  %v669 = vunpack.c.l.b16 %v144
  %v670 = vunpack.c.l.b16 %v145
  %v671 = vunpack.c.l.b16 %v146
  %v672 = vunpack.c.l.b16 %v147
  %v673 = vunpack.c.l.b16 %v148
  %v674 = vunpack.c.l.b16 %v149
  %v675 = vunpack.c.l.b16 %v150
  %v676 = vunpack.c.l.b16 %v151
  %v677 = vunpack.c.l.b16 %v152
  %v678 = vunpack.c.l.b16 %v153
  %v679 = vunpack.c.l.b16 %v154
  %v680 = vunpack.c.l.b16 %v155
  %v681 = vunpack.c.l.b16 %v156
  %v682 = vunpack.c.l.b16 %v157
  %v683 = vunpack.c.l.b16 %v158
  %v684 = vunpack.c.l.b16 %v159
  %v685 = vunpack.c.l.b16 %v160
  %v686 = vunpack.c.l.b16 %v161
  %v687 = vunpack.c.l.b16 %v162
  %v688 = vunpack.c.l.b16 %v163
  %v689 = vunpack.c.l.b16 %v164
  %v690 = vunpack.c.l.b16 %v165
  %v691 = vunpack.c.l.b16 %v166
  %v692 = vunpack.c.l.b16 %v167
  %v693 = vunpack.c.l.b16 %v168
  %v694 = vunpack.c.l.b16 %v169
  %v695 = vunpack.c.l.b16 %v170
  %v696 = vunpack.c.l.b16 %v171
  %v697 = vunpack.c.l.b16 %v172
  %v698 = vunpack.c.l.b16 %v173
  %v699 = vunpack.c.l.b16 %v174
  %v700 = vunpack.c.l.b16 %v175
  %v701 = vunpack.c.l.b16 %v176
  %v702 = vunpack.c.l.b16 %v177
  %v703 = vunpack.c.l.b16 %v178
  %v704 = vunpack.c.l.b16 %v179
  %v705 = vunpack.c.l.b16 %v180
  %v706 = vunpack.c.l.b16 %v181
  %v707 = vunpack.c.l.b16 %v182
  %v708 = vunpack.c.l.b16 %v183
  %v709 = vunpack.c.l.b16 %v184
  %v710 = vunpack.c.l.b16 %v185
  %v711 = vunpack.c.l.b16 %v186
  %v712 = vunpack.c.l.b16 %v187
  %v713 = vunpack.c.l.b16 %v188
  %v714 = vunpack.c.l.b16 %v189
  %v715 = vunpack.c.l.b16 %v190
  %v716 = vunpack.c.l.b16 %v191
  %v717 = vunpack.c.l.b16 %v192
  %v718 = vunpack.c.l.b16 %v193
  %v719 = vunpack.c.l.b16 %v194
  %v720 = vunpack.c.l.b16 %v195
  %v721 = vunpack.c.l.b16 %v196
  %v722 = vunpack.c.l.b16 %v197
  %v723 = vunpack.c.l.b16 %v198
  %v724 = vunpack.c.l.b16 %v199
  %v725 = vunpack.c.l.b16 %v200
  %v726 = vunpack.c.l.b16 %v201
  %v727 = vunpack.c.l.b16 %v202
  %v728 = vunpack.c.l.b16 %v203
  %v729 = vunpack.c.l.b16 %v204
  %v730 = vunpack.c.l.b16 %v205
  %v731 = vunpack.c.l.b16 %v206
  %v732 = vunpack.c.l.b16 %v207
  %v733 = vunpack.c.l.b16 %v208
  %v734 = vunpack.c.l.b16 %v209
  %v735 = vunpack.c.l.b16 %v210
  %v736 = vunpack.c.l.b16 %v211
  %v737 = vunpack.c.l.b16 %v212
  %v738 = vunpack.c.l.b16 %v213
  %v739 = vunpack.c.l.b16 %v214
  %v740 = vunpack.c.l.b16 %v215
  %v741 = vunpack.c.l.b16 %v216
  %v742 = vunpack.c.l.b16 %v217
  %v743 = vunpack.c.l.b16 %v218
  %v744 = vunpack.c.l.b16 %v219
  %v745 = vunpack.c.l.b16 %v220
  %v746 = vunpack.c.l.b16 %v221
  %v747 = vunpack.c.l.b16 %v222
  %v748 = vunpack.c.l.b16 %v223
  %v749 = vunpack.c.l.b16 %v224
  %v750 = vunpack.c.l.b16 %v225
  %v751 = vunpack.c.l.b16 %v226
  %v752 = vunpack.c.l.b16 %v227
  %v753 = vunpack.c.l.b16 %v228
  %v754 = vunpack.c.l.b16 %v229
  %v755 = vunpack.c.l.b16 %v230
  %v756 = vunpack.c.l.b16 %v231
  %v757 = vunpack.c.l.b16 %v232
  %v758 = vunpack.c.l.b16 %v233
  %v759 = vunpack.c.l.b16 %v234
  %v760 = vunpack.c.l.b16 %v235
  %v761 = vunpack.c.l.b16 %v236
  %v762 = vunpack.c.l.b16 %v237
  %v763 = vunpack.c.l.b16 %v238
  %v764 = vunpack.c.l.b16 %v239
  %v765 = vunpack.c.l.b16 %v240
  %v766 = vunpack.c.l.b16 %v241
  %v767 = vunpack.c.l.b16 %v242
  %v768 = vunpack.c.l.b16 %v243
  %v769 = vunpack.c.l.b16 %v244
  %v770 = vunpack.c.l.b16 %v245
  %v771 = vunpack.c.l.b16 %v246
  %v772 = vunpack.c.l.b16 %v247
  %v773 = vunpack.c.l.b16 %v248
  %v774 = vunpack.c.l.b16 %v249
  %v775 = vunpack.c.l.b16 %v250
  %v776 = vunpack.c.l.b16 %v251
  %v777 = vunpack.c.l.b16 %v252
  %v778 = vpack.c.b16 %v555, %v554
  %v779 = vpack.c.b16 %v557, %v556
  %v780 = vpack.c.b16 %v559, %v558
  %v781 = vpack.c.b16 %v561, %v560
  %v782 = vpack.c.b16 %v563, %v562
  %v783 = vpack.c.b16 %v565, %v564
  %v784 = vpack.c.b16 %v567, %v566
  %v785 = vpack.c.b16 %v569, %v568
  %v786 = vpack.c.b16 %v571, %v570
  %v787 = vpack.c.b16 %v573, %v572
  %v788 = vpack.c.b16 %v575, %v574
  %v789 = vpack.c.b16 %v577, %v576
  %v790 = vpack.c.b16 %v579, %v578
  %v791 = vpack.c.b16 %v581, %v580
  %v792 = vpack.c.b16 %v583, %v582
  %v793 = vpack.c.b16 %v585, %v584
  %v794 = vpack.c.b16 %v587, %v586
  %v795 = vpack.c.b16 %v589, %v588
  %v796 = vpack.c.b16 %v591, %v590
  %v797 = vpack.c.b16 %v593, %v592
  %v798 = vpack.c.b16 %v595, %v594
  %v799 = vpack.c.b16 %v597, %v596
  %v800 = vpack.c.b16 %v599, %v598
  %v801 = vpack.c.b16 %v601, %v600
  %v802 = vpack.c.b16 %v603, %v602
  %v803 = vpack.c.b16 %v605, %v604
  %v804 = vpack.c.b16 %v607, %v606
  %v805 = vpack.c.b16 %v609, %v608
  %v806 = vpack.c.b16 %v611, %v610
  %v807 = vpack.c.b16 %v613, %v612
  %v808 = vpack.c.b16 %v615, %v614
  %v809 = vpack.c.b16 %v617, %v616
  %v810 = vpack.c.b16 %v619, %v618
  %v811 = vpack.c.b16 %v621, %v620
  %v812 = vpack.c.b16 %v623, %v622
  %v813 = vpack.c.b16 %v625, %v624
  %v814 = vpack.c.b16 %v627, %v626
  %v815 = vpack.c.b16 %v629, %v628
  %v816 = vpack.c.b16 %v631, %v630
  %v817 = vpack.c.b16 %v633, %v632
  %v818 = vpack.c.b16 %v635, %v634
  %v819 = vpack.c.b16 %v637, %v636
  %v820 = vpack.c.b16 %v639, %v638
  %v821 = vpack.c.b16 %v641, %v640
  %v822 = vpack.c.b16 %v643, %v642
  %v823 = vpack.c.b16 %v645, %v644
  %v824 = vpack.c.b16 %v647, %v646
  %v825 = vpack.c.b16 %v649, %v648
  %v826 = vpack.c.b16 %v651, %v650
  %v827 = vpack.c.b16 %v653, %v652
  %v828 = vpack.c.b16 %v655, %v654
  %v829 = vpack.c.b16 %v657, %v656
  %v830 = vpack.c.b16 %v659, %v658
  %v831 = vpack.c.b16 %v661, %v660
  %v832 = vpack.c.b16 %v663, %v662
  %v833 = vpack.c.b16 %v665, %v664
  %v834 = vpack.c.b16 %v667, %v666
  %v835 = vpack.c.b16 %v669, %v668
  %v836 = vpack.c.b16 %v671, %v670
  %v837 = vpack.c.b16 %v673, %v672
  %v838 = vpack.c.b16 %v675, %v674
  %v839 = vpack.c.b16 %v677, %v676
  %v840 = vpack.c.b16 %v679, %v678
  %v841 = vpack.c.b16 %v681, %v680
  %v842 = vpack.c.b16 %v683, %v682
  %v843 = vpack.c.b16 %v685, %v684
  %v844 = vpack.c.b16 %v687, %v686
  %v845 = vpack.c.b16 %v689, %v688
  %v846 = vpack.c.b16 %v691, %v690
  %v847 = vpack.c.b16 %v693, %v692
  %v848 = vpack.c.b16 %v695, %v694
  %v849 = vpack.c.b16 %v697, %v696
  %v850 = vpack.c.b16 %v699, %v698
  %v851 = vpack.c.b16 %v701, %v700
  %v852 = vpack.c.b16 %v703, %v702
  %v853 = vpack.c.b16 %v705, %v704
  %v854 = vpack.c.b16 %v707, %v706
  %v855 = vpack.c.b16 %v709, %v708
  %v856 = vpack.c.b16 %v711, %v710
  %v857 = vpack.c.b16 %v713, %v712
  %v858 = vpack.c.b16 %v715, %v714
  %v859 = vpack.c.b16 %v717, %v716
  %v860 = vpack.c.b16 %v719, %v718
  %v861 = vpack.c.b16 %v721, %v720
  %v862 = vpack.c.b16 %v723, %v722
  %v863 = vpack.c.b16 %v725, %v724
  %v864 = vpack.c.b16 %v727, %v726
  %v865 = vpack.c.b16 %v729, %v728
  %v866 = vpack.c.b16 %v731, %v730
  %v867 = vpack.c.b16 %v733, %v732
  %v868 = vpack.c.b16 %v735, %v734
  %v869 = vpack.c.b16 %v737, %v736
  %v870 = vpack.c.b16 %v739, %v738
  %v871 = vpack.c.b16 %v741, %v740
  %v872 = vpack.c.b16 %v743, %v742
  %v873 = vpack.c.b16 %v745, %v744
  %v874 = vpack.c.b16 %v747, %v746
  %v875 = vpack.c.b16 %v749, %v748
  %v876 = vpack.c.b16 %v751, %v750
  %v877 = vpack.c.b16 %v753, %v752
  %v878 = vpack.c.b16 %v755, %v754
  %v879 = vpack.c.b16 %v757, %v756
  %v880 = vpack.c.b16 %v759, %v758
  %v881 = vpack.c.b16 %v761, %v760
  %v882 = vpack.c.b16 %v763, %v762
  %v883 = vpack.c.b16 %v765, %v764
  %v884 = vpack.c.b16 %v767, %v766
  %v885 = vpack.c.b16 %v769, %v768
  %v886 = vpack.c.b16 %v771, %v770
  %v887 = vpack.c.b16 %v773, %v772
  %v888 = vpack.c.b16 %v775, %v774
  %v889 = vpack.c.b16 %v777, %v776
  %1002 = vmatprep.subr.bf16.mxu0 0
  %1003 = vmatpush1.bf16.msra.mxu0 %v778
  %1004 = vmatprep.subr.bf16.mxu0 0
  %1005 = vmatpush1.bf16.msra.mxu0 %v779
  %1006 = vmatprep.subr.bf16.mxu0 0
  %1007 = vmatpush1.bf16.msra.mxu0 %v780
  %1008 = vmatprep.subr.bf16.mxu0 0
  %1009 = vmatpush1.bf16.msra.mxu0 %v781
  %1010 = vmatprep.subr.bf16.mxu0 0
  %1011 = vmatpush1.bf16.msra.mxu0 %v782
  %1012 = vmatprep.subr.bf16.mxu0 0
  %1013 = vmatpush1.bf16.msra.mxu0 %v783
  %1014 = vmatprep.subr.bf16.mxu0 0
  %1015 = vmatpush1.bf16.msra.mxu0 %v784
  %1016 = vmatprep.subr.bf16.mxu0 0
  %1017 = vmatpush1.bf16.msra.mxu0 %v785
  %1018 = vmatprep.subr.bf16.mxu0 0
  %1019 = vmatpush1.bf16.msra.mxu0 %v786
  %1020 = vmatprep.subr.bf16.mxu0 0
  %1021 = vmatpush1.bf16.msra.mxu0 %v787
  %1022 = vmatprep.subr.bf16.mxu0 0
  %1023 = vmatpush1.bf16.msra.mxu0 %v788
  %1024 = vmatprep.subr.bf16.mxu0 0
  %1025 = vmatpush1.bf16.msra.mxu0 %v789
  %1026 = vmatprep.subr.bf16.mxu0 0
  %1027 = vmatpush1.bf16.msra.mxu0 %v790
  %1028 = vmatprep.subr.bf16.mxu0 0
  %1029 = vmatpush1.bf16.msra.mxu0 %v791
  %1030 = vmatprep.subr.bf16.mxu0 0
  %1031 = vmatpush1.bf16.msra.mxu0 %v792
  %1032 = vmatprep.subr.bf16.mxu0 0
  %1033 = vmatpush1.bf16.msra.mxu0 %v793
  %1034 = vmatprep.mubr.bf16.mxu0 %v303
  %1035 = vmatmul.mubr.bf16.gmra.mrb[0].mxu0 %v302
  %v1036 = vpop.f32.mrb[0].mxu0
  %v1037 = vadd.f32 %v258, %v1036
  %v1038 = vpop.f32.mrb[0].mxu0
  %v1039 = vpop.f32.mrb[0].mxu0
  %v1040 = vadd.f32 %v258, %v1039
  %v1041 = vpop.f32.mrb[0].mxu0
  %1042 = vdwg.mxu0
  %1043 = vmatprep.subr.bf16.mxu0 0
  %1044 = vmatpush1.bf16.msra.mxu0 %v794
  %1045 = vmatprep.subr.bf16.mxu0 0
  %1046 = vmatpush1.bf16.msra.mxu0 %v795
  %1047 = vmatprep.subr.bf16.mxu0 0
  %1048 = vmatpush1.bf16.msra.mxu0 %v796
  %1049 = vmatprep.subr.bf16.mxu0 0
  %1050 = vmatpush1.bf16.msra.mxu0 %v797
  %1051 = vmatprep.subr.bf16.mxu0 0
  %1052 = vmatpush1.bf16.msra.mxu0 %v798
  %1053 = vmatprep.subr.bf16.mxu0 0
  %1054 = vmatpush1.bf16.msra.mxu0 %v799
  %1055 = vmatprep.subr.bf16.mxu0 0
  %1056 = vmatpush1.bf16.msra.mxu0 %v800
  %1057 = vmatprep.subr.bf16.mxu0 0
  %1058 = vmatpush1.bf16.msra.mxu0 %v801
  %1059 = vmatprep.subr.bf16.mxu0 0
  %1060 = vmatpush1.bf16.msra.mxu0 %v802
  %1061 = vmatprep.subr.bf16.mxu0 0
  %1062 = vmatpush1.bf16.msra.mxu0 %v803
  %1063 = vmatprep.subr.bf16.mxu0 0
  %1064 = vmatpush1.bf16.msra.mxu0 %v804
  %1065 = vmatprep.subr.bf16.mxu0 0
  %1066 = vmatpush1.bf16.msra.mxu0 %v805
  %1067 = vmatprep.subr.bf16.mxu0 0
  %1068 = vmatpush1.bf16.msra.mxu0 %v806
  %1069 = vmatprep.subr.bf16.mxu0 0
  %1070 = vmatpush1.bf16.msra.mxu0 %v807
  %1071 = vmatprep.subr.bf16.mxu0 0
  %1072 = vmatpush1.bf16.msra.mxu0 %v808
  %1073 = vmatprep.subr.bf16.mxu0 0
  %1074 = vmatpush1.bf16.msra.mxu0 %v809
  %1075 = vmatprep.mubr.bf16.mxu0 %v305
  %1076 = vmatmul.mubr.bf16.gmra.mrb[0].mxu0 %v304
  %v1077 = vpop.f32.mrb[0].mxu0
  %v1078 = vadd.f32 %v1037, %v1077
  %v1079 = vpop.f32.mrb[0].mxu0
  %v1080 = vpop.f32.mrb[0].mxu0
  %v1081 = vadd.f32 %v1040, %v1080
  %v1082 = vpop.f32.mrb[0].mxu0
  %1083 = vdwg.mxu0
  %1084 = vmatprep.subr.bf16.mxu0 0
  %1085 = vmatpush1.bf16.msra.mxu0 %v810
  %1086 = vmatprep.subr.bf16.mxu0 0
  %1087 = vmatpush1.bf16.msra.mxu0 %v811
  %1088 = vmatprep.subr.bf16.mxu0 0
  %1089 = vmatpush1.bf16.msra.mxu0 %v812
  %1090 = vmatprep.subr.bf16.mxu0 0
  %1091 = vmatpush1.bf16.msra.mxu0 %v813
  %1092 = vmatprep.subr.bf16.mxu0 0
  %1093 = vmatpush1.bf16.msra.mxu0 %v814
  %1094 = vmatprep.subr.bf16.mxu0 0
  %1095 = vmatpush1.bf16.msra.mxu0 %v815
  %1096 = vmatprep.subr.bf16.mxu0 0
  %1097 = vmatpush1.bf16.msra.mxu0 %v816
  %1098 = vmatprep.subr.bf16.mxu0 0
  %1099 = vmatpush1.bf16.msra.mxu0 %v817
  %1100 = vmatprep.subr.bf16.mxu0 0
  %1101 = vmatpush1.bf16.msra.mxu0 %v818
  %1102 = vmatprep.subr.bf16.mxu0 0
  %1103 = vmatpush1.bf16.msra.mxu0 %v819
  %1104 = vmatprep.subr.bf16.mxu0 0
  %1105 = vmatpush1.bf16.msra.mxu0 %v820
  %1106 = vmatprep.subr.bf16.mxu0 0
  %1107 = vmatpush1.bf16.msra.mxu0 %v821
  %1108 = vmatprep.subr.bf16.mxu0 0
  %1109 = vmatpush1.bf16.msra.mxu0 %v822
  %1110 = vmatprep.subr.bf16.mxu0 0
  %1111 = vmatpush1.bf16.msra.mxu0 %v823
  %1112 = vmatprep.subr.bf16.mxu0 0
  %1113 = vmatpush1.bf16.msra.mxu0 %v824
  %1114 = vmatprep.subr.bf16.mxu0 0
  %1115 = vmatpush1.bf16.msra.mxu0 %v825
  %1116 = vmatprep.mubr.bf16.mxu0 %v307
  %1117 = vmatmul.mubr.bf16.gmra.mrb[0].mxu0 %v306
  %v1118 = vpop.f32.mrb[0].mxu0
  %v1119 = vadd.f32 %v1078, %v1118
  %v1120 = vpop.f32.mrb[0].mxu0
  %v1121 = vpop.f32.mrb[0].mxu0
  %v1122 = vadd.f32 %v1081, %v1121
  %v1123 = vpop.f32.mrb[0].mxu0
  %1124 = vdwg.mxu0
  %1125 = vmatprep.subr.bf16.mxu0 0
  %1126 = vmatpush1.bf16.msra.mxu0 %v826
  %1127 = vmatprep.subr.bf16.mxu0 0
  %1128 = vmatpush1.bf16.msra.mxu0 %v827
  %1129 = vmatprep.subr.bf16.mxu0 0
  %1130 = vmatpush1.bf16.msra.mxu0 %v828
  %1131 = vmatprep.subr.bf16.mxu0 0
  %1132 = vmatpush1.bf16.msra.mxu0 %v829
  %1133 = vmatprep.subr.bf16.mxu0 0
  %1134 = vmatpush1.bf16.msra.mxu0 %v830
  %1135 = vmatprep.subr.bf16.mxu0 0
  %1136 = vmatpush1.bf16.msra.mxu0 %v831
  %1137 = vmatprep.subr.bf16.mxu0 0
  %1138 = vmatpush1.bf16.msra.mxu0 %v832
  %1139 = vmatprep.subr.bf16.mxu0 0
  %1140 = vmatpush1.bf16.msra.mxu0 %v833
  %1141 = vmatprep.subr.bf16.mxu0 0
  %1142 = vmatpush1.bf16.msra.mxu0 %v834
  %1143 = vmatprep.subr.bf16.mxu0 0
  %1144 = vmatpush1.bf16.msra.mxu0 %v835
  %1145 = vmatprep.subr.bf16.mxu0 0
  %1146 = vmatpush1.bf16.msra.mxu0 %v836
  %1147 = vmatprep.subr.bf16.mxu0 0
  %1148 = vmatpush1.bf16.msra.mxu0 %v837
  %1149 = vmatprep.subr.bf16.mxu0 0
  %1150 = vmatpush1.bf16.msra.mxu0 %v838
  %1151 = vmatprep.subr.bf16.mxu0 0
  %1152 = vmatpush1.bf16.msra.mxu0 %v839
  %1153 = vmatprep.subr.bf16.mxu0 0
  %1154 = vmatpush1.bf16.msra.mxu0 %v840
  %1155 = vmatprep.subr.bf16.mxu0 0
  %1156 = vmatpush1.bf16.msra.mxu0 %v841
  %1157 = vmatprep.mubr.bf16.mxu0 %v309
  %1158 = vmatmul.mubr.bf16.gmra.mrb[0].mxu0 %v308
  %v1159 = vpop.f32.mrb[0].mxu0
  %v1160 = vadd.f32 %v1119, %v1159
  %v1161 = vpop.f32.mrb[0].mxu0
  %v1162 = vpop.f32.mrb[0].mxu0
  %v1163 = vadd.f32 %v1122, %v1162
  %v1164 = vpop.f32.mrb[0].mxu0
  %1165 = vdwg.mxu0
  %1166 = vmatprep.subr.bf16.mxu0 0
  %1167 = vmatpush1.bf16.msra.mxu0 %v842
  %1168 = vmatprep.subr.bf16.mxu0 0
  %1169 = vmatpush1.bf16.msra.mxu0 %v843
  %1170 = vmatprep.subr.bf16.mxu0 0
  %1171 = vmatpush1.bf16.msra.mxu0 %v844
  %1172 = vmatprep.subr.bf16.mxu0 0
  %1173 = vmatpush1.bf16.msra.mxu0 %v845
  %1174 = vmatprep.subr.bf16.mxu0 0
  %1175 = vmatpush1.bf16.msra.mxu0 %v846
  %1176 = vmatprep.subr.bf16.mxu0 0
  %1177 = vmatpush1.bf16.msra.mxu0 %v847
  %1178 = vmatprep.subr.bf16.mxu0 0
  %1179 = vmatpush1.bf16.msra.mxu0 %v848
  %1180 = vmatprep.subr.bf16.mxu0 0
  %1181 = vmatpush1.bf16.msra.mxu0 %v849
  %1182 = vmatprep.subr.bf16.mxu0 0
  %1183 = vmatpush1.bf16.msra.mxu0 %v850
  %1184 = vmatprep.subr.bf16.mxu0 0
  %1185 = vmatpush1.bf16.msra.mxu0 %v851
  %1186 = vmatprep.subr.bf16.mxu0 0
  %1187 = vmatpush1.bf16.msra.mxu0 %v852
  %1188 = vmatprep.subr.bf16.mxu0 0
  %1189 = vmatpush1.bf16.msra.mxu0 %v853
  %1190 = vmatprep.subr.bf16.mxu0 0
  %1191 = vmatpush1.bf16.msra.mxu0 %v854
  %1192 = vmatprep.subr.bf16.mxu0 0
  %1193 = vmatpush1.bf16.msra.mxu0 %v855
  %1194 = vmatprep.subr.bf16.mxu0 0
  %1195 = vmatpush1.bf16.msra.mxu0 %v856
  %1196 = vmatprep.subr.bf16.mxu0 0
  %1197 = vmatpush1.bf16.msra.mxu0 %v857
  %1198 = vmatprep.mubr.bf16.mxu0 %v311
  %1199 = vmatmul.mubr.bf16.gmra.mrb[0].mxu0 %v310
  %v1200 = vpop.f32.mrb[0].mxu0
  %v1201 = vadd.f32 %v1160, %v1200
  %v1202 = vpop.f32.mrb[0].mxu0
  %v1203 = vpop.f32.mrb[0].mxu0
  %v1204 = vadd.f32 %v1163, %v1203
  %v1205 = vpop.f32.mrb[0].mxu0
  %1206 = vdwg.mxu0
  %1207 = vmatprep.subr.bf16.mxu0 0
  %1208 = vmatpush1.bf16.msra.mxu0 %v858
  %1209 = vmatprep.subr.bf16.mxu0 0
  %1210 = vmatpush1.bf16.msra.mxu0 %v859
  %1211 = vmatprep.subr.bf16.mxu0 0
  %1212 = vmatpush1.bf16.msra.mxu0 %v860
  %1213 = vmatprep.subr.bf16.mxu0 0
  %1214 = vmatpush1.bf16.msra.mxu0 %v861
  %1215 = vmatprep.subr.bf16.mxu0 0
  %1216 = vmatpush1.bf16.msra.mxu0 %v862
  %1217 = vmatprep.subr.bf16.mxu0 0
  %1218 = vmatpush1.bf16.msra.mxu0 %v863
  %1219 = vmatprep.subr.bf16.mxu0 0
  %1220 = vmatpush1.bf16.msra.mxu0 %v864
  %1221 = vmatprep.subr.bf16.mxu0 0
  %1222 = vmatpush1.bf16.msra.mxu0 %v865
  %1223 = vmatprep.subr.bf16.mxu0 0
  %1224 = vmatpush1.bf16.msra.mxu0 %v866
  %1225 = vmatprep.subr.bf16.mxu0 0
  %1226 = vmatpush1.bf16.msra.mxu0 %v867
  %1227 = vmatprep.subr.bf16.mxu0 0
  %1228 = vmatpush1.bf16.msra.mxu0 %v868
  %1229 = vmatprep.subr.bf16.mxu0 0
  %1230 = vmatpush1.bf16.msra.mxu0 %v869
  %1231 = vmatprep.subr.bf16.mxu0 0
  %1232 = vmatpush1.bf16.msra.mxu0 %v870
  %1233 = vmatprep.subr.bf16.mxu0 0
  %1234 = vmatpush1.bf16.msra.mxu0 %v871
  %1235 = vmatprep.subr.bf16.mxu0 0
  %1236 = vmatpush1.bf16.msra.mxu0 %v872
  %1237 = vmatprep.subr.bf16.mxu0 0
  %1238 = vmatpush1.bf16.msra.mxu0 %v873
  %1239 = vmatprep.mubr.bf16.mxu0 %v313
  %1240 = vmatmul.mubr.bf16.gmra.mrb[0].mxu0 %v312
  %v1241 = vpop.f32.mrb[0].mxu0
  %v1242 = vadd.f32 %v1201, %v1241
  %v1243 = vpop.f32.mrb[0].mxu0
  %v1244 = vpop.f32.mrb[0].mxu0
  %v1245 = vadd.f32 %v1204, %v1244
  %v1246 = vpop.f32.mrb[0].mxu0
  %1247 = vdwg.mxu0
  %1248 = vmatprep.subr.bf16.mxu0 0
  %1249 = vmatpush1.bf16.msra.mxu0 %v874
  %1250 = vmatprep.subr.bf16.mxu0 0
  %1251 = vmatpush1.bf16.msra.mxu0 %v875
  %1252 = vmatprep.subr.bf16.mxu0 0
  %1253 = vmatpush1.bf16.msra.mxu0 %v876
  %1254 = vmatprep.subr.bf16.mxu0 0
  %1255 = vmatpush1.bf16.msra.mxu0 %v877
  %1256 = vmatprep.subr.bf16.mxu0 0
  %1257 = vmatpush1.bf16.msra.mxu0 %v878
  %1258 = vmatprep.subr.bf16.mxu0 0
  %1259 = vmatpush1.bf16.msra.mxu0 %v879
  %1260 = vmatprep.subr.bf16.mxu0 0
  %1261 = vmatpush1.bf16.msra.mxu0 %v880
  %1262 = vmatprep.subr.bf16.mxu0 0
  %1263 = vmatpush1.bf16.msra.mxu0 %v881
  %1264 = vmatprep.subr.bf16.mxu0 0
  %1265 = vmatpush1.bf16.msra.mxu0 %v882
  %1266 = vmatprep.subr.bf16.mxu0 0
  %1267 = vmatpush1.bf16.msra.mxu0 %v883
  %1268 = vmatprep.subr.bf16.mxu0 0
  %1269 = vmatpush1.bf16.msra.mxu0 %v884
  %1270 = vmatprep.subr.bf16.mxu0 0
  %1271 = vmatpush1.bf16.msra.mxu0 %v885
  %1272 = vmatprep.subr.bf16.mxu0 0
  %1273 = vmatpush1.bf16.msra.mxu0 %v886
  %1274 = vmatprep.subr.bf16.mxu0 0
  %1275 = vmatpush1.bf16.msra.mxu0 %v887
  %1276 = vmatprep.subr.bf16.mxu0 0
  %1277 = vmatpush1.bf16.msra.mxu0 %v888
  %1278 = vmatprep.subr.bf16.mxu0 0
  %1279 = vmatpush1.bf16.msra.mxu0 %v889
  %1280 = vmatprep.mubr.bf16.mxu0 %v315
  %1281 = vmatmul.mubr.bf16.gmra.mrb[0].mxu0 %v314
  %v1282 = vpop.f32.mrb[0].mxu0
  %v1283 = vadd.f32 %v1242, %v1282
  %v1284 = vpop.f32.mrb[0].mxu0
  %v1285 = vpop.f32.mrb[0].mxu0
  %v1286 = vadd.f32 %v1245, %v1285
  %v1287 = vpop.f32.mrb[0].mxu0
  %1288 = vdwg.mxu0
  %1289 = vst [vmem:[%s3] sm:$0xff] %v1283
  %1290 = vst [vmem:[%s3 + $0x8] sm:$0xff] %v1286
  // Predicated region
  $region14: #{convnet_forward.5} parent=0 // pred_check
    _
  $region15: #{convnet_forward.5} parent=0 // pred_check_branch
    %1292 = sbr.rel (0) target = $region17
  $region16: #{convnet_forward.5} parent=0 // pred_region
    _
  $region17: #{convnet_forward.5} parent=0 // pred_fallthru
    _
  // Predicated region
  $region18: #{convnet_forward.5} parent=0 // pred_check
    _
  $region19: #{convnet_forward.5} parent=0 // pred_check_branch
    %1294 = sbr.rel (0) target = $region21
  $region20: #{convnet_forward.5} parent=0 // pred_region
    _
  $region21: #{convnet_forward.5} parent=0 // pred_fallthru
    _

// kernel: convnet_forward.4
$region0: #{convnet_forward.4}
  #allocation0 [shape = 'u32[]', space=smem, size = 0x4, offset = 0x4, fixed_abs, tag = 'smem constant byte address 0x4 - core index']
  #allocation1 [shape = 'u32[144,128]{1,0:T(1,128)}', space=vmem, size = 0x12000, scoped, tag = 'internal scratch']
  %s0 = inlined_call_operand.vmem [shape: bf16[16,1728], index: 0, kind: input, shape index: {}]
  %s1 = inlined_call_operand.hbm [shape: bf16[1728,1024], index: 1, kind: input, shape index: {}]
  %s2 = inlined_call_operand.hbm [shape: f32[1,1024], index: 2, kind: input, shape index: {}]
  %s3 = inlined_call_operand.hbm [shape: f32[1,1024], index: 3, kind: input, shape index: {}]
  %s4 = inlined_call_operand.vmem [shape: bf16[16,256], index: 4, kind: output, shape index: {}]
  %s5 = sld [smem:[#allocation0]]
  $region38: #{convnet_forward.4} parent=0
    _
  %s7 = ssub.s32 1, %s5
  %s8 = scalar_select 0, %s7, %s5
  $region1: #{convnet_forward.4} parent=0
    #allocation2 [shape = 'u8[3538944]{0}', space=vmem, size = 0x360000, scoped, tag = 'input window, operand 1, single buffered']
    #allocation3 [shape = 's32[1]{0}', space=sflag, size = 0x4, scoped, tag = 'scoped memory for convnet_forward.4']
    #allocation4 [shape = 'u8[4096]{0}', space=vmem, size = 0x1000, scoped, tag = 'input window, operand 2, single buffered']
    #allocation5 [shape = 's32[1]{0}', space=sflag, size = 0x4, scoped, tag = 'scoped memory for convnet_forward.4']
    #allocation6 [shape = 'u8[4096]{0}', space=vmem, size = 0x1000, scoped, tag = 'input window, operand 3, single buffered']
    %9 = vsyncpa [#allocation3], 0
    %10 = vsyncpa [#allocation5], 0
    // Predicated region
    $region2: #{convnet_forward.4} parent=1 // pred_check
      _
    $region3: #{convnet_forward.4} parent=1 // pred_check_branch
      %12 = sbr.rel (0) target = $region5
    $region4: #{convnet_forward.4} parent=1 // pred_region
      _
    $region5: #{convnet_forward.4} parent=1 // pred_fallthru
      _
    // Predicated region
    $region6: #{convnet_forward.4} parent=1 // pred_check
      _
    $region7: #{convnet_forward.4} parent=1 // pred_check_branch
      %14 = sbr.rel (0) target = $region9
    $region8: #{convnet_forward.4} parent=1 // pred_region
      %s16 = ssub.s32 110592, 110592
      %17 = vsyncadd [#allocation3], %s16
      %s18 = sshll.u32 [#allocation2], 4
      %s19 = int_to_ptr.vmem [resolvable:$true] %s18
      %24 = dma.hbm_to_vmem [thread:$0]  %s1, 110592, %s19, [#allocation3], 512, 512, 32
    $region9: #{convnet_forward.4} parent=1 // pred_fallthru
      _
    // Predicated region
    $region10: #{convnet_forward.4} parent=1 // pred_check
      _
    $region11: #{convnet_forward.4} parent=1 // pred_check_branch
      %26 = sbr.rel (0) target = $region13
    $region12: #{convnet_forward.4} parent=1 // pred_region
      %s28 = ssub.s32 128, 128
      %29 = vsyncadd [#allocation5], %s28
      %s31 = sshll.u32 [#allocation4], 4
      %s32 = int_to_ptr.vmem [resolvable:$true] %s31
      %34 = dma.hbm_to_vmem [thread:$0]  %s2, 128, %s32, [#allocation5]
    $region13: #{convnet_forward.4} parent=1 // pred_fallthru
      _
    // Predicated region
    $region14: #{convnet_forward.4} parent=1 // pred_check
      _
    $region15: #{convnet_forward.4} parent=1 // pred_check_branch
      %36 = sbr.rel (0) target = $region17
    $region16: #{convnet_forward.4} parent=1 // pred_region
      %s38 = ssub.s32 128, 128
      %39 = vsyncadd [#allocation5], %s38
      %s41 = sshll.u32 [#allocation6], 4
      %s42 = int_to_ptr.vmem [resolvable:$true] %s41
      %44 = dma.hbm_to_vmem [thread:$0]  %s3, 128, %s42, [#allocation5]
    $region17: #{convnet_forward.4} parent=1 // pred_fallthru
      _
    // Predicated region
    $region18: #{convnet_forward.4} parent=1 // pred_check
      _
    $region19: #{convnet_forward.4} parent=1 // pred_check_branch
      %46 = sbr.rel (0) target = $region21
    $region20: #{convnet_forward.4} parent=1 // pred_region
      %47 = dma.done [#allocation3], 110592
    $region21: #{convnet_forward.4} parent=1 // pred_fallthru
      _
    // Predicated region
    $region22: #{convnet_forward.4} parent=1 // pred_check
      _
    $region23: #{convnet_forward.4} parent=1 // pred_check_branch
      %49 = sbr.rel (0) target = $region25
    $region24: #{convnet_forward.4} parent=1 // pred_region
      %50 = dma.done [#allocation5], 128
    $region25: #{convnet_forward.4} parent=1 // pred_fallthru
      _
    // Predicated region
    $region26: #{convnet_forward.4} parent=1 // pred_check
      _
    $region27: #{convnet_forward.4} parent=1 // pred_check_branch
      %52 = sbr.rel (0) target = $region29
    $region28: #{convnet_forward.4} parent=1 // pred_region
      %53 = dma.done [#allocation5], 128
    $region29: #{convnet_forward.4} parent=1 // pred_fallthru
      _
    %v55 = vld [vmem:[%s0] sm:$0xff]
    %v56 = vld [vmem:[%s0 + $0x8] sm:$0xff]
    %v57 = vld [vmem:[%s0 + $0x10] sm:$0xff]
    %v58 = vld [vmem:[%s0 + $0x18] sm:$0xff]
    %v59 = vld [vmem:[%s0 + $0x20] sm:$0xff]
    %v60 = vld [vmem:[%s0 + $0x28] sm:$0xff]
    %v61 = vld [vmem:[%s0 + $0x30] sm:$0xff]
    %v62 = vld [vmem:[%s0 + $0x38] sm:$0xff]
    %v63 = vld [vmem:[%s0 + $0x40] sm:$0xff]
    %v64 = vld [vmem:[%s0 + $0x48] sm:$0xff]
    %v65 = vld [vmem:[%s0 + $0x50] sm:$0xff]
    %v66 = vld [vmem:[%s0 + $0x58] sm:$0xff]
    %v67 = vld [vmem:[%s0 + $0x60] sm:$0xff]
    %v68 = vld [vmem:[%s0 + $0x68] sm:$0xff]
    %v69 = vld [vmem:[#allocation2] sm:$0xff]
    %v70 = vld [vmem:[#allocation2 + $0x8] sm:$0xff]
    %v71 = vld [vmem:[#allocation2 + $0x10] sm:$0xff]
    %v72 = vld [vmem:[#allocation2 + $0x18] sm:$0xff]
    %v73 = vld [vmem:[#allocation2 + $0x20] sm:$0xff]
    %v74 = vld [vmem:[#allocation2 + $0x28] sm:$0xff]
    %v75 = vld [vmem:[#allocation2 + $0x30] sm:$0xff]
    %v76 = vld [vmem:[#allocation2 + $0x38] sm:$0xff]
    %v77 = vld [vmem:[#allocation2 + $0x40] sm:$0xff]
    %v78 = vld [vmem:[#allocation2 + $0x48] sm:$0xff]
    %v79 = vld [vmem:[#allocation2 + $0x50] sm:$0xff]
    %v80 = vld [vmem:[#allocation2 + $0x58] sm:$0xff]
    %v81 = vld [vmem:[#allocation2 + $0x60] sm:$0xff]
    %v82 = vld [vmem:[#allocation2 + $0x68] sm:$0xff]
    %v83 = vld [vmem:[#allocation2 + $0x70] sm:$0xff]
    %v84 = vld [vmem:[#allocation2 + $0x78] sm:$0xff]
    %v85 = vld [vmem:[#allocation2 + $0x80] sm:$0xff]
    %v86 = vld [vmem:[#allocation2 + $0x88] sm:$0xff]
    %v87 = vld [vmem:[#allocation2 + $0x90] sm:$0xff]
    %v88 = vld [vmem:[#allocation2 + $0x98] sm:$0xff]
    %v89 = vld [vmem:[#allocation2 + $0xa0] sm:$0xff]
    %v90 = vld [vmem:[#allocation2 + $0xa8] sm:$0xff]
    %v91 = vld [vmem:[#allocation2 + $0xb0] sm:$0xff]
    %v92 = vld [vmem:[#allocation2 + $0xb8] sm:$0xff]
    %v93 = vld [vmem:[#allocation2 + $0xc0] sm:$0xff]
    %v94 = vld [vmem:[#allocation2 + $0xc8] sm:$0xff]
    %v95 = vld [vmem:[#allocation2 + $0xd0] sm:$0xff]
    %v96 = vld [vmem:[#allocation2 + $0xd8] sm:$0xff]
    %v97 = vld [vmem:[#allocation2 + $0xe0] sm:$0xff]
    %v98 = vld [vmem:[#allocation2 + $0xe8] sm:$0xff]
    %v99 = vld [vmem:[#allocation2 + $0xf0] sm:$0xff]
    %v100 = vld [vmem:[#allocation2 + $0xf8] sm:$0xff]
    %v101 = vld [vmem:[#allocation2 + $0x100] sm:$0xff]
    %v102 = vld [vmem:[#allocation2 + $0x108] sm:$0xff]
    %v103 = vld [vmem:[#allocation2 + $0x110] sm:$0xff]
    %v104 = vld [vmem:[#allocation2 + $0x118] sm:$0xff]
    %v105 = vld [vmem:[#allocation2 + $0x120] sm:$0xff]
    %v106 = vld [vmem:[#allocation2 + $0x128] sm:$0xff]
    %v107 = vld [vmem:[#allocation2 + $0x130] sm:$0xff]
    %v108 = vld [vmem:[#allocation2 + $0x138] sm:$0xff]
    %v109 = vld [vmem:[#allocation2 + $0x140] sm:$0xff]
    %v110 = vld [vmem:[#allocation2 + $0x148] sm:$0xff]
    %v111 = vld [vmem:[#allocation2 + $0x150] sm:$0xff]
    %v112 = vld [vmem:[#allocation2 + $0x158] sm:$0xff]
    %v113 = vld [vmem:[#allocation2 + $0x160] sm:$0xff]
    %v114 = vld [vmem:[#allocation2 + $0x168] sm:$0xff]
    %v115 = vld [vmem:[#allocation2 + $0x170] sm:$0xff]
    %v116 = vld [vmem:[#allocation2 + $0x178] sm:$0xff]
    %v117 = vld [vmem:[#allocation2 + $0x180] sm:$0xff]
    %v118 = vld [vmem:[#allocation2 + $0x188] sm:$0xff]
    %v119 = vld [vmem:[#allocation2 + $0x190] sm:$0xff]
    %v120 = vld [vmem:[#allocation2 + $0x198] sm:$0xff]
    %v121 = vld [vmem:[#allocation2 + $0x1a0] sm:$0xff]
    %v122 = vld [vmem:[#allocation2 + $0x1a8] sm:$0xff]
    %v123 = vld [vmem:[#allocation2 + $0x1b0] sm:$0xff]
    %v124 = vld [vmem:[#allocation2 + $0x1b8] sm:$0xff]
    %v125 = vld [vmem:[#allocation2 + $0x1c0] sm:$0xff]
    %v126 = vld [vmem:[#allocation2 + $0x1c8] sm:$0xff]
    %v127 = vld [vmem:[#allocation2 + $0x1d0] sm:$0xff]
    %v128 = vld [vmem:[#allocation2 + $0x1d8] sm:$0xff]
    %v129 = vld [vmem:[#allocation2 + $0x1e0] sm:$0xff]
    %v130 = vld [vmem:[#allocation2 + $0x1e8] sm:$0xff]
    %v131 = vld [vmem:[#allocation2 + $0x1f0] sm:$0xff]
    %v132 = vld [vmem:[#allocation2 + $0x1f8] sm:$0xff]
    %v133 = vld [vmem:[#allocation2 + $0x200] sm:$0xff]
    %v134 = vld [vmem:[#allocation2 + $0x208] sm:$0xff]
    %v135 = vld [vmem:[#allocation2 + $0x210] sm:$0xff]
    %v136 = vld [vmem:[#allocation2 + $0x218] sm:$0xff]
    %v137 = vld [vmem:[#allocation2 + $0x220] sm:$0xff]
    %v138 = vld [vmem:[#allocation2 + $0x228] sm:$0xff]
    %v139 = vld [vmem:[#allocation2 + $0x230] sm:$0xff]
    %v140 = vld [vmem:[#allocation2 + $0x238] sm:$0xff]
    %v141 = vld [vmem:[#allocation2 + $0x240] sm:$0xff]
    %v142 = vld [vmem:[#allocation2 + $0x248] sm:$0xff]
    %v143 = vld [vmem:[#allocation2 + $0x250] sm:$0xff]
    %v144 = vld [vmem:[#allocation2 + $0x258] sm:$0xff]
    %v145 = vld [vmem:[#allocation2 + $0x260] sm:$0xff]
    %v146 = vld [vmem:[#allocation2 + $0x268] sm:$0xff]
    %v147 = vld [vmem:[#allocation2 + $0x270] sm:$0xff]
    %v148 = vld [vmem:[#allocation2 + $0x278] sm:$0xff]
    %v149 = vld [vmem:[#allocation2 + $0x280] sm:$0xff]
    %v150 = vld [vmem:[#allocation2 + $0x288] sm:$0xff]
    %v151 = vld [vmem:[#allocation2 + $0x290] sm:$0xff]
    %v152 = vld [vmem:[#allocation2 + $0x298] sm:$0xff]
    %v153 = vld [vmem:[#allocation2 + $0x2a0] sm:$0xff]
    %v154 = vld [vmem:[#allocation2 + $0x2a8] sm:$0xff]
    %v155 = vld [vmem:[#allocation2 + $0x2b0] sm:$0xff]
    %v156 = vld [vmem:[#allocation2 + $0x2b8] sm:$0xff]
    %v157 = vld [vmem:[#allocation2 + $0x2c0] sm:$0xff]
    %v158 = vld [vmem:[#allocation2 + $0x2c8] sm:$0xff]
    %v159 = vld [vmem:[#allocation2 + $0x2d0] sm:$0xff]
    %v160 = vld [vmem:[#allocation2 + $0x2d8] sm:$0xff]
    %v161 = vld [vmem:[#allocation2 + $0x2e0] sm:$0xff]
    %v162 = vld [vmem:[#allocation2 + $0x2e8] sm:$0xff]
    %v163 = vld [vmem:[#allocation2 + $0x2f0] sm:$0xff]
    %v164 = vld [vmem:[#allocation2 + $0x2f8] sm:$0xff]
    %v165 = vld [vmem:[#allocation2 + $0x300] sm:$0xff]
    %v166 = vld [vmem:[#allocation2 + $0x308] sm:$0xff]
    %v167 = vld [vmem:[#allocation2 + $0x310] sm:$0xff]
    %v168 = vld [vmem:[#allocation2 + $0x318] sm:$0xff]
    %v169 = vld [vmem:[#allocation2 + $0x320] sm:$0xff]
    %v170 = vld [vmem:[#allocation2 + $0x328] sm:$0xff]
    %v171 = vld [vmem:[#allocation2 + $0x330] sm:$0xff]
    %v172 = vld [vmem:[#allocation2 + $0x338] sm:$0xff]
    %v173 = vld [vmem:[#allocation2 + $0x340] sm:$0xff]
    %v174 = vld [vmem:[#allocation2 + $0x348] sm:$0xff]
    %v175 = vld [vmem:[#allocation2 + $0x350] sm:$0xff]
    %v176 = vld [vmem:[#allocation2 + $0x358] sm:$0xff]
    %v177 = vld [vmem:[#allocation2 + $0x360] sm:$0xff]
    %v178 = vld [vmem:[#allocation2 + $0x368] sm:$0xff]
    %v179 = vld [vmem:[#allocation2 + $0x370] sm:$0xff]
    %v180 = vld [vmem:[#allocation2 + $0x378] sm:$0xff]
    %v181 = vld [vmem:[#allocation2 + $0x380] sm:$0xff]
    %v182 = vld [vmem:[#allocation2 + $0x388] sm:$0xff]
    %v183 = vld [vmem:[#allocation2 + $0x390] sm:$0xff]
    %v184 = vld [vmem:[#allocation2 + $0x398] sm:$0xff]
    %v185 = vld [vmem:[#allocation2 + $0x3a0] sm:$0xff]
    %v186 = vld [vmem:[#allocation2 + $0x3a8] sm:$0xff]
    %v187 = vld [vmem:[#allocation2 + $0x3b0] sm:$0xff]
    %v188 = vld [vmem:[#allocation2 + $0x3b8] sm:$0xff]
    %v189 = vld [vmem:[#allocation2 + $0x3c0] sm:$0xff]
    %v190 = vld [vmem:[#allocation2 + $0x3c8] sm:$0xff]
    %v191 = vld [vmem:[#allocation2 + $0x3d0] sm:$0xff]
    %v192 = vld [vmem:[#allocation2 + $0x3d8] sm:$0xff]
    %v193 = vld [vmem:[#allocation2 + $0x3e0] sm:$0xff]
    %v194 = vld [vmem:[#allocation2 + $0x3e8] sm:$0xff]
    %v195 = vld [vmem:[#allocation2 + $0x3f0] sm:$0xff]
    %v196 = vld [vmem:[#allocation2 + $0x3f8] sm:$0xff]
    %v197 = vld [vmem:[#allocation2 + $0x400] sm:$0xff]
    %v198 = vld [vmem:[#allocation2 + $0x408] sm:$0xff]
    %v199 = vld [vmem:[#allocation2 + $0x410] sm:$0xff]
    %v200 = vld [vmem:[#allocation2 + $0x418] sm:$0xff]
    %v201 = vld [vmem:[#allocation2 + $0x420] sm:$0xff]
    %v202 = vld [vmem:[#allocation2 + $0x428] sm:$0xff]
    %v203 = vld [vmem:[#allocation2 + $0x430] sm:$0xff]
    %v204 = vld [vmem:[#allocation2 + $0x438] sm:$0xff]
    %v205 = vld [vmem:[#allocation2 + $0x440] sm:$0xff]
    %v206 = vld [vmem:[#allocation2 + $0x448] sm:$0xff]
    %v207 = vld [vmem:[#allocation2 + $0x450] sm:$0xff]
    %v208 = vld [vmem:[#allocation2 + $0x458] sm:$0xff]
    %v209 = vld [vmem:[#allocation2 + $0x460] sm:$0xff]
    %v210 = vld [vmem:[#allocation2 + $0x468] sm:$0xff]
    %v211 = vld [vmem:[#allocation2 + $0x470] sm:$0xff]
    %v212 = vld [vmem:[#allocation2 + $0x478] sm:$0xff]
    %v213 = vld [vmem:[#allocation2 + $0x480] sm:$0xff]
    %v214 = vld [vmem:[#allocation2 + $0x488] sm:$0xff]
    %v215 = vld [vmem:[#allocation2 + $0x490] sm:$0xff]
    %v216 = vld [vmem:[#allocation2 + $0x498] sm:$0xff]
    %v217 = vld [vmem:[#allocation2 + $0x4a0] sm:$0xff]
    %v218 = vld [vmem:[#allocation2 + $0x4a8] sm:$0xff]
    %v219 = vld [vmem:[#allocation2 + $0x4b0] sm:$0xff]
    %v220 = vld [vmem:[#allocation2 + $0x4b8] sm:$0xff]
    %v221 = vld [vmem:[#allocation2 + $0x4c0] sm:$0xff]
    %v222 = vld [vmem:[#allocation2 + $0x4c8] sm:$0xff]
    %v223 = vld [vmem:[#allocation2 + $0x4d0] sm:$0xff]
    %v224 = vld [vmem:[#allocation2 + $0x4d8] sm:$0xff]
    %v225 = vld [vmem:[#allocation2 + $0x4e0] sm:$0xff]
    %v226 = vld [vmem:[#allocation2 + $0x4e8] sm:$0xff]
    %v227 = vld [vmem:[#allocation2 + $0x4f0] sm:$0xff]
    %v228 = vld [vmem:[#allocation2 + $0x4f8] sm:$0xff]
    %v229 = vld [vmem:[#allocation2 + $0x500] sm:$0xff]
    %v230 = vld [vmem:[#allocation2 + $0x508] sm:$0xff]
    %v231 = vld [vmem:[#allocation2 + $0x510] sm:$0xff]
    %v232 = vld [vmem:[#allocation2 + $0x518] sm:$0xff]
    %v233 = vld [vmem:[#allocation2 + $0x520] sm:$0xff]
    %v234 = vld [vmem:[#allocation2 + $0x528] sm:$0xff]
    %v235 = vld [vmem:[#allocation2 + $0x530] sm:$0xff]
    %v236 = vld [vmem:[#allocation2 + $0x538] sm:$0xff]
    %v237 = vld [vmem:[#allocation2 + $0x540] sm:$0xff]
    %v238 = vld [vmem:[#allocation2 + $0x548] sm:$0xff]
    %v239 = vld [vmem:[#allocation2 + $0x550] sm:$0xff]
    %v240 = vld [vmem:[#allocation2 + $0x558] sm:$0xff]
    %v241 = vld [vmem:[#allocation2 + $0x560] sm:$0xff]
    %v242 = vld [vmem:[#allocation2 + $0x568] sm:$0xff]
    %v243 = vld [vmem:[#allocation2 + $0x570] sm:$0xff]
    %v244 = vld [vmem:[#allocation2 + $0x578] sm:$0xff]
    %v245 = vld [vmem:[#allocation2 + $0x580] sm:$0xff]
    %v246 = vld [vmem:[#allocation2 + $0x588] sm:$0xff]
    %v247 = vld [vmem:[#allocation2 + $0x590] sm:$0xff]
    %v248 = vld [vmem:[#allocation2 + $0x598] sm:$0xff]
    %v249 = vld [vmem:[#allocation2 + $0x5a0] sm:$0xff]
    %v250 = vld [vmem:[#allocation2 + $0x5a8] sm:$0xff]
    %v251 = vld [vmem:[#allocation2 + $0x5b0] sm:$0xff]
    %v252 = vld [vmem:[#allocation2 + $0x5b8] sm:$0xff]
    %v253 = vld [vmem:[#allocation2 + $0x5c0] sm:$0xff]
    %v254 = vld [vmem:[#allocation2 + $0x5c8] sm:$0xff]
    %v255 = vld [vmem:[#allocation2 + $0x5d0] sm:$0xff]
    %v256 = vld [vmem:[#allocation2 + $0x5d8] sm:$0xff]
    %v257 = vld [vmem:[#allocation2 + $0x5e0] sm:$0xff]
    %v258 = vld [vmem:[#allocation2 + $0x5e8] sm:$0xff]
    %v259 = vld [vmem:[#allocation2 + $0x5f0] sm:$0xff]
    %v260 = vld [vmem:[#allocation2 + $0x5f8] sm:$0xff]
    %v261 = vld [vmem:[#allocation2 + $0x600] sm:$0xff]
    %v262 = vld [vmem:[#allocation2 + $0x608] sm:$0xff]
    %v263 = vld [vmem:[#allocation2 + $0x610] sm:$0xff]
    %v264 = vld [vmem:[#allocation2 + $0x618] sm:$0xff]
    %v265 = vld [vmem:[#allocation2 + $0x620] sm:$0xff]
    %v266 = vld [vmem:[#allocation2 + $0x628] sm:$0xff]
    %v267 = vld [vmem:[#allocation2 + $0x630] sm:$0xff]
    %v268 = vld [vmem:[#allocation2 + $0x638] sm:$0xff]
    %v269 = vld [vmem:[#allocation2 + $0x640] sm:$0xff]
    %v270 = vld [vmem:[#allocation2 + $0x648] sm:$0xff]
    %v271 = vld [vmem:[#allocation2 + $0x650] sm:$0xff]
    %v272 = vld [vmem:[#allocation2 + $0x658] sm:$0xff]
    %v273 = vld [vmem:[#allocation2 + $0x660] sm:$0xff]
    %v274 = vld [vmem:[#allocation2 + $0x668] sm:$0xff]
    %v275 = vld [vmem:[#allocation2 + $0x670] sm:$0xff]
    %v276 = vld [vmem:[#allocation2 + $0x678] sm:$0xff]
    %v277 = vld [vmem:[#allocation2 + $0x680] sm:$0xff]
    %v278 = vld [vmem:[#allocation2 + $0x688] sm:$0xff]
    %v279 = vld [vmem:[#allocation2 + $0x690] sm:$0xff]
    %v280 = vld [vmem:[#allocation2 + $0x698] sm:$0xff]
    %v281 = vld [vmem:[#allocation2 + $0x6a0] sm:$0xff]
    %v282 = vld [vmem:[#allocation2 + $0x6a8] sm:$0xff]
    %v283 = vld [vmem:[#allocation2 + $0x6b0] sm:$0xff]
    %v284 = vld [vmem:[#allocation2 + $0x6b8] sm:$0xff]
    %v285 = vld [vmem:[#allocation2 + $0x6c0] sm:$0xff]
    %v286 = vld [vmem:[#allocation2 + $0x6c8] sm:$0xff]
    %v287 = vld [vmem:[#allocation2 + $0x6d0] sm:$0xff]
    %v288 = vld [vmem:[#allocation2 + $0x6d8] sm:$0xff]
    %v289 = vld [vmem:[#allocation2 + $0x6e0] sm:$0xff]
    %v290 = vld [vmem:[#allocation2 + $0x6e8] sm:$0xff]
    %v291 = vld [vmem:[#allocation2 + $0x6f0] sm:$0xff]
    %v292 = vld [vmem:[#allocation2 + $0x6f8] sm:$0xff]
    %v293 = vld [vmem:[#allocation2 + $0x700] sm:$0xff]
    %v294 = vld [vmem:[#allocation2 + $0x708] sm:$0xff]
    %v295 = vld [vmem:[#allocation2 + $0x710] sm:$0xff]
    %v296 = vld [vmem:[#allocation2 + $0x718] sm:$0xff]
    %v297 = vld [vmem:[#allocation2 + $0x720] sm:$0xff]
    %v298 = vld [vmem:[#allocation2 + $0x728] sm:$0xff]
    %v299 = vld [vmem:[#allocation2 + $0x730] sm:$0xff]
    %v300 = vld [vmem:[#allocation2 + $0x738] sm:$0xff]
    %v301 = vld [vmem:[#allocation2 + $0x740] sm:$0xff]
    %v302 = vld [vmem:[#allocation2 + $0x748] sm:$0xff]
    %v303 = vld [vmem:[#allocation2 + $0x750] sm:$0xff]
    %v304 = vld [vmem:[#allocation2 + $0x758] sm:$0xff]
    %v305 = vld [vmem:[#allocation2 + $0x760] sm:$0xff]
    %v306 = vld [vmem:[#allocation2 + $0x768] sm:$0xff]
    %v307 = vld [vmem:[#allocation2 + $0x770] sm:$0xff]
    %v308 = vld [vmem:[#allocation2 + $0x778] sm:$0xff]
    %v309 = vld [vmem:[#allocation2 + $0x780] sm:$0xff]
    %v310 = vld [vmem:[#allocation2 + $0x788] sm:$0xff]
    %v311 = vld [vmem:[#allocation2 + $0x790] sm:$0xff]
    %v312 = vld [vmem:[#allocation2 + $0x798] sm:$0xff]
    %v313 = vld [vmem:[#allocation2 + $0x7a0] sm:$0xff]
    %v314 = vld [vmem:[#allocation2 + $0x7a8] sm:$0xff]
    %v315 = vld [vmem:[#allocation2 + $0x7b0] sm:$0xff]
    %v316 = vld [vmem:[#allocation2 + $0x7b8] sm:$0xff]
    %v317 = vld [vmem:[#allocation2 + $0x7c0] sm:$0xff]
    %v318 = vld [vmem:[#allocation2 + $0x7c8] sm:$0xff]
    %v319 = vld [vmem:[#allocation2 + $0x7d0] sm:$0xff]
    %v320 = vld [vmem:[#allocation2 + $0x7d8] sm:$0xff]
    %v321 = vld [vmem:[#allocation2 + $0x7e0] sm:$0xff]
    %v322 = vld [vmem:[#allocation2 + $0x7e8] sm:$0xff]
    %v323 = vld [vmem:[#allocation2 + $0x7f0] sm:$0xff]
    %v324 = vld [vmem:[#allocation2 + $0x7f8] sm:$0xff]
    %v325 = vld [vmem:[#allocation2 + $0x800] sm:$0xff]
    %v326 = vld [vmem:[#allocation2 + $0x808] sm:$0xff]
    %v327 = vld [vmem:[#allocation2 + $0x810] sm:$0xff]
    %v328 = vld [vmem:[#allocation2 + $0x818] sm:$0xff]
    %v329 = vld [vmem:[#allocation2 + $0x820] sm:$0xff]
    %v330 = vld [vmem:[#allocation2 + $0x828] sm:$0xff]
    %v331 = vld [vmem:[#allocation2 + $0x830] sm:$0xff]
    %v332 = vld [vmem:[#allocation2 + $0x838] sm:$0xff]
    %v333 = vld [vmem:[#allocation2 + $0x840] sm:$0xff]
    %v334 = vld [vmem:[#allocation2 + $0x848] sm:$0xff]
    %v335 = vld [vmem:[#allocation2 + $0x850] sm:$0xff]
    %v336 = vld [vmem:[#allocation2 + $0x858] sm:$0xff]
    %v337 = vld [vmem:[#allocation2 + $0x860] sm:$0xff]
    %v338 = vld [vmem:[#allocation2 + $0x868] sm:$0xff]
    %v339 = vld [vmem:[#allocation2 + $0x870] sm:$0xff]
    %v340 = vld [vmem:[#allocation2 + $0x878] sm:$0xff]
    %v341 = vld [vmem:[#allocation2 + $0x880] sm:$0xff]
    %v342 = vld [vmem:[#allocation2 + $0x888] sm:$0xff]
    %v343 = vld [vmem:[#allocation2 + $0x890] sm:$0xff]
    %v344 = vld [vmem:[#allocation2 + $0x898] sm:$0xff]
    %v345 = vld [vmem:[#allocation2 + $0x8a0] sm:$0xff]
    %v346 = vld [vmem:[#allocation2 + $0x8a8] sm:$0xff]
    %v347 = vld [vmem:[#allocation2 + $0x8b0] sm:$0xff]
    %v348 = vld [vmem:[#allocation2 + $0x8b8] sm:$0xff]
    %v349 = vld [vmem:[#allocation2 + $0x8c0] sm:$0xff]
    %v350 = vld [vmem:[#allocation2 + $0x8c8] sm:$0xff]
    %v351 = vld [vmem:[#allocation2 + $0x8d0] sm:$0xff]
    %v352 = vld [vmem:[#allocation2 + $0x8d8] sm:$0xff]
    %v353 = vld [vmem:[#allocation2 + $0x8e0] sm:$0xff]
    %v354 = vld [vmem:[#allocation2 + $0x8e8] sm:$0xff]
    %v355 = vld [vmem:[#allocation2 + $0x8f0] sm:$0xff]
    %v356 = vld [vmem:[#allocation2 + $0x8f8] sm:$0xff]
    %v357 = vld [vmem:[#allocation2 + $0x900] sm:$0xff]
    %v358 = vld [vmem:[#allocation2 + $0x908] sm:$0xff]
    %v359 = vld [vmem:[#allocation2 + $0x910] sm:$0xff]
    %v360 = vld [vmem:[#allocation2 + $0x918] sm:$0xff]
    %v361 = vld [vmem:[#allocation2 + $0x920] sm:$0xff]
    %v362 = vld [vmem:[#allocation2 + $0x928] sm:$0xff]
    %v363 = vld [vmem:[#allocation2 + $0x930] sm:$0xff]
    %v364 = vld [vmem:[#allocation2 + $0x938] sm:$0xff]
    %v365 = vld [vmem:[#allocation2 + $0x940] sm:$0xff]
    %v366 = vld [vmem:[#allocation2 + $0x948] sm:$0xff]
    %v367 = vld [vmem:[#allocation2 + $0x950] sm:$0xff]
    %v368 = vld [vmem:[#allocation2 + $0x958] sm:$0xff]
    %v369 = vld [vmem:[#allocation2 + $0x960] sm:$0xff]
    %v370 = vld [vmem:[#allocation2 + $0x968] sm:$0xff]
    %v371 = vld [vmem:[#allocation2 + $0x970] sm:$0xff]
    %v372 = vld [vmem:[#allocation2 + $0x978] sm:$0xff]
    %v373 = vld [vmem:[#allocation2 + $0x980] sm:$0xff]
    %v374 = vld [vmem:[#allocation2 + $0x988] sm:$0xff]
    %v375 = vld [vmem:[#allocation2 + $0x990] sm:$0xff]
    %v376 = vld [vmem:[#allocation2 + $0x998] sm:$0xff]
    %v377 = vld [vmem:[#allocation2 + $0x9a0] sm:$0xff]
    %v378 = vld [vmem:[#allocation2 + $0x9a8] sm:$0xff]
    %v379 = vld [vmem:[#allocation2 + $0x9b0] sm:$0xff]
    %v380 = vld [vmem:[#allocation2 + $0x9b8] sm:$0xff]
    %v381 = vld [vmem:[#allocation2 + $0x9c0] sm:$0xff]
    %v382 = vld [vmem:[#allocation2 + $0x9c8] sm:$0xff]
    %v383 = vld [vmem:[#allocation2 + $0x9d0] sm:$0xff]
    %v384 = vld [vmem:[#allocation2 + $0x9d8] sm:$0xff]
    %v385 = vld [vmem:[#allocation2 + $0x9e0] sm:$0xff]
    %v386 = vld [vmem:[#allocation2 + $0x9e8] sm:$0xff]
    %v387 = vld [vmem:[#allocation2 + $0x9f0] sm:$0xff]
    %v388 = vld [vmem:[#allocation2 + $0x9f8] sm:$0xff]
    %v389 = vld [vmem:[#allocation2 + $0xa00] sm:$0xff]
    %v390 = vld [vmem:[#allocation2 + $0xa08] sm:$0xff]
    %v391 = vld [vmem:[#allocation2 + $0xa10] sm:$0xff]
    %v392 = vld [vmem:[#allocation2 + $0xa18] sm:$0xff]
    %v393 = vld [vmem:[#allocation2 + $0xa20] sm:$0xff]
    %v394 = vld [vmem:[#allocation2 + $0xa28] sm:$0xff]
    %v395 = vld [vmem:[#allocation2 + $0xa30] sm:$0xff]
    %v396 = vld [vmem:[#allocation2 + $0xa38] sm:$0xff]
    %v397 = vld [vmem:[#allocation2 + $0xa40] sm:$0xff]
    %v398 = vld [vmem:[#allocation2 + $0xa48] sm:$0xff]
    %v399 = vld [vmem:[#allocation2 + $0xa50] sm:$0xff]
    %v400 = vld [vmem:[#allocation2 + $0xa58] sm:$0xff]
    %v401 = vld [vmem:[#allocation2 + $0xa60] sm:$0xff]
    %v402 = vld [vmem:[#allocation2 + $0xa68] sm:$0xff]
    %v403 = vld [vmem:[#allocation2 + $0xa70] sm:$0xff]
    %v404 = vld [vmem:[#allocation2 + $0xa78] sm:$0xff]
    %v405 = vld [vmem:[#allocation2 + $0xa80] sm:$0xff]
    %v406 = vld [vmem:[#allocation2 + $0xa88] sm:$0xff]
    %v407 = vld [vmem:[#allocation2 + $0xa90] sm:$0xff]
    %v408 = vld [vmem:[#allocation2 + $0xa98] sm:$0xff]
    %v409 = vld [vmem:[#allocation2 + $0xaa0] sm:$0xff]
    %v410 = vld [vmem:[#allocation2 + $0xaa8] sm:$0xff]
    %v411 = vld [vmem:[#allocation2 + $0xab0] sm:$0xff]
    %v412 = vld [vmem:[#allocation2 + $0xab8] sm:$0xff]
    %v413 = vld [vmem:[#allocation2 + $0xac0] sm:$0xff]
    %v414 = vld [vmem:[#allocation2 + $0xac8] sm:$0xff]
    %v415 = vld [vmem:[#allocation2 + $0xad0] sm:$0xff]
    %v416 = vld [vmem:[#allocation2 + $0xad8] sm:$0xff]
    %v417 = vld [vmem:[#allocation2 + $0xae0] sm:$0xff]
    %v418 = vld [vmem:[#allocation2 + $0xae8] sm:$0xff]
    %v419 = vld [vmem:[#allocation2 + $0xaf0] sm:$0xff]
    %v420 = vld [vmem:[#allocation2 + $0xaf8] sm:$0xff]
    %v421 = vld [vmem:[#allocation2 + $0xb00] sm:$0xff]
    %v422 = vld [vmem:[#allocation2 + $0xb08] sm:$0xff]
    %v423 = vld [vmem:[#allocation2 + $0xb10] sm:$0xff]
    %v424 = vld [vmem:[#allocation2 + $0xb18] sm:$0xff]
    %v425 = vld [vmem:[#allocation2 + $0xb20] sm:$0xff]
    %v426 = vld [vmem:[#allocation2 + $0xb28] sm:$0xff]
    %v427 = vld [vmem:[#allocation2 + $0xb30] sm:$0xff]
    %v428 = vld [vmem:[#allocation2 + $0xb38] sm:$0xff]
    %v429 = vld [vmem:[#allocation2 + $0xb40] sm:$0xff]
    %v430 = vld [vmem:[#allocation2 + $0xb48] sm:$0xff]
    %v431 = vld [vmem:[#allocation2 + $0xb50] sm:$0xff]
    %v432 = vld [vmem:[#allocation2 + $0xb58] sm:$0xff]
    %v433 = vld [vmem:[#allocation2 + $0xb60] sm:$0xff]
    %v434 = vld [vmem:[#allocation2 + $0xb68] sm:$0xff]
    %v435 = vld [vmem:[#allocation2 + $0xb70] sm:$0xff]
    %v436 = vld [vmem:[#allocation2 + $0xb78] sm:$0xff]
    %v437 = vld [vmem:[#allocation2 + $0xb80] sm:$0xff]
    %v438 = vld [vmem:[#allocation2 + $0xb88] sm:$0xff]
    %v439 = vld [vmem:[#allocation2 + $0xb90] sm:$0xff]
    %v440 = vld [vmem:[#allocation2 + $0xb98] sm:$0xff]
    %v441 = vld [vmem:[#allocation2 + $0xba0] sm:$0xff]
    %v442 = vld [vmem:[#allocation2 + $0xba8] sm:$0xff]
    %v443 = vld [vmem:[#allocation2 + $0xbb0] sm:$0xff]
    %v444 = vld [vmem:[#allocation2 + $0xbb8] sm:$0xff]
    %v445 = vld [vmem:[#allocation2 + $0xbc0] sm:$0xff]
    %v446 = vld [vmem:[#allocation2 + $0xbc8] sm:$0xff]
    %v447 = vld [vmem:[#allocation2 + $0xbd0] sm:$0xff]
    %v448 = vld [vmem:[#allocation2 + $0xbd8] sm:$0xff]
    %v449 = vld [vmem:[#allocation2 + $0xbe0] sm:$0xff]
    %v450 = vld [vmem:[#allocation2 + $0xbe8] sm:$0xff]
    %v451 = vld [vmem:[#allocation2 + $0xbf0] sm:$0xff]
    %v452 = vld [vmem:[#allocation2 + $0xbf8] sm:$0xff]
    %v453 = vld [vmem:[#allocation2 + $0xc00] sm:$0xff]
    %v454 = vld [vmem:[#allocation2 + $0xc08] sm:$0xff]
    %v455 = vld [vmem:[#allocation2 + $0xc10] sm:$0xff]
    %v456 = vld [vmem:[#allocation2 + $0xc18] sm:$0xff]
    %v457 = vld [vmem:[#allocation2 + $0xc20] sm:$0xff]
    %v458 = vld [vmem:[#allocation2 + $0xc28] sm:$0xff]
    %v459 = vld [vmem:[#allocation2 + $0xc30] sm:$0xff]
    %v460 = vld [vmem:[#allocation2 + $0xc38] sm:$0xff]
    %v461 = vld [vmem:[#allocation2 + $0xc40] sm:$0xff]
    %v462 = vld [vmem:[#allocation2 + $0xc48] sm:$0xff]
    %v463 = vld [vmem:[#allocation2 + $0xc50] sm:$0xff]
    %v464 = vld [vmem:[#allocation2 + $0xc58] sm:$0xff]
    %v465 = vld [vmem:[#allocation2 + $0xc60] sm:$0xff]
    %v466 = vld [vmem:[#allocation2 + $0xc68] sm:$0xff]
    %v467 = vld [vmem:[#allocation2 + $0xc70] sm:$0xff]
    %v468 = vld [vmem:[#allocation2 + $0xc78] sm:$0xff]
    %v469 = vld [vmem:[#allocation2 + $0xc80] sm:$0xff]
    %v470 = vld [vmem:[#allocation2 + $0xc88] sm:$0xff]
    %v471 = vld [vmem:[#allocation2 + $0xc90] sm:$0xff]
    %v472 = vld [vmem:[#allocation2 + $0xc98] sm:$0xff]
    %v473 = vld [vmem:[#allocation2 + $0xca0] sm:$0xff]
    %v474 = vld [vmem:[#allocation2 + $0xca8] sm:$0xff]
    %v475 = vld [vmem:[#allocation2 + $0xcb0] sm:$0xff]
    %v476 = vld [vmem:[#allocation2 + $0xcb8] sm:$0xff]
    %v477 = vld [vmem:[#allocation2 + $0xcc0] sm:$0xff]
    %v478 = vld [vmem:[#allocation2 + $0xcc8] sm:$0xff]
    %v479 = vld [vmem:[#allocation2 + $0xcd0] sm:$0xff]
    %v480 = vld [vmem:[#allocation2 + $0xcd8] sm:$0xff]
    %v481 = vld [vmem:[#allocation2 + $0xce0] sm:$0xff]
    %v482 = vld [vmem:[#allocation2 + $0xce8] sm:$0xff]
    %v483 = vld [vmem:[#allocation2 + $0xcf0] sm:$0xff]
    %v484 = vld [vmem:[#allocation2 + $0xcf8] sm:$0xff]
    %v485 = vld [vmem:[#allocation2 + $0xd00] sm:$0xff]
    %v486 = vld [vmem:[#allocation2 + $0xd08] sm:$0xff]
    %v487 = vld [vmem:[#allocation2 + $0xd10] sm:$0xff]
    %v488 = vld [vmem:[#allocation2 + $0xd18] sm:$0xff]
    %v489 = vld [vmem:[#allocation2 + $0xd20] sm:$0xff]
    %v490 = vld [vmem:[#allocation2 + $0xd28] sm:$0xff]
    %v491 = vld [vmem:[#allocation2 + $0xd30] sm:$0xff]
    %v492 = vld [vmem:[#allocation2 + $0xd38] sm:$0xff]
    %v493 = vld [vmem:[#allocation2 + $0xd40] sm:$0xff]
    %v494 = vld [vmem:[#allocation2 + $0xd48] sm:$0xff]
    %v495 = vld [vmem:[#allocation2 + $0xd50] sm:$0xff]
    %v496 = vld [vmem:[#allocation2 + $0xd58] sm:$0xff]
    %v497 = vld [vmem:[#allocation2 + $0xd60] sm:$0xff]
    %v498 = vld [vmem:[#allocation2 + $0xd68] sm:$0xff]
    %v499 = vld [vmem:[#allocation2 + $0xd70] sm:$0xff]
    %v500 = vld [vmem:[#allocation2 + $0xd78] sm:$0xff]
    %v501 = vld [vmem:[#allocation2 + $0xd80] sm:$0xff]
    %v502 = vld [vmem:[#allocation2 + $0xd88] sm:$0xff]
    %v503 = vld [vmem:[#allocation2 + $0xd90] sm:$0xff]
    %v504 = vld [vmem:[#allocation2 + $0xd98] sm:$0xff]
    %v505 = vld [vmem:[#allocation2 + $0xda0] sm:$0xff]
    %v506 = vld [vmem:[#allocation2 + $0xda8] sm:$0xff]
    %v507 = vld [vmem:[#allocation2 + $0xdb0] sm:$0xff]
    %v508 = vld [vmem:[#allocation2 + $0xdb8] sm:$0xff]
    %v509 = vld [vmem:[#allocation2 + $0xdc0] sm:$0xff]
    %v510 = vld [vmem:[#allocation2 + $0xdc8] sm:$0xff]
    %v511 = vld [vmem:[#allocation2 + $0xdd0] sm:$0xff]
    %v512 = vld [vmem:[#allocation2 + $0xdd8] sm:$0xff]
    %v513 = vld [vmem:[#allocation2 + $0xde0] sm:$0xff]
    %v514 = vld [vmem:[#allocation2 + $0xde8] sm:$0xff]
    %v515 = vld [vmem:[#allocation2 + $0xdf0] sm:$0xff]
    %v516 = vld [vmem:[#allocation2 + $0xdf8] sm:$0xff]
    %v517 = vld [vmem:[#allocation2 + $0xe00] sm:$0xff]
    %v518 = vld [vmem:[#allocation2 + $0xe08] sm:$0xff]
    %v519 = vld [vmem:[#allocation2 + $0xe10] sm:$0xff]
    %v520 = vld [vmem:[#allocation2 + $0xe18] sm:$0xff]
    %v521 = vld [vmem:[#allocation2 + $0xe20] sm:$0xff]
    %v522 = vld [vmem:[#allocation2 + $0xe28] sm:$0xff]
    %v523 = vld [vmem:[#allocation2 + $0xe30] sm:$0xff]
    %v524 = vld [vmem:[#allocation2 + $0xe38] sm:$0xff]
    %v525 = vld [vmem:[#allocation2 + $0xe40] sm:$0xff]
    %v526 = vld [vmem:[#allocation2 + $0xe48] sm:$0xff]
    %v527 = vld [vmem:[#allocation2 + $0xe50] sm:$0xff]
    %v528 = vld [vmem:[#allocation2 + $0xe58] sm:$0xff]
    %v529 = vld [vmem:[#allocation2 + $0xe60] sm:$0xff]
    %v530 = vld [vmem:[#allocation2 + $0xe68] sm:$0xff]
    %v531 = vld [vmem:[#allocation2 + $0xe70] sm:$0xff]
    %v532 = vld [vmem:[#allocation2 + $0xe78] sm:$0xff]
    %v533 = vld [vmem:[#allocation2 + $0xe80] sm:$0xff]
    %v534 = vld [vmem:[#allocation2 + $0xe88] sm:$0xff]
    %v535 = vld [vmem:[#allocation2 + $0xe90] sm:$0xff]
    %v536 = vld [vmem:[#allocation2 + $0xe98] sm:$0xff]
    %v537 = vld [vmem:[#allocation2 + $0xea0] sm:$0xff]
    %v538 = vld [vmem:[#allocation2 + $0xea8] sm:$0xff]
    %v539 = vld [vmem:[#allocation2 + $0xeb0] sm:$0xff]
    %v540 = vld [vmem:[#allocation2 + $0xeb8] sm:$0xff]
    %v541 = vld [vmem:[#allocation2 + $0xec0] sm:$0xff]
    %v542 = vld [vmem:[#allocation2 + $0xec8] sm:$0xff]
    %v543 = vld [vmem:[#allocation2 + $0xed0] sm:$0xff]
    %v544 = vld [vmem:[#allocation2 + $0xed8] sm:$0xff]
    %v545 = vld [vmem:[#allocation2 + $0xee0] sm:$0xff]
    %v546 = vld [vmem:[#allocation2 + $0xee8] sm:$0xff]
    %v547 = vld [vmem:[#allocation2 + $0xef0] sm:$0xff]
    %v548 = vld [vmem:[#allocation2 + $0xef8] sm:$0xff]
    %v549 = vld [vmem:[#allocation2 + $0xf00] sm:$0xff]
    %v550 = vld [vmem:[#allocation2 + $0xf08] sm:$0xff]
    %v551 = vld [vmem:[#allocation2 + $0xf10] sm:$0xff]
    %v552 = vld [vmem:[#allocation2 + $0xf18] sm:$0xff]
    %v553 = vld [vmem:[#allocation2 + $0xf20] sm:$0xff]
    %v554 = vld [vmem:[#allocation2 + $0xf28] sm:$0xff]
    %v555 = vld [vmem:[#allocation2 + $0xf30] sm:$0xff]
    %v556 = vld [vmem:[#allocation2 + $0xf38] sm:$0xff]
    %v557 = vld [vmem:[#allocation2 + $0xf40] sm:$0xff]
    %v558 = vld [vmem:[#allocation2 + $0xf48] sm:$0xff]
    %v559 = vld [vmem:[#allocation2 + $0xf50] sm:$0xff]
    %v560 = vld [vmem:[#allocation2 + $0xf58] sm:$0xff]
    %v561 = vld [vmem:[#allocation2 + $0xf60] sm:$0xff]
    %v562 = vld [vmem:[#allocation2 + $0xf68] sm:$0xff]
    %v563 = vld [vmem:[#allocation2 + $0xf70] sm:$0xff]
    %v564 = vld [vmem:[#allocation2 + $0xf78] sm:$0xff]
    %v565 = vld [vmem:[#allocation2 + $0xf80] sm:$0xff]
    %v566 = vld [vmem:[#allocation2 + $0xf88] sm:$0xff]
    %v567 = vld [vmem:[#allocation2 + $0xf90] sm:$0xff]
    %v568 = vld [vmem:[#allocation2 + $0xf98] sm:$0xff]
    %v569 = vld [vmem:[#allocation2 + $0xfa0] sm:$0xff]
    %v570 = vld [vmem:[#allocation2 + $0xfa8] sm:$0xff]
    %v571 = vld [vmem:[#allocation2 + $0xfb0] sm:$0xff]
    %v572 = vld [vmem:[#allocation2 + $0xfb8] sm:$0xff]
    %v573 = vld [vmem:[#allocation2 + $0xfc0] sm:$0xff]
    %v574 = vld [vmem:[#allocation2 + $0xfc8] sm:$0xff]
    %v575 = vld [vmem:[#allocation2 + $0xfd0] sm:$0xff]
    %v576 = vld [vmem:[#allocation2 + $0xfd8] sm:$0xff]
    %v577 = vld [vmem:[#allocation2 + $0xfe0] sm:$0xff]
    %v578 = vld [vmem:[#allocation2 + $0xfe8] sm:$0xff]
    %v579 = vld [vmem:[#allocation2 + $0xff0] sm:$0xff]
    %v580 = vld [vmem:[#allocation2 + $0xff8] sm:$0xff]
    %v581 = vld [vmem:[#allocation2 + $0x1000] sm:$0xff]
    %v582 = vld [vmem:[#allocation2 + $0x1008] sm:$0xff]
    %v583 = vld [vmem:[#allocation2 + $0x1010] sm:$0xff]
    %v584 = vld [vmem:[#allocation2 + $0x1018] sm:$0xff]
    %v585 = vld [vmem:[#allocation2 + $0x1020] sm:$0xff]
    %v586 = vld [vmem:[#allocation2 + $0x1028] sm:$0xff]
    %v587 = vld [vmem:[#allocation2 + $0x1030] sm:$0xff]
    %v588 = vld [vmem:[#allocation2 + $0x1038] sm:$0xff]
    %v589 = vld [vmem:[#allocation2 + $0x1040] sm:$0xff]
    %v590 = vld [vmem:[#allocation2 + $0x1048] sm:$0xff]
    %v591 = vld [vmem:[#allocation2 + $0x1050] sm:$0xff]
    %v592 = vld [vmem:[#allocation2 + $0x1058] sm:$0xff]
    %v593 = vld [vmem:[#allocation2 + $0x1060] sm:$0xff]
    %v594 = vld [vmem:[#allocation2 + $0x1068] sm:$0xff]
    %v595 = vld [vmem:[#allocation2 + $0x1070] sm:$0xff]
    %v596 = vld [vmem:[#allocation2 + $0x1078] sm:$0xff]
    %v597 = vld [vmem:[#allocation2 + $0x1080] sm:$0xff]
    %v598 = vld [vmem:[#allocation2 + $0x1088] sm:$0xff]
    %v599 = vld [vmem:[#allocation2 + $0x1090] sm:$0xff]
    %v600 = vld [vmem:[#allocation2 + $0x1098] sm:$0xff]
    %v601 = vld [vmem:[#allocation2 + $0x10a0] sm:$0xff]
    %v602 = vld [vmem:[#allocation2 + $0x10a8] sm:$0xff]
    %v603 = vld [vmem:[#allocation2 + $0x10b0] sm:$0xff]
    %v604 = vld [vmem:[#allocation2 + $0x10b8] sm:$0xff]
    %v605 = vld [vmem:[#allocation2 + $0x10c0] sm:$0xff]
    %v606 = vld [vmem:[#allocation2 + $0x10c8] sm:$0xff]
    %v607 = vld [vmem:[#allocation2 + $0x10d0] sm:$0xff]
    %v608 = vld [vmem:[#allocation2 + $0x10d8] sm:$0xff]
    %v609 = vld [vmem:[#allocation2 + $0x10e0] sm:$0xff]
    %v610 = vld [vmem:[#allocation2 + $0x10e8] sm:$0xff]
    %v611 = vld [vmem:[#allocation2 + $0x10f0] sm:$0xff]
    %v612 = vld [vmem:[#allocation2 + $0x10f8] sm:$0xff]
    %v613 = vld [vmem:[#allocation2 + $0x1100] sm:$0xff]
    %v614 = vld [vmem:[#allocation2 + $0x1108] sm:$0xff]
    %v615 = vld [vmem:[#allocation2 + $0x1110] sm:$0xff]
    %v616 = vld [vmem:[#allocation2 + $0x1118] sm:$0xff]
    %v617 = vld [vmem:[#allocation2 + $0x1120] sm:$0xff]
    %v618 = vld [vmem:[#allocation2 + $0x1128] sm:$0xff]
    %v619 = vld [vmem:[#allocation2 + $0x1130] sm:$0xff]
    %v620 = vld [vmem:[#allocation2 + $0x1138] sm:$0xff]
    %v621 = vld [vmem:[#allocation2 + $0x1140] sm:$0xff]
    %v622 = vld [vmem:[#allocation2 + $0x1148] sm:$0xff]
    %v623 = vld [vmem:[#allocation2 + $0x1150] sm:$0xff]
    %v624 = vld [vmem:[#allocation2 + $0x1158] sm:$0xff]
    %v625 = vld [vmem:[#allocation2 + $0x1160] sm:$0xff]
    %v626 = vld [vmem:[#allocation2 + $0x1168] sm:$0xff]
    %v627 = vld [vmem:[#allocation2 + $0x1170] sm:$0xff]
    %v628 = vld [vmem:[#allocation2 + $0x1178] sm:$0xff]
    %v629 = vld [vmem:[#allocation2 + $0x1180] sm:$0xff]
    %v630 = vld [vmem:[#allocation2 + $0x1188] sm:$0xff]
    %v631 = vld [vmem:[#allocation2 + $0x1190] sm:$0xff]
    %v632 = vld [vmem:[#allocation2 + $0x1198] sm:$0xff]
    %v633 = vld [vmem:[#allocation2 + $0x11a0] sm:$0xff]
    %v634 = vld [vmem:[#allocation2 + $0x11a8] sm:$0xff]
    %v635 = vld [vmem:[#allocation2 + $0x11b0] sm:$0xff]
    %v636 = vld [vmem:[#allocation2 + $0x11b8] sm:$0xff]
    %v637 = vld [vmem:[#allocation2 + $0x11c0] sm:$0xff]
    %v638 = vld [vmem:[#allocation2 + $0x11c8] sm:$0xff]
    %v639 = vld [vmem:[#allocation2 + $0x11d0] sm:$0xff]
    %v640 = vld [vmem:[#allocation2 + $0x11d8] sm:$0xff]
    %v641 = vld [vmem:[#allocation2 + $0x11e0] sm:$0xff]
    %v642 = vld [vmem:[#allocation2 + $0x11e8] sm:$0xff]
    %v643 = vld [vmem:[#allocation2 + $0x11f0] sm:$0xff]
    %v644 = vld [vmem:[#allocation2 + $0x11f8] sm:$0xff]
    %v645 = vld [vmem:[#allocation2 + $0x1200] sm:$0xff]
    %v646 = vld [vmem:[#allocation2 + $0x1208] sm:$0xff]
    %v647 = vld [vmem:[#allocation2 + $0x1210] sm:$0xff]
    %v648 = vld [vmem:[#allocation2 + $0x1218] sm:$0xff]
    %v649 = vld [vmem:[#allocation2 + $0x1220] sm:$0xff]
    %v650 = vld [vmem:[#allocation2 + $0x1228] sm:$0xff]
    %v651 = vld [vmem:[#allocation2 + $0x1230] sm:$0xff]
    %v652 = vld [vmem:[#allocation2 + $0x1238] sm:$0xff]
    %v653 = vld [vmem:[#allocation2 + $0x1240] sm:$0xff]
    %v654 = vld [vmem:[#allocation2 + $0x1248] sm:$0xff]
    %v655 = vld [vmem:[#allocation2 + $0x1250] sm:$0xff]
    %v656 = vld [vmem:[#allocation2 + $0x1258] sm:$0xff]
    %v657 = vld [vmem:[#allocation2 + $0x1260] sm:$0xff]
    %v658 = vld [vmem:[#allocation2 + $0x1268] sm:$0xff]
    %v659 = vld [vmem:[#allocation2 + $0x1270] sm:$0xff]
    %v660 = vld [vmem:[#allocation2 + $0x1278] sm:$0xff]
    %v661 = vld [vmem:[#allocation2 + $0x1280] sm:$0xff]
    %v662 = vld [vmem:[#allocation2 + $0x1288] sm:$0xff]
    %v663 = vld [vmem:[#allocation2 + $0x1290] sm:$0xff]
    %v664 = vld [vmem:[#allocation2 + $0x1298] sm:$0xff]
    %v665 = vld [vmem:[#allocation2 + $0x12a0] sm:$0xff]
    %v666 = vld [vmem:[#allocation2 + $0x12a8] sm:$0xff]
    %v667 = vld [vmem:[#allocation2 + $0x12b0] sm:$0xff]
    %v668 = vld [vmem:[#allocation2 + $0x12b8] sm:$0xff]
    %v669 = vld [vmem:[#allocation2 + $0x12c0] sm:$0xff]
    %v670 = vld [vmem:[#allocation2 + $0x12c8] sm:$0xff]
    %v671 = vld [vmem:[#allocation2 + $0x12d0] sm:$0xff]
    %v672 = vld [vmem:[#allocation2 + $0x12d8] sm:$0xff]
    %v673 = vld [vmem:[#allocation2 + $0x12e0] sm:$0xff]
    %v674 = vld [vmem:[#allocation2 + $0x12e8] sm:$0xff]
    %v675 = vld [vmem:[#allocation2 + $0x12f0] sm:$0xff]
    %v676 = vld [vmem:[#allocation2 + $0x12f8] sm:$0xff]
    %v677 = vld [vmem:[#allocation2 + $0x1300] sm:$0xff]
    %v678 = vld [vmem:[#allocation2 + $0x1308] sm:$0xff]
    %v679 = vld [vmem:[#allocation2 + $0x1310] sm:$0xff]
    %v680 = vld [vmem:[#allocation2 + $0x1318] sm:$0xff]
    %v681 = vld [vmem:[#allocation2 + $0x1320] sm:$0xff]
    %v682 = vld [vmem:[#allocation2 + $0x1328] sm:$0xff]
    %v683 = vld [vmem:[#allocation2 + $0x1330] sm:$0xff]
    %v684 = vld [vmem:[#allocation2 + $0x1338] sm:$0xff]
    %v685 = vld [vmem:[#allocation2 + $0x1340] sm:$0xff]
    %v686 = vld [vmem:[#allocation2 + $0x1348] sm:$0xff]
    %v687 = vld [vmem:[#allocation2 + $0x1350] sm:$0xff]
    %v688 = vld [vmem:[#allocation2 + $0x1358] sm:$0xff]
    %v689 = vld [vmem:[#allocation2 + $0x1360] sm:$0xff]
    %v690 = vld [vmem:[#allocation2 + $0x1368] sm:$0xff]
    %v691 = vld [vmem:[#allocation2 + $0x1370] sm:$0xff]
    %v692 = vld [vmem:[#allocation2 + $0x1378] sm:$0xff]
    %v693 = vld [vmem:[#allocation2 + $0x1380] sm:$0xff]
    %v694 = vld [vmem:[#allocation2 + $0x1388] sm:$0xff]
    %v695 = vld [vmem:[#allocation2 + $0x1390] sm:$0xff]
    %v696 = vld [vmem:[#allocation2 + $0x1398] sm:$0xff]
    %v697 = vld [vmem:[#allocation2 + $0x13a0] sm:$0xff]
    %v698 = vld [vmem:[#allocation2 + $0x13a8] sm:$0xff]
    %v699 = vld [vmem:[#allocation2 + $0x13b0] sm:$0xff]
    %v700 = vld [vmem:[#allocation2 + $0x13b8] sm:$0xff]
    %v701 = vld [vmem:[#allocation2 + $0x13c0] sm:$0xff]
    %v702 = vld [vmem:[#allocation2 + $0x13c8] sm:$0xff]
    %v703 = vld [vmem:[#allocation2 + $0x13d0] sm:$0xff]
    %v704 = vld [vmem:[#allocation2 + $0x13d8] sm:$0xff]
    %v705 = vld [vmem:[#allocation2 + $0x13e0] sm:$0xff]
    %v706 = vld [vmem:[#allocation2 + $0x13e8] sm:$0xff]
    %v707 = vld [vmem:[#allocation2 + $0x13f0] sm:$0xff]
    %v708 = vld [vmem:[#allocation2 + $0x13f8] sm:$0xff]
    %v709 = vld [vmem:[#allocation2 + $0x1400] sm:$0xff]
    %v710 = vld [vmem:[#allocation2 + $0x1408] sm:$0xff]
    %v711 = vld [vmem:[#allocation2 + $0x1410] sm:$0xff]
    %v712 = vld [vmem:[#allocation2 + $0x1418] sm:$0xff]
    %v713 = vld [vmem:[#allocation2 + $0x1420] sm:$0xff]
    %v714 = vld [vmem:[#allocation2 + $0x1428] sm:$0xff]
    %v715 = vld [vmem:[#allocation2 + $0x1430] sm:$0xff]
    %v716 = vld [vmem:[#allocation2 + $0x1438] sm:$0xff]
    %v717 = vld [vmem:[#allocation2 + $0x1440] sm:$0xff]
    %v718 = vld [vmem:[#allocation2 + $0x1448] sm:$0xff]
    %v719 = vld [vmem:[#allocation2 + $0x1450] sm:$0xff]
    %v720 = vld [vmem:[#allocation2 + $0x1458] sm:$0xff]
    %v721 = vld [vmem:[#allocation2 + $0x1460] sm:$0xff]
    %v722 = vld [vmem:[#allocation2 + $0x1468] sm:$0xff]
    %v723 = vld [vmem:[#allocation2 + $0x1470] sm:$0xff]
    %v724 = vld [vmem:[#allocation2 + $0x1478] sm:$0xff]
    %v725 = vld [vmem:[#allocation2 + $0x1480] sm:$0xff]
    %v726 = vld [vmem:[#allocation2 + $0x1488] sm:$0xff]
    %v727 = vld [vmem:[#allocation2 + $0x1490] sm:$0xff]
    %v728 = vld [vmem:[#allocation2 + $0x1498] sm:$0xff]
    %v729 = vld [vmem:[#allocation2 + $0x14a0] sm:$0xff]
    %v730 = vld [vmem:[#allocation2 + $0x14a8] sm:$0xff]
    %v731 = vld [vmem:[#allocation2 + $0x14b0] sm:$0xff]
    %v732 = vld [vmem:[#allocation2 + $0x14b8] sm:$0xff]
    %v733 = vld [vmem:[#allocation2 + $0x14c0] sm:$0xff]
    %v734 = vld [vmem:[#allocation2 + $0x14c8] sm:$0xff]
    %v735 = vld [vmem:[#allocation2 + $0x14d0] sm:$0xff]
    %v736 = vld [vmem:[#allocation2 + $0x14d8] sm:$0xff]
    %v737 = vld [vmem:[#allocation2 + $0x14e0] sm:$0xff]
    %v738 = vld [vmem:[#allocation2 + $0x14e8] sm:$0xff]
    %v739 = vld [vmem:[#allocation2 + $0x14f0] sm:$0xff]
    %v740 = vld [vmem:[#allocation2 + $0x14f8] sm:$0xff]
    %v741 = vld [vmem:[#allocation2 + $0x1500] sm:$0xff]
    %v742 = vld [vmem:[#allocation2 + $0x1508] sm:$0xff]
    %v743 = vld [vmem:[#allocation2 + $0x1510] sm:$0xff]
    %v744 = vld [vmem:[#allocation2 + $0x1518] sm:$0xff]
    %v745 = vld [vmem:[#allocation2 + $0x1520] sm:$0xff]
    %v746 = vld [vmem:[#allocation2 + $0x1528] sm:$0xff]
    %v747 = vld [vmem:[#allocation2 + $0x1530] sm:$0xff]
    %v748 = vld [vmem:[#allocation2 + $0x1538] sm:$0xff]
    %v749 = vld [vmem:[#allocation2 + $0x1540] sm:$0xff]
    %v750 = vld [vmem:[#allocation2 + $0x1548] sm:$0xff]
    %v751 = vld [vmem:[#allocation2 + $0x1550] sm:$0xff]
    %v752 = vld [vmem:[#allocation2 + $0x1558] sm:$0xff]
    %v753 = vld [vmem:[#allocation2 + $0x1560] sm:$0xff]
    %v754 = vld [vmem:[#allocation2 + $0x1568] sm:$0xff]
    %v755 = vld [vmem:[#allocation2 + $0x1570] sm:$0xff]
    %v756 = vld [vmem:[#allocation2 + $0x1578] sm:$0xff]
    %v757 = vld [vmem:[#allocation2 + $0x1580] sm:$0xff]
    %v758 = vld [vmem:[#allocation2 + $0x1588] sm:$0xff]
    %v759 = vld [vmem:[#allocation2 + $0x1590] sm:$0xff]
    %v760 = vld [vmem:[#allocation2 + $0x1598] sm:$0xff]
    %v761 = vld [vmem:[#allocation2 + $0x15a0] sm:$0xff]
    %v762 = vld [vmem:[#allocation2 + $0x15a8] sm:$0xff]
    %v763 = vld [vmem:[#allocation2 + $0x15b0] sm:$0xff]
    %v764 = vld [vmem:[#allocation2 + $0x15b8] sm:$0xff]
    %v765 = vld [vmem:[#allocation2 + $0x15c0] sm:$0xff]
    %v766 = vld [vmem:[#allocation2 + $0x15c8] sm:$0xff]
    %v767 = vld [vmem:[#allocation2 + $0x15d0] sm:$0xff]
    %v768 = vld [vmem:[#allocation2 + $0x15d8] sm:$0xff]
    %v769 = vld [vmem:[#allocation2 + $0x15e0] sm:$0xff]
    %v770 = vld [vmem:[#allocation2 + $0x15e8] sm:$0xff]
    %v771 = vld [vmem:[#allocation2 + $0x15f0] sm:$0xff]
    %v772 = vld [vmem:[#allocation2 + $0x15f8] sm:$0xff]
    %v773 = vld [vmem:[#allocation2 + $0x1600] sm:$0xff]
    %v774 = vld [vmem:[#allocation2 + $0x1608] sm:$0xff]
    %v775 = vld [vmem:[#allocation2 + $0x1610] sm:$0xff]
    %v776 = vld [vmem:[#allocation2 + $0x1618] sm:$0xff]
    %v777 = vld [vmem:[#allocation2 + $0x1620] sm:$0xff]
    %v778 = vld [vmem:[#allocation2 + $0x1628] sm:$0xff]
    %v779 = vld [vmem:[#allocation2 + $0x1630] sm:$0xff]
    %v780 = vld [vmem:[#allocation2 + $0x1638] sm:$0xff]
    %v781 = vld [vmem:[#allocation2 + $0x1640] sm:$0xff]
    %v782 = vld [vmem:[#allocation2 + $0x1648] sm:$0xff]
    %v783 = vld [vmem:[#allocation2 + $0x1650] sm:$0xff]
    %v784 = vld [vmem:[#allocation2 + $0x1658] sm:$0xff]
    %v785 = vld [vmem:[#allocation2 + $0x1660] sm:$0xff]
    %v786 = vld [vmem:[#allocation2 + $0x1668] sm:$0xff]
    %v787 = vld [vmem:[#allocation2 + $0x1670] sm:$0xff]
    %v788 = vld [vmem:[#allocation2 + $0x1678] sm:$0xff]
    %v789 = vld [vmem:[#allocation2 + $0x1680] sm:$0xff]
    %v790 = vld [vmem:[#allocation2 + $0x1688] sm:$0xff]
    %v791 = vld [vmem:[#allocation2 + $0x1690] sm:$0xff]
    %v792 = vld [vmem:[#allocation2 + $0x1698] sm:$0xff]
    %v793 = vld [vmem:[#allocation2 + $0x16a0] sm:$0xff]
    %v794 = vld [vmem:[#allocation2 + $0x16a8] sm:$0xff]
    %v795 = vld [vmem:[#allocation2 + $0x16b0] sm:$0xff]
    %v796 = vld [vmem:[#allocation2 + $0x16b8] sm:$0xff]
    %v797 = vld [vmem:[#allocation2 + $0x16c0] sm:$0xff]
    %v798 = vld [vmem:[#allocation2 + $0x16c8] sm:$0xff]
    %v799 = vld [vmem:[#allocation2 + $0x16d0] sm:$0xff]
    %v800 = vld [vmem:[#allocation2 + $0x16d8] sm:$0xff]
    %v801 = vld [vmem:[#allocation2 + $0x16e0] sm:$0xff]
    %v802 = vld [vmem:[#allocation2 + $0x16e8] sm:$0xff]
    %v803 = vld [vmem:[#allocation2 + $0x16f0] sm:$0xff]
    %v804 = vld [vmem:[#allocation2 + $0x16f8] sm:$0xff]
    %v805 = vld [vmem:[#allocation2 + $0x1700] sm:$0xff]
    %v806 = vld [vmem:[#allocation2 + $0x1708] sm:$0xff]
    %v807 = vld [vmem:[#allocation2 + $0x1710] sm:$0xff]
    %v808 = vld [vmem:[#allocation2 + $0x1718] sm:$0xff]
    %v809 = vld [vmem:[#allocation2 + $0x1720] sm:$0xff]
    %v810 = vld [vmem:[#allocation2 + $0x1728] sm:$0xff]
    %v811 = vld [vmem:[#allocation2 + $0x1730] sm:$0xff]
    %v812 = vld [vmem:[#allocation2 + $0x1738] sm:$0xff]
    %v813 = vld [vmem:[#allocation2 + $0x1740] sm:$0xff]
    %v814 = vld [vmem:[#allocation2 + $0x1748] sm:$0xff]
    %v815 = vld [vmem:[#allocation2 + $0x1750] sm:$0xff]
    %v816 = vld [vmem:[#allocation2 + $0x1758] sm:$0xff]
    %v817 = vld [vmem:[#allocation2 + $0x1760] sm:$0xff]
    %v818 = vld [vmem:[#allocation2 + $0x1768] sm:$0xff]
    %v819 = vld [vmem:[#allocation2 + $0x1770] sm:$0xff]
    %v820 = vld [vmem:[#allocation2 + $0x1778] sm:$0xff]
    %v821 = vld [vmem:[#allocation2 + $0x1780] sm:$0xff]
    %v822 = vld [vmem:[#allocation2 + $0x1788] sm:$0xff]
    %v823 = vld [vmem:[#allocation2 + $0x1790] sm:$0xff]
    %v824 = vld [vmem:[#allocation2 + $0x1798] sm:$0xff]
    %v825 = vld [vmem:[#allocation2 + $0x17a0] sm:$0xff]
    %v826 = vld [vmem:[#allocation2 + $0x17a8] sm:$0xff]
    %v827 = vld [vmem:[#allocation2 + $0x17b0] sm:$0xff]
    %v828 = vld [vmem:[#allocation2 + $0x17b8] sm:$0xff]
    %v829 = vld [vmem:[#allocation2 + $0x17c0] sm:$0xff]
    %v830 = vld [vmem:[#allocation2 + $0x17c8] sm:$0xff]
    %v831 = vld [vmem:[#allocation2 + $0x17d0] sm:$0xff]
    %v832 = vld [vmem:[#allocation2 + $0x17d8] sm:$0xff]
    %v833 = vld [vmem:[#allocation2 + $0x17e0] sm:$0xff]
    %v834 = vld [vmem:[#allocation2 + $0x17e8] sm:$0xff]
    %v835 = vld [vmem:[#allocation2 + $0x17f0] sm:$0xff]
    %v836 = vld [vmem:[#allocation2 + $0x17f8] sm:$0xff]
    %v837 = vld [vmem:[#allocation2 + $0x1800] sm:$0xff]
    %v838 = vld [vmem:[#allocation2 + $0x1808] sm:$0xff]
    %v839 = vld [vmem:[#allocation2 + $0x1810] sm:$0xff]
    %v840 = vld [vmem:[#allocation2 + $0x1818] sm:$0xff]
    %v841 = vld [vmem:[#allocation2 + $0x1820] sm:$0xff]
    %v842 = vld [vmem:[#allocation2 + $0x1828] sm:$0xff]
    %v843 = vld [vmem:[#allocation2 + $0x1830] sm:$0xff]
    %v844 = vld [vmem:[#allocation2 + $0x1838] sm:$0xff]
    %v845 = vld [vmem:[#allocation2 + $0x1840] sm:$0xff]
    %v846 = vld [vmem:[#allocation2 + $0x1848] sm:$0xff]
    %v847 = vld [vmem:[#allocation2 + $0x1850] sm:$0xff]
    %v848 = vld [vmem:[#allocation2 + $0x1858] sm:$0xff]
    %v849 = vld [vmem:[#allocation2 + $0x1860] sm:$0xff]
    %v850 = vld [vmem:[#allocation2 + $0x1868] sm:$0xff]
    %v851 = vld [vmem:[#allocation2 + $0x1870] sm:$0xff]
    %v852 = vld [vmem:[#allocation2 + $0x1878] sm:$0xff]
    %v853 = vld [vmem:[#allocation2 + $0x1880] sm:$0xff]
    %v854 = vld [vmem:[#allocation2 + $0x1888] sm:$0xff]
    %v855 = vld [vmem:[#allocation2 + $0x1890] sm:$0xff]
    %v856 = vld [vmem:[#allocation2 + $0x1898] sm:$0xff]
    %v857 = vld [vmem:[#allocation2 + $0x18a0] sm:$0xff]
    %v858 = vld [vmem:[#allocation2 + $0x18a8] sm:$0xff]
    %v859 = vld [vmem:[#allocation2 + $0x18b0] sm:$0xff]
    %v860 = vld [vmem:[#allocation2 + $0x18b8] sm:$0xff]
    %v861 = vld [vmem:[#allocation2 + $0x18c0] sm:$0xff]
    %v862 = vld [vmem:[#allocation2 + $0x18c8] sm:$0xff]
    %v863 = vld [vmem:[#allocation2 + $0x18d0] sm:$0xff]
    %v864 = vld [vmem:[#allocation2 + $0x18d8] sm:$0xff]
    %v865 = vld [vmem:[#allocation2 + $0x18e0] sm:$0xff]
    %v866 = vld [vmem:[#allocation2 + $0x18e8] sm:$0xff]
    %v867 = vld [vmem:[#allocation2 + $0x18f0] sm:$0xff]
    %v868 = vld [vmem:[#allocation2 + $0x18f8] sm:$0xff]
    %v869 = vld [vmem:[#allocation2 + $0x1900] sm:$0xff]
    %v870 = vld [vmem:[#allocation2 + $0x1908] sm:$0xff]
    %v871 = vld [vmem:[#allocation2 + $0x1910] sm:$0xff]
    %v872 = vld [vmem:[#allocation2 + $0x1918] sm:$0xff]
    %v873 = vld [vmem:[#allocation2 + $0x1920] sm:$0xff]
    %v874 = vld [vmem:[#allocation2 + $0x1928] sm:$0xff]
    %v875 = vld [vmem:[#allocation2 + $0x1930] sm:$0xff]
    %v876 = vld [vmem:[#allocation2 + $0x1938] sm:$0xff]
    %v877 = vld [vmem:[#allocation2 + $0x1940] sm:$0xff]
    %v878 = vld [vmem:[#allocation2 + $0x1948] sm:$0xff]
    %v879 = vld [vmem:[#allocation2 + $0x1950] sm:$0xff]
    %v880 = vld [vmem:[#allocation2 + $0x1958] sm:$0xff]
    %v881 = vld [vmem:[#allocation2 + $0x1960] sm:$0xff]
    %v882 = vld [vmem:[#allocation2 + $0x1968] sm:$0xff]
    %v883 = vld [vmem:[#allocation2 + $0x1970] sm:$0xff]
    %v884 = vld [vmem:[#allocation2 + $0x1978] sm:$0xff]
    %v885 = vld [vmem:[#allocation2 + $0x1980] sm:$0xff]
    %v886 = vld [vmem:[#allocation2 + $0x1988] sm:$0xff]
    %v887 = vld [vmem:[#allocation2 + $0x1990] sm:$0xff]
    %v888 = vld [vmem:[#allocation2 + $0x1998] sm:$0xff]
    %v889 = vld [vmem:[#allocation2 + $0x19a0] sm:$0xff]
    %v890 = vld [vmem:[#allocation2 + $0x19a8] sm:$0xff]
    %v891 = vld [vmem:[#allocation2 + $0x19b0] sm:$0xff]
    %v892 = vld [vmem:[#allocation2 + $0x19b8] sm:$0xff]
    %v893 = vld [vmem:[#allocation2 + $0x19c0] sm:$0xff]
    %v894 = vld [vmem:[#allocation2 + $0x19c8] sm:$0xff]
    %v895 = vld [vmem:[#allocation2 + $0x19d0] sm:$0xff]
    %v896 = vld [vmem:[#allocation2 + $0x19d8] sm:$0xff]
    %v897 = vld [vmem:[#allocation2 + $0x19e0] sm:$0xff]
    %v898 = vld [vmem:[#allocation2 + $0x19e8] sm:$0xff]
    %v899 = vld [vmem:[#allocation2 + $0x19f0] sm:$0xff]
    %v900 = vld [vmem:[#allocation2 + $0x19f8] sm:$0xff]
    %v901 = vld [vmem:[#allocation2 + $0x1a00] sm:$0xff]
    %v902 = vld [vmem:[#allocation2 + $0x1a08] sm:$0xff]
    %v903 = vld [vmem:[#allocation2 + $0x1a10] sm:$0xff]
    %v904 = vld [vmem:[#allocation2 + $0x1a18] sm:$0xff]
    %v905 = vld [vmem:[#allocation2 + $0x1a20] sm:$0xff]
    %v906 = vld [vmem:[#allocation2 + $0x1a28] sm:$0xff]
    %v907 = vld [vmem:[#allocation2 + $0x1a30] sm:$0xff]
    %v908 = vld [vmem:[#allocation2 + $0x1a38] sm:$0xff]
    %v909 = vld [vmem:[#allocation2 + $0x1a40] sm:$0xff]
    %v910 = vld [vmem:[#allocation2 + $0x1a48] sm:$0xff]
    %v911 = vld [vmem:[#allocation2 + $0x1a50] sm:$0xff]
    %v912 = vld [vmem:[#allocation2 + $0x1a58] sm:$0xff]
    %v913 = vld [vmem:[#allocation2 + $0x1a60] sm:$0xff]
    %v914 = vld [vmem:[#allocation2 + $0x1a68] sm:$0xff]
    %v915 = vld [vmem:[#allocation2 + $0x1a70] sm:$0xff]
    %v916 = vld [vmem:[#allocation2 + $0x1a78] sm:$0xff]
    %v917 = vld [vmem:[#allocation2 + $0x1a80] sm:$0xff]
    %v918 = vld [vmem:[#allocation2 + $0x1a88] sm:$0xff]
    %v919 = vld [vmem:[#allocation2 + $0x1a90] sm:$0xff]
    %v920 = vld [vmem:[#allocation2 + $0x1a98] sm:$0xff]
    %v921 = vld [vmem:[#allocation2 + $0x1aa0] sm:$0xff]
    %v922 = vld [vmem:[#allocation2 + $0x1aa8] sm:$0xff]
    %v923 = vld [vmem:[#allocation2 + $0x1ab0] sm:$0xff]
    %v924 = vld [vmem:[#allocation2 + $0x1ab8] sm:$0xff]
    %v925 = vld [vmem:[#allocation2 + $0x1ac0] sm:$0xff]
    %v926 = vld [vmem:[#allocation2 + $0x1ac8] sm:$0xff]
    %v927 = vld [vmem:[#allocation2 + $0x1ad0] sm:$0xff]
    %v928 = vld [vmem:[#allocation2 + $0x1ad8] sm:$0xff]
    %v929 = vld [vmem:[#allocation2 + $0x1ae0] sm:$0xff]
    %v930 = vld [vmem:[#allocation2 + $0x1ae8] sm:$0xff]
    %v931 = vld [vmem:[#allocation2 + $0x1af0] sm:$0xff]
    %v932 = vld [vmem:[#allocation2 + $0x1af8] sm:$0xff]
    %v947 = vunpack.c.l.b16 %v55
    %v948 = vunpack.c.h.b16 %v55
    %v949 = vunpack.c.l.b16 %v56
    %v950 = vunpack.c.h.b16 %v56
    %v951 = vunpack.c.l.b16 %v57
    %v952 = vunpack.c.h.b16 %v57
    %v953 = vunpack.c.l.b16 %v58
    %v954 = vunpack.c.h.b16 %v58
    %v955 = vunpack.c.l.b16 %v59
    %v956 = vunpack.c.h.b16 %v59
    %v957 = vunpack.c.l.b16 %v60
    %v958 = vunpack.c.h.b16 %v60
    %v959 = vunpack.c.l.b16 %v61
    %v960 = vunpack.c.h.b16 %v61
    %v961 = vunpack.c.l.b16 %v62
    %v962 = vunpack.c.h.b16 %v62
    %v963 = vunpack.c.l.b16 %v63
    %v964 = vunpack.c.h.b16 %v63
    %v965 = vunpack.c.l.b16 %v64
    %v966 = vunpack.c.h.b16 %v64
    %v967 = vunpack.c.l.b16 %v65
    %v968 = vunpack.c.h.b16 %v65
    %v969 = vunpack.c.l.b16 %v66
    %v970 = vunpack.c.h.b16 %v66
    %v971 = vunpack.c.l.b16 %v67
    %v972 = vunpack.c.h.b16 %v67
    %v973 = vunpack.c.l.b16 %v68
    %v974 = vunpack.c.h.b16 %v68
    %v975 = vpack.c.b16 %v961, %v947
    %v976 = vpack.c.b16 %v962, %v948
    %v977 = vpack.c.b16 %v963, %v949
    %v978 = vpack.c.b16 %v964, %v950
    %v979 = vpack.c.b16 %v965, %v951
    %v980 = vpack.c.b16 %v966, %v952
    %v981 = vpack.c.b16 %v967, %v953
    %v982 = vpack.c.b16 %v968, %v954
    %v983 = vpack.c.b16 %v969, %v955
    %v984 = vpack.c.b16 %v970, %v956
    %v985 = vpack.c.b16 %v971, %v957
    %v986 = vpack.c.b16 %v972, %v958
    %v987 = vpack.c.b16 %v973, %v959
    %v988 = vpack.c.b16 %v974, %v960
    %v1866 = vunpack.c.l.b16 %v69
    %v1867 = vunpack.c.h.b16 %v69
    %v1868 = vunpack.c.l.b16 %v70
    %v1869 = vunpack.c.h.b16 %v70
    %v1870 = vunpack.c.l.b16 %v71
    %v1871 = vunpack.c.h.b16 %v71
    %v1872 = vunpack.c.l.b16 %v72
    %v1873 = vunpack.c.h.b16 %v72
    %v1874 = vunpack.c.l.b16 %v73
    %v1875 = vunpack.c.h.b16 %v73
    %v1876 = vunpack.c.l.b16 %v74
    %v1877 = vunpack.c.h.b16 %v74
    %v1878 = vunpack.c.l.b16 %v75
    %v1879 = vunpack.c.h.b16 %v75
    %v1880 = vunpack.c.l.b16 %v76
    %v1881 = vunpack.c.h.b16 %v76
    %v1882 = vunpack.c.l.b16 %v77
    %v1883 = vunpack.c.h.b16 %v77
    %v1884 = vunpack.c.l.b16 %v78
    %v1885 = vunpack.c.h.b16 %v78
    %v1886 = vunpack.c.l.b16 %v79
    %v1887 = vunpack.c.h.b16 %v79
    %v1888 = vunpack.c.l.b16 %v80
    %v1889 = vunpack.c.h.b16 %v80
    %v1890 = vunpack.c.l.b16 %v81
    %v1891 = vunpack.c.h.b16 %v81
    %v1892 = vunpack.c.l.b16 %v82
    %v1893 = vunpack.c.h.b16 %v82
    %v1894 = vunpack.c.l.b16 %v83
    %v1895 = vunpack.c.h.b16 %v83
    %v1896 = vunpack.c.l.b16 %v84
    %v1897 = vunpack.c.h.b16 %v84
    %v1898 = vunpack.c.l.b16 %v85
    %v1899 = vunpack.c.h.b16 %v85
    %v1900 = vunpack.c.l.b16 %v86
    %v1901 = vunpack.c.h.b16 %v86
    %v1902 = vunpack.c.l.b16 %v87
    %v1903 = vunpack.c.h.b16 %v87
    %v1904 = vunpack.c.l.b16 %v88
    %v1905 = vunpack.c.h.b16 %v88
    %v1906 = vunpack.c.l.b16 %v89
    %v1907 = vunpack.c.h.b16 %v89
    %v1908 = vunpack.c.l.b16 %v90
    %v1909 = vunpack.c.h.b16 %v90
    %v1910 = vunpack.c.l.b16 %v91
    %v1911 = vunpack.c.h.b16 %v91
    %v1912 = vunpack.c.l.b16 %v92
    %v1913 = vunpack.c.h.b16 %v92
    %v1914 = vunpack.c.l.b16 %v93
    %v1915 = vunpack.c.h.b16 %v93
    %v1916 = vunpack.c.l.b16 %v94
    %v1917 = vunpack.c.h.b16 %v94
    %v1918 = vunpack.c.l.b16 %v95
    %v1919 = vunpack.c.h.b16 %v95
    %v1920 = vunpack.c.l.b16 %v96
    %v1921 = vunpack.c.h.b16 %v96
    %v1922 = vunpack.c.l.b16 %v97
    %v1923 = vunpack.c.h.b16 %v97
    %v1924 = vunpack.c.l.b16 %v98
    %v1925 = vunpack.c.h.b16 %v98
    %v1926 = vunpack.c.l.b16 %v99
    %v1927 = vunpack.c.h.b16 %v99
    %v1928 = vunpack.c.l.b16 %v100
    %v1929 = vunpack.c.h.b16 %v100
    %v1930 = vunpack.c.l.b16 %v101
    %v1931 = vunpack.c.h.b16 %v101
    %v1932 = vunpack.c.l.b16 %v102
    %v1933 = vunpack.c.h.b16 %v102
    %v1934 = vunpack.c.l.b16 %v103
    %v1935 = vunpack.c.h.b16 %v103
    %v1936 = vunpack.c.l.b16 %v104
    %v1937 = vunpack.c.h.b16 %v104
    %v1938 = vunpack.c.l.b16 %v105
    %v1939 = vunpack.c.h.b16 %v105
    %v1940 = vunpack.c.l.b16 %v106
    %v1941 = vunpack.c.h.b16 %v106
    %v1942 = vunpack.c.l.b16 %v107
    %v1943 = vunpack.c.h.b16 %v107
    %v1944 = vunpack.c.l.b16 %v108
    %v1945 = vunpack.c.h.b16 %v108
    %v1946 = vunpack.c.l.b16 %v109
    %v1947 = vunpack.c.h.b16 %v109
    %v1948 = vunpack.c.l.b16 %v110
    %v1949 = vunpack.c.h.b16 %v110
    %v1950 = vunpack.c.l.b16 %v111
    %v1951 = vunpack.c.h.b16 %v111
    %v1952 = vunpack.c.l.b16 %v112
    %v1953 = vunpack.c.h.b16 %v112
    %v1954 = vunpack.c.l.b16 %v113
    %v1955 = vunpack.c.h.b16 %v113
    %v1956 = vunpack.c.l.b16 %v114
    %v1957 = vunpack.c.h.b16 %v114
    %v1958 = vunpack.c.l.b16 %v115
    %v1959 = vunpack.c.h.b16 %v115
    %v1960 = vunpack.c.l.b16 %v116
    %v1961 = vunpack.c.h.b16 %v116
    %v1962 = vunpack.c.l.b16 %v117
    %v1963 = vunpack.c.h.b16 %v117
    %v1964 = vunpack.c.l.b16 %v118
    %v1965 = vunpack.c.h.b16 %v118
    %v1966 = vunpack.c.l.b16 %v119
    %v1967 = vunpack.c.h.b16 %v119
    %v1968 = vunpack.c.l.b16 %v120
    %v1969 = vunpack.c.h.b16 %v120
    %v1970 = vunpack.c.l.b16 %v121
    %v1971 = vunpack.c.h.b16 %v121
    %v1972 = vunpack.c.l.b16 %v122
    %v1973 = vunpack.c.h.b16 %v122
    %v1974 = vunpack.c.l.b16 %v123
    %v1975 = vunpack.c.h.b16 %v123
    %v1976 = vunpack.c.l.b16 %v124
    %v1977 = vunpack.c.h.b16 %v124
    %v1978 = vunpack.c.l.b16 %v125
    %v1979 = vunpack.c.h.b16 %v125
    %v1980 = vunpack.c.l.b16 %v126
    %v1981 = vunpack.c.h.b16 %v126
    %v1982 = vunpack.c.l.b16 %v127
    %v1983 = vunpack.c.h.b16 %v127
    %v1984 = vunpack.c.l.b16 %v128
    %v1985 = vunpack.c.h.b16 %v128
    %v1986 = vunpack.c.l.b16 %v129
    %v1987 = vunpack.c.h.b16 %v129
    %v1988 = vunpack.c.l.b16 %v130
    %v1989 = vunpack.c.h.b16 %v130
    %v1990 = vunpack.c.l.b16 %v131
    %v1991 = vunpack.c.h.b16 %v131
    %v1992 = vunpack.c.l.b16 %v132
    %v1993 = vunpack.c.h.b16 %v132
    %v1994 = vunpack.c.l.b16 %v133
    %v1995 = vunpack.c.h.b16 %v133
    %v1996 = vunpack.c.l.b16 %v134
    %v1997 = vunpack.c.h.b16 %v134
    %v1998 = vunpack.c.l.b16 %v135
    %v1999 = vunpack.c.h.b16 %v135
    %v2000 = vunpack.c.l.b16 %v136
    %v2001 = vunpack.c.h.b16 %v136
    %v2002 = vunpack.c.l.b16 %v137
    %v2003 = vunpack.c.h.b16 %v137
    %v2004 = vunpack.c.l.b16 %v138
    %v2005 = vunpack.c.h.b16 %v138
    %v2006 = vunpack.c.l.b16 %v139
    %v2007 = vunpack.c.h.b16 %v139
    %v2008 = vunpack.c.l.b16 %v140
    %v2009 = vunpack.c.h.b16 %v140
    %v2010 = vunpack.c.l.b16 %v141
    %v2011 = vunpack.c.h.b16 %v141
    %v2012 = vunpack.c.l.b16 %v142
    %v2013 = vunpack.c.h.b16 %v142
    %v2014 = vunpack.c.l.b16 %v143
    %v2015 = vunpack.c.h.b16 %v143
    %v2016 = vunpack.c.l.b16 %v144
    %v2017 = vunpack.c.h.b16 %v144
    %v2018 = vunpack.c.l.b16 %v145
    %v2019 = vunpack.c.h.b16 %v145
    %v2020 = vunpack.c.l.b16 %v146
    %v2021 = vunpack.c.h.b16 %v146
    %v2022 = vunpack.c.l.b16 %v147
    %v2023 = vunpack.c.h.b16 %v147
    %v2024 = vunpack.c.l.b16 %v148
    %v2025 = vunpack.c.h.b16 %v148
    %v2026 = vunpack.c.l.b16 %v149
    %v2027 = vunpack.c.h.b16 %v149
    %v2028 = vunpack.c.l.b16 %v150
    %v2029 = vunpack.c.h.b16 %v150
    %v2030 = vunpack.c.l.b16 %v151
    %v2031 = vunpack.c.h.b16 %v151
    %v2032 = vunpack.c.l.b16 %v152
    %v2033 = vunpack.c.h.b16 %v152
    %v2034 = vunpack.c.l.b16 %v153
    %v2035 = vunpack.c.h.b16 %v153
    %v2036 = vunpack.c.l.b16 %v154
    %v2037 = vunpack.c.h.b16 %v154
    %v2038 = vunpack.c.l.b16 %v155
    %v2039 = vunpack.c.h.b16 %v155
    %v2040 = vunpack.c.l.b16 %v156
    %v2041 = vunpack.c.h.b16 %v156
    %v2042 = vunpack.c.l.b16 %v157
    %v2043 = vunpack.c.h.b16 %v157
    %v2044 = vunpack.c.l.b16 %v158
    %v2045 = vunpack.c.h.b16 %v158
    %v2046 = vunpack.c.l.b16 %v159
    %v2047 = vunpack.c.h.b16 %v159
    %v2048 = vunpack.c.l.b16 %v160
    %v2049 = vunpack.c.h.b16 %v160
    %v2050 = vunpack.c.l.b16 %v161
    %v2051 = vunpack.c.h.b16 %v161
    %v2052 = vunpack.c.l.b16 %v162
    %v2053 = vunpack.c.h.b16 %v162
    %v2054 = vunpack.c.l.b16 %v163
    %v2055 = vunpack.c.h.b16 %v163
    %v2056 = vunpack.c.l.b16 %v164
    %v2057 = vunpack.c.h.b16 %v164
    %v2058 = vunpack.c.l.b16 %v165
    %v2059 = vunpack.c.h.b16 %v165
    %v2060 = vunpack.c.l.b16 %v166
    %v2061 = vunpack.c.h.b16 %v166
    %v2062 = vunpack.c.l.b16 %v167
    %v2063 = vunpack.c.h.b16 %v167
    %v2064 = vunpack.c.l.b16 %v168
    %v2065 = vunpack.c.h.b16 %v168
    %v2066 = vunpack.c.l.b16 %v169
    %v2067 = vunpack.c.h.b16 %v169
    %v2068 = vunpack.c.l.b16 %v170
    %v2069 = vunpack.c.h.b16 %v170
    %v2070 = vunpack.c.l.b16 %v171
    %v2071 = vunpack.c.h.b16 %v171
    %v2072 = vunpack.c.l.b16 %v172
    %v2073 = vunpack.c.h.b16 %v172
    %v2074 = vunpack.c.l.b16 %v173
    %v2075 = vunpack.c.h.b16 %v173
    %v2076 = vunpack.c.l.b16 %v174
    %v2077 = vunpack.c.h.b16 %v174
    %v2078 = vunpack.c.l.b16 %v175
    %v2079 = vunpack.c.h.b16 %v175
    %v2080 = vunpack.c.l.b16 %v176
    %v2081 = vunpack.c.h.b16 %v176
    %v2082 = vunpack.c.l.b16 %v177
    %v2083 = vunpack.c.h.b16 %v177
    %v2084 = vunpack.c.l.b16 %v178
    %v2085 = vunpack.c.h.b16 %v178
    %v2086 = vunpack.c.l.b16 %v179
    %v2087 = vunpack.c.h.b16 %v179
    %v2088 = vunpack.c.l.b16 %v180
    %v2089 = vunpack.c.h.b16 %v180
    %v2090 = vunpack.c.l.b16 %v181
    %v2091 = vunpack.c.h.b16 %v181
    %v2092 = vunpack.c.l.b16 %v182
    %v2093 = vunpack.c.h.b16 %v182
    %v2094 = vunpack.c.l.b16 %v183
    %v2095 = vunpack.c.h.b16 %v183
    %v2096 = vunpack.c.l.b16 %v184
    %v2097 = vunpack.c.h.b16 %v184
    %v2098 = vunpack.c.l.b16 %v185
    %v2099 = vunpack.c.h.b16 %v185
    %v2100 = vunpack.c.l.b16 %v186
    %v2101 = vunpack.c.h.b16 %v186
    %v2102 = vunpack.c.l.b16 %v187
    %v2103 = vunpack.c.h.b16 %v187
    %v2104 = vunpack.c.l.b16 %v188
    %v2105 = vunpack.c.h.b16 %v188
    %v2106 = vunpack.c.l.b16 %v189
    %v2107 = vunpack.c.h.b16 %v189
    %v2108 = vunpack.c.l.b16 %v190
    %v2109 = vunpack.c.h.b16 %v190
    %v2110 = vunpack.c.l.b16 %v191
    %v2111 = vunpack.c.h.b16 %v191
    %v2112 = vunpack.c.l.b16 %v192
    %v2113 = vunpack.c.h.b16 %v192
    %v2114 = vunpack.c.l.b16 %v193
    %v2115 = vunpack.c.h.b16 %v193
    %v2116 = vunpack.c.l.b16 %v194
    %v2117 = vunpack.c.h.b16 %v194
    %v2118 = vunpack.c.l.b16 %v195
    %v2119 = vunpack.c.h.b16 %v195
    %v2120 = vunpack.c.l.b16 %v196
    %v2121 = vunpack.c.h.b16 %v196
    %v2122 = vunpack.c.l.b16 %v197
    %v2123 = vunpack.c.h.b16 %v197
    %v2124 = vunpack.c.l.b16 %v198
    %v2125 = vunpack.c.h.b16 %v198
    %v2126 = vunpack.c.l.b16 %v199
    %v2127 = vunpack.c.h.b16 %v199
    %v2128 = vunpack.c.l.b16 %v200
    %v2129 = vunpack.c.h.b16 %v200
    %v2130 = vunpack.c.l.b16 %v201
    %v2131 = vunpack.c.h.b16 %v201
    %v2132 = vunpack.c.l.b16 %v202
    %v2133 = vunpack.c.h.b16 %v202
    %v2134 = vunpack.c.l.b16 %v203
    %v2135 = vunpack.c.h.b16 %v203
    %v2136 = vunpack.c.l.b16 %v204
    %v2137 = vunpack.c.h.b16 %v204
    %v2138 = vunpack.c.l.b16 %v205
    %v2139 = vunpack.c.h.b16 %v205
    %v2140 = vunpack.c.l.b16 %v206
    %v2141 = vunpack.c.h.b16 %v206
    %v2142 = vunpack.c.l.b16 %v207
    %v2143 = vunpack.c.h.b16 %v207
    %v2144 = vunpack.c.l.b16 %v208
    %v2145 = vunpack.c.h.b16 %v208
    %v2146 = vunpack.c.l.b16 %v209
    %v2147 = vunpack.c.h.b16 %v209
    %v2148 = vunpack.c.l.b16 %v210
    %v2149 = vunpack.c.h.b16 %v210
    %v2150 = vunpack.c.l.b16 %v211
    %v2151 = vunpack.c.h.b16 %v211
    %v2152 = vunpack.c.l.b16 %v212
    %v2153 = vunpack.c.h.b16 %v212
    %v2154 = vunpack.c.l.b16 %v213
    %v2155 = vunpack.c.h.b16 %v213
    %v2156 = vunpack.c.l.b16 %v214
    %v2157 = vunpack.c.h.b16 %v214
    %v2158 = vunpack.c.l.b16 %v215
    %v2159 = vunpack.c.h.b16 %v215
    %v2160 = vunpack.c.l.b16 %v216
    %v2161 = vunpack.c.h.b16 %v216
    %v2162 = vunpack.c.l.b16 %v217
    %v2163 = vunpack.c.h.b16 %v217
    %v2164 = vunpack.c.l.b16 %v218
    %v2165 = vunpack.c.h.b16 %v218
    %v2166 = vunpack.c.l.b16 %v219
    %v2167 = vunpack.c.h.b16 %v219
    %v2168 = vunpack.c.l.b16 %v220
    %v2169 = vunpack.c.h.b16 %v220
    %v2170 = vunpack.c.l.b16 %v221
    %v2171 = vunpack.c.h.b16 %v221
    %v2172 = vunpack.c.l.b16 %v222
    %v2173 = vunpack.c.h.b16 %v222
    %v2174 = vunpack.c.l.b16 %v223
    %v2175 = vunpack.c.h.b16 %v223
    %v2176 = vunpack.c.l.b16 %v224
    %v2177 = vunpack.c.h.b16 %v224
    %v2178 = vunpack.c.l.b16 %v225
    %v2179 = vunpack.c.h.b16 %v225
    %v2180 = vunpack.c.l.b16 %v226
    %v2181 = vunpack.c.h.b16 %v226
    %v2182 = vunpack.c.l.b16 %v227
    %v2183 = vunpack.c.h.b16 %v227
    %v2184 = vunpack.c.l.b16 %v228
    %v2185 = vunpack.c.h.b16 %v228
    %v2186 = vunpack.c.l.b16 %v229
    %v2187 = vunpack.c.h.b16 %v229
    %v2188 = vunpack.c.l.b16 %v230
    %v2189 = vunpack.c.h.b16 %v230
    %v2190 = vunpack.c.l.b16 %v231
    %v2191 = vunpack.c.h.b16 %v231
    %v2192 = vunpack.c.l.b16 %v232
    %v2193 = vunpack.c.h.b16 %v232
    %v2194 = vunpack.c.l.b16 %v233
    %v2195 = vunpack.c.h.b16 %v233
    %v2196 = vunpack.c.l.b16 %v234
    %v2197 = vunpack.c.h.b16 %v234
    %v2198 = vunpack.c.l.b16 %v235
    %v2199 = vunpack.c.h.b16 %v235
    %v2200 = vunpack.c.l.b16 %v236
    %v2201 = vunpack.c.h.b16 %v236
    %v2202 = vunpack.c.l.b16 %v237
    %v2203 = vunpack.c.h.b16 %v237
    %v2204 = vunpack.c.l.b16 %v238
    %v2205 = vunpack.c.h.b16 %v238
    %v2206 = vunpack.c.l.b16 %v239
    %v2207 = vunpack.c.h.b16 %v239
    %v2208 = vunpack.c.l.b16 %v240
    %v2209 = vunpack.c.h.b16 %v240
    %v2210 = vunpack.c.l.b16 %v241
    %v2211 = vunpack.c.h.b16 %v241
    %v2212 = vunpack.c.l.b16 %v242
    %v2213 = vunpack.c.h.b16 %v242
    %v2214 = vunpack.c.l.b16 %v243
    %v2215 = vunpack.c.h.b16 %v243
    %v2216 = vunpack.c.l.b16 %v244
    %v2217 = vunpack.c.h.b16 %v244
    %v2218 = vunpack.c.l.b16 %v245
    %v2219 = vunpack.c.h.b16 %v245
    %v2220 = vunpack.c.l.b16 %v246
    %v2221 = vunpack.c.h.b16 %v246
    %v2222 = vunpack.c.l.b16 %v247
    %v2223 = vunpack.c.h.b16 %v247
    %v2224 = vunpack.c.l.b16 %v248
    %v2225 = vunpack.c.h.b16 %v248
    %v2226 = vunpack.c.l.b16 %v249
    %v2227 = vunpack.c.h.b16 %v249
    %v2228 = vunpack.c.l.b16 %v250
    %v2229 = vunpack.c.h.b16 %v250
    %v2230 = vunpack.c.l.b16 %v251
    %v2231 = vunpack.c.h.b16 %v251
    %v2232 = vunpack.c.l.b16 %v252
    %v2233 = vunpack.c.h.b16 %v252
    %v2234 = vunpack.c.l.b16 %v253
    %v2235 = vunpack.c.h.b16 %v253
    %v2236 = vunpack.c.l.b16 %v254
    %v2237 = vunpack.c.h.b16 %v254
    %v2238 = vunpack.c.l.b16 %v255
    %v2239 = vunpack.c.h.b16 %v255
    %v2240 = vunpack.c.l.b16 %v256
    %v2241 = vunpack.c.h.b16 %v256
    %v2242 = vunpack.c.l.b16 %v257
    %v2243 = vunpack.c.h.b16 %v257
    %v2244 = vunpack.c.l.b16 %v258
    %v2245 = vunpack.c.h.b16 %v258
    %v2246 = vunpack.c.l.b16 %v259
    %v2247 = vunpack.c.h.b16 %v259
    %v2248 = vunpack.c.l.b16 %v260
    %v2249 = vunpack.c.h.b16 %v260
    %v2250 = vunpack.c.l.b16 %v261
    %v2251 = vunpack.c.h.b16 %v261
    %v2252 = vunpack.c.l.b16 %v262
    %v2253 = vunpack.c.h.b16 %v262
    %v2254 = vunpack.c.l.b16 %v263
    %v2255 = vunpack.c.h.b16 %v263
    %v2256 = vunpack.c.l.b16 %v264
    %v2257 = vunpack.c.h.b16 %v264
    %v2258 = vunpack.c.l.b16 %v265
    %v2259 = vunpack.c.h.b16 %v265
    %v2260 = vunpack.c.l.b16 %v266
    %v2261 = vunpack.c.h.b16 %v266
    %v2262 = vunpack.c.l.b16 %v267
    %v2263 = vunpack.c.h.b16 %v267
    %v2264 = vunpack.c.l.b16 %v268
    %v2265 = vunpack.c.h.b16 %v268
    %v2266 = vunpack.c.l.b16 %v269
    %v2267 = vunpack.c.h.b16 %v269
    %v2268 = vunpack.c.l.b16 %v270
    %v2269 = vunpack.c.h.b16 %v270
    %v2270 = vunpack.c.l.b16 %v271
    %v2271 = vunpack.c.h.b16 %v271
    %v2272 = vunpack.c.l.b16 %v272
    %v2273 = vunpack.c.h.b16 %v272
    %v2274 = vunpack.c.l.b16 %v273
    %v2275 = vunpack.c.h.b16 %v273
    %v2276 = vunpack.c.l.b16 %v274
    %v2277 = vunpack.c.h.b16 %v274
    %v2278 = vunpack.c.l.b16 %v275
    %v2279 = vunpack.c.h.b16 %v275
    %v2280 = vunpack.c.l.b16 %v276
    %v2281 = vunpack.c.h.b16 %v276
    %v2282 = vunpack.c.l.b16 %v277
    %v2283 = vunpack.c.h.b16 %v277
    %v2284 = vunpack.c.l.b16 %v278
    %v2285 = vunpack.c.h.b16 %v278
    %v2286 = vunpack.c.l.b16 %v279
    %v2287 = vunpack.c.h.b16 %v279
    %v2288 = vunpack.c.l.b16 %v280
    %v2289 = vunpack.c.h.b16 %v280
    %v2290 = vunpack.c.l.b16 %v281
    %v2291 = vunpack.c.h.b16 %v281
    %v2292 = vunpack.c.l.b16 %v282
    %v2293 = vunpack.c.h.b16 %v282
    %v2294 = vunpack.c.l.b16 %v283
    %v2295 = vunpack.c.h.b16 %v283
    %v2296 = vunpack.c.l.b16 %v284
    %v2297 = vunpack.c.h.b16 %v284
    %v2298 = vunpack.c.l.b16 %v285
    %v2299 = vunpack.c.h.b16 %v285
    %v2300 = vunpack.c.l.b16 %v286
    %v2301 = vunpack.c.h.b16 %v286
    %v2302 = vunpack.c.l.b16 %v287
    %v2303 = vunpack.c.h.b16 %v287
    %v2304 = vunpack.c.l.b16 %v288
    %v2305 = vunpack.c.h.b16 %v288
    %v2306 = vunpack.c.l.b16 %v289
    %v2307 = vunpack.c.h.b16 %v289
    %v2308 = vunpack.c.l.b16 %v290
    %v2309 = vunpack.c.h.b16 %v290
    %v2310 = vunpack.c.l.b16 %v291
    %v2311 = vunpack.c.h.b16 %v291
    %v2312 = vunpack.c.l.b16 %v292
    %v2313 = vunpack.c.h.b16 %v292
    %v2314 = vunpack.c.l.b16 %v293
    %v2315 = vunpack.c.h.b16 %v293
    %v2316 = vunpack.c.l.b16 %v294
    %v2317 = vunpack.c.h.b16 %v294
    %v2318 = vunpack.c.l.b16 %v295
    %v2319 = vunpack.c.h.b16 %v295
    %v2320 = vunpack.c.l.b16 %v296
    %v2321 = vunpack.c.h.b16 %v296
    %v2322 = vunpack.c.l.b16 %v297
    %v2323 = vunpack.c.h.b16 %v297
    %v2324 = vunpack.c.l.b16 %v298
    %v2325 = vunpack.c.h.b16 %v298
    %v2326 = vunpack.c.l.b16 %v299
    %v2327 = vunpack.c.h.b16 %v299
    %v2328 = vunpack.c.l.b16 %v300
    %v2329 = vunpack.c.h.b16 %v300
    %v2330 = vunpack.c.l.b16 %v301
    %v2331 = vunpack.c.h.b16 %v301
    %v2332 = vunpack.c.l.b16 %v302
    %v2333 = vunpack.c.h.b16 %v302
    %v2334 = vunpack.c.l.b16 %v303
    %v2335 = vunpack.c.h.b16 %v303
    %v2336 = vunpack.c.l.b16 %v304
    %v2337 = vunpack.c.h.b16 %v304
    %v2338 = vunpack.c.l.b16 %v305
    %v2339 = vunpack.c.h.b16 %v305
    %v2340 = vunpack.c.l.b16 %v306
    %v2341 = vunpack.c.h.b16 %v306
    %v2342 = vunpack.c.l.b16 %v307
    %v2343 = vunpack.c.h.b16 %v307
    %v2344 = vunpack.c.l.b16 %v308
    %v2345 = vunpack.c.h.b16 %v308
    %v2346 = vunpack.c.l.b16 %v309
    %v2347 = vunpack.c.h.b16 %v309
    %v2348 = vunpack.c.l.b16 %v310
    %v2349 = vunpack.c.h.b16 %v310
    %v2350 = vunpack.c.l.b16 %v311
    %v2351 = vunpack.c.h.b16 %v311
    %v2352 = vunpack.c.l.b16 %v312
    %v2353 = vunpack.c.h.b16 %v312
    %v2354 = vunpack.c.l.b16 %v313
    %v2355 = vunpack.c.h.b16 %v313
    %v2356 = vunpack.c.l.b16 %v314
    %v2357 = vunpack.c.h.b16 %v314
    %v2358 = vunpack.c.l.b16 %v315
    %v2359 = vunpack.c.h.b16 %v315
    %v2360 = vunpack.c.l.b16 %v316
    %v2361 = vunpack.c.h.b16 %v316
    %v2362 = vunpack.c.l.b16 %v317
    %v2363 = vunpack.c.h.b16 %v317
    %v2364 = vunpack.c.l.b16 %v318
    %v2365 = vunpack.c.h.b16 %v318
    %v2366 = vunpack.c.l.b16 %v319
    %v2367 = vunpack.c.h.b16 %v319
    %v2368 = vunpack.c.l.b16 %v320
    %v2369 = vunpack.c.h.b16 %v320
    %v2370 = vunpack.c.l.b16 %v321
    %v2371 = vunpack.c.h.b16 %v321
    %v2372 = vunpack.c.l.b16 %v322
    %v2373 = vunpack.c.h.b16 %v322
    %v2374 = vunpack.c.l.b16 %v323
    %v2375 = vunpack.c.h.b16 %v323
    %v2376 = vunpack.c.l.b16 %v324
    %v2377 = vunpack.c.h.b16 %v324
    %v2378 = vunpack.c.l.b16 %v325
    %v2379 = vunpack.c.h.b16 %v325
    %v2380 = vunpack.c.l.b16 %v326
    %v2381 = vunpack.c.h.b16 %v326
    %v2382 = vunpack.c.l.b16 %v327
    %v2383 = vunpack.c.h.b16 %v327
    %v2384 = vunpack.c.l.b16 %v328
    %v2385 = vunpack.c.h.b16 %v328
    %v2386 = vunpack.c.l.b16 %v329
    %v2387 = vunpack.c.h.b16 %v329
    %v2388 = vunpack.c.l.b16 %v330
    %v2389 = vunpack.c.h.b16 %v330
    %v2390 = vunpack.c.l.b16 %v331
    %v2391 = vunpack.c.h.b16 %v331
    %v2392 = vunpack.c.l.b16 %v332
    %v2393 = vunpack.c.h.b16 %v332
    %v2394 = vunpack.c.l.b16 %v333
    %v2395 = vunpack.c.h.b16 %v333
    %v2396 = vunpack.c.l.b16 %v334
    %v2397 = vunpack.c.h.b16 %v334
    %v2398 = vunpack.c.l.b16 %v335
    %v2399 = vunpack.c.h.b16 %v335
    %v2400 = vunpack.c.l.b16 %v336
    %v2401 = vunpack.c.h.b16 %v336
    %v2402 = vunpack.c.l.b16 %v337
    %v2403 = vunpack.c.h.b16 %v337
    %v2404 = vunpack.c.l.b16 %v338
    %v2405 = vunpack.c.h.b16 %v338
    %v2406 = vunpack.c.l.b16 %v339
    %v2407 = vunpack.c.h.b16 %v339
    %v2408 = vunpack.c.l.b16 %v340
    %v2409 = vunpack.c.h.b16 %v340
    %v2410 = vunpack.c.l.b16 %v341
    %v2411 = vunpack.c.h.b16 %v341
    %v2412 = vunpack.c.l.b16 %v342
    %v2413 = vunpack.c.h.b16 %v342
    %v2414 = vunpack.c.l.b16 %v343
    %v2415 = vunpack.c.h.b16 %v343
    %v2416 = vunpack.c.l.b16 %v344
    %v2417 = vunpack.c.h.b16 %v344
    %v2418 = vunpack.c.l.b16 %v345
    %v2419 = vunpack.c.h.b16 %v345
    %v2420 = vunpack.c.l.b16 %v346
    %v2421 = vunpack.c.h.b16 %v346
    %v2422 = vunpack.c.l.b16 %v347
    %v2423 = vunpack.c.h.b16 %v347
    %v2424 = vunpack.c.l.b16 %v348
    %v2425 = vunpack.c.h.b16 %v348
    %v2426 = vunpack.c.l.b16 %v349
    %v2427 = vunpack.c.h.b16 %v349
    %v2428 = vunpack.c.l.b16 %v350
    %v2429 = vunpack.c.h.b16 %v350
    %v2430 = vunpack.c.l.b16 %v351
    %v2431 = vunpack.c.h.b16 %v351
    %v2432 = vunpack.c.l.b16 %v352
    %v2433 = vunpack.c.h.b16 %v352
    %v2434 = vunpack.c.l.b16 %v353
    %v2435 = vunpack.c.h.b16 %v353
    %v2436 = vunpack.c.l.b16 %v354
    %v2437 = vunpack.c.h.b16 %v354
    %v2438 = vunpack.c.l.b16 %v355
    %v2439 = vunpack.c.h.b16 %v355
    %v2440 = vunpack.c.l.b16 %v356
    %v2441 = vunpack.c.h.b16 %v356
    %v2442 = vunpack.c.l.b16 %v357
    %v2443 = vunpack.c.h.b16 %v357
    %v2444 = vunpack.c.l.b16 %v358
    %v2445 = vunpack.c.h.b16 %v358
    %v2446 = vunpack.c.l.b16 %v359
    %v2447 = vunpack.c.h.b16 %v359
    %v2448 = vunpack.c.l.b16 %v360
    %v2449 = vunpack.c.h.b16 %v360
    %v2450 = vunpack.c.l.b16 %v361
    %v2451 = vunpack.c.h.b16 %v361
    %v2452 = vunpack.c.l.b16 %v362
    %v2453 = vunpack.c.h.b16 %v362
    %v2454 = vunpack.c.l.b16 %v363
    %v2455 = vunpack.c.h.b16 %v363
    %v2456 = vunpack.c.l.b16 %v364
    %v2457 = vunpack.c.h.b16 %v364
    %v2458 = vunpack.c.l.b16 %v365
    %v2459 = vunpack.c.h.b16 %v365
    %v2460 = vunpack.c.l.b16 %v366
    %v2461 = vunpack.c.h.b16 %v366
    %v2462 = vunpack.c.l.b16 %v367
    %v2463 = vunpack.c.h.b16 %v367
    %v2464 = vunpack.c.l.b16 %v368
    %v2465 = vunpack.c.h.b16 %v368
    %v2466 = vunpack.c.l.b16 %v369
    %v2467 = vunpack.c.h.b16 %v369
    %v2468 = vunpack.c.l.b16 %v370
    %v2469 = vunpack.c.h.b16 %v370
    %v2470 = vunpack.c.l.b16 %v371
    %v2471 = vunpack.c.h.b16 %v371
    %v2472 = vunpack.c.l.b16 %v372
    %v2473 = vunpack.c.h.b16 %v372
    %v2474 = vunpack.c.l.b16 %v373
    %v2475 = vunpack.c.h.b16 %v373
    %v2476 = vunpack.c.l.b16 %v374
    %v2477 = vunpack.c.h.b16 %v374
    %v2478 = vunpack.c.l.b16 %v375
    %v2479 = vunpack.c.h.b16 %v375
    %v2480 = vunpack.c.l.b16 %v376
    %v2481 = vunpack.c.h.b16 %v376
    %v2482 = vunpack.c.l.b16 %v377
    %v2483 = vunpack.c.h.b16 %v377
    %v2484 = vunpack.c.l.b16 %v378
    %v2485 = vunpack.c.h.b16 %v378
    %v2486 = vunpack.c.l.b16 %v379
    %v2487 = vunpack.c.h.b16 %v379
    %v2488 = vunpack.c.l.b16 %v380
    %v2489 = vunpack.c.h.b16 %v380
    %v2490 = vunpack.c.l.b16 %v381
    %v2491 = vunpack.c.h.b16 %v381
    %v2492 = vunpack.c.l.b16 %v382
    %v2493 = vunpack.c.h.b16 %v382
    %v2494 = vunpack.c.l.b16 %v383
    %v2495 = vunpack.c.h.b16 %v383
    %v2496 = vunpack.c.l.b16 %v384
    %v2497 = vunpack.c.h.b16 %v384
    %v2498 = vunpack.c.l.b16 %v385
    %v2499 = vunpack.c.h.b16 %v385
    %v2500 = vunpack.c.l.b16 %v386
    %v2501 = vunpack.c.h.b16 %v386
    %v2502 = vunpack.c.l.b16 %v387
    %v2503 = vunpack.c.h.b16 %v387
    %v2504 = vunpack.c.l.b16 %v388
    %v2505 = vunpack.c.h.b16 %v388
    %v2506 = vunpack.c.l.b16 %v389
    %v2507 = vunpack.c.h.b16 %v389
    %v2508 = vunpack.c.l.b16 %v390
    %v2509 = vunpack.c.h.b16 %v390
    %v2510 = vunpack.c.l.b16 %v391
    %v2511 = vunpack.c.h.b16 %v391
    %v2512 = vunpack.c.l.b16 %v392
    %v2513 = vunpack.c.h.b16 %v392
    %v2514 = vunpack.c.l.b16 %v393
    %v2515 = vunpack.c.h.b16 %v393
    %v2516 = vunpack.c.l.b16 %v394
    %v2517 = vunpack.c.h.b16 %v394
    %v2518 = vunpack.c.l.b16 %v395
    %v2519 = vunpack.c.h.b16 %v395
    %v2520 = vunpack.c.l.b16 %v396
    %v2521 = vunpack.c.h.b16 %v396
    %v2522 = vunpack.c.l.b16 %v397
    %v2523 = vunpack.c.h.b16 %v397
    %v2524 = vunpack.c.l.b16 %v398
    %v2525 = vunpack.c.h.b16 %v398
    %v2526 = vunpack.c.l.b16 %v399
    %v2527 = vunpack.c.h.b16 %v399
    %v2528 = vunpack.c.l.b16 %v400
    %v2529 = vunpack.c.h.b16 %v400
    %v2530 = vunpack.c.l.b16 %v401
    %v2531 = vunpack.c.h.b16 %v401
    %v2532 = vunpack.c.l.b16 %v402
    %v2533 = vunpack.c.h.b16 %v402
    %v2534 = vunpack.c.l.b16 %v403
    %v2535 = vunpack.c.h.b16 %v403
    %v2536 = vunpack.c.l.b16 %v404
    %v2537 = vunpack.c.h.b16 %v404
    %v2538 = vunpack.c.l.b16 %v405
    %v2539 = vunpack.c.h.b16 %v405
    %v2540 = vunpack.c.l.b16 %v406
    %v2541 = vunpack.c.h.b16 %v406
    %v2542 = vunpack.c.l.b16 %v407
    %v2543 = vunpack.c.h.b16 %v407
    %v2544 = vunpack.c.l.b16 %v408
    %v2545 = vunpack.c.h.b16 %v408
    %v2546 = vunpack.c.l.b16 %v409
    %v2547 = vunpack.c.h.b16 %v409
    %v2548 = vunpack.c.l.b16 %v410
    %v2549 = vunpack.c.h.b16 %v410
    %v2550 = vunpack.c.l.b16 %v411
    %v2551 = vunpack.c.h.b16 %v411
    %v2552 = vunpack.c.l.b16 %v412
    %v2553 = vunpack.c.h.b16 %v412
    %v2554 = vunpack.c.l.b16 %v413
    %v2555 = vunpack.c.h.b16 %v413
    %v2556 = vunpack.c.l.b16 %v414
    %v2557 = vunpack.c.h.b16 %v414
    %v2558 = vunpack.c.l.b16 %v415
    %v2559 = vunpack.c.h.b16 %v415
    %v2560 = vunpack.c.l.b16 %v416
    %v2561 = vunpack.c.h.b16 %v416
    %v2562 = vunpack.c.l.b16 %v417
    %v2563 = vunpack.c.h.b16 %v417
    %v2564 = vunpack.c.l.b16 %v418
    %v2565 = vunpack.c.h.b16 %v418
    %v2566 = vunpack.c.l.b16 %v419
    %v2567 = vunpack.c.h.b16 %v419
    %v2568 = vunpack.c.l.b16 %v420
    %v2569 = vunpack.c.h.b16 %v420
    %v2570 = vunpack.c.l.b16 %v421
    %v2571 = vunpack.c.h.b16 %v421
    %v2572 = vunpack.c.l.b16 %v422
    %v2573 = vunpack.c.h.b16 %v422
    %v2574 = vunpack.c.l.b16 %v423
    %v2575 = vunpack.c.h.b16 %v423
    %v2576 = vunpack.c.l.b16 %v424
    %v2577 = vunpack.c.h.b16 %v424
    %v2578 = vunpack.c.l.b16 %v425
    %v2579 = vunpack.c.h.b16 %v425
    %v2580 = vunpack.c.l.b16 %v426
    %v2581 = vunpack.c.h.b16 %v426
    %v2582 = vunpack.c.l.b16 %v427
    %v2583 = vunpack.c.h.b16 %v427
    %v2584 = vunpack.c.l.b16 %v428
    %v2585 = vunpack.c.h.b16 %v428
    %v2586 = vunpack.c.l.b16 %v429
    %v2587 = vunpack.c.h.b16 %v429
    %v2588 = vunpack.c.l.b16 %v430
    %v2589 = vunpack.c.h.b16 %v430
    %v2590 = vunpack.c.l.b16 %v431
    %v2591 = vunpack.c.h.b16 %v431
    %v2592 = vunpack.c.l.b16 %v432
    %v2593 = vunpack.c.h.b16 %v432
    %v2594 = vunpack.c.l.b16 %v433
    %v2595 = vunpack.c.h.b16 %v433
    %v2596 = vunpack.c.l.b16 %v434
    %v2597 = vunpack.c.h.b16 %v434
    %v2598 = vunpack.c.l.b16 %v435
    %v2599 = vunpack.c.h.b16 %v435
    %v2600 = vunpack.c.l.b16 %v436
    %v2601 = vunpack.c.h.b16 %v436
    %v2602 = vunpack.c.l.b16 %v437
    %v2603 = vunpack.c.h.b16 %v437
    %v2604 = vunpack.c.l.b16 %v438
    %v2605 = vunpack.c.h.b16 %v438
    %v2606 = vunpack.c.l.b16 %v439
    %v2607 = vunpack.c.h.b16 %v439
    %v2608 = vunpack.c.l.b16 %v440
    %v2609 = vunpack.c.h.b16 %v440
    %v2610 = vunpack.c.l.b16 %v441
    %v2611 = vunpack.c.h.b16 %v441
    %v2612 = vunpack.c.l.b16 %v442
    %v2613 = vunpack.c.h.b16 %v442
    %v2614 = vunpack.c.l.b16 %v443
    %v2615 = vunpack.c.h.b16 %v443
    %v2616 = vunpack.c.l.b16 %v444
    %v2617 = vunpack.c.h.b16 %v444
    %v2618 = vunpack.c.l.b16 %v445
    %v2619 = vunpack.c.h.b16 %v445
    %v2620 = vunpack.c.l.b16 %v446
    %v2621 = vunpack.c.h.b16 %v446
    %v2622 = vunpack.c.l.b16 %v447
    %v2623 = vunpack.c.h.b16 %v447
    %v2624 = vunpack.c.l.b16 %v448
    %v2625 = vunpack.c.h.b16 %v448
    %v2626 = vunpack.c.l.b16 %v449
    %v2627 = vunpack.c.h.b16 %v449
    %v2628 = vunpack.c.l.b16 %v450
    %v2629 = vunpack.c.h.b16 %v450
    %v2630 = vunpack.c.l.b16 %v451
    %v2631 = vunpack.c.h.b16 %v451
    %v2632 = vunpack.c.l.b16 %v452
    %v2633 = vunpack.c.h.b16 %v452
    %v2634 = vunpack.c.l.b16 %v453
    %v2635 = vunpack.c.h.b16 %v453
    %v2636 = vunpack.c.l.b16 %v454
    %v2637 = vunpack.c.h.b16 %v454
    %v2638 = vunpack.c.l.b16 %v455
    %v2639 = vunpack.c.h.b16 %v455
    %v2640 = vunpack.c.l.b16 %v456
    %v2641 = vunpack.c.h.b16 %v456
    %v2642 = vunpack.c.l.b16 %v457
    %v2643 = vunpack.c.h.b16 %v457
    %v2644 = vunpack.c.l.b16 %v458
    %v2645 = vunpack.c.h.b16 %v458
    %v2646 = vunpack.c.l.b16 %v459
    %v2647 = vunpack.c.h.b16 %v459
    %v2648 = vunpack.c.l.b16 %v460
    %v2649 = vunpack.c.h.b16 %v460
    %v2650 = vunpack.c.l.b16 %v461
    %v2651 = vunpack.c.h.b16 %v461
    %v2652 = vunpack.c.l.b16 %v462
    %v2653 = vunpack.c.h.b16 %v462
    %v2654 = vunpack.c.l.b16 %v463
    %v2655 = vunpack.c.h.b16 %v463
    %v2656 = vunpack.c.l.b16 %v464
    %v2657 = vunpack.c.h.b16 %v464
    %v2658 = vunpack.c.l.b16 %v465
    %v2659 = vunpack.c.h.b16 %v465
    %v2660 = vunpack.c.l.b16 %v466
    %v2661 = vunpack.c.h.b16 %v466
    %v2662 = vunpack.c.l.b16 %v467
    %v2663 = vunpack.c.h.b16 %v467
    %v2664 = vunpack.c.l.b16 %v468
    %v2665 = vunpack.c.h.b16 %v468
    %v2666 = vunpack.c.l.b16 %v469
    %v2667 = vunpack.c.h.b16 %v469
    %v2668 = vunpack.c.l.b16 %v470
    %v2669 = vunpack.c.h.b16 %v470
    %v2670 = vunpack.c.l.b16 %v471
    %v2671 = vunpack.c.h.b16 %v471
    %v2672 = vunpack.c.l.b16 %v472
    %v2673 = vunpack.c.h.b16 %v472
    %v2674 = vunpack.c.l.b16 %v473
    %v2675 = vunpack.c.h.b16 %v473
    %v2676 = vunpack.c.l.b16 %v474
    %v2677 = vunpack.c.h.b16 %v474
    %v2678 = vunpack.c.l.b16 %v475
    %v2679 = vunpack.c.h.b16 %v475
    %v2680 = vunpack.c.l.b16 %v476
    %v2681 = vunpack.c.h.b16 %v476
    %v2682 = vunpack.c.l.b16 %v477
    %v2683 = vunpack.c.h.b16 %v477
    %v2684 = vunpack.c.l.b16 %v478
    %v2685 = vunpack.c.h.b16 %v478
    %v2686 = vunpack.c.l.b16 %v479
    %v2687 = vunpack.c.h.b16 %v479
    %v2688 = vunpack.c.l.b16 %v480
    %v2689 = vunpack.c.h.b16 %v480
    %v2690 = vunpack.c.l.b16 %v481
    %v2691 = vunpack.c.h.b16 %v481
    %v2692 = vunpack.c.l.b16 %v482
    %v2693 = vunpack.c.h.b16 %v482
    %v2694 = vunpack.c.l.b16 %v483
    %v2695 = vunpack.c.h.b16 %v483
    %v2696 = vunpack.c.l.b16 %v484
    %v2697 = vunpack.c.h.b16 %v484
    %v2698 = vunpack.c.l.b16 %v485
    %v2699 = vunpack.c.h.b16 %v485
    %v2700 = vunpack.c.l.b16 %v486
    %v2701 = vunpack.c.h.b16 %v486
    %v2702 = vunpack.c.l.b16 %v487
    %v2703 = vunpack.c.h.b16 %v487
    %v2704 = vunpack.c.l.b16 %v488
    %v2705 = vunpack.c.h.b16 %v488
    %v2706 = vunpack.c.l.b16 %v489
    %v2707 = vunpack.c.h.b16 %v489
    %v2708 = vunpack.c.l.b16 %v490
    %v2709 = vunpack.c.h.b16 %v490
    %v2710 = vunpack.c.l.b16 %v491
    %v2711 = vunpack.c.h.b16 %v491
    %v2712 = vunpack.c.l.b16 %v492
    %v2713 = vunpack.c.h.b16 %v492
    %v2714 = vunpack.c.l.b16 %v493
    %v2715 = vunpack.c.h.b16 %v493
    %v2716 = vunpack.c.l.b16 %v494
    %v2717 = vunpack.c.h.b16 %v494
    %v2718 = vunpack.c.l.b16 %v495
    %v2719 = vunpack.c.h.b16 %v495
    %v2720 = vunpack.c.l.b16 %v496
    %v2721 = vunpack.c.h.b16 %v496
    %v2722 = vunpack.c.l.b16 %v497
    %v2723 = vunpack.c.h.b16 %v497
    %v2724 = vunpack.c.l.b16 %v498
    %v2725 = vunpack.c.h.b16 %v498
    %v2726 = vunpack.c.l.b16 %v499
    %v2727 = vunpack.c.h.b16 %v499
    %v2728 = vunpack.c.l.b16 %v500
    %v2729 = vunpack.c.h.b16 %v500
    %v2730 = vunpack.c.l.b16 %v501
    %v2731 = vunpack.c.h.b16 %v501
    %v2732 = vunpack.c.l.b16 %v502
    %v2733 = vunpack.c.h.b16 %v502
    %v2734 = vunpack.c.l.b16 %v503
    %v2735 = vunpack.c.h.b16 %v503
    %v2736 = vunpack.c.l.b16 %v504
    %v2737 = vunpack.c.h.b16 %v504
    %v2738 = vunpack.c.l.b16 %v505
    %v2739 = vunpack.c.h.b16 %v505
    %v2740 = vunpack.c.l.b16 %v506
    %v2741 = vunpack.c.h.b16 %v506
    %v2742 = vunpack.c.l.b16 %v507
    %v2743 = vunpack.c.h.b16 %v507
    %v2744 = vunpack.c.l.b16 %v508
    %v2745 = vunpack.c.h.b16 %v508
    %v2746 = vunpack.c.l.b16 %v509
    %v2747 = vunpack.c.h.b16 %v509
    %v2748 = vunpack.c.l.b16 %v510
    %v2749 = vunpack.c.h.b16 %v510
    %v2750 = vunpack.c.l.b16 %v511
    %v2751 = vunpack.c.h.b16 %v511
    %v2752 = vunpack.c.l.b16 %v512
    %v2753 = vunpack.c.h.b16 %v512
    %v2754 = vunpack.c.l.b16 %v513
    %v2755 = vunpack.c.h.b16 %v513
    %v2756 = vunpack.c.l.b16 %v514
    %v2757 = vunpack.c.h.b16 %v514
    %v2758 = vunpack.c.l.b16 %v515
    %v2759 = vunpack.c.h.b16 %v515
    %v2760 = vunpack.c.l.b16 %v516
    %v2761 = vunpack.c.h.b16 %v516
    %v2762 = vunpack.c.l.b16 %v517
    %v2763 = vunpack.c.h.b16 %v517
    %v2764 = vunpack.c.l.b16 %v518
    %v2765 = vunpack.c.h.b16 %v518
    %v2766 = vunpack.c.l.b16 %v519
    %v2767 = vunpack.c.h.b16 %v519
    %v2768 = vunpack.c.l.b16 %v520
    %v2769 = vunpack.c.h.b16 %v520
    %v2770 = vunpack.c.l.b16 %v521
    %v2771 = vunpack.c.h.b16 %v521
    %v2772 = vunpack.c.l.b16 %v522
    %v2773 = vunpack.c.h.b16 %v522
    %v2774 = vunpack.c.l.b16 %v523
    %v2775 = vunpack.c.h.b16 %v523
    %v2776 = vunpack.c.l.b16 %v524
    %v2777 = vunpack.c.h.b16 %v524
    %v2778 = vunpack.c.l.b16 %v525
    %v2779 = vunpack.c.h.b16 %v525
    %v2780 = vunpack.c.l.b16 %v526
    %v2781 = vunpack.c.h.b16 %v526
    %v2782 = vunpack.c.l.b16 %v527
    %v2783 = vunpack.c.h.b16 %v527
    %v2784 = vunpack.c.l.b16 %v528
    %v2785 = vunpack.c.h.b16 %v528
    %v2786 = vunpack.c.l.b16 %v529
    %v2787 = vunpack.c.h.b16 %v529
    %v2788 = vunpack.c.l.b16 %v530
    %v2789 = vunpack.c.h.b16 %v530
    %v2790 = vunpack.c.l.b16 %v531
    %v2791 = vunpack.c.h.b16 %v531
    %v2792 = vunpack.c.l.b16 %v532
    %v2793 = vunpack.c.h.b16 %v532
    %v2794 = vunpack.c.l.b16 %v533
    %v2795 = vunpack.c.h.b16 %v533
    %v2796 = vunpack.c.l.b16 %v534
    %v2797 = vunpack.c.h.b16 %v534
    %v2798 = vunpack.c.l.b16 %v535
    %v2799 = vunpack.c.h.b16 %v535
    %v2800 = vunpack.c.l.b16 %v536
    %v2801 = vunpack.c.h.b16 %v536
    %v2802 = vunpack.c.l.b16 %v537
    %v2803 = vunpack.c.h.b16 %v537
    %v2804 = vunpack.c.l.b16 %v538
    %v2805 = vunpack.c.h.b16 %v538
    %v2806 = vunpack.c.l.b16 %v539
    %v2807 = vunpack.c.h.b16 %v539
    %v2808 = vunpack.c.l.b16 %v540
    %v2809 = vunpack.c.h.b16 %v540
    %v2810 = vunpack.c.l.b16 %v541
    %v2811 = vunpack.c.h.b16 %v541
    %v2812 = vunpack.c.l.b16 %v542
    %v2813 = vunpack.c.h.b16 %v542
    %v2814 = vunpack.c.l.b16 %v543
    %v2815 = vunpack.c.h.b16 %v543
    %v2816 = vunpack.c.l.b16 %v544
    %v2817 = vunpack.c.h.b16 %v544
    %v2818 = vunpack.c.l.b16 %v545
    %v2819 = vunpack.c.h.b16 %v545
    %v2820 = vunpack.c.l.b16 %v546
    %v2821 = vunpack.c.h.b16 %v546
    %v2822 = vunpack.c.l.b16 %v547
    %v2823 = vunpack.c.h.b16 %v547
    %v2824 = vunpack.c.l.b16 %v548
    %v2825 = vunpack.c.h.b16 %v548
    %v2826 = vunpack.c.l.b16 %v549
    %v2827 = vunpack.c.h.b16 %v549
    %v2828 = vunpack.c.l.b16 %v550
    %v2829 = vunpack.c.h.b16 %v550
    %v2830 = vunpack.c.l.b16 %v551
    %v2831 = vunpack.c.h.b16 %v551
    %v2832 = vunpack.c.l.b16 %v552
    %v2833 = vunpack.c.h.b16 %v552
    %v2834 = vunpack.c.l.b16 %v553
    %v2835 = vunpack.c.h.b16 %v553
    %v2836 = vunpack.c.l.b16 %v554
    %v2837 = vunpack.c.h.b16 %v554
    %v2838 = vunpack.c.l.b16 %v555
    %v2839 = vunpack.c.h.b16 %v555
    %v2840 = vunpack.c.l.b16 %v556
    %v2841 = vunpack.c.h.b16 %v556
    %v2842 = vunpack.c.l.b16 %v557
    %v2843 = vunpack.c.h.b16 %v557
    %v2844 = vunpack.c.l.b16 %v558
    %v2845 = vunpack.c.h.b16 %v558
    %v2846 = vunpack.c.l.b16 %v559
    %v2847 = vunpack.c.h.b16 %v559
    %v2848 = vunpack.c.l.b16 %v560
    %v2849 = vunpack.c.h.b16 %v560
    %v2850 = vunpack.c.l.b16 %v561
    %v2851 = vunpack.c.h.b16 %v561
    %v2852 = vunpack.c.l.b16 %v562
    %v2853 = vunpack.c.h.b16 %v562
    %v2854 = vunpack.c.l.b16 %v563
    %v2855 = vunpack.c.h.b16 %v563
    %v2856 = vunpack.c.l.b16 %v564
    %v2857 = vunpack.c.h.b16 %v564
    %v2858 = vunpack.c.l.b16 %v565
    %v2859 = vunpack.c.h.b16 %v565
    %v2860 = vunpack.c.l.b16 %v566
    %v2861 = vunpack.c.h.b16 %v566
    %v2862 = vunpack.c.l.b16 %v567
    %v2863 = vunpack.c.h.b16 %v567
    %v2864 = vunpack.c.l.b16 %v568
    %v2865 = vunpack.c.h.b16 %v568
    %v2866 = vunpack.c.l.b16 %v569
    %v2867 = vunpack.c.h.b16 %v569
    %v2868 = vunpack.c.l.b16 %v570
    %v2869 = vunpack.c.h.b16 %v570
    %v2870 = vunpack.c.l.b16 %v571
    %v2871 = vunpack.c.h.b16 %v571
    %v2872 = vunpack.c.l.b16 %v572
    %v2873 = vunpack.c.h.b16 %v572
    %v2874 = vunpack.c.l.b16 %v573
    %v2875 = vunpack.c.h.b16 %v573
    %v2876 = vunpack.c.l.b16 %v574
    %v2877 = vunpack.c.h.b16 %v574
    %v2878 = vunpack.c.l.b16 %v575
    %v2879 = vunpack.c.h.b16 %v575
    %v2880 = vunpack.c.l.b16 %v576
    %v2881 = vunpack.c.h.b16 %v576
    %v2882 = vunpack.c.l.b16 %v577
    %v2883 = vunpack.c.h.b16 %v577
    %v2884 = vunpack.c.l.b16 %v578
    %v2885 = vunpack.c.h.b16 %v578
    %v2886 = vunpack.c.l.b16 %v579
    %v2887 = vunpack.c.h.b16 %v579
    %v2888 = vunpack.c.l.b16 %v580
    %v2889 = vunpack.c.h.b16 %v580
    %v2890 = vunpack.c.l.b16 %v581
    %v2891 = vunpack.c.h.b16 %v581
    %v2892 = vunpack.c.l.b16 %v582
    %v2893 = vunpack.c.h.b16 %v582
    %v2894 = vunpack.c.l.b16 %v583
    %v2895 = vunpack.c.h.b16 %v583
    %v2896 = vunpack.c.l.b16 %v584
    %v2897 = vunpack.c.h.b16 %v584
    %v2898 = vunpack.c.l.b16 %v585
    %v2899 = vunpack.c.h.b16 %v585
    %v2900 = vunpack.c.l.b16 %v586
    %v2901 = vunpack.c.h.b16 %v586
    %v2902 = vunpack.c.l.b16 %v587
    %v2903 = vunpack.c.h.b16 %v587
    %v2904 = vunpack.c.l.b16 %v588
    %v2905 = vunpack.c.h.b16 %v588
    %v2906 = vunpack.c.l.b16 %v589
    %v2907 = vunpack.c.h.b16 %v589
    %v2908 = vunpack.c.l.b16 %v590
    %v2909 = vunpack.c.h.b16 %v590
    %v2910 = vunpack.c.l.b16 %v591
    %v2911 = vunpack.c.h.b16 %v591
    %v2912 = vunpack.c.l.b16 %v592
    %v2913 = vunpack.c.h.b16 %v592
    %v2914 = vunpack.c.l.b16 %v593
    %v2915 = vunpack.c.h.b16 %v593
    %v2916 = vunpack.c.l.b16 %v594
    %v2917 = vunpack.c.h.b16 %v594
    %v2918 = vunpack.c.l.b16 %v595
    %v2919 = vunpack.c.h.b16 %v595
    %v2920 = vunpack.c.l.b16 %v596
    %v2921 = vunpack.c.h.b16 %v596
    %v2922 = vunpack.c.l.b16 %v597
    %v2923 = vunpack.c.h.b16 %v597
    %v2924 = vunpack.c.l.b16 %v598
    %v2925 = vunpack.c.h.b16 %v598
    %v2926 = vunpack.c.l.b16 %v599
    %v2927 = vunpack.c.h.b16 %v599
    %v2928 = vunpack.c.l.b16 %v600
    %v2929 = vunpack.c.h.b16 %v600
    %v2930 = vunpack.c.l.b16 %v601
    %v2931 = vunpack.c.h.b16 %v601
    %v2932 = vunpack.c.l.b16 %v602
    %v2933 = vunpack.c.h.b16 %v602
    %v2934 = vunpack.c.l.b16 %v603
    %v2935 = vunpack.c.h.b16 %v603
    %v2936 = vunpack.c.l.b16 %v604
    %v2937 = vunpack.c.h.b16 %v604
    %v2938 = vunpack.c.l.b16 %v605
    %v2939 = vunpack.c.h.b16 %v605
    %v2940 = vunpack.c.l.b16 %v606
    %v2941 = vunpack.c.h.b16 %v606
    %v2942 = vunpack.c.l.b16 %v607
    %v2943 = vunpack.c.h.b16 %v607
    %v2944 = vunpack.c.l.b16 %v608
    %v2945 = vunpack.c.h.b16 %v608
    %v2946 = vunpack.c.l.b16 %v609
    %v2947 = vunpack.c.h.b16 %v609
    %v2948 = vunpack.c.l.b16 %v610
    %v2949 = vunpack.c.h.b16 %v610
    %v2950 = vunpack.c.l.b16 %v611
    %v2951 = vunpack.c.h.b16 %v611
    %v2952 = vunpack.c.l.b16 %v612
    %v2953 = vunpack.c.h.b16 %v612
    %v2954 = vunpack.c.l.b16 %v613
    %v2955 = vunpack.c.h.b16 %v613
    %v2956 = vunpack.c.l.b16 %v614
    %v2957 = vunpack.c.h.b16 %v614
    %v2958 = vunpack.c.l.b16 %v615
    %v2959 = vunpack.c.h.b16 %v615
    %v2960 = vunpack.c.l.b16 %v616
    %v2961 = vunpack.c.h.b16 %v616
    %v2962 = vunpack.c.l.b16 %v617
    %v2963 = vunpack.c.h.b16 %v617
    %v2964 = vunpack.c.l.b16 %v618
    %v2965 = vunpack.c.h.b16 %v618
    %v2966 = vunpack.c.l.b16 %v619
    %v2967 = vunpack.c.h.b16 %v619
    %v2968 = vunpack.c.l.b16 %v620
    %v2969 = vunpack.c.h.b16 %v620
    %v2970 = vunpack.c.l.b16 %v621
    %v2971 = vunpack.c.h.b16 %v621
    %v2972 = vunpack.c.l.b16 %v622
    %v2973 = vunpack.c.h.b16 %v622
    %v2974 = vunpack.c.l.b16 %v623
    %v2975 = vunpack.c.h.b16 %v623
    %v2976 = vunpack.c.l.b16 %v624
    %v2977 = vunpack.c.h.b16 %v624
    %v2978 = vunpack.c.l.b16 %v625
    %v2979 = vunpack.c.h.b16 %v625
    %v2980 = vunpack.c.l.b16 %v626
    %v2981 = vunpack.c.h.b16 %v626
    %v2982 = vunpack.c.l.b16 %v627
    %v2983 = vunpack.c.h.b16 %v627
    %v2984 = vunpack.c.l.b16 %v628
    %v2985 = vunpack.c.h.b16 %v628
    %v2986 = vunpack.c.l.b16 %v629
    %v2987 = vunpack.c.h.b16 %v629
    %v2988 = vunpack.c.l.b16 %v630
    %v2989 = vunpack.c.h.b16 %v630
    %v2990 = vunpack.c.l.b16 %v631
    %v2991 = vunpack.c.h.b16 %v631
    %v2992 = vunpack.c.l.b16 %v632
    %v2993 = vunpack.c.h.b16 %v632
    %v2994 = vunpack.c.l.b16 %v633
    %v2995 = vunpack.c.h.b16 %v633
    %v2996 = vunpack.c.l.b16 %v634
    %v2997 = vunpack.c.h.b16 %v634
    %v2998 = vunpack.c.l.b16 %v635
    %v2999 = vunpack.c.h.b16 %v635
    %v3000 = vunpack.c.l.b16 %v636
    %v3001 = vunpack.c.h.b16 %v636
    %v3002 = vunpack.c.l.b16 %v637
    %v3003 = vunpack.c.h.b16 %v637
    %v3004 = vunpack.c.l.b16 %v638
    %v3005 = vunpack.c.h.b16 %v638
    %v3006 = vunpack.c.l.b16 %v639
    %v3007 = vunpack.c.h.b16 %v639
    %v3008 = vunpack.c.l.b16 %v640
    %v3009 = vunpack.c.h.b16 %v640
    %v3010 = vunpack.c.l.b16 %v641
    %v3011 = vunpack.c.h.b16 %v641
    %v3012 = vunpack.c.l.b16 %v642
    %v3013 = vunpack.c.h.b16 %v642
    %v3014 = vunpack.c.l.b16 %v643
    %v3015 = vunpack.c.h.b16 %v643
    %v3016 = vunpack.c.l.b16 %v644
    %v3017 = vunpack.c.h.b16 %v644
    %v3018 = vunpack.c.l.b16 %v645
    %v3019 = vunpack.c.h.b16 %v645
    %v3020 = vunpack.c.l.b16 %v646
    %v3021 = vunpack.c.h.b16 %v646
    %v3022 = vunpack.c.l.b16 %v647
    %v3023 = vunpack.c.h.b16 %v647
    %v3024 = vunpack.c.l.b16 %v648
    %v3025 = vunpack.c.h.b16 %v648
    %v3026 = vunpack.c.l.b16 %v649
    %v3027 = vunpack.c.h.b16 %v649
    %v3028 = vunpack.c.l.b16 %v650
    %v3029 = vunpack.c.h.b16 %v650
    %v3030 = vunpack.c.l.b16 %v651
    %v3031 = vunpack.c.h.b16 %v651
    %v3032 = vunpack.c.l.b16 %v652
    %v3033 = vunpack.c.h.b16 %v652
    %v3034 = vunpack.c.l.b16 %v653
    %v3035 = vunpack.c.h.b16 %v653
    %v3036 = vunpack.c.l.b16 %v654
    %v3037 = vunpack.c.h.b16 %v654
    %v3038 = vunpack.c.l.b16 %v655
    %v3039 = vunpack.c.h.b16 %v655
    %v3040 = vunpack.c.l.b16 %v656
    %v3041 = vunpack.c.h.b16 %v656
    %v3042 = vunpack.c.l.b16 %v657
    %v3043 = vunpack.c.h.b16 %v657
    %v3044 = vunpack.c.l.b16 %v658
    %v3045 = vunpack.c.h.b16 %v658
    %v3046 = vunpack.c.l.b16 %v659
    %v3047 = vunpack.c.h.b16 %v659
    %v3048 = vunpack.c.l.b16 %v660
    %v3049 = vunpack.c.h.b16 %v660
    %v3050 = vunpack.c.l.b16 %v661
    %v3051 = vunpack.c.h.b16 %v661
    %v3052 = vunpack.c.l.b16 %v662
    %v3053 = vunpack.c.h.b16 %v662
    %v3054 = vunpack.c.l.b16 %v663
    %v3055 = vunpack.c.h.b16 %v663
    %v3056 = vunpack.c.l.b16 %v664
    %v3057 = vunpack.c.h.b16 %v664
    %v3058 = vunpack.c.l.b16 %v665
    %v3059 = vunpack.c.h.b16 %v665
    %v3060 = vunpack.c.l.b16 %v666
    %v3061 = vunpack.c.h.b16 %v666
    %v3062 = vunpack.c.l.b16 %v667
    %v3063 = vunpack.c.h.b16 %v667
    %v3064 = vunpack.c.l.b16 %v668
    %v3065 = vunpack.c.h.b16 %v668
    %v3066 = vunpack.c.l.b16 %v669
    %v3067 = vunpack.c.h.b16 %v669
    %v3068 = vunpack.c.l.b16 %v670
    %v3069 = vunpack.c.h.b16 %v670
    %v3070 = vunpack.c.l.b16 %v671
    %v3071 = vunpack.c.h.b16 %v671
    %v3072 = vunpack.c.l.b16 %v672
    %v3073 = vunpack.c.h.b16 %v672
    %v3074 = vunpack.c.l.b16 %v673
    %v3075 = vunpack.c.h.b16 %v673
    %v3076 = vunpack.c.l.b16 %v674
    %v3077 = vunpack.c.h.b16 %v674
    %v3078 = vunpack.c.l.b16 %v675
    %v3079 = vunpack.c.h.b16 %v675
    %v3080 = vunpack.c.l.b16 %v676
    %v3081 = vunpack.c.h.b16 %v676
    %v3082 = vunpack.c.l.b16 %v677
    %v3083 = vunpack.c.h.b16 %v677
    %v3084 = vunpack.c.l.b16 %v678
    %v3085 = vunpack.c.h.b16 %v678
    %v3086 = vunpack.c.l.b16 %v679
    %v3087 = vunpack.c.h.b16 %v679
    %v3088 = vunpack.c.l.b16 %v680
    %v3089 = vunpack.c.h.b16 %v680
    %v3090 = vunpack.c.l.b16 %v681
    %v3091 = vunpack.c.h.b16 %v681
    %v3092 = vunpack.c.l.b16 %v682
    %v3093 = vunpack.c.h.b16 %v682
    %v3094 = vunpack.c.l.b16 %v683
    %v3095 = vunpack.c.h.b16 %v683
    %v3096 = vunpack.c.l.b16 %v684
    %v3097 = vunpack.c.h.b16 %v684
    %v3098 = vunpack.c.l.b16 %v685
    %v3099 = vunpack.c.h.b16 %v685
    %v3100 = vunpack.c.l.b16 %v686
    %v3101 = vunpack.c.h.b16 %v686
    %v3102 = vunpack.c.l.b16 %v687
    %v3103 = vunpack.c.h.b16 %v687
    %v3104 = vunpack.c.l.b16 %v688
    %v3105 = vunpack.c.h.b16 %v688
    %v3106 = vunpack.c.l.b16 %v689
    %v3107 = vunpack.c.h.b16 %v689
    %v3108 = vunpack.c.l.b16 %v690
    %v3109 = vunpack.c.h.b16 %v690
    %v3110 = vunpack.c.l.b16 %v691
    %v3111 = vunpack.c.h.b16 %v691
    %v3112 = vunpack.c.l.b16 %v692
    %v3113 = vunpack.c.h.b16 %v692
    %v3114 = vunpack.c.l.b16 %v693
    %v3115 = vunpack.c.h.b16 %v693
    %v3116 = vunpack.c.l.b16 %v694
    %v3117 = vunpack.c.h.b16 %v694
    %v3118 = vunpack.c.l.b16 %v695
    %v3119 = vunpack.c.h.b16 %v695
    %v3120 = vunpack.c.l.b16 %v696
    %v3121 = vunpack.c.h.b16 %v696
    %v3122 = vunpack.c.l.b16 %v697
    %v3123 = vunpack.c.h.b16 %v697
    %v3124 = vunpack.c.l.b16 %v698
    %v3125 = vunpack.c.h.b16 %v698
    %v3126 = vunpack.c.l.b16 %v699
    %v3127 = vunpack.c.h.b16 %v699
    %v3128 = vunpack.c.l.b16 %v700
    %v3129 = vunpack.c.h.b16 %v700
    %v3130 = vunpack.c.l.b16 %v701
    %v3131 = vunpack.c.h.b16 %v701
    %v3132 = vunpack.c.l.b16 %v702
    %v3133 = vunpack.c.h.b16 %v702
    %v3134 = vunpack.c.l.b16 %v703
    %v3135 = vunpack.c.h.b16 %v703
    %v3136 = vunpack.c.l.b16 %v704
    %v3137 = vunpack.c.h.b16 %v704
    %v3138 = vunpack.c.l.b16 %v705
    %v3139 = vunpack.c.h.b16 %v705
    %v3140 = vunpack.c.l.b16 %v706
    %v3141 = vunpack.c.h.b16 %v706
    %v3142 = vunpack.c.l.b16 %v707
    %v3143 = vunpack.c.h.b16 %v707
    %v3144 = vunpack.c.l.b16 %v708
    %v3145 = vunpack.c.h.b16 %v708
    %v3146 = vunpack.c.l.b16 %v709
    %v3147 = vunpack.c.h.b16 %v709
    %v3148 = vunpack.c.l.b16 %v710
    %v3149 = vunpack.c.h.b16 %v710
    %v3150 = vunpack.c.l.b16 %v711
    %v3151 = vunpack.c.h.b16 %v711
    %v3152 = vunpack.c.l.b16 %v712
    %v3153 = vunpack.c.h.b16 %v712
    %v3154 = vunpack.c.l.b16 %v713
    %v3155 = vunpack.c.h.b16 %v713
    %v3156 = vunpack.c.l.b16 %v714
    %v3157 = vunpack.c.h.b16 %v714
    %v3158 = vunpack.c.l.b16 %v715
    %v3159 = vunpack.c.h.b16 %v715
    %v3160 = vunpack.c.l.b16 %v716
    %v3161 = vunpack.c.h.b16 %v716
    %v3162 = vunpack.c.l.b16 %v717
    %v3163 = vunpack.c.h.b16 %v717
    %v3164 = vunpack.c.l.b16 %v718
    %v3165 = vunpack.c.h.b16 %v718
    %v3166 = vunpack.c.l.b16 %v719
    %v3167 = vunpack.c.h.b16 %v719
    %v3168 = vunpack.c.l.b16 %v720
    %v3169 = vunpack.c.h.b16 %v720
    %v3170 = vunpack.c.l.b16 %v721
    %v3171 = vunpack.c.h.b16 %v721
    %v3172 = vunpack.c.l.b16 %v722
    %v3173 = vunpack.c.h.b16 %v722
    %v3174 = vunpack.c.l.b16 %v723
    %v3175 = vunpack.c.h.b16 %v723
    %v3176 = vunpack.c.l.b16 %v724
    %v3177 = vunpack.c.h.b16 %v724
    %v3178 = vunpack.c.l.b16 %v725
    %v3179 = vunpack.c.h.b16 %v725
    %v3180 = vunpack.c.l.b16 %v726
    %v3181 = vunpack.c.h.b16 %v726
    %v3182 = vunpack.c.l.b16 %v727
    %v3183 = vunpack.c.h.b16 %v727
    %v3184 = vunpack.c.l.b16 %v728
    %v3185 = vunpack.c.h.b16 %v728
    %v3186 = vunpack.c.l.b16 %v729
    %v3187 = vunpack.c.h.b16 %v729
    %v3188 = vunpack.c.l.b16 %v730
    %v3189 = vunpack.c.h.b16 %v730
    %v3190 = vunpack.c.l.b16 %v731
    %v3191 = vunpack.c.h.b16 %v731
    %v3192 = vunpack.c.l.b16 %v732
    %v3193 = vunpack.c.h.b16 %v732
    %v3194 = vunpack.c.l.b16 %v733
    %v3195 = vunpack.c.h.b16 %v733
    %v3196 = vunpack.c.l.b16 %v734
    %v3197 = vunpack.c.h.b16 %v734
    %v3198 = vunpack.c.l.b16 %v735
    %v3199 = vunpack.c.h.b16 %v735
    %v3200 = vunpack.c.l.b16 %v736
    %v3201 = vunpack.c.h.b16 %v736
    %v3202 = vunpack.c.l.b16 %v737
    %v3203 = vunpack.c.h.b16 %v737
    %v3204 = vunpack.c.l.b16 %v738
    %v3205 = vunpack.c.h.b16 %v738
    %v3206 = vunpack.c.l.b16 %v739
    %v3207 = vunpack.c.h.b16 %v739
    %v3208 = vunpack.c.l.b16 %v740
    %v3209 = vunpack.c.h.b16 %v740
    %v3210 = vunpack.c.l.b16 %v741
    %v3211 = vunpack.c.h.b16 %v741
    %v3212 = vunpack.c.l.b16 %v742
    %v3213 = vunpack.c.h.b16 %v742
    %v3214 = vunpack.c.l.b16 %v743
    %v3215 = vunpack.c.h.b16 %v743
    %v3216 = vunpack.c.l.b16 %v744
    %v3217 = vunpack.c.h.b16 %v744
    %v3218 = vunpack.c.l.b16 %v745
    %v3219 = vunpack.c.h.b16 %v745
    %v3220 = vunpack.c.l.b16 %v746
    %v3221 = vunpack.c.h.b16 %v746
    %v3222 = vunpack.c.l.b16 %v747
    %v3223 = vunpack.c.h.b16 %v747
    %v3224 = vunpack.c.l.b16 %v748
    %v3225 = vunpack.c.h.b16 %v748
    %v3226 = vunpack.c.l.b16 %v749
    %v3227 = vunpack.c.h.b16 %v749
    %v3228 = vunpack.c.l.b16 %v750
    %v3229 = vunpack.c.h.b16 %v750
    %v3230 = vunpack.c.l.b16 %v751
    %v3231 = vunpack.c.h.b16 %v751
    %v3232 = vunpack.c.l.b16 %v752
    %v3233 = vunpack.c.h.b16 %v752
    %v3234 = vunpack.c.l.b16 %v753
    %v3235 = vunpack.c.h.b16 %v753
    %v3236 = vunpack.c.l.b16 %v754
    %v3237 = vunpack.c.h.b16 %v754
    %v3238 = vunpack.c.l.b16 %v755
    %v3239 = vunpack.c.h.b16 %v755
    %v3240 = vunpack.c.l.b16 %v756
    %v3241 = vunpack.c.h.b16 %v756
    %v3242 = vunpack.c.l.b16 %v757
    %v3243 = vunpack.c.h.b16 %v757
    %v3244 = vunpack.c.l.b16 %v758
    %v3245 = vunpack.c.h.b16 %v758
    %v3246 = vunpack.c.l.b16 %v759
    %v3247 = vunpack.c.h.b16 %v759
    %v3248 = vunpack.c.l.b16 %v760
    %v3249 = vunpack.c.h.b16 %v760
    %v3250 = vunpack.c.l.b16 %v761
    %v3251 = vunpack.c.h.b16 %v761
    %v3252 = vunpack.c.l.b16 %v762
    %v3253 = vunpack.c.h.b16 %v762
    %v3254 = vunpack.c.l.b16 %v763
    %v3255 = vunpack.c.h.b16 %v763
    %v3256 = vunpack.c.l.b16 %v764
    %v3257 = vunpack.c.h.b16 %v764
    %v3258 = vunpack.c.l.b16 %v765
    %v3259 = vunpack.c.h.b16 %v765
    %v3260 = vunpack.c.l.b16 %v766
    %v3261 = vunpack.c.h.b16 %v766
    %v3262 = vunpack.c.l.b16 %v767
    %v3263 = vunpack.c.h.b16 %v767
    %v3264 = vunpack.c.l.b16 %v768
    %v3265 = vunpack.c.h.b16 %v768
    %v3266 = vunpack.c.l.b16 %v769
    %v3267 = vunpack.c.h.b16 %v769
    %v3268 = vunpack.c.l.b16 %v770
    %v3269 = vunpack.c.h.b16 %v770
    %v3270 = vunpack.c.l.b16 %v771
    %v3271 = vunpack.c.h.b16 %v771
    %v3272 = vunpack.c.l.b16 %v772
    %v3273 = vunpack.c.h.b16 %v772
    %v3274 = vunpack.c.l.b16 %v773
    %v3275 = vunpack.c.h.b16 %v773
    %v3276 = vunpack.c.l.b16 %v774
    %v3277 = vunpack.c.h.b16 %v774
    %v3278 = vunpack.c.l.b16 %v775
    %v3279 = vunpack.c.h.b16 %v775
    %v3280 = vunpack.c.l.b16 %v776
    %v3281 = vunpack.c.h.b16 %v776
    %v3282 = vunpack.c.l.b16 %v777
    %v3283 = vunpack.c.h.b16 %v777
    %v3284 = vunpack.c.l.b16 %v778
    %v3285 = vunpack.c.h.b16 %v778
    %v3286 = vunpack.c.l.b16 %v779
    %v3287 = vunpack.c.h.b16 %v779
    %v3288 = vunpack.c.l.b16 %v780
    %v3289 = vunpack.c.h.b16 %v780
    %v3290 = vunpack.c.l.b16 %v781
    %v3291 = vunpack.c.h.b16 %v781
    %v3292 = vunpack.c.l.b16 %v782
    %v3293 = vunpack.c.h.b16 %v782
    %v3294 = vunpack.c.l.b16 %v783
    %v3295 = vunpack.c.h.b16 %v783
    %v3296 = vunpack.c.l.b16 %v784
    %v3297 = vunpack.c.h.b16 %v784
    %v3298 = vunpack.c.l.b16 %v785
    %v3299 = vunpack.c.h.b16 %v785
    %v3300 = vunpack.c.l.b16 %v786
    %v3301 = vunpack.c.h.b16 %v786
    %v3302 = vunpack.c.l.b16 %v787
    %v3303 = vunpack.c.h.b16 %v787
    %v3304 = vunpack.c.l.b16 %v788
    %v3305 = vunpack.c.h.b16 %v788
    %v3306 = vunpack.c.l.b16 %v789
    %v3307 = vunpack.c.h.b16 %v789
    %v3308 = vunpack.c.l.b16 %v790
    %v3309 = vunpack.c.h.b16 %v790
    %v3310 = vunpack.c.l.b16 %v791
    %v3311 = vunpack.c.h.b16 %v791
    %v3312 = vunpack.c.l.b16 %v792
    %v3313 = vunpack.c.h.b16 %v792
    %v3314 = vunpack.c.l.b16 %v793
    %v3315 = vunpack.c.h.b16 %v793
    %v3316 = vunpack.c.l.b16 %v794
    %v3317 = vunpack.c.h.b16 %v794
    %v3318 = vunpack.c.l.b16 %v795
    %v3319 = vunpack.c.h.b16 %v795
    %v3320 = vunpack.c.l.b16 %v796
    %v3321 = vunpack.c.h.b16 %v796
    %v3322 = vunpack.c.l.b16 %v797
    %v3323 = vunpack.c.h.b16 %v797
    %v3324 = vunpack.c.l.b16 %v798
    %v3325 = vunpack.c.h.b16 %v798
    %v3326 = vunpack.c.l.b16 %v799
    %v3327 = vunpack.c.h.b16 %v799
    %v3328 = vunpack.c.l.b16 %v800
    %v3329 = vunpack.c.h.b16 %v800
    %v3330 = vunpack.c.l.b16 %v801
    %v3331 = vunpack.c.h.b16 %v801
    %v3332 = vunpack.c.l.b16 %v802
    %v3333 = vunpack.c.h.b16 %v802
    %v3334 = vunpack.c.l.b16 %v803
    %v3335 = vunpack.c.h.b16 %v803
    %v3336 = vunpack.c.l.b16 %v804
    %v3337 = vunpack.c.h.b16 %v804
    %v3338 = vunpack.c.l.b16 %v805
    %v3339 = vunpack.c.h.b16 %v805
    %v3340 = vunpack.c.l.b16 %v806
    %v3341 = vunpack.c.h.b16 %v806
    %v3342 = vunpack.c.l.b16 %v807
    %v3343 = vunpack.c.h.b16 %v807
    %v3344 = vunpack.c.l.b16 %v808
    %v3345 = vunpack.c.h.b16 %v808
    %v3346 = vunpack.c.l.b16 %v809
    %v3347 = vunpack.c.h.b16 %v809
    %v3348 = vunpack.c.l.b16 %v810
    %v3349 = vunpack.c.h.b16 %v810
    %v3350 = vunpack.c.l.b16 %v811
    %v3351 = vunpack.c.h.b16 %v811
    %v3352 = vunpack.c.l.b16 %v812
    %v3353 = vunpack.c.h.b16 %v812
    %v3354 = vunpack.c.l.b16 %v813
    %v3355 = vunpack.c.h.b16 %v813
    %v3356 = vunpack.c.l.b16 %v814
    %v3357 = vunpack.c.h.b16 %v814
    %v3358 = vunpack.c.l.b16 %v815
    %v3359 = vunpack.c.h.b16 %v815
    %v3360 = vunpack.c.l.b16 %v816
    %v3361 = vunpack.c.h.b16 %v816
    %v3362 = vunpack.c.l.b16 %v817
    %v3363 = vunpack.c.h.b16 %v817
    %v3364 = vunpack.c.l.b16 %v818
    %v3365 = vunpack.c.h.b16 %v818
    %v3366 = vunpack.c.l.b16 %v819
    %v3367 = vunpack.c.h.b16 %v819
    %v3368 = vunpack.c.l.b16 %v820
    %v3369 = vunpack.c.h.b16 %v820
    %v3370 = vunpack.c.l.b16 %v821
    %v3371 = vunpack.c.h.b16 %v821
    %v3372 = vunpack.c.l.b16 %v822
    %v3373 = vunpack.c.h.b16 %v822
    %v3374 = vunpack.c.l.b16 %v823
    %v3375 = vunpack.c.h.b16 %v823
    %v3376 = vunpack.c.l.b16 %v824
    %v3377 = vunpack.c.h.b16 %v824
    %v3378 = vunpack.c.l.b16 %v825
    %v3379 = vunpack.c.h.b16 %v825
    %v3380 = vunpack.c.l.b16 %v826
    %v3381 = vunpack.c.h.b16 %v826
    %v3382 = vunpack.c.l.b16 %v827
    %v3383 = vunpack.c.h.b16 %v827
    %v3384 = vunpack.c.l.b16 %v828
    %v3385 = vunpack.c.h.b16 %v828
    %v3386 = vunpack.c.l.b16 %v829
    %v3387 = vunpack.c.h.b16 %v829
    %v3388 = vunpack.c.l.b16 %v830
    %v3389 = vunpack.c.h.b16 %v830
    %v3390 = vunpack.c.l.b16 %v831
    %v3391 = vunpack.c.h.b16 %v831
    %v3392 = vunpack.c.l.b16 %v832
    %v3393 = vunpack.c.h.b16 %v832
    %v3394 = vunpack.c.l.b16 %v833
    %v3395 = vunpack.c.h.b16 %v833
    %v3396 = vunpack.c.l.b16 %v834
    %v3397 = vunpack.c.h.b16 %v834
    %v3398 = vunpack.c.l.b16 %v835
    %v3399 = vunpack.c.h.b16 %v835
    %v3400 = vunpack.c.l.b16 %v836
    %v3401 = vunpack.c.h.b16 %v836
    %v3402 = vunpack.c.l.b16 %v837
    %v3403 = vunpack.c.h.b16 %v837
    %v3404 = vunpack.c.l.b16 %v838
    %v3405 = vunpack.c.h.b16 %v838
    %v3406 = vunpack.c.l.b16 %v839
    %v3407 = vunpack.c.h.b16 %v839
    %v3408 = vunpack.c.l.b16 %v840
    %v3409 = vunpack.c.h.b16 %v840
    %v3410 = vunpack.c.l.b16 %v841
    %v3411 = vunpack.c.h.b16 %v841
    %v3412 = vunpack.c.l.b16 %v842
    %v3413 = vunpack.c.h.b16 %v842
    %v3414 = vunpack.c.l.b16 %v843
    %v3415 = vunpack.c.h.b16 %v843
    %v3416 = vunpack.c.l.b16 %v844
    %v3417 = vunpack.c.h.b16 %v844
    %v3418 = vunpack.c.l.b16 %v845
    %v3419 = vunpack.c.h.b16 %v845
    %v3420 = vunpack.c.l.b16 %v846
    %v3421 = vunpack.c.h.b16 %v846
    %v3422 = vunpack.c.l.b16 %v847
    %v3423 = vunpack.c.h.b16 %v847
    %v3424 = vunpack.c.l.b16 %v848
    %v3425 = vunpack.c.h.b16 %v848
    %v3426 = vunpack.c.l.b16 %v849
    %v3427 = vunpack.c.h.b16 %v849
    %v3428 = vunpack.c.l.b16 %v850
    %v3429 = vunpack.c.h.b16 %v850
    %v3430 = vunpack.c.l.b16 %v851
    %v3431 = vunpack.c.h.b16 %v851
    %v3432 = vunpack.c.l.b16 %v852
    %v3433 = vunpack.c.h.b16 %v852
    %v3434 = vunpack.c.l.b16 %v853
    %v3435 = vunpack.c.h.b16 %v853
    %v3436 = vunpack.c.l.b16 %v854
    %v3437 = vunpack.c.h.b16 %v854
    %v3438 = vunpack.c.l.b16 %v855
    %v3439 = vunpack.c.h.b16 %v855
    %v3440 = vunpack.c.l.b16 %v856
    %v3441 = vunpack.c.h.b16 %v856
    %v3442 = vunpack.c.l.b16 %v857
    %v3443 = vunpack.c.h.b16 %v857
    %v3444 = vunpack.c.l.b16 %v858
    %v3445 = vunpack.c.h.b16 %v858
    %v3446 = vunpack.c.l.b16 %v859
    %v3447 = vunpack.c.h.b16 %v859
    %v3448 = vunpack.c.l.b16 %v860
    %v3449 = vunpack.c.h.b16 %v860
    %v3450 = vunpack.c.l.b16 %v861
    %v3451 = vunpack.c.h.b16 %v861
    %v3452 = vunpack.c.l.b16 %v862
    %v3453 = vunpack.c.h.b16 %v862
    %v3454 = vunpack.c.l.b16 %v863
    %v3455 = vunpack.c.h.b16 %v863
    %v3456 = vunpack.c.l.b16 %v864
    %v3457 = vunpack.c.h.b16 %v864
    %v3458 = vunpack.c.l.b16 %v865
    %v3459 = vunpack.c.h.b16 %v865
    %v3460 = vunpack.c.l.b16 %v866
    %v3461 = vunpack.c.h.b16 %v866
    %v3462 = vunpack.c.l.b16 %v867
    %v3463 = vunpack.c.h.b16 %v867
    %v3464 = vunpack.c.l.b16 %v868
    %v3465 = vunpack.c.h.b16 %v868
    %v3466 = vunpack.c.l.b16 %v869
    %v3467 = vunpack.c.h.b16 %v869
    %v3468 = vunpack.c.l.b16 %v870
    %v3469 = vunpack.c.h.b16 %v870
    %v3470 = vunpack.c.l.b16 %v871
    %v3471 = vunpack.c.h.b16 %v871
    %v3472 = vunpack.c.l.b16 %v872
    %v3473 = vunpack.c.h.b16 %v872
    %v3474 = vunpack.c.l.b16 %v873
    %v3475 = vunpack.c.h.b16 %v873
    %v3476 = vunpack.c.l.b16 %v874
    %v3477 = vunpack.c.h.b16 %v874
    %v3478 = vunpack.c.l.b16 %v875
    %v3479 = vunpack.c.h.b16 %v875
    %v3480 = vunpack.c.l.b16 %v876
    %v3481 = vunpack.c.h.b16 %v876
    %v3482 = vunpack.c.l.b16 %v877
    %v3483 = vunpack.c.h.b16 %v877
    %v3484 = vunpack.c.l.b16 %v878
    %v3485 = vunpack.c.h.b16 %v878
    %v3486 = vunpack.c.l.b16 %v879
    %v3487 = vunpack.c.h.b16 %v879
    %v3488 = vunpack.c.l.b16 %v880
    %v3489 = vunpack.c.h.b16 %v880
    %v3490 = vunpack.c.l.b16 %v881
    %v3491 = vunpack.c.h.b16 %v881
    %v3492 = vunpack.c.l.b16 %v882
    %v3493 = vunpack.c.h.b16 %v882
    %v3494 = vunpack.c.l.b16 %v883
    %v3495 = vunpack.c.h.b16 %v883
    %v3496 = vunpack.c.l.b16 %v884
    %v3497 = vunpack.c.h.b16 %v884
    %v3498 = vunpack.c.l.b16 %v885
    %v3499 = vunpack.c.h.b16 %v885
    %v3500 = vunpack.c.l.b16 %v886
    %v3501 = vunpack.c.h.b16 %v886
    %v3502 = vunpack.c.l.b16 %v887
    %v3503 = vunpack.c.h.b16 %v887
    %v3504 = vunpack.c.l.b16 %v888
    %v3505 = vunpack.c.h.b16 %v888
    %v3506 = vunpack.c.l.b16 %v889
    %v3507 = vunpack.c.h.b16 %v889
    %v3508 = vunpack.c.l.b16 %v890
    %v3509 = vunpack.c.h.b16 %v890
    %v3510 = vunpack.c.l.b16 %v891
    %v3511 = vunpack.c.h.b16 %v891
    %v3512 = vunpack.c.l.b16 %v892
    %v3513 = vunpack.c.h.b16 %v892
    %v3514 = vunpack.c.l.b16 %v893
    %v3515 = vunpack.c.h.b16 %v893
    %v3516 = vunpack.c.l.b16 %v894
    %v3517 = vunpack.c.h.b16 %v894
    %v3518 = vunpack.c.l.b16 %v895
    %v3519 = vunpack.c.h.b16 %v895
    %v3520 = vunpack.c.l.b16 %v896
    %v3521 = vunpack.c.h.b16 %v896
    %v3522 = vunpack.c.l.b16 %v897
    %v3523 = vunpack.c.h.b16 %v897
    %v3524 = vunpack.c.l.b16 %v898
    %v3525 = vunpack.c.h.b16 %v898
    %v3526 = vunpack.c.l.b16 %v899
    %v3527 = vunpack.c.h.b16 %v899
    %v3528 = vunpack.c.l.b16 %v900
    %v3529 = vunpack.c.h.b16 %v900
    %v3530 = vunpack.c.l.b16 %v901
    %v3531 = vunpack.c.h.b16 %v901
    %v3532 = vunpack.c.l.b16 %v902
    %v3533 = vunpack.c.h.b16 %v902
    %v3534 = vunpack.c.l.b16 %v903
    %v3535 = vunpack.c.h.b16 %v903
    %v3536 = vunpack.c.l.b16 %v904
    %v3537 = vunpack.c.h.b16 %v904
    %v3538 = vunpack.c.l.b16 %v905
    %v3539 = vunpack.c.h.b16 %v905
    %v3540 = vunpack.c.l.b16 %v906
    %v3541 = vunpack.c.h.b16 %v906
    %v3542 = vunpack.c.l.b16 %v907
    %v3543 = vunpack.c.h.b16 %v907
    %v3544 = vunpack.c.l.b16 %v908
    %v3545 = vunpack.c.h.b16 %v908
    %v3546 = vunpack.c.l.b16 %v909
    %v3547 = vunpack.c.h.b16 %v909
    %v3548 = vunpack.c.l.b16 %v910
    %v3549 = vunpack.c.h.b16 %v910
    %v3550 = vunpack.c.l.b16 %v911
    %v3551 = vunpack.c.h.b16 %v911
    %v3552 = vunpack.c.l.b16 %v912
    %v3553 = vunpack.c.h.b16 %v912
    %v3554 = vunpack.c.l.b16 %v913
    %v3555 = vunpack.c.h.b16 %v913
    %v3556 = vunpack.c.l.b16 %v914
    %v3557 = vunpack.c.h.b16 %v914
    %v3558 = vunpack.c.l.b16 %v915
    %v3559 = vunpack.c.h.b16 %v915
    %v3560 = vunpack.c.l.b16 %v916
    %v3561 = vunpack.c.h.b16 %v916
    %v3562 = vunpack.c.l.b16 %v917
    %v3563 = vunpack.c.h.b16 %v917
    %v3564 = vunpack.c.l.b16 %v918
    %v3565 = vunpack.c.h.b16 %v918
    %v3566 = vunpack.c.l.b16 %v919
    %v3567 = vunpack.c.h.b16 %v919
    %v3568 = vunpack.c.l.b16 %v920
    %v3569 = vunpack.c.h.b16 %v920
    %v3570 = vunpack.c.l.b16 %v921
    %v3571 = vunpack.c.h.b16 %v921
    %v3572 = vunpack.c.l.b16 %v922
    %v3573 = vunpack.c.h.b16 %v922
    %v3574 = vunpack.c.l.b16 %v923
    %v3575 = vunpack.c.h.b16 %v923
    %v3576 = vunpack.c.l.b16 %v924
    %v3577 = vunpack.c.h.b16 %v924
    %v3578 = vunpack.c.l.b16 %v925
    %v3579 = vunpack.c.h.b16 %v925
    %v3580 = vunpack.c.l.b16 %v926
    %v3581 = vunpack.c.h.b16 %v926
    %v3582 = vunpack.c.l.b16 %v927
    %v3583 = vunpack.c.h.b16 %v927
    %v3584 = vunpack.c.l.b16 %v928
    %v3585 = vunpack.c.h.b16 %v928
    %v3586 = vunpack.c.l.b16 %v929
    %v3587 = vunpack.c.h.b16 %v929
    %v3588 = vunpack.c.l.b16 %v930
    %v3589 = vunpack.c.h.b16 %v930
    %v3590 = vunpack.c.l.b16 %v931
    %v3591 = vunpack.c.h.b16 %v931
    %v3592 = vunpack.c.l.b16 %v932
    %v3593 = vunpack.c.h.b16 %v932
    %v3594 = vpack.c.b16 %v1874, %v1866
    %v3595 = vpack.c.b16 %v1875, %v1867
    %v3596 = vpack.c.b16 %v1876, %v1868
    %v3597 = vpack.c.b16 %v1877, %v1869
    %v3598 = vpack.c.b16 %v1878, %v1870
    %v3599 = vpack.c.b16 %v1879, %v1871
    %v3600 = vpack.c.b16 %v1880, %v1872
    %v3601 = vpack.c.b16 %v1881, %v1873
    %v3602 = vpack.c.b16 %v1890, %v1882
    %v3603 = vpack.c.b16 %v1891, %v1883
    %v3604 = vpack.c.b16 %v1892, %v1884
    %v3605 = vpack.c.b16 %v1893, %v1885
    %v3606 = vpack.c.b16 %v1894, %v1886
    %v3607 = vpack.c.b16 %v1895, %v1887
    %v3608 = vpack.c.b16 %v1896, %v1888
    %v3609 = vpack.c.b16 %v1897, %v1889
    %v3610 = vpack.c.b16 %v1906, %v1898
    %v3611 = vpack.c.b16 %v1907, %v1899
    %v3612 = vpack.c.b16 %v1908, %v1900
    %v3613 = vpack.c.b16 %v1909, %v1901
    %v3614 = vpack.c.b16 %v1910, %v1902
    %v3615 = vpack.c.b16 %v1911, %v1903
    %v3616 = vpack.c.b16 %v1912, %v1904
    %v3617 = vpack.c.b16 %v1913, %v1905
    %v3618 = vpack.c.b16 %v1922, %v1914
    %v3619 = vpack.c.b16 %v1923, %v1915
    %v3620 = vpack.c.b16 %v1924, %v1916
    %v3621 = vpack.c.b16 %v1925, %v1917
    %v3622 = vpack.c.b16 %v1926, %v1918
    %v3623 = vpack.c.b16 %v1927, %v1919
    %v3624 = vpack.c.b16 %v1928, %v1920
    %v3625 = vpack.c.b16 %v1929, %v1921
    %v3626 = vpack.c.b16 %v1938, %v1930
    %v3627 = vpack.c.b16 %v1939, %v1931
    %v3628 = vpack.c.b16 %v1940, %v1932
    %v3629 = vpack.c.b16 %v1941, %v1933
    %v3630 = vpack.c.b16 %v1942, %v1934
    %v3631 = vpack.c.b16 %v1943, %v1935
    %v3632 = vpack.c.b16 %v1944, %v1936
    %v3633 = vpack.c.b16 %v1945, %v1937
    %v3634 = vpack.c.b16 %v1954, %v1946
    %v3635 = vpack.c.b16 %v1955, %v1947
    %v3636 = vpack.c.b16 %v1956, %v1948
    %v3637 = vpack.c.b16 %v1957, %v1949
    %v3638 = vpack.c.b16 %v1958, %v1950
    %v3639 = vpack.c.b16 %v1959, %v1951
    %v3640 = vpack.c.b16 %v1960, %v1952
    %v3641 = vpack.c.b16 %v1961, %v1953
    %v3642 = vpack.c.b16 %v1970, %v1962
    %v3643 = vpack.c.b16 %v1971, %v1963
    %v3644 = vpack.c.b16 %v1972, %v1964
    %v3645 = vpack.c.b16 %v1973, %v1965
    %v3646 = vpack.c.b16 %v1974, %v1966
    %v3647 = vpack.c.b16 %v1975, %v1967
    %v3648 = vpack.c.b16 %v1976, %v1968
    %v3649 = vpack.c.b16 %v1977, %v1969
    %v3650 = vpack.c.b16 %v1986, %v1978
    %v3651 = vpack.c.b16 %v1987, %v1979
    %v3652 = vpack.c.b16 %v1988, %v1980
    %v3653 = vpack.c.b16 %v1989, %v1981
    %v3654 = vpack.c.b16 %v1990, %v1982
    %v3655 = vpack.c.b16 %v1991, %v1983
    %v3656 = vpack.c.b16 %v1992, %v1984
    %v3657 = vpack.c.b16 %v1993, %v1985
    %v3658 = vpack.c.b16 %v2002, %v1994
    %v3659 = vpack.c.b16 %v2003, %v1995
    %v3660 = vpack.c.b16 %v2004, %v1996
    %v3661 = vpack.c.b16 %v2005, %v1997
    %v3662 = vpack.c.b16 %v2006, %v1998
    %v3663 = vpack.c.b16 %v2007, %v1999
    %v3664 = vpack.c.b16 %v2008, %v2000
    %v3665 = vpack.c.b16 %v2009, %v2001
    %v3666 = vpack.c.b16 %v2018, %v2010
    %v3667 = vpack.c.b16 %v2019, %v2011
    %v3668 = vpack.c.b16 %v2020, %v2012
    %v3669 = vpack.c.b16 %v2021, %v2013
    %v3670 = vpack.c.b16 %v2022, %v2014
    %v3671 = vpack.c.b16 %v2023, %v2015
    %v3672 = vpack.c.b16 %v2024, %v2016
    %v3673 = vpack.c.b16 %v2025, %v2017
    %v3674 = vpack.c.b16 %v2034, %v2026
    %v3675 = vpack.c.b16 %v2035, %v2027
    %v3676 = vpack.c.b16 %v2036, %v2028
    %v3677 = vpack.c.b16 %v2037, %v2029
    %v3678 = vpack.c.b16 %v2038, %v2030
    %v3679 = vpack.c.b16 %v2039, %v2031
    %v3680 = vpack.c.b16 %v2040, %v2032
    %v3681 = vpack.c.b16 %v2041, %v2033
    %v3682 = vpack.c.b16 %v2050, %v2042
    %v3683 = vpack.c.b16 %v2051, %v2043
    %v3684 = vpack.c.b16 %v2052, %v2044
    %v3685 = vpack.c.b16 %v2053, %v2045
    %v3686 = vpack.c.b16 %v2054, %v2046
    %v3687 = vpack.c.b16 %v2055, %v2047
    %v3688 = vpack.c.b16 %v2056, %v2048
    %v3689 = vpack.c.b16 %v2057, %v2049
    %v3690 = vpack.c.b16 %v2066, %v2058
    %v3691 = vpack.c.b16 %v2067, %v2059
    %v3692 = vpack.c.b16 %v2068, %v2060
    %v3693 = vpack.c.b16 %v2069, %v2061
    %v3694 = vpack.c.b16 %v2070, %v2062
    %v3695 = vpack.c.b16 %v2071, %v2063
    %v3696 = vpack.c.b16 %v2072, %v2064
    %v3697 = vpack.c.b16 %v2073, %v2065
    %v3698 = vpack.c.b16 %v2082, %v2074
    %v3699 = vpack.c.b16 %v2083, %v2075
    %v3700 = vpack.c.b16 %v2084, %v2076
    %v3701 = vpack.c.b16 %v2085, %v2077
    %v3702 = vpack.c.b16 %v2086, %v2078
    %v3703 = vpack.c.b16 %v2087, %v2079
    %v3704 = vpack.c.b16 %v2088, %v2080
    %v3705 = vpack.c.b16 %v2089, %v2081
    %v3706 = vpack.c.b16 %v2098, %v2090
    %v3707 = vpack.c.b16 %v2099, %v2091
    %v3708 = vpack.c.b16 %v2100, %v2092
    %v3709 = vpack.c.b16 %v2101, %v2093
    %v3710 = vpack.c.b16 %v2102, %v2094
    %v3711 = vpack.c.b16 %v2103, %v2095
    %v3712 = vpack.c.b16 %v2104, %v2096
    %v3713 = vpack.c.b16 %v2105, %v2097
    %v3714 = vpack.c.b16 %v2114, %v2106
    %v3715 = vpack.c.b16 %v2115, %v2107
    %v3716 = vpack.c.b16 %v2116, %v2108
    %v3717 = vpack.c.b16 %v2117, %v2109
    %v3718 = vpack.c.b16 %v2118, %v2110
    %v3719 = vpack.c.b16 %v2119, %v2111
    %v3720 = vpack.c.b16 %v2120, %v2112
    %v3721 = vpack.c.b16 %v2121, %v2113
    %v3722 = vpack.c.b16 %v2130, %v2122
    %v3723 = vpack.c.b16 %v2131, %v2123
    %v3724 = vpack.c.b16 %v2132, %v2124
    %v3725 = vpack.c.b16 %v2133, %v2125
    %v3726 = vpack.c.b16 %v2134, %v2126
    %v3727 = vpack.c.b16 %v2135, %v2127
    %v3728 = vpack.c.b16 %v2136, %v2128
    %v3729 = vpack.c.b16 %v2137, %v2129
    %v3730 = vpack.c.b16 %v2146, %v2138
    %v3731 = vpack.c.b16 %v2147, %v2139
    %v3732 = vpack.c.b16 %v2148, %v2140
    %v3733 = vpack.c.b16 %v2149, %v2141
    %v3734 = vpack.c.b16 %v2150, %v2142
    %v3735 = vpack.c.b16 %v2151, %v2143
    %v3736 = vpack.c.b16 %v2152, %v2144
    %v3737 = vpack.c.b16 %v2153, %v2145
    %v3738 = vpack.c.b16 %v2162, %v2154
    %v3739 = vpack.c.b16 %v2163, %v2155
    %v3740 = vpack.c.b16 %v2164, %v2156
    %v3741 = vpack.c.b16 %v2165, %v2157
    %v3742 = vpack.c.b16 %v2166, %v2158
    %v3743 = vpack.c.b16 %v2167, %v2159
    %v3744 = vpack.c.b16 %v2168, %v2160
    %v3745 = vpack.c.b16 %v2169, %v2161
    %v3746 = vpack.c.b16 %v2178, %v2170
    %v3747 = vpack.c.b16 %v2179, %v2171
    %v3748 = vpack.c.b16 %v2180, %v2172
    %v3749 = vpack.c.b16 %v2181, %v2173
    %v3750 = vpack.c.b16 %v2182, %v2174
    %v3751 = vpack.c.b16 %v2183, %v2175
    %v3752 = vpack.c.b16 %v2184, %v2176
    %v3753 = vpack.c.b16 %v2185, %v2177
    %v3754 = vpack.c.b16 %v2194, %v2186
    %v3755 = vpack.c.b16 %v2195, %v2187
    %v3756 = vpack.c.b16 %v2196, %v2188
    %v3757 = vpack.c.b16 %v2197, %v2189
    %v3758 = vpack.c.b16 %v2198, %v2190
    %v3759 = vpack.c.b16 %v2199, %v2191
    %v3760 = vpack.c.b16 %v2200, %v2192
    %v3761 = vpack.c.b16 %v2201, %v2193
    %v3762 = vpack.c.b16 %v2210, %v2202
    %v3763 = vpack.c.b16 %v2211, %v2203
    %v3764 = vpack.c.b16 %v2212, %v2204
    %v3765 = vpack.c.b16 %v2213, %v2205
    %v3766 = vpack.c.b16 %v2214, %v2206
    %v3767 = vpack.c.b16 %v2215, %v2207
    %v3768 = vpack.c.b16 %v2216, %v2208
    %v3769 = vpack.c.b16 %v2217, %v2209
    %v3770 = vpack.c.b16 %v2226, %v2218
    %v3771 = vpack.c.b16 %v2227, %v2219
    %v3772 = vpack.c.b16 %v2228, %v2220
    %v3773 = vpack.c.b16 %v2229, %v2221
    %v3774 = vpack.c.b16 %v2230, %v2222
    %v3775 = vpack.c.b16 %v2231, %v2223
    %v3776 = vpack.c.b16 %v2232, %v2224
    %v3777 = vpack.c.b16 %v2233, %v2225
    %v3778 = vpack.c.b16 %v2242, %v2234
    %v3779 = vpack.c.b16 %v2243, %v2235
    %v3780 = vpack.c.b16 %v2244, %v2236
    %v3781 = vpack.c.b16 %v2245, %v2237
    %v3782 = vpack.c.b16 %v2246, %v2238
    %v3783 = vpack.c.b16 %v2247, %v2239
    %v3784 = vpack.c.b16 %v2248, %v2240
    %v3785 = vpack.c.b16 %v2249, %v2241
    %v3786 = vpack.c.b16 %v2258, %v2250
    %v3787 = vpack.c.b16 %v2259, %v2251
    %v3788 = vpack.c.b16 %v2260, %v2252
    %v3789 = vpack.c.b16 %v2261, %v2253
    %v3790 = vpack.c.b16 %v2262, %v2254
    %v3791 = vpack.c.b16 %v2263, %v2255
    %v3792 = vpack.c.b16 %v2264, %v2256
    %v3793 = vpack.c.b16 %v2265, %v2257
    %v3794 = vpack.c.b16 %v2274, %v2266
    %v3795 = vpack.c.b16 %v2275, %v2267
    %v3796 = vpack.c.b16 %v2276, %v2268
    %v3797 = vpack.c.b16 %v2277, %v2269
    %v3798 = vpack.c.b16 %v2278, %v2270
    %v3799 = vpack.c.b16 %v2279, %v2271
    %v3800 = vpack.c.b16 %v2280, %v2272
    %v3801 = vpack.c.b16 %v2281, %v2273
    %v3802 = vpack.c.b16 %v2290, %v2282
    %v3803 = vpack.c.b16 %v2291, %v2283
    %v3804 = vpack.c.b16 %v2292, %v2284
    %v3805 = vpack.c.b16 %v2293, %v2285
    %v3806 = vpack.c.b16 %v2294, %v2286
    %v3807 = vpack.c.b16 %v2295, %v2287
    %v3808 = vpack.c.b16 %v2296, %v2288
    %v3809 = vpack.c.b16 %v2297, %v2289
    %v3810 = vpack.c.b16 %v2306, %v2298
    %v3811 = vpack.c.b16 %v2307, %v2299
    %v3812 = vpack.c.b16 %v2308, %v2300
    %v3813 = vpack.c.b16 %v2309, %v2301
    %v3814 = vpack.c.b16 %v2310, %v2302
    %v3815 = vpack.c.b16 %v2311, %v2303
    %v3816 = vpack.c.b16 %v2312, %v2304
    %v3817 = vpack.c.b16 %v2313, %v2305
    %v3818 = vpack.c.b16 %v2322, %v2314
    %v3819 = vpack.c.b16 %v2323, %v2315
    %v3820 = vpack.c.b16 %v2324, %v2316
    %v3821 = vpack.c.b16 %v2325, %v2317
    %v3822 = vpack.c.b16 %v2326, %v2318
    %v3823 = vpack.c.b16 %v2327, %v2319
    %v3824 = vpack.c.b16 %v2328, %v2320
    %v3825 = vpack.c.b16 %v2329, %v2321
    %v3826 = vpack.c.b16 %v2338, %v2330
    %v3827 = vpack.c.b16 %v2339, %v2331
    %v3828 = vpack.c.b16 %v2340, %v2332
    %v3829 = vpack.c.b16 %v2341, %v2333
    %v3830 = vpack.c.b16 %v2342, %v2334
    %v3831 = vpack.c.b16 %v2343, %v2335
    %v3832 = vpack.c.b16 %v2344, %v2336
    %v3833 = vpack.c.b16 %v2345, %v2337
    %v3834 = vpack.c.b16 %v2354, %v2346
    %v3835 = vpack.c.b16 %v2355, %v2347
    %v3836 = vpack.c.b16 %v2356, %v2348
    %v3837 = vpack.c.b16 %v2357, %v2349
    %v3838 = vpack.c.b16 %v2358, %v2350
    %v3839 = vpack.c.b16 %v2359, %v2351
    %v3840 = vpack.c.b16 %v2360, %v2352
    %v3841 = vpack.c.b16 %v2361, %v2353
    %v3842 = vpack.c.b16 %v2370, %v2362
    %v3843 = vpack.c.b16 %v2371, %v2363
    %v3844 = vpack.c.b16 %v2372, %v2364
    %v3845 = vpack.c.b16 %v2373, %v2365
    %v3846 = vpack.c.b16 %v2374, %v2366
    %v3847 = vpack.c.b16 %v2375, %v2367
    %v3848 = vpack.c.b16 %v2376, %v2368
    %v3849 = vpack.c.b16 %v2377, %v2369
    %v3850 = vpack.c.b16 %v2386, %v2378
    %v3851 = vpack.c.b16 %v2387, %v2379
    %v3852 = vpack.c.b16 %v2388, %v2380
    %v3853 = vpack.c.b16 %v2389, %v2381
    %v3854 = vpack.c.b16 %v2390, %v2382
    %v3855 = vpack.c.b16 %v2391, %v2383
    %v3856 = vpack.c.b16 %v2392, %v2384
    %v3857 = vpack.c.b16 %v2393, %v2385
    %v3858 = vpack.c.b16 %v2402, %v2394
    %v3859 = vpack.c.b16 %v2403, %v2395
    %v3860 = vpack.c.b16 %v2404, %v2396
    %v3861 = vpack.c.b16 %v2405, %v2397
    %v3862 = vpack.c.b16 %v2406, %v2398
    %v3863 = vpack.c.b16 %v2407, %v2399
    %v3864 = vpack.c.b16 %v2408, %v2400
    %v3865 = vpack.c.b16 %v2409, %v2401
    %v3866 = vpack.c.b16 %v2418, %v2410
    %v3867 = vpack.c.b16 %v2419, %v2411
    %v3868 = vpack.c.b16 %v2420, %v2412
    %v3869 = vpack.c.b16 %v2421, %v2413
    %v3870 = vpack.c.b16 %v2422, %v2414
    %v3871 = vpack.c.b16 %v2423, %v2415
    %v3872 = vpack.c.b16 %v2424, %v2416
    %v3873 = vpack.c.b16 %v2425, %v2417
    %v3874 = vpack.c.b16 %v2434, %v2426
    %v3875 = vpack.c.b16 %v2435, %v2427
    %v3876 = vpack.c.b16 %v2436, %v2428
    %v3877 = vpack.c.b16 %v2437, %v2429
    %v3878 = vpack.c.b16 %v2438, %v2430
    %v3879 = vpack.c.b16 %v2439, %v2431
    %v3880 = vpack.c.b16 %v2440, %v2432
    %v3881 = vpack.c.b16 %v2441, %v2433
    %v3882 = vpack.c.b16 %v2450, %v2442
    %v3883 = vpack.c.b16 %v2451, %v2443
    %v3884 = vpack.c.b16 %v2452, %v2444
    %v3885 = vpack.c.b16 %v2453, %v2445
    %v3886 = vpack.c.b16 %v2454, %v2446
    %v3887 = vpack.c.b16 %v2455, %v2447
    %v3888 = vpack.c.b16 %v2456, %v2448
    %v3889 = vpack.c.b16 %v2457, %v2449
    %v3890 = vpack.c.b16 %v2466, %v2458
    %v3891 = vpack.c.b16 %v2467, %v2459
    %v3892 = vpack.c.b16 %v2468, %v2460
    %v3893 = vpack.c.b16 %v2469, %v2461
    %v3894 = vpack.c.b16 %v2470, %v2462
    %v3895 = vpack.c.b16 %v2471, %v2463
    %v3896 = vpack.c.b16 %v2472, %v2464
    %v3897 = vpack.c.b16 %v2473, %v2465
    %v3898 = vpack.c.b16 %v2482, %v2474
    %v3899 = vpack.c.b16 %v2483, %v2475
    %v3900 = vpack.c.b16 %v2484, %v2476
    %v3901 = vpack.c.b16 %v2485, %v2477
    %v3902 = vpack.c.b16 %v2486, %v2478
    %v3903 = vpack.c.b16 %v2487, %v2479
    %v3904 = vpack.c.b16 %v2488, %v2480
    %v3905 = vpack.c.b16 %v2489, %v2481
    %v3906 = vpack.c.b16 %v2498, %v2490
    %v3907 = vpack.c.b16 %v2499, %v2491
    %v3908 = vpack.c.b16 %v2500, %v2492
    %v3909 = vpack.c.b16 %v2501, %v2493
    %v3910 = vpack.c.b16 %v2502, %v2494
    %v3911 = vpack.c.b16 %v2503, %v2495
    %v3912 = vpack.c.b16 %v2504, %v2496
    %v3913 = vpack.c.b16 %v2505, %v2497
    %v3914 = vpack.c.b16 %v2514, %v2506
    %v3915 = vpack.c.b16 %v2515, %v2507
    %v3916 = vpack.c.b16 %v2516, %v2508
    %v3917 = vpack.c.b16 %v2517, %v2509
    %v3918 = vpack.c.b16 %v2518, %v2510
    %v3919 = vpack.c.b16 %v2519, %v2511
    %v3920 = vpack.c.b16 %v2520, %v2512
    %v3921 = vpack.c.b16 %v2521, %v2513
    %v3922 = vpack.c.b16 %v2530, %v2522
    %v3923 = vpack.c.b16 %v2531, %v2523
    %v3924 = vpack.c.b16 %v2532, %v2524
    %v3925 = vpack.c.b16 %v2533, %v2525
    %v3926 = vpack.c.b16 %v2534, %v2526
    %v3927 = vpack.c.b16 %v2535, %v2527
    %v3928 = vpack.c.b16 %v2536, %v2528
    %v3929 = vpack.c.b16 %v2537, %v2529
    %v3930 = vpack.c.b16 %v2546, %v2538
    %v3931 = vpack.c.b16 %v2547, %v2539
    %v3932 = vpack.c.b16 %v2548, %v2540
    %v3933 = vpack.c.b16 %v2549, %v2541
    %v3934 = vpack.c.b16 %v2550, %v2542
    %v3935 = vpack.c.b16 %v2551, %v2543
    %v3936 = vpack.c.b16 %v2552, %v2544
    %v3937 = vpack.c.b16 %v2553, %v2545
    %v3938 = vpack.c.b16 %v2562, %v2554
    %v3939 = vpack.c.b16 %v2563, %v2555
    %v3940 = vpack.c.b16 %v2564, %v2556
    %v3941 = vpack.c.b16 %v2565, %v2557
    %v3942 = vpack.c.b16 %v2566, %v2558
    %v3943 = vpack.c.b16 %v2567, %v2559
    %v3944 = vpack.c.b16 %v2568, %v2560
    %v3945 = vpack.c.b16 %v2569, %v2561
    %v3946 = vpack.c.b16 %v2578, %v2570
    %v3947 = vpack.c.b16 %v2579, %v2571
    %v3948 = vpack.c.b16 %v2580, %v2572
    %v3949 = vpack.c.b16 %v2581, %v2573
    %v3950 = vpack.c.b16 %v2582, %v2574
    %v3951 = vpack.c.b16 %v2583, %v2575
    %v3952 = vpack.c.b16 %v2584, %v2576
    %v3953 = vpack.c.b16 %v2585, %v2577
    %v3954 = vpack.c.b16 %v2594, %v2586
    %v3955 = vpack.c.b16 %v2595, %v2587
    %v3956 = vpack.c.b16 %v2596, %v2588
    %v3957 = vpack.c.b16 %v2597, %v2589
    %v3958 = vpack.c.b16 %v2598, %v2590
    %v3959 = vpack.c.b16 %v2599, %v2591
    %v3960 = vpack.c.b16 %v2600, %v2592
    %v3961 = vpack.c.b16 %v2601, %v2593
    %v3962 = vpack.c.b16 %v2610, %v2602
    %v3963 = vpack.c.b16 %v2611, %v2603
    %v3964 = vpack.c.b16 %v2612, %v2604
    %v3965 = vpack.c.b16 %v2613, %v2605
    %v3966 = vpack.c.b16 %v2614, %v2606
    %v3967 = vpack.c.b16 %v2615, %v2607
    %v3968 = vpack.c.b16 %v2616, %v2608
    %v3969 = vpack.c.b16 %v2617, %v2609
    %v3970 = vpack.c.b16 %v2626, %v2618
    %v3971 = vpack.c.b16 %v2627, %v2619
    %v3972 = vpack.c.b16 %v2628, %v2620
    %v3973 = vpack.c.b16 %v2629, %v2621
    %v3974 = vpack.c.b16 %v2630, %v2622
    %v3975 = vpack.c.b16 %v2631, %v2623
    %v3976 = vpack.c.b16 %v2632, %v2624
    %v3977 = vpack.c.b16 %v2633, %v2625
    %v3978 = vpack.c.b16 %v2642, %v2634
    %v3979 = vpack.c.b16 %v2643, %v2635
    %v3980 = vpack.c.b16 %v2644, %v2636
    %v3981 = vpack.c.b16 %v2645, %v2637
    %v3982 = vpack.c.b16 %v2646, %v2638
    %v3983 = vpack.c.b16 %v2647, %v2639
    %v3984 = vpack.c.b16 %v2648, %v2640
    %v3985 = vpack.c.b16 %v2649, %v2641
    %v3986 = vpack.c.b16 %v2658, %v2650
    %v3987 = vpack.c.b16 %v2659, %v2651
    %v3988 = vpack.c.b16 %v2660, %v2652
    %v3989 = vpack.c.b16 %v2661, %v2653
    %v3990 = vpack.c.b16 %v2662, %v2654
    %v3991 = vpack.c.b16 %v2663, %v2655
    %v3992 = vpack.c.b16 %v2664, %v2656
    %v3993 = vpack.c.b16 %v2665, %v2657
    %v3994 = vpack.c.b16 %v2674, %v2666
    %v3995 = vpack.c.b16 %v2675, %v2667
    %v3996 = vpack.c.b16 %v2676, %v2668
    %v3997 = vpack.c.b16 %v2677, %v2669
    %v3998 = vpack.c.b16 %v2678, %v2670
    %v3999 = vpack.c.b16 %v2679, %v2671
    %v4000 = vpack.c.b16 %v2680, %v2672
    %v4001 = vpack.c.b16 %v2681, %v2673
    %v4002 = vpack.c.b16 %v2690, %v2682
    %v4003 = vpack.c.b16 %v2691, %v2683
    %v4004 = vpack.c.b16 %v2692, %v2684
    %v4005 = vpack.c.b16 %v2693, %v2685
    %v4006 = vpack.c.b16 %v2694, %v2686
    %v4007 = vpack.c.b16 %v2695, %v2687
    %v4008 = vpack.c.b16 %v2696, %v2688
    %v4009 = vpack.c.b16 %v2697, %v2689
    %v4010 = vpack.c.b16 %v2706, %v2698
    %v4011 = vpack.c.b16 %v2707, %v2699
    %v4012 = vpack.c.b16 %v2708, %v2700
    %v4013 = vpack.c.b16 %v2709, %v2701
    %v4014 = vpack.c.b16 %v2710, %v2702
    %v4015 = vpack.c.b16 %v2711, %v2703
    %v4016 = vpack.c.b16 %v2712, %v2704
    %v4017 = vpack.c.b16 %v2713, %v2705
    %v4018 = vpack.c.b16 %v2722, %v2714
    %v4019 = vpack.c.b16 %v2723, %v2715
    %v4020 = vpack.c.b16 %v2724, %v2716
    %v4021 = vpack.c.b16 %v2725, %v2717
    %v4022 = vpack.c.b16 %v2726, %v2718
    %v4023 = vpack.c.b16 %v2727, %v2719
    %v4024 = vpack.c.b16 %v2728, %v2720
    %v4025 = vpack.c.b16 %v2729, %v2721
    %v4026 = vpack.c.b16 %v2738, %v2730
    %v4027 = vpack.c.b16 %v2739, %v2731
    %v4028 = vpack.c.b16 %v2740, %v2732
    %v4029 = vpack.c.b16 %v2741, %v2733
    %v4030 = vpack.c.b16 %v2742, %v2734
    %v4031 = vpack.c.b16 %v2743, %v2735
    %v4032 = vpack.c.b16 %v2744, %v2736
    %v4033 = vpack.c.b16 %v2745, %v2737
    %v4034 = vpack.c.b16 %v2754, %v2746
    %v4035 = vpack.c.b16 %v2755, %v2747
    %v4036 = vpack.c.b16 %v2756, %v2748
    %v4037 = vpack.c.b16 %v2757, %v2749
    %v4038 = vpack.c.b16 %v2758, %v2750
    %v4039 = vpack.c.b16 %v2759, %v2751
    %v4040 = vpack.c.b16 %v2760, %v2752
    %v4041 = vpack.c.b16 %v2761, %v2753
    %v4042 = vpack.c.b16 %v2770, %v2762
    %v4043 = vpack.c.b16 %v2771, %v2763
    %v4044 = vpack.c.b16 %v2772, %v2764
    %v4045 = vpack.c.b16 %v2773, %v2765
    %v4046 = vpack.c.b16 %v2774, %v2766
    %v4047 = vpack.c.b16 %v2775, %v2767
    %v4048 = vpack.c.b16 %v2776, %v2768
    %v4049 = vpack.c.b16 %v2777, %v2769
    %v4050 = vpack.c.b16 %v2786, %v2778
    %v4051 = vpack.c.b16 %v2787, %v2779
    %v4052 = vpack.c.b16 %v2788, %v2780
    %v4053 = vpack.c.b16 %v2789, %v2781
    %v4054 = vpack.c.b16 %v2790, %v2782
    %v4055 = vpack.c.b16 %v2791, %v2783
    %v4056 = vpack.c.b16 %v2792, %v2784
    %v4057 = vpack.c.b16 %v2793, %v2785
    %v4058 = vpack.c.b16 %v2802, %v2794
    %v4059 = vpack.c.b16 %v2803, %v2795
    %v4060 = vpack.c.b16 %v2804, %v2796
    %v4061 = vpack.c.b16 %v2805, %v2797
    %v4062 = vpack.c.b16 %v2806, %v2798
    %v4063 = vpack.c.b16 %v2807, %v2799
    %v4064 = vpack.c.b16 %v2808, %v2800
    %v4065 = vpack.c.b16 %v2809, %v2801
    %v4066 = vpack.c.b16 %v2818, %v2810
    %v4067 = vpack.c.b16 %v2819, %v2811
    %v4068 = vpack.c.b16 %v2820, %v2812
    %v4069 = vpack.c.b16 %v2821, %v2813
    %v4070 = vpack.c.b16 %v2822, %v2814
    %v4071 = vpack.c.b16 %v2823, %v2815
    %v4072 = vpack.c.b16 %v2824, %v2816
    %v4073 = vpack.c.b16 %v2825, %v2817
    %v4074 = vpack.c.b16 %v2834, %v2826
    %v4075 = vpack.c.b16 %v2835, %v2827
    %v4076 = vpack.c.b16 %v2836, %v2828
    %v4077 = vpack.c.b16 %v2837, %v2829
    %v4078 = vpack.c.b16 %v2838, %v2830
    %v4079 = vpack.c.b16 %v2839, %v2831
    %v4080 = vpack.c.b16 %v2840, %v2832
    %v4081 = vpack.c.b16 %v2841, %v2833
    %v4082 = vpack.c.b16 %v2850, %v2842
    %v4083 = vpack.c.b16 %v2851, %v2843
    %v4084 = vpack.c.b16 %v2852, %v2844
    %v4085 = vpack.c.b16 %v2853, %v2845
    %v4086 = vpack.c.b16 %v2854, %v2846
    %v4087 = vpack.c.b16 %v2855, %v2847
    %v4088 = vpack.c.b16 %v2856, %v2848
    %v4089 = vpack.c.b16 %v2857, %v2849
    %v4090 = vpack.c.b16 %v2866, %v2858
    %v4091 = vpack.c.b16 %v2867, %v2859
    %v4092 = vpack.c.b16 %v2868, %v2860
    %v4093 = vpack.c.b16 %v2869, %v2861
    %v4094 = vpack.c.b16 %v2870, %v2862
    %v4095 = vpack.c.b16 %v2871, %v2863
    %v4096 = vpack.c.b16 %v2872, %v2864
    %v4097 = vpack.c.b16 %v2873, %v2865
    %v4098 = vpack.c.b16 %v2882, %v2874
    %v4099 = vpack.c.b16 %v2883, %v2875
    %v4100 = vpack.c.b16 %v2884, %v2876
    %v4101 = vpack.c.b16 %v2885, %v2877
    %v4102 = vpack.c.b16 %v2886, %v2878
    %v4103 = vpack.c.b16 %v2887, %v2879
    %v4104 = vpack.c.b16 %v2888, %v2880
    %v4105 = vpack.c.b16 %v2889, %v2881
    %v4106 = vpack.c.b16 %v2898, %v2890
    %v4107 = vpack.c.b16 %v2899, %v2891
    %v4108 = vpack.c.b16 %v2900, %v2892
    %v4109 = vpack.c.b16 %v2901, %v2893
    %v4110 = vpack.c.b16 %v2902, %v2894
    %v4111 = vpack.c.b16 %v2903, %v2895
    %v4112 = vpack.c.b16 %v2904, %v2896
    %v4113 = vpack.c.b16 %v2905, %v2897
    %v4114 = vpack.c.b16 %v2914, %v2906
    %v4115 = vpack.c.b16 %v2915, %v2907
    %v4116 = vpack.c.b16 %v2916, %v2908
    %v4117 = vpack.c.b16 %v2917, %v2909
    %v4118 = vpack.c.b16 %v2918, %v2910
    %v4119 = vpack.c.b16 %v2919, %v2911
    %v4120 = vpack.c.b16 %v2920, %v2912
    %v4121 = vpack.c.b16 %v2921, %v2913
    %v4122 = vpack.c.b16 %v2930, %v2922
    %v4123 = vpack.c.b16 %v2931, %v2923
    %v4124 = vpack.c.b16 %v2932, %v2924
    %v4125 = vpack.c.b16 %v2933, %v2925
    %v4126 = vpack.c.b16 %v2934, %v2926
    %v4127 = vpack.c.b16 %v2935, %v2927
    %v4128 = vpack.c.b16 %v2936, %v2928
    %v4129 = vpack.c.b16 %v2937, %v2929
    %v4130 = vpack.c.b16 %v2946, %v2938
    %v4131 = vpack.c.b16 %v2947, %v2939
    %v4132 = vpack.c.b16 %v2948, %v2940
    %v4133 = vpack.c.b16 %v2949, %v2941
    %v4134 = vpack.c.b16 %v2950, %v2942
    %v4135 = vpack.c.b16 %v2951, %v2943
    %v4136 = vpack.c.b16 %v2952, %v2944
    %v4137 = vpack.c.b16 %v2953, %v2945
    %v4138 = vpack.c.b16 %v2962, %v2954
    %v4139 = vpack.c.b16 %v2963, %v2955
    %v4140 = vpack.c.b16 %v2964, %v2956
    %v4141 = vpack.c.b16 %v2965, %v2957
    %v4142 = vpack.c.b16 %v2966, %v2958
    %v4143 = vpack.c.b16 %v2967, %v2959
    %v4144 = vpack.c.b16 %v2968, %v2960
    %v4145 = vpack.c.b16 %v2969, %v2961
    %v4146 = vpack.c.b16 %v2978, %v2970
    %v4147 = vpack.c.b16 %v2979, %v2971
    %v4148 = vpack.c.b16 %v2980, %v2972
    %v4149 = vpack.c.b16 %v2981, %v2973
    %v4150 = vpack.c.b16 %v2982, %v2974
    %v4151 = vpack.c.b16 %v2983, %v2975
    %v4152 = vpack.c.b16 %v2984, %v2976
    %v4153 = vpack.c.b16 %v2985, %v2977
    %v4154 = vpack.c.b16 %v2994, %v2986
    %v4155 = vpack.c.b16 %v2995, %v2987
    %v4156 = vpack.c.b16 %v2996, %v2988
    %v4157 = vpack.c.b16 %v2997, %v2989
    %v4158 = vpack.c.b16 %v2998, %v2990
    %v4159 = vpack.c.b16 %v2999, %v2991
    %v4160 = vpack.c.b16 %v3000, %v2992
    %v4161 = vpack.c.b16 %v3001, %v2993
    %v4162 = vpack.c.b16 %v3010, %v3002
    %v4163 = vpack.c.b16 %v3011, %v3003
    %v4164 = vpack.c.b16 %v3012, %v3004
    %v4165 = vpack.c.b16 %v3013, %v3005
    %v4166 = vpack.c.b16 %v3014, %v3006
    %v4167 = vpack.c.b16 %v3015, %v3007
    %v4168 = vpack.c.b16 %v3016, %v3008
    %v4169 = vpack.c.b16 %v3017, %v3009
    %v4170 = vpack.c.b16 %v3026, %v3018
    %v4171 = vpack.c.b16 %v3027, %v3019
    %v4172 = vpack.c.b16 %v3028, %v3020
    %v4173 = vpack.c.b16 %v3029, %v3021
    %v4174 = vpack.c.b16 %v3030, %v3022
    %v4175 = vpack.c.b16 %v3031, %v3023
    %v4176 = vpack.c.b16 %v3032, %v3024
    %v4177 = vpack.c.b16 %v3033, %v3025
    %v4178 = vpack.c.b16 %v3042, %v3034
    %v4179 = vpack.c.b16 %v3043, %v3035
    %v4180 = vpack.c.b16 %v3044, %v3036
    %v4181 = vpack.c.b16 %v3045, %v3037
    %v4182 = vpack.c.b16 %v3046, %v3038
    %v4183 = vpack.c.b16 %v3047, %v3039
    %v4184 = vpack.c.b16 %v3048, %v3040
    %v4185 = vpack.c.b16 %v3049, %v3041
    %v4186 = vpack.c.b16 %v3058, %v3050
    %v4187 = vpack.c.b16 %v3059, %v3051
    %v4188 = vpack.c.b16 %v3060, %v3052
    %v4189 = vpack.c.b16 %v3061, %v3053
    %v4190 = vpack.c.b16 %v3062, %v3054
    %v4191 = vpack.c.b16 %v3063, %v3055
    %v4192 = vpack.c.b16 %v3064, %v3056
    %v4193 = vpack.c.b16 %v3065, %v3057
    %v4194 = vpack.c.b16 %v3074, %v3066
    %v4195 = vpack.c.b16 %v3075, %v3067
    %v4196 = vpack.c.b16 %v3076, %v3068
    %v4197 = vpack.c.b16 %v3077, %v3069
    %v4198 = vpack.c.b16 %v3078, %v3070
    %v4199 = vpack.c.b16 %v3079, %v3071
    %v4200 = vpack.c.b16 %v3080, %v3072
    %v4201 = vpack.c.b16 %v3081, %v3073
    %v4202 = vpack.c.b16 %v3090, %v3082
    %v4203 = vpack.c.b16 %v3091, %v3083
    %v4204 = vpack.c.b16 %v3092, %v3084
    %v4205 = vpack.c.b16 %v3093, %v3085
    %v4206 = vpack.c.b16 %v3094, %v3086
    %v4207 = vpack.c.b16 %v3095, %v3087
    %v4208 = vpack.c.b16 %v3096, %v3088
    %v4209 = vpack.c.b16 %v3097, %v3089
    %v4210 = vpack.c.b16 %v3106, %v3098
    %v4211 = vpack.c.b16 %v3107, %v3099
    %v4212 = vpack.c.b16 %v3108, %v3100
    %v4213 = vpack.c.b16 %v3109, %v3101
    %v4214 = vpack.c.b16 %v3110, %v3102
    %v4215 = vpack.c.b16 %v3111, %v3103
    %v4216 = vpack.c.b16 %v3112, %v3104
    %v4217 = vpack.c.b16 %v3113, %v3105
    %v4218 = vpack.c.b16 %v3122, %v3114
    %v4219 = vpack.c.b16 %v3123, %v3115
    %v4220 = vpack.c.b16 %v3124, %v3116
    %v4221 = vpack.c.b16 %v3125, %v3117
    %v4222 = vpack.c.b16 %v3126, %v3118
    %v4223 = vpack.c.b16 %v3127, %v3119
    %v4224 = vpack.c.b16 %v3128, %v3120
    %v4225 = vpack.c.b16 %v3129, %v3121
    %v4226 = vpack.c.b16 %v3138, %v3130
    %v4227 = vpack.c.b16 %v3139, %v3131
    %v4228 = vpack.c.b16 %v3140, %v3132
    %v4229 = vpack.c.b16 %v3141, %v3133
    %v4230 = vpack.c.b16 %v3142, %v3134
    %v4231 = vpack.c.b16 %v3143, %v3135
    %v4232 = vpack.c.b16 %v3144, %v3136
    %v4233 = vpack.c.b16 %v3145, %v3137
    %v4234 = vpack.c.b16 %v3154, %v3146
    %v4235 = vpack.c.b16 %v3155, %v3147
    %v4236 = vpack.c.b16 %v3156, %v3148
    %v4237 = vpack.c.b16 %v3157, %v3149
    %v4238 = vpack.c.b16 %v3158, %v3150
    %v4239 = vpack.c.b16 %v3159, %v3151
    %v4240 = vpack.c.b16 %v3160, %v3152
    %v4241 = vpack.c.b16 %v3161, %v3153
    %v4242 = vpack.c.b16 %v3170, %v3162
    %v4243 = vpack.c.b16 %v3171, %v3163
    %v4244 = vpack.c.b16 %v3172, %v3164
    %v4245 = vpack.c.b16 %v3173, %v3165
    %v4246 = vpack.c.b16 %v3174, %v3166
    %v4247 = vpack.c.b16 %v3175, %v3167
    %v4248 = vpack.c.b16 %v3176, %v3168
    %v4249 = vpack.c.b16 %v3177, %v3169
    %v4250 = vpack.c.b16 %v3186, %v3178
    %v4251 = vpack.c.b16 %v3187, %v3179
    %v4252 = vpack.c.b16 %v3188, %v3180
    %v4253 = vpack.c.b16 %v3189, %v3181
    %v4254 = vpack.c.b16 %v3190, %v3182
    %v4255 = vpack.c.b16 %v3191, %v3183
    %v4256 = vpack.c.b16 %v3192, %v3184
    %v4257 = vpack.c.b16 %v3193, %v3185
    %v4258 = vpack.c.b16 %v3202, %v3194
    %v4259 = vpack.c.b16 %v3203, %v3195
    %v4260 = vpack.c.b16 %v3204, %v3196
    %v4261 = vpack.c.b16 %v3205, %v3197
    %v4262 = vpack.c.b16 %v3206, %v3198
    %v4263 = vpack.c.b16 %v3207, %v3199
    %v4264 = vpack.c.b16 %v3208, %v3200
    %v4265 = vpack.c.b16 %v3209, %v3201
    %v4266 = vpack.c.b16 %v3218, %v3210
    %v4267 = vpack.c.b16 %v3219, %v3211
    %v4268 = vpack.c.b16 %v3220, %v3212
    %v4269 = vpack.c.b16 %v3221, %v3213
    %v4270 = vpack.c.b16 %v3222, %v3214
    %v4271 = vpack.c.b16 %v3223, %v3215
    %v4272 = vpack.c.b16 %v3224, %v3216
    %v4273 = vpack.c.b16 %v3225, %v3217
    %v4274 = vpack.c.b16 %v3234, %v3226
    %v4275 = vpack.c.b16 %v3235, %v3227
    %v4276 = vpack.c.b16 %v3236, %v3228
    %v4277 = vpack.c.b16 %v3237, %v3229
    %v4278 = vpack.c.b16 %v3238, %v3230
    %v4279 = vpack.c.b16 %v3239, %v3231
    %v4280 = vpack.c.b16 %v3240, %v3232
    %v4281 = vpack.c.b16 %v3241, %v3233
    %v4282 = vpack.c.b16 %v3250, %v3242
    %v4283 = vpack.c.b16 %v3251, %v3243
    %v4284 = vpack.c.b16 %v3252, %v3244
    %v4285 = vpack.c.b16 %v3253, %v3245
    %v4286 = vpack.c.b16 %v3254, %v3246
    %v4287 = vpack.c.b16 %v3255, %v3247
    %v4288 = vpack.c.b16 %v3256, %v3248
    %v4289 = vpack.c.b16 %v3257, %v3249
    %v4290 = vpack.c.b16 %v3266, %v3258
    %v4291 = vpack.c.b16 %v3267, %v3259
    %v4292 = vpack.c.b16 %v3268, %v3260
    %v4293 = vpack.c.b16 %v3269, %v3261
    %v4294 = vpack.c.b16 %v3270, %v3262
    %v4295 = vpack.c.b16 %v3271, %v3263
    %v4296 = vpack.c.b16 %v3272, %v3264
    %v4297 = vpack.c.b16 %v3273, %v3265
    %v4298 = vpack.c.b16 %v3282, %v3274
    %v4299 = vpack.c.b16 %v3283, %v3275
    %v4300 = vpack.c.b16 %v3284, %v3276
    %v4301 = vpack.c.b16 %v3285, %v3277
    %v4302 = vpack.c.b16 %v3286, %v3278
    %v4303 = vpack.c.b16 %v3287, %v3279
    %v4304 = vpack.c.b16 %v3288, %v3280
    %v4305 = vpack.c.b16 %v3289, %v3281
    %v4306 = vpack.c.b16 %v3298, %v3290
    %v4307 = vpack.c.b16 %v3299, %v3291
    %v4308 = vpack.c.b16 %v3300, %v3292
    %v4309 = vpack.c.b16 %v3301, %v3293
    %v4310 = vpack.c.b16 %v3302, %v3294
    %v4311 = vpack.c.b16 %v3303, %v3295
    %v4312 = vpack.c.b16 %v3304, %v3296
    %v4313 = vpack.c.b16 %v3305, %v3297
    %v4314 = vpack.c.b16 %v3314, %v3306
    %v4315 = vpack.c.b16 %v3315, %v3307
    %v4316 = vpack.c.b16 %v3316, %v3308
    %v4317 = vpack.c.b16 %v3317, %v3309
    %v4318 = vpack.c.b16 %v3318, %v3310
    %v4319 = vpack.c.b16 %v3319, %v3311
    %v4320 = vpack.c.b16 %v3320, %v3312
    %v4321 = vpack.c.b16 %v3321, %v3313
    %v4322 = vpack.c.b16 %v3330, %v3322
    %v4323 = vpack.c.b16 %v3331, %v3323
    %v4324 = vpack.c.b16 %v3332, %v3324
    %v4325 = vpack.c.b16 %v3333, %v3325
    %v4326 = vpack.c.b16 %v3334, %v3326
    %v4327 = vpack.c.b16 %v3335, %v3327
    %v4328 = vpack.c.b16 %v3336, %v3328
    %v4329 = vpack.c.b16 %v3337, %v3329
    %v4330 = vpack.c.b16 %v3346, %v3338
    %v4331 = vpack.c.b16 %v3347, %v3339
    %v4332 = vpack.c.b16 %v3348, %v3340
    %v4333 = vpack.c.b16 %v3349, %v3341
    %v4334 = vpack.c.b16 %v3350, %v3342
    %v4335 = vpack.c.b16 %v3351, %v3343
    %v4336 = vpack.c.b16 %v3352, %v3344
    %v4337 = vpack.c.b16 %v3353, %v3345
    %v4338 = vpack.c.b16 %v3362, %v3354
    %v4339 = vpack.c.b16 %v3363, %v3355
    %v4340 = vpack.c.b16 %v3364, %v3356
    %v4341 = vpack.c.b16 %v3365, %v3357
    %v4342 = vpack.c.b16 %v3366, %v3358
    %v4343 = vpack.c.b16 %v3367, %v3359
    %v4344 = vpack.c.b16 %v3368, %v3360
    %v4345 = vpack.c.b16 %v3369, %v3361
    %v4346 = vpack.c.b16 %v3378, %v3370
    %v4347 = vpack.c.b16 %v3379, %v3371
    %v4348 = vpack.c.b16 %v3380, %v3372
    %v4349 = vpack.c.b16 %v3381, %v3373
    %v4350 = vpack.c.b16 %v3382, %v3374
    %v4351 = vpack.c.b16 %v3383, %v3375
    %v4352 = vpack.c.b16 %v3384, %v3376
    %v4353 = vpack.c.b16 %v3385, %v3377
    %v4354 = vpack.c.b16 %v3394, %v3386
    %v4355 = vpack.c.b16 %v3395, %v3387
    %v4356 = vpack.c.b16 %v3396, %v3388
    %v4357 = vpack.c.b16 %v3397, %v3389
    %v4358 = vpack.c.b16 %v3398, %v3390
    %v4359 = vpack.c.b16 %v3399, %v3391
    %v4360 = vpack.c.b16 %v3400, %v3392
    %v4361 = vpack.c.b16 %v3401, %v3393
    %v4362 = vpack.c.b16 %v3410, %v3402
    %v4363 = vpack.c.b16 %v3411, %v3403
    %v4364 = vpack.c.b16 %v3412, %v3404
    %v4365 = vpack.c.b16 %v3413, %v3405
    %v4366 = vpack.c.b16 %v3414, %v3406
    %v4367 = vpack.c.b16 %v3415, %v3407
    %v4368 = vpack.c.b16 %v3416, %v3408
    %v4369 = vpack.c.b16 %v3417, %v3409
    %v4370 = vpack.c.b16 %v3426, %v3418
    %v4371 = vpack.c.b16 %v3427, %v3419
    %v4372 = vpack.c.b16 %v3428, %v3420
    %v4373 = vpack.c.b16 %v3429, %v3421
    %v4374 = vpack.c.b16 %v3430, %v3422
    %v4375 = vpack.c.b16 %v3431, %v3423
    %v4376 = vpack.c.b16 %v3432, %v3424
    %v4377 = vpack.c.b16 %v3433, %v3425
    %v4378 = vpack.c.b16 %v3442, %v3434
    %v4379 = vpack.c.b16 %v3443, %v3435
    %v4380 = vpack.c.b16 %v3444, %v3436
    %v4381 = vpack.c.b16 %v3445, %v3437
    %v4382 = vpack.c.b16 %v3446, %v3438
    %v4383 = vpack.c.b16 %v3447, %v3439
    %v4384 = vpack.c.b16 %v3448, %v3440
    %v4385 = vpack.c.b16 %v3449, %v3441
    %v4386 = vpack.c.b16 %v3458, %v3450
    %v4387 = vpack.c.b16 %v3459, %v3451
    %v4388 = vpack.c.b16 %v3460, %v3452
    %v4389 = vpack.c.b16 %v3461, %v3453
    %v4390 = vpack.c.b16 %v3462, %v3454
    %v4391 = vpack.c.b16 %v3463, %v3455
    %v4392 = vpack.c.b16 %v3464, %v3456
    %v4393 = vpack.c.b16 %v3465, %v3457
    %v4394 = vpack.c.b16 %v3474, %v3466
    %v4395 = vpack.c.b16 %v3475, %v3467
    %v4396 = vpack.c.b16 %v3476, %v3468
    %v4397 = vpack.c.b16 %v3477, %v3469
    %v4398 = vpack.c.b16 %v3478, %v3470
    %v4399 = vpack.c.b16 %v3479, %v3471
    %v4400 = vpack.c.b16 %v3480, %v3472
    %v4401 = vpack.c.b16 %v3481, %v3473
    %v4402 = vpack.c.b16 %v3490, %v3482
    %v4403 = vpack.c.b16 %v3491, %v3483
    %v4404 = vpack.c.b16 %v3492, %v3484
    %v4405 = vpack.c.b16 %v3493, %v3485
    %v4406 = vpack.c.b16 %v3494, %v3486
    %v4407 = vpack.c.b16 %v3495, %v3487
    %v4408 = vpack.c.b16 %v3496, %v3488
    %v4409 = vpack.c.b16 %v3497, %v3489
    %v4410 = vpack.c.b16 %v3506, %v3498
    %v4411 = vpack.c.b16 %v3507, %v3499
    %v4412 = vpack.c.b16 %v3508, %v3500
    %v4413 = vpack.c.b16 %v3509, %v3501
    %v4414 = vpack.c.b16 %v3510, %v3502
    %v4415 = vpack.c.b16 %v3511, %v3503
    %v4416 = vpack.c.b16 %v3512, %v3504
    %v4417 = vpack.c.b16 %v3513, %v3505
    %v4418 = vpack.c.b16 %v3522, %v3514
    %v4419 = vpack.c.b16 %v3523, %v3515
    %v4420 = vpack.c.b16 %v3524, %v3516
    %v4421 = vpack.c.b16 %v3525, %v3517
    %v4422 = vpack.c.b16 %v3526, %v3518
    %v4423 = vpack.c.b16 %v3527, %v3519
    %v4424 = vpack.c.b16 %v3528, %v3520
    %v4425 = vpack.c.b16 %v3529, %v3521
    %v4426 = vpack.c.b16 %v3538, %v3530
    %v4427 = vpack.c.b16 %v3539, %v3531
    %v4428 = vpack.c.b16 %v3540, %v3532
    %v4429 = vpack.c.b16 %v3541, %v3533
    %v4430 = vpack.c.b16 %v3542, %v3534
    %v4431 = vpack.c.b16 %v3543, %v3535
    %v4432 = vpack.c.b16 %v3544, %v3536
    %v4433 = vpack.c.b16 %v3545, %v3537
    %v4434 = vpack.c.b16 %v3554, %v3546
    %v4435 = vpack.c.b16 %v3555, %v3547
    %v4436 = vpack.c.b16 %v3556, %v3548
    %v4437 = vpack.c.b16 %v3557, %v3549
    %v4438 = vpack.c.b16 %v3558, %v3550
    %v4439 = vpack.c.b16 %v3559, %v3551
    %v4440 = vpack.c.b16 %v3560, %v3552
    %v4441 = vpack.c.b16 %v3561, %v3553
    %v4442 = vpack.c.b16 %v3570, %v3562
    %v4443 = vpack.c.b16 %v3571, %v3563
    %v4444 = vpack.c.b16 %v3572, %v3564
    %v4445 = vpack.c.b16 %v3573, %v3565
    %v4446 = vpack.c.b16 %v3574, %v3566
    %v4447 = vpack.c.b16 %v3575, %v3567
    %v4448 = vpack.c.b16 %v3576, %v3568
    %v4449 = vpack.c.b16 %v3577, %v3569
    %v4450 = vpack.c.b16 %v3586, %v3578
    %v4451 = vpack.c.b16 %v3587, %v3579
    %v4452 = vpack.c.b16 %v3588, %v3580
    %v4453 = vpack.c.b16 %v3589, %v3581
    %v4454 = vpack.c.b16 %v3590, %v3582
    %v4455 = vpack.c.b16 %v3591, %v3583
    %v4456 = vpack.c.b16 %v3592, %v3584
    %v4457 = vpack.c.b16 %v3593, %v3585
    %vm5322 = vcmask 523264
    %v5324 = vsel %vm5322, %v988, 0
    %5326 = vmatprep.subr.bf16.mxu0 %v3595
    %5327 = vmatpush1.bf16.msra.mxu0 %v3594
    %5328 = vmatprep.subr.bf16.mxu0 %v3603
    %5329 = vmatpush1.bf16.msra.mxu0 %v3602
    %5330 = vmatprep.subr.bf16.mxu0 %v3611
    %5331 = vmatpush1.bf16.msra.mxu0 %v3610
    %5332 = vmatprep.subr.bf16.mxu0 %v3619
    %5333 = vmatpush1.bf16.msra.mxu0 %v3618
    %5334 = vmatprep.subr.bf16.mxu0 %v3627
    %5335 = vmatpush1.bf16.msra.mxu0 %v3626
    %5336 = vmatprep.subr.bf16.mxu0 %v3635
    %5337 = vmatpush1.bf16.msra.mxu0 %v3634
    %5338 = vmatprep.subr.bf16.mxu0 %v3643
    %5339 = vmatpush1.bf16.msra.mxu0 %v3642
    %5340 = vmatprep.subr.bf16.mxu0 %v3651
    %5341 = vmatpush1.bf16.msra.mxu0 %v3650
    %5342 = vmatprep.subr.bf16.mxu0 %v3659
    %5343 = vmatpush1.bf16.msra.mxu0 %v3658
    %5344 = vmatprep.subr.bf16.mxu0 %v3667
    %5345 = vmatpush1.bf16.msra.mxu0 %v3666
    %5346 = vmatprep.subr.bf16.mxu0 %v3675
    %5347 = vmatpush1.bf16.msra.mxu0 %v3674
    %5348 = vmatprep.subr.bf16.mxu0 %v3683
    %5349 = vmatpush1.bf16.msra.mxu0 %v3682
    %5350 = vmatprep.subr.bf16.mxu0 %v3691
    %5351 = vmatpush1.bf16.msra.mxu0 %v3690
    %5352 = vmatprep.subr.bf16.mxu0 %v3699
    %5353 = vmatpush1.bf16.msra.mxu0 %v3698
    %5354 = vmatprep.subr.bf16.mxu0 %v3707
    %5355 = vmatpush1.bf16.msra.mxu0 %v3706
    %5356 = vmatprep.subr.bf16.mxu0 %v3715
    %5357 = vmatpush1.bf16.msra.mxu0 %v3714
    %5358 = vmatprep.mubr.bf16.mxu0 %v976
    %5359 = vmatmul.mubr.bf16.gmra.mrb[0].mxu0 %v975
    %v5360 = vpop.f32.mrb[0].mxu0
    %v5361 = vadd.f32 0.0, %v5360
    %v5362 = vpop.f32.mrb[0].mxu0
    %v5363 = vadd.f32 0.0, %v5362
    %v5364 = vpop.f32.mrb[0].mxu0
    %v5365 = vadd.f32 0.0, %v5364
    %v5366 = vpop.f32.mrb[0].mxu0
    %v5367 = vadd.f32 0.0, %v5366
    %5368 = vdwg.mxu0
    %5369 = vmatprep.subr.bf16.mxu0 %v3723
    %5370 = vmatpush1.bf16.msra.mxu0 %v3722
    %5371 = vmatprep.subr.bf16.mxu0 %v3731
    %5372 = vmatpush1.bf16.msra.mxu0 %v3730
    %5373 = vmatprep.subr.bf16.mxu0 %v3739
    %5374 = vmatpush1.bf16.msra.mxu0 %v3738
    %5375 = vmatprep.subr.bf16.mxu0 %v3747
    %5376 = vmatpush1.bf16.msra.mxu0 %v3746
    %5377 = vmatprep.subr.bf16.mxu0 %v3755
    %5378 = vmatpush1.bf16.msra.mxu0 %v3754
    %5379 = vmatprep.subr.bf16.mxu0 %v3763
    %5380 = vmatpush1.bf16.msra.mxu0 %v3762
    %5381 = vmatprep.subr.bf16.mxu0 %v3771
    %5382 = vmatpush1.bf16.msra.mxu0 %v3770
    %5383 = vmatprep.subr.bf16.mxu0 %v3779
    %5384 = vmatpush1.bf16.msra.mxu0 %v3778
    %5385 = vmatprep.subr.bf16.mxu0 %v3787
    %5386 = vmatpush1.bf16.msra.mxu0 %v3786
    %5387 = vmatprep.subr.bf16.mxu0 %v3795
    %5388 = vmatpush1.bf16.msra.mxu0 %v3794
    %5389 = vmatprep.subr.bf16.mxu0 %v3803
    %5390 = vmatpush1.bf16.msra.mxu0 %v3802
    %5391 = vmatprep.subr.bf16.mxu0 %v3811
    %5392 = vmatpush1.bf16.msra.mxu0 %v3810
    %5393 = vmatprep.subr.bf16.mxu0 %v3819
    %5394 = vmatpush1.bf16.msra.mxu0 %v3818
    %5395 = vmatprep.subr.bf16.mxu0 %v3827
    %5396 = vmatpush1.bf16.msra.mxu0 %v3826
    %5397 = vmatprep.subr.bf16.mxu0 %v3835
    %5398 = vmatpush1.bf16.msra.mxu0 %v3834
    %5399 = vmatprep.subr.bf16.mxu0 %v3843
    %5400 = vmatpush1.bf16.msra.mxu0 %v3842
    %5401 = vmatprep.mubr.bf16.mxu0 %v978
    %5402 = vmatmul.mubr.bf16.gmra.mrb[0].mxu0 %v977
    %v5403 = vpop.f32.mrb[0].mxu0
    %v5404 = vadd.f32 %v5361, %v5403
    %v5405 = vpop.f32.mrb[0].mxu0
    %v5406 = vadd.f32 %v5363, %v5405
    %v5407 = vpop.f32.mrb[0].mxu0
    %v5408 = vadd.f32 %v5365, %v5407
    %v5409 = vpop.f32.mrb[0].mxu0
    %v5410 = vadd.f32 %v5367, %v5409
    %5411 = vdwg.mxu0
    %5412 = vmatprep.subr.bf16.mxu0 %v3851
    %5413 = vmatpush1.bf16.msra.mxu0 %v3850
    %5414 = vmatprep.subr.bf16.mxu0 %v3859
    %5415 = vmatpush1.bf16.msra.mxu0 %v3858
    %5416 = vmatprep.subr.bf16.mxu0 %v3867
    %5417 = vmatpush1.bf16.msra.mxu0 %v3866
    %5418 = vmatprep.subr.bf16.mxu0 %v3875
    %5419 = vmatpush1.bf16.msra.mxu0 %v3874
    %5420 = vmatprep.subr.bf16.mxu0 %v3883
    %5421 = vmatpush1.bf16.msra.mxu0 %v3882
    %5422 = vmatprep.subr.bf16.mxu0 %v3891
    %5423 = vmatpush1.bf16.msra.mxu0 %v3890
    %5424 = vmatprep.subr.bf16.mxu0 %v3899
    %5425 = vmatpush1.bf16.msra.mxu0 %v3898
    %5426 = vmatprep.subr.bf16.mxu0 %v3907
    %5427 = vmatpush1.bf16.msra.mxu0 %v3906
    %5428 = vmatprep.subr.bf16.mxu0 %v3915
    %5429 = vmatpush1.bf16.msra.mxu0 %v3914
    %5430 = vmatprep.subr.bf16.mxu0 %v3923
    %5431 = vmatpush1.bf16.msra.mxu0 %v3922
    %5432 = vmatprep.subr.bf16.mxu0 %v3931
    %5433 = vmatpush1.bf16.msra.mxu0 %v3930
    %5434 = vmatprep.subr.bf16.mxu0 %v3939
    %5435 = vmatpush1.bf16.msra.mxu0 %v3938
    %5436 = vmatprep.subr.bf16.mxu0 %v3947
    %5437 = vmatpush1.bf16.msra.mxu0 %v3946
    %5438 = vmatprep.subr.bf16.mxu0 %v3955
    %5439 = vmatpush1.bf16.msra.mxu0 %v3954
    %5440 = vmatprep.subr.bf16.mxu0 %v3963
    %5441 = vmatpush1.bf16.msra.mxu0 %v3962
    %5442 = vmatprep.subr.bf16.mxu0 %v3971
    %5443 = vmatpush1.bf16.msra.mxu0 %v3970
    %5444 = vmatprep.mubr.bf16.mxu0 %v980
    %5445 = vmatmul.mubr.bf16.gmra.mrb[0].mxu0 %v979
    %v5446 = vpop.f32.mrb[0].mxu0
    %v5447 = vadd.f32 %v5404, %v5446
    %v5448 = vpop.f32.mrb[0].mxu0
    %v5449 = vadd.f32 %v5406, %v5448
    %v5450 = vpop.f32.mrb[0].mxu0
    %v5451 = vadd.f32 %v5408, %v5450
    %v5452 = vpop.f32.mrb[0].mxu0
    %v5453 = vadd.f32 %v5410, %v5452
    %5454 = vdwg.mxu0
    %5455 = vmatprep.subr.bf16.mxu0 %v3979
    %5456 = vmatpush1.bf16.msra.mxu0 %v3978
    %5457 = vmatprep.subr.bf16.mxu0 %v3987
    %5458 = vmatpush1.bf16.msra.mxu0 %v3986
    %5459 = vmatprep.subr.bf16.mxu0 %v3995
    %5460 = vmatpush1.bf16.msra.mxu0 %v3994
    %5461 = vmatprep.subr.bf16.mxu0 %v4003
    %5462 = vmatpush1.bf16.msra.mxu0 %v4002
    %5463 = vmatprep.subr.bf16.mxu0 %v4011
    %5464 = vmatpush1.bf16.msra.mxu0 %v4010
    %5465 = vmatprep.subr.bf16.mxu0 %v4019
    %5466 = vmatpush1.bf16.msra.mxu0 %v4018
    %5467 = vmatprep.subr.bf16.mxu0 %v4027
    %5468 = vmatpush1.bf16.msra.mxu0 %v4026
    %5469 = vmatprep.subr.bf16.mxu0 %v4035
    %5470 = vmatpush1.bf16.msra.mxu0 %v4034
    %5471 = vmatprep.subr.bf16.mxu0 %v4043
    %5472 = vmatpush1.bf16.msra.mxu0 %v4042
    %5473 = vmatprep.subr.bf16.mxu0 %v4051
    %5474 = vmatpush1.bf16.msra.mxu0 %v4050
    %5475 = vmatprep.subr.bf16.mxu0 %v4059
    %5476 = vmatpush1.bf16.msra.mxu0 %v4058
    %5477 = vmatprep.subr.bf16.mxu0 %v4067
    %5478 = vmatpush1.bf16.msra.mxu0 %v4066
    %5479 = vmatprep.subr.bf16.mxu0 %v4075
    %5480 = vmatpush1.bf16.msra.mxu0 %v4074
    %5481 = vmatprep.subr.bf16.mxu0 %v4083
    %5482 = vmatpush1.bf16.msra.mxu0 %v4082
    %5483 = vmatprep.subr.bf16.mxu0 %v4091
    %5484 = vmatpush1.bf16.msra.mxu0 %v4090
    %5485 = vmatprep.subr.bf16.mxu0 %v4099
    %5486 = vmatpush1.bf16.msra.mxu0 %v4098
    %5487 = vmatprep.mubr.bf16.mxu0 %v982
    %5488 = vmatmul.mubr.bf16.gmra.mrb[0].mxu0 %v981
    %v5489 = vpop.f32.mrb[0].mxu0
    %v5490 = vadd.f32 %v5447, %v5489
    %v5491 = vpop.f32.mrb[0].mxu0
    %v5492 = vadd.f32 %v5449, %v5491
    %v5493 = vpop.f32.mrb[0].mxu0
    %v5494 = vadd.f32 %v5451, %v5493
    %v5495 = vpop.f32.mrb[0].mxu0
    %v5496 = vadd.f32 %v5453, %v5495
    %5497 = vdwg.mxu0
    %5498 = vmatprep.subr.bf16.mxu0 %v4107
    %5499 = vmatpush1.bf16.msra.mxu0 %v4106
    %5500 = vmatprep.subr.bf16.mxu0 %v4115
    %5501 = vmatpush1.bf16.msra.mxu0 %v4114
    %5502 = vmatprep.subr.bf16.mxu0 %v4123
    %5503 = vmatpush1.bf16.msra.mxu0 %v4122
    %5504 = vmatprep.subr.bf16.mxu0 %v4131
    %5505 = vmatpush1.bf16.msra.mxu0 %v4130
    %5506 = vmatprep.subr.bf16.mxu0 %v4139
    %5507 = vmatpush1.bf16.msra.mxu0 %v4138
    %5508 = vmatprep.subr.bf16.mxu0 %v4147
    %5509 = vmatpush1.bf16.msra.mxu0 %v4146
    %5510 = vmatprep.subr.bf16.mxu0 %v4155
    %5511 = vmatpush1.bf16.msra.mxu0 %v4154
    %5512 = vmatprep.subr.bf16.mxu0 %v4163
    %5513 = vmatpush1.bf16.msra.mxu0 %v4162
    %5514 = vmatprep.subr.bf16.mxu0 %v4171
    %5515 = vmatpush1.bf16.msra.mxu0 %v4170
    %5516 = vmatprep.subr.bf16.mxu0 %v4179
    %5517 = vmatpush1.bf16.msra.mxu0 %v4178
    %5518 = vmatprep.subr.bf16.mxu0 %v4187
    %5519 = vmatpush1.bf16.msra.mxu0 %v4186
    %5520 = vmatprep.subr.bf16.mxu0 %v4195
    %5521 = vmatpush1.bf16.msra.mxu0 %v4194
    %5522 = vmatprep.subr.bf16.mxu0 %v4203
    %5523 = vmatpush1.bf16.msra.mxu0 %v4202
    %5524 = vmatprep.subr.bf16.mxu0 %v4211
    %5525 = vmatpush1.bf16.msra.mxu0 %v4210
    %5526 = vmatprep.subr.bf16.mxu0 %v4219
    %5527 = vmatpush1.bf16.msra.mxu0 %v4218
    %5528 = vmatprep.subr.bf16.mxu0 %v4227
    %5529 = vmatpush1.bf16.msra.mxu0 %v4226
    %5530 = vmatprep.mubr.bf16.mxu0 %v984
    %5531 = vmatmul.mubr.bf16.gmra.mrb[0].mxu0 %v983
    %v5532 = vpop.f32.mrb[0].mxu0
    %v5533 = vadd.f32 %v5490, %v5532
    %v5534 = vpop.f32.mrb[0].mxu0
    %v5535 = vadd.f32 %v5492, %v5534
    %v5536 = vpop.f32.mrb[0].mxu0
    %v5537 = vadd.f32 %v5494, %v5536
    %v5538 = vpop.f32.mrb[0].mxu0
    %v5539 = vadd.f32 %v5496, %v5538
    %5540 = vdwg.mxu0
    %5541 = vmatprep.subr.bf16.mxu0 %v4235
    %5542 = vmatpush1.bf16.msra.mxu0 %v4234
    %5543 = vmatprep.subr.bf16.mxu0 %v4243
    %5544 = vmatpush1.bf16.msra.mxu0 %v4242
    %5545 = vmatprep.subr.bf16.mxu0 %v4251
    %5546 = vmatpush1.bf16.msra.mxu0 %v4250
    %5547 = vmatprep.subr.bf16.mxu0 %v4259
    %5548 = vmatpush1.bf16.msra.mxu0 %v4258
    %5549 = vmatprep.subr.bf16.mxu0 %v4267
    %5550 = vmatpush1.bf16.msra.mxu0 %v4266
    %5551 = vmatprep.subr.bf16.mxu0 %v4275
    %5552 = vmatpush1.bf16.msra.mxu0 %v4274
    %5553 = vmatprep.subr.bf16.mxu0 %v4283
    %5554 = vmatpush1.bf16.msra.mxu0 %v4282
    %5555 = vmatprep.subr.bf16.mxu0 %v4291
    %5556 = vmatpush1.bf16.msra.mxu0 %v4290
    %5557 = vmatprep.subr.bf16.mxu0 %v4299
    %5558 = vmatpush1.bf16.msra.mxu0 %v4298
    %5559 = vmatprep.subr.bf16.mxu0 %v4307
    %5560 = vmatpush1.bf16.msra.mxu0 %v4306
    %5561 = vmatprep.subr.bf16.mxu0 %v4315
    %5562 = vmatpush1.bf16.msra.mxu0 %v4314
    %5563 = vmatprep.subr.bf16.mxu0 %v4323
    %5564 = vmatpush1.bf16.msra.mxu0 %v4322
    %5565 = vmatprep.subr.bf16.mxu0 %v4331
    %5566 = vmatpush1.bf16.msra.mxu0 %v4330
    %5567 = vmatprep.subr.bf16.mxu0 %v4339
    %5568 = vmatpush1.bf16.msra.mxu0 %v4338
    %5569 = vmatprep.subr.bf16.mxu0 %v4347
    %5570 = vmatpush1.bf16.msra.mxu0 %v4346
    %5571 = vmatprep.subr.bf16.mxu0 %v4355
    %5572 = vmatpush1.bf16.msra.mxu0 %v4354
    %5573 = vmatprep.mubr.bf16.mxu0 %v986
    %5574 = vmatmul.mubr.bf16.gmra.mrb[0].mxu0 %v985
    %v5575 = vpop.f32.mrb[0].mxu0
    %v5576 = vadd.f32 %v5533, %v5575
    %v5577 = vpop.f32.mrb[0].mxu0
    %v5578 = vadd.f32 %v5535, %v5577
    %v5579 = vpop.f32.mrb[0].mxu0
    %v5580 = vadd.f32 %v5537, %v5579
    %v5581 = vpop.f32.mrb[0].mxu0
    %v5582 = vadd.f32 %v5539, %v5581
    %5583 = vdwg.mxu0
    %5584 = vmatprep.subr.bf16.mxu0 %v4363
    %5585 = vmatpush1.bf16.msra.mxu0 %v4362
    %5586 = vmatprep.subr.bf16.mxu0 %v4371
    %5587 = vmatpush1.bf16.msra.mxu0 %v4370
    %5588 = vmatprep.subr.bf16.mxu0 %v4379
    %5589 = vmatpush1.bf16.msra.mxu0 %v4378
    %5590 = vmatprep.subr.bf16.mxu0 %v4387
    %5591 = vmatpush1.bf16.msra.mxu0 %v4386
    %5592 = vmatprep.subr.bf16.mxu0 %v4395
    %5593 = vmatpush1.bf16.msra.mxu0 %v4394
    %5594 = vmatprep.subr.bf16.mxu0 %v4403
    %5595 = vmatpush1.bf16.msra.mxu0 %v4402
    %5596 = vmatprep.subr.bf16.mxu0 %v4411
    %5597 = vmatpush1.bf16.msra.mxu0 %v4410
    %5598 = vmatprep.subr.bf16.mxu0 %v4419
    %5599 = vmatpush1.bf16.msra.mxu0 %v4418
    %5600 = vmatprep.subr.bf16.mxu0 %v4427
    %5601 = vmatpush1.bf16.msra.mxu0 %v4426
    %5602 = vmatprep.subr.bf16.mxu0 %v4435
    %5603 = vmatpush1.bf16.msra.mxu0 %v4434
    %5604 = vmatprep.subr.bf16.mxu0 %v4443
    %5605 = vmatpush1.bf16.msra.mxu0 %v4442
    %5606 = vmatprep.subr.bf16.mxu0 %v4451
    %5607 = vmatpush1.bf16.msra.mxu0 %v4450
    %5608 = vmatprep.subr.bf16.mxu0 0
    %5609 = vmatpush1.bf16.msra.mxu0 0
    %5610 = vmatprep.subr.bf16.mxu0 0
    %5611 = vmatpush1.bf16.msra.mxu0 0
    %5612 = vmatprep.subr.bf16.mxu0 0
    %5613 = vmatpush1.bf16.msra.mxu0 0
    %5614 = vmatprep.subr.bf16.mxu0 0
    %5615 = vmatpush1.bf16.msra.mxu0 0
    %5616 = vmatprep.mubr.bf16.mxu0 %v5324
    %5617 = vmatmul.mubr.bf16.gmra.mrb[0].mxu0 %v987
    %v5618 = vpop.f32.mrb[0].mxu0
    %v5619 = vadd.f32 %v5576, %v5618
    %v5620 = vpop.f32.mrb[0].mxu0
    %v5621 = vadd.f32 %v5578, %v5620
    %v5622 = vpop.f32.mrb[0].mxu0
    %v5623 = vadd.f32 %v5580, %v5622
    %v5624 = vpop.f32.mrb[0].mxu0
    %v5625 = vadd.f32 %v5582, %v5624
    %5626 = vdwg.mxu0
    %5627 = vmatprep.subr.bf16.mxu0 %v3597
    %5628 = vmatpush1.bf16.msra.mxu0 %v3596
    %5629 = vmatprep.subr.bf16.mxu0 %v3605
    %5630 = vmatpush1.bf16.msra.mxu0 %v3604
    %5631 = vmatprep.subr.bf16.mxu0 %v3613
    %5632 = vmatpush1.bf16.msra.mxu0 %v3612
    %5633 = vmatprep.subr.bf16.mxu0 %v3621
    %5634 = vmatpush1.bf16.msra.mxu0 %v3620
    %5635 = vmatprep.subr.bf16.mxu0 %v3629
    %5636 = vmatpush1.bf16.msra.mxu0 %v3628
    %5637 = vmatprep.subr.bf16.mxu0 %v3637
    %5638 = vmatpush1.bf16.msra.mxu0 %v3636
    %5639 = vmatprep.subr.bf16.mxu0 %v3645
    %5640 = vmatpush1.bf16.msra.mxu0 %v3644
    %5641 = vmatprep.subr.bf16.mxu0 %v3653
    %5642 = vmatpush1.bf16.msra.mxu0 %v3652
    %5643 = vmatprep.subr.bf16.mxu0 %v3661
    %5644 = vmatpush1.bf16.msra.mxu0 %v3660
    %5645 = vmatprep.subr.bf16.mxu0 %v3669
    %5646 = vmatpush1.bf16.msra.mxu0 %v3668
    %5647 = vmatprep.subr.bf16.mxu0 %v3677
    %5648 = vmatpush1.bf16.msra.mxu0 %v3676
    %5649 = vmatprep.subr.bf16.mxu0 %v3685
    %5650 = vmatpush1.bf16.msra.mxu0 %v3684
    %5651 = vmatprep.subr.bf16.mxu0 %v3693
    %5652 = vmatpush1.bf16.msra.mxu0 %v3692
    %5653 = vmatprep.subr.bf16.mxu0 %v3701
    %5654 = vmatpush1.bf16.msra.mxu0 %v3700
    %5655 = vmatprep.subr.bf16.mxu0 %v3709
    %5656 = vmatpush1.bf16.msra.mxu0 %v3708
    %5657 = vmatprep.subr.bf16.mxu0 %v3717
    %5658 = vmatpush1.bf16.msra.mxu0 %v3716
    %5659 = vmatprep.mubr.bf16.mxu0 %v976
    %5660 = vmatmul.mubr.bf16.gmra.mrb[0].mxu0 %v975
    %v5661 = vpop.f32.mrb[0].mxu0
    %v5662 = vadd.f32 0.0, %v5661
    %v5663 = vpop.f32.mrb[0].mxu0
    %v5664 = vadd.f32 0.0, %v5663
    %v5665 = vpop.f32.mrb[0].mxu0
    %v5666 = vadd.f32 0.0, %v5665
    %v5667 = vpop.f32.mrb[0].mxu0
    %v5668 = vadd.f32 0.0, %v5667
    %5669 = vdwg.mxu0
    %5670 = vmatprep.subr.bf16.mxu0 %v3725
    %5671 = vmatpush1.bf16.msra.mxu0 %v3724
    %5672 = vmatprep.subr.bf16.mxu0 %v3733
    %5673 = vmatpush1.bf16.msra.mxu0 %v3732
    %5674 = vmatprep.subr.bf16.mxu0 %v3741
    %5675 = vmatpush1.bf16.msra.mxu0 %v3740
    %5676 = vmatprep.subr.bf16.mxu0 %v3749
    %5677 = vmatpush1.bf16.msra.mxu0 %v3748
    %5678 = vmatprep.subr.bf16.mxu0 %v3757
    %5679 = vmatpush1.bf16.msra.mxu0 %v3756
    %5680 = vmatprep.subr.bf16.mxu0 %v3765
    %5681 = vmatpush1.bf16.msra.mxu0 %v3764
    %5682 = vmatprep.subr.bf16.mxu0 %v3773
    %5683 = vmatpush1.bf16.msra.mxu0 %v3772
    %5684 = vmatprep.subr.bf16.mxu0 %v3781
    %5685 = vmatpush1.bf16.msra.mxu0 %v3780
    %5686 = vmatprep.subr.bf16.mxu0 %v3789
    %5687 = vmatpush1.bf16.msra.mxu0 %v3788
    %5688 = vmatprep.subr.bf16.mxu0 %v3797
    %5689 = vmatpush1.bf16.msra.mxu0 %v3796
    %5690 = vmatprep.subr.bf16.mxu0 %v3805
    %5691 = vmatpush1.bf16.msra.mxu0 %v3804
    %5692 = vmatprep.subr.bf16.mxu0 %v3813
    %5693 = vmatpush1.bf16.msra.mxu0 %v3812
    %5694 = vmatprep.subr.bf16.mxu0 %v3821
    %5695 = vmatpush1.bf16.msra.mxu0 %v3820
    %5696 = vmatprep.subr.bf16.mxu0 %v3829
    %5697 = vmatpush1.bf16.msra.mxu0 %v3828
    %5698 = vmatprep.subr.bf16.mxu0 %v3837
    %5699 = vmatpush1.bf16.msra.mxu0 %v3836
    %5700 = vmatprep.subr.bf16.mxu0 %v3845
    %5701 = vmatpush1.bf16.msra.mxu0 %v3844
    %5702 = vmatprep.mubr.bf16.mxu0 %v978
    %5703 = vmatmul.mubr.bf16.gmra.mrb[0].mxu0 %v977
    %v5704 = vpop.f32.mrb[0].mxu0
    %v5705 = vadd.f32 %v5662, %v5704
    %v5706 = vpop.f32.mrb[0].mxu0
    %v5707 = vadd.f32 %v5664, %v5706
    %v5708 = vpop.f32.mrb[0].mxu0
    %v5709 = vadd.f32 %v5666, %v5708
    %v5710 = vpop.f32.mrb[0].mxu0
    %v5711 = vadd.f32 %v5668, %v5710
    %5712 = vdwg.mxu0
    %5713 = vmatprep.subr.bf16.mxu0 %v3853
    %5714 = vmatpush1.bf16.msra.mxu0 %v3852
    %5715 = vmatprep.subr.bf16.mxu0 %v3861
    %5716 = vmatpush1.bf16.msra.mxu0 %v3860
    %5717 = vmatprep.subr.bf16.mxu0 %v3869
    %5718 = vmatpush1.bf16.msra.mxu0 %v3868
    %5719 = vmatprep.subr.bf16.mxu0 %v3877
    %5720 = vmatpush1.bf16.msra.mxu0 %v3876
    %5721 = vmatprep.subr.bf16.mxu0 %v3885
    %5722 = vmatpush1.bf16.msra.mxu0 %v3884
    %5723 = vmatprep.subr.bf16.mxu0 %v3893
    %5724 = vmatpush1.bf16.msra.mxu0 %v3892
    %5725 = vmatprep.subr.bf16.mxu0 %v3901
    %5726 = vmatpush1.bf16.msra.mxu0 %v3900
    %5727 = vmatprep.subr.bf16.mxu0 %v3909
    %5728 = vmatpush1.bf16.msra.mxu0 %v3908
    %5729 = vmatprep.subr.bf16.mxu0 %v3917
    %5730 = vmatpush1.bf16.msra.mxu0 %v3916
    %5731 = vmatprep.subr.bf16.mxu0 %v3925
    %5732 = vmatpush1.bf16.msra.mxu0 %v3924
    %5733 = vmatprep.subr.bf16.mxu0 %v3933
    %5734 = vmatpush1.bf16.msra.mxu0 %v3932
    %5735 = vmatprep.subr.bf16.mxu0 %v3941
    %5736 = vmatpush1.bf16.msra.mxu0 %v3940
    %5737 = vmatprep.subr.bf16.mxu0 %v3949
    %5738 = vmatpush1.bf16.msra.mxu0 %v3948
    %5739 = vmatprep.subr.bf16.mxu0 %v3957
    %5740 = vmatpush1.bf16.msra.mxu0 %v3956
    %5741 = vmatprep.subr.bf16.mxu0 %v3965
    %5742 = vmatpush1.bf16.msra.mxu0 %v3964
    %5743 = vmatprep.subr.bf16.mxu0 %v3973
    %5744 = vmatpush1.bf16.msra.mxu0 %v3972
    %5745 = vmatprep.mubr.bf16.mxu0 %v980
    %5746 = vmatmul.mubr.bf16.gmra.mrb[0].mxu0 %v979
    %v5747 = vpop.f32.mrb[0].mxu0
    %v5748 = vadd.f32 %v5705, %v5747
    %v5749 = vpop.f32.mrb[0].mxu0
    %v5750 = vadd.f32 %v5707, %v5749
    %v5751 = vpop.f32.mrb[0].mxu0
    %v5752 = vadd.f32 %v5709, %v5751
    %v5753 = vpop.f32.mrb[0].mxu0
    %v5754 = vadd.f32 %v5711, %v5753
    %5755 = vdwg.mxu0
    %5756 = vmatprep.subr.bf16.mxu0 %v3981
    %5757 = vmatpush1.bf16.msra.mxu0 %v3980
    %5758 = vmatprep.subr.bf16.mxu0 %v3989
    %5759 = vmatpush1.bf16.msra.mxu0 %v3988
    %5760 = vmatprep.subr.bf16.mxu0 %v3997
    %5761 = vmatpush1.bf16.msra.mxu0 %v3996
    %5762 = vmatprep.subr.bf16.mxu0 %v4005
    %5763 = vmatpush1.bf16.msra.mxu0 %v4004
    %5764 = vmatprep.subr.bf16.mxu0 %v4013
    %5765 = vmatpush1.bf16.msra.mxu0 %v4012
    %5766 = vmatprep.subr.bf16.mxu0 %v4021
    %5767 = vmatpush1.bf16.msra.mxu0 %v4020
    %5768 = vmatprep.subr.bf16.mxu0 %v4029
    %5769 = vmatpush1.bf16.msra.mxu0 %v4028
    %5770 = vmatprep.subr.bf16.mxu0 %v4037
    %5771 = vmatpush1.bf16.msra.mxu0 %v4036
    %5772 = vmatprep.subr.bf16.mxu0 %v4045
    %5773 = vmatpush1.bf16.msra.mxu0 %v4044
    %5774 = vmatprep.subr.bf16.mxu0 %v4053
    %5775 = vmatpush1.bf16.msra.mxu0 %v4052
    %5776 = vmatprep.subr.bf16.mxu0 %v4061
    %5777 = vmatpush1.bf16.msra.mxu0 %v4060
    %5778 = vmatprep.subr.bf16.mxu0 %v4069
    %5779 = vmatpush1.bf16.msra.mxu0 %v4068
    %5780 = vmatprep.subr.bf16.mxu0 %v4077
    %5781 = vmatpush1.bf16.msra.mxu0 %v4076
    %5782 = vmatprep.subr.bf16.mxu0 %v4085
    %5783 = vmatpush1.bf16.msra.mxu0 %v4084
    %5784 = vmatprep.subr.bf16.mxu0 %v4093
    %5785 = vmatpush1.bf16.msra.mxu0 %v4092
    %5786 = vmatprep.subr.bf16.mxu0 %v4101
    %5787 = vmatpush1.bf16.msra.mxu0 %v4100
    %5788 = vmatprep.mubr.bf16.mxu0 %v982
    %5789 = vmatmul.mubr.bf16.gmra.mrb[0].mxu0 %v981
    %v5790 = vpop.f32.mrb[0].mxu0
    %v5791 = vadd.f32 %v5748, %v5790
    %v5792 = vpop.f32.mrb[0].mxu0
    %v5793 = vadd.f32 %v5750, %v5792
    %v5794 = vpop.f32.mrb[0].mxu0
    %v5795 = vadd.f32 %v5752, %v5794
    %v5796 = vpop.f32.mrb[0].mxu0
    %v5797 = vadd.f32 %v5754, %v5796
    %5798 = vdwg.mxu0
    %5799 = vmatprep.subr.bf16.mxu0 %v4109
    %5800 = vmatpush1.bf16.msra.mxu0 %v4108
    %5801 = vmatprep.subr.bf16.mxu0 %v4117
    %5802 = vmatpush1.bf16.msra.mxu0 %v4116
    %5803 = vmatprep.subr.bf16.mxu0 %v4125
    %5804 = vmatpush1.bf16.msra.mxu0 %v4124
    %5805 = vmatprep.subr.bf16.mxu0 %v4133
    %5806 = vmatpush1.bf16.msra.mxu0 %v4132
    %5807 = vmatprep.subr.bf16.mxu0 %v4141
    %5808 = vmatpush1.bf16.msra.mxu0 %v4140
    %5809 = vmatprep.subr.bf16.mxu0 %v4149
    %5810 = vmatpush1.bf16.msra.mxu0 %v4148
    %5811 = vmatprep.subr.bf16.mxu0 %v4157
    %5812 = vmatpush1.bf16.msra.mxu0 %v4156
    %5813 = vmatprep.subr.bf16.mxu0 %v4165
    %5814 = vmatpush1.bf16.msra.mxu0 %v4164
    %5815 = vmatprep.subr.bf16.mxu0 %v4173
    %5816 = vmatpush1.bf16.msra.mxu0 %v4172
    %5817 = vmatprep.subr.bf16.mxu0 %v4181
    %5818 = vmatpush1.bf16.msra.mxu0 %v4180
    %5819 = vmatprep.subr.bf16.mxu0 %v4189
    %5820 = vmatpush1.bf16.msra.mxu0 %v4188
    %5821 = vmatprep.subr.bf16.mxu0 %v4197
    %5822 = vmatpush1.bf16.msra.mxu0 %v4196
    %5823 = vmatprep.subr.bf16.mxu0 %v4205
    %5824 = vmatpush1.bf16.msra.mxu0 %v4204
    %5825 = vmatprep.subr.bf16.mxu0 %v4213
    %5826 = vmatpush1.bf16.msra.mxu0 %v4212
    %5827 = vmatprep.subr.bf16.mxu0 %v4221
    %5828 = vmatpush1.bf16.msra.mxu0 %v4220
    %5829 = vmatprep.subr.bf16.mxu0 %v4229
    %5830 = vmatpush1.bf16.msra.mxu0 %v4228
    %5831 = vmatprep.mubr.bf16.mxu0 %v984
    %5832 = vmatmul.mubr.bf16.gmra.mrb[0].mxu0 %v983
    %v5833 = vpop.f32.mrb[0].mxu0
    %v5834 = vadd.f32 %v5791, %v5833
    %v5835 = vpop.f32.mrb[0].mxu0
    %v5836 = vadd.f32 %v5793, %v5835
    %v5837 = vpop.f32.mrb[0].mxu0
    %v5838 = vadd.f32 %v5795, %v5837
    %v5839 = vpop.f32.mrb[0].mxu0
    %v5840 = vadd.f32 %v5797, %v5839
    %5841 = vdwg.mxu0
    %5842 = vmatprep.subr.bf16.mxu0 %v4237
    %5843 = vmatpush1.bf16.msra.mxu0 %v4236
    %5844 = vmatprep.subr.bf16.mxu0 %v4245
    %5845 = vmatpush1.bf16.msra.mxu0 %v4244
    %5846 = vmatprep.subr.bf16.mxu0 %v4253
    %5847 = vmatpush1.bf16.msra.mxu0 %v4252
    %5848 = vmatprep.subr.bf16.mxu0 %v4261
    %5849 = vmatpush1.bf16.msra.mxu0 %v4260
    %5850 = vmatprep.subr.bf16.mxu0 %v4269
    %5851 = vmatpush1.bf16.msra.mxu0 %v4268
    %5852 = vmatprep.subr.bf16.mxu0 %v4277
    %5853 = vmatpush1.bf16.msra.mxu0 %v4276
    %5854 = vmatprep.subr.bf16.mxu0 %v4285
    %5855 = vmatpush1.bf16.msra.mxu0 %v4284
    %5856 = vmatprep.subr.bf16.mxu0 %v4293
    %5857 = vmatpush1.bf16.msra.mxu0 %v4292
    %5858 = vmatprep.subr.bf16.mxu0 %v4301
    %5859 = vmatpush1.bf16.msra.mxu0 %v4300
    %5860 = vmatprep.subr.bf16.mxu0 %v4309
    %5861 = vmatpush1.bf16.msra.mxu0 %v4308
    %5862 = vmatprep.subr.bf16.mxu0 %v4317
    %5863 = vmatpush1.bf16.msra.mxu0 %v4316
    %5864 = vmatprep.subr.bf16.mxu0 %v4325
    %5865 = vmatpush1.bf16.msra.mxu0 %v4324
    %5866 = vmatprep.subr.bf16.mxu0 %v4333
    %5867 = vmatpush1.bf16.msra.mxu0 %v4332
    %5868 = vmatprep.subr.bf16.mxu0 %v4341
    %5869 = vmatpush1.bf16.msra.mxu0 %v4340
    %5870 = vmatprep.subr.bf16.mxu0 %v4349
    %5871 = vmatpush1.bf16.msra.mxu0 %v4348
    %5872 = vmatprep.subr.bf16.mxu0 %v4357
    %5873 = vmatpush1.bf16.msra.mxu0 %v4356
    %5874 = vmatprep.mubr.bf16.mxu0 %v986
    %5875 = vmatmul.mubr.bf16.gmra.mrb[0].mxu0 %v985
    %v5876 = vpop.f32.mrb[0].mxu0
    %v5877 = vadd.f32 %v5834, %v5876
    %v5878 = vpop.f32.mrb[0].mxu0
    %v5879 = vadd.f32 %v5836, %v5878
    %v5880 = vpop.f32.mrb[0].mxu0
    %v5881 = vadd.f32 %v5838, %v5880
    %v5882 = vpop.f32.mrb[0].mxu0
    %v5883 = vadd.f32 %v5840, %v5882
    %5884 = vdwg.mxu0
    %5885 = vmatprep.subr.bf16.mxu0 %v4365
    %5886 = vmatpush1.bf16.msra.mxu0 %v4364
    %5887 = vmatprep.subr.bf16.mxu0 %v4373
    %5888 = vmatpush1.bf16.msra.mxu0 %v4372
    %5889 = vmatprep.subr.bf16.mxu0 %v4381
    %5890 = vmatpush1.bf16.msra.mxu0 %v4380
    %5891 = vmatprep.subr.bf16.mxu0 %v4389
    %5892 = vmatpush1.bf16.msra.mxu0 %v4388
    %5893 = vmatprep.subr.bf16.mxu0 %v4397
    %5894 = vmatpush1.bf16.msra.mxu0 %v4396
    %5895 = vmatprep.subr.bf16.mxu0 %v4405
    %5896 = vmatpush1.bf16.msra.mxu0 %v4404
    %5897 = vmatprep.subr.bf16.mxu0 %v4413
    %5898 = vmatpush1.bf16.msra.mxu0 %v4412
    %5899 = vmatprep.subr.bf16.mxu0 %v4421
    %5900 = vmatpush1.bf16.msra.mxu0 %v4420
    %5901 = vmatprep.subr.bf16.mxu0 %v4429
    %5902 = vmatpush1.bf16.msra.mxu0 %v4428
    %5903 = vmatprep.subr.bf16.mxu0 %v4437
    %5904 = vmatpush1.bf16.msra.mxu0 %v4436
    %5905 = vmatprep.subr.bf16.mxu0 %v4445
    %5906 = vmatpush1.bf16.msra.mxu0 %v4444
    %5907 = vmatprep.subr.bf16.mxu0 %v4453
    %5908 = vmatpush1.bf16.msra.mxu0 %v4452
    %5909 = vmatprep.subr.bf16.mxu0 0
    %5910 = vmatpush1.bf16.msra.mxu0 0
    %5911 = vmatprep.subr.bf16.mxu0 0
    %5912 = vmatpush1.bf16.msra.mxu0 0
    %5913 = vmatprep.subr.bf16.mxu0 0
    %5914 = vmatpush1.bf16.msra.mxu0 0
    %5915 = vmatprep.subr.bf16.mxu0 0
    %5916 = vmatpush1.bf16.msra.mxu0 0
    %5917 = vmatprep.mubr.bf16.mxu0 %v5324
    %5918 = vmatmul.mubr.bf16.gmra.mrb[0].mxu0 %v987
    %v5919 = vpop.f32.mrb[0].mxu0
    %v5920 = vadd.f32 %v5877, %v5919
    %v5921 = vpop.f32.mrb[0].mxu0
    %v5922 = vadd.f32 %v5879, %v5921
    %v5923 = vpop.f32.mrb[0].mxu0
    %v5924 = vadd.f32 %v5881, %v5923
    %v5925 = vpop.f32.mrb[0].mxu0
    %v5926 = vadd.f32 %v5883, %v5925
    %5927 = vdwg.mxu0
    %5928 = vmatprep.subr.bf16.mxu0 %v3599
    %5929 = vmatpush1.bf16.msra.mxu0 %v3598
    %5930 = vmatprep.subr.bf16.mxu0 %v3607
    %5931 = vmatpush1.bf16.msra.mxu0 %v3606
    %5932 = vmatprep.subr.bf16.mxu0 %v3615
    %5933 = vmatpush1.bf16.msra.mxu0 %v3614
    %5934 = vmatprep.subr.bf16.mxu0 %v3623
    %5935 = vmatpush1.bf16.msra.mxu0 %v3622
    %5936 = vmatprep.subr.bf16.mxu0 %v3631
    %5937 = vmatpush1.bf16.msra.mxu0 %v3630
    %5938 = vmatprep.subr.bf16.mxu0 %v3639
    %5939 = vmatpush1.bf16.msra.mxu0 %v3638
    %5940 = vmatprep.subr.bf16.mxu0 %v3647
    %5941 = vmatpush1.bf16.msra.mxu0 %v3646
    %5942 = vmatprep.subr.bf16.mxu0 %v3655
    %5943 = vmatpush1.bf16.msra.mxu0 %v3654
    %5944 = vmatprep.subr.bf16.mxu0 %v3663
    %5945 = vmatpush1.bf16.msra.mxu0 %v3662
    %5946 = vmatprep.subr.bf16.mxu0 %v3671
    %5947 = vmatpush1.bf16.msra.mxu0 %v3670
    %5948 = vmatprep.subr.bf16.mxu0 %v3679
    %5949 = vmatpush1.bf16.msra.mxu0 %v3678
    %5950 = vmatprep.subr.bf16.mxu0 %v3687
    %5951 = vmatpush1.bf16.msra.mxu0 %v3686
    %5952 = vmatprep.subr.bf16.mxu0 %v3695
    %5953 = vmatpush1.bf16.msra.mxu0 %v3694
    %5954 = vmatprep.subr.bf16.mxu0 %v3703
    %5955 = vmatpush1.bf16.msra.mxu0 %v3702
    %5956 = vmatprep.subr.bf16.mxu0 %v3711
    %5957 = vmatpush1.bf16.msra.mxu0 %v3710
    %5958 = vmatprep.subr.bf16.mxu0 %v3719
    %5959 = vmatpush1.bf16.msra.mxu0 %v3718
    %5960 = vmatprep.mubr.bf16.mxu0 %v976
    %5961 = vmatmul.mubr.bf16.gmra.mrb[0].mxu0 %v975
    %v5962 = vpop.f32.mrb[0].mxu0
    %v5963 = vadd.f32 0.0, %v5962
    %v5964 = vpop.f32.mrb[0].mxu0
    %v5965 = vadd.f32 0.0, %v5964
    %v5966 = vpop.f32.mrb[0].mxu0
    %v5967 = vadd.f32 0.0, %v5966
    %v5968 = vpop.f32.mrb[0].mxu0
    %v5969 = vadd.f32 0.0, %v5968
    %5970 = vdwg.mxu0
    %5971 = vmatprep.subr.bf16.mxu0 %v3727
    %5972 = vmatpush1.bf16.msra.mxu0 %v3726
    %5973 = vmatprep.subr.bf16.mxu0 %v3735
    %5974 = vmatpush1.bf16.msra.mxu0 %v3734
    %5975 = vmatprep.subr.bf16.mxu0 %v3743
    %5976 = vmatpush1.bf16.msra.mxu0 %v3742
    %5977 = vmatprep.subr.bf16.mxu0 %v3751
    %5978 = vmatpush1.bf16.msra.mxu0 %v3750
    %5979 = vmatprep.subr.bf16.mxu0 %v3759
    %5980 = vmatpush1.bf16.msra.mxu0 %v3758
    %5981 = vmatprep.subr.bf16.mxu0 %v3767
    %5982 = vmatpush1.bf16.msra.mxu0 %v3766
    %5983 = vmatprep.subr.bf16.mxu0 %v3775
    %5984 = vmatpush1.bf16.msra.mxu0 %v3774
    %5985 = vmatprep.subr.bf16.mxu0 %v3783
    %5986 = vmatpush1.bf16.msra.mxu0 %v3782
    %5987 = vmatprep.subr.bf16.mxu0 %v3791
    %5988 = vmatpush1.bf16.msra.mxu0 %v3790
    %5989 = vmatprep.subr.bf16.mxu0 %v3799
    %5990 = vmatpush1.bf16.msra.mxu0 %v3798
    %5991 = vmatprep.subr.bf16.mxu0 %v3807
    %5992 = vmatpush1.bf16.msra.mxu0 %v3806
    %5993 = vmatprep.subr.bf16.mxu0 %v3815
    %5994 = vmatpush1.bf16.msra.mxu0 %v3814
    %5995 = vmatprep.subr.bf16.mxu0 %v3823
    %5996 = vmatpush1.bf16.msra.mxu0 %v3822
    %5997 = vmatprep.subr.bf16.mxu0 %v3831
    %5998 = vmatpush1.bf16.msra.mxu0 %v3830
    %5999 = vmatprep.subr.bf16.mxu0 %v3839
    %6000 = vmatpush1.bf16.msra.mxu0 %v3838
    %6001 = vmatprep.subr.bf16.mxu0 %v3847
    %6002 = vmatpush1.bf16.msra.mxu0 %v3846
    %6003 = vmatprep.mubr.bf16.mxu0 %v978
    %6004 = vmatmul.mubr.bf16.gmra.mrb[0].mxu0 %v977
    %v6005 = vpop.f32.mrb[0].mxu0
    %v6006 = vadd.f32 %v5963, %v6005
    %v6007 = vpop.f32.mrb[0].mxu0
    %v6008 = vadd.f32 %v5965, %v6007
    %v6009 = vpop.f32.mrb[0].mxu0
    %v6010 = vadd.f32 %v5967, %v6009
    %v6011 = vpop.f32.mrb[0].mxu0
    %v6012 = vadd.f32 %v5969, %v6011
    %6013 = vdwg.mxu0
    %6014 = vmatprep.subr.bf16.mxu0 %v3855
    %6015 = vmatpush1.bf16.msra.mxu0 %v3854
    %6016 = vmatprep.subr.bf16.mxu0 %v3863
    %6017 = vmatpush1.bf16.msra.mxu0 %v3862
    %6018 = vmatprep.subr.bf16.mxu0 %v3871
    %6019 = vmatpush1.bf16.msra.mxu0 %v3870
    %6020 = vmatprep.subr.bf16.mxu0 %v3879
    %6021 = vmatpush1.bf16.msra.mxu0 %v3878
    %6022 = vmatprep.subr.bf16.mxu0 %v3887
    %6023 = vmatpush1.bf16.msra.mxu0 %v3886
    %6024 = vmatprep.subr.bf16.mxu0 %v3895
    %6025 = vmatpush1.bf16.msra.mxu0 %v3894
    %6026 = vmatprep.subr.bf16.mxu0 %v3903
    %6027 = vmatpush1.bf16.msra.mxu0 %v3902
    %6028 = vmatprep.subr.bf16.mxu0 %v3911
    %6029 = vmatpush1.bf16.msra.mxu0 %v3910
    %6030 = vmatprep.subr.bf16.mxu0 %v3919
    %6031 = vmatpush1.bf16.msra.mxu0 %v3918
    %6032 = vmatprep.subr.bf16.mxu0 %v3927
    %6033 = vmatpush1.bf16.msra.mxu0 %v3926
    %6034 = vmatprep.subr.bf16.mxu0 %v3935
    %6035 = vmatpush1.bf16.msra.mxu0 %v3934
    %6036 = vmatprep.subr.bf16.mxu0 %v3943
    %6037 = vmatpush1.bf16.msra.mxu0 %v3942
    %6038 = vmatprep.subr.bf16.mxu0 %v3951
    %6039 = vmatpush1.bf16.msra.mxu0 %v3950
    %6040 = vmatprep.subr.bf16.mxu0 %v3959
    %6041 = vmatpush1.bf16.msra.mxu0 %v3958
    %6042 = vmatprep.subr.bf16.mxu0 %v3967
    %6043 = vmatpush1.bf16.msra.mxu0 %v3966
    %6044 = vmatprep.subr.bf16.mxu0 %v3975
    %6045 = vmatpush1.bf16.msra.mxu0 %v3974
    %6046 = vmatprep.mubr.bf16.mxu0 %v980
    %6047 = vmatmul.mubr.bf16.gmra.mrb[0].mxu0 %v979
    %v6048 = vpop.f32.mrb[0].mxu0
    %v6049 = vadd.f32 %v6006, %v6048
    %v6050 = vpop.f32.mrb[0].mxu0
    %v6051 = vadd.f32 %v6008, %v6050
    %v6052 = vpop.f32.mrb[0].mxu0
    %v6053 = vadd.f32 %v6010, %v6052
    %v6054 = vpop.f32.mrb[0].mxu0
    %v6055 = vadd.f32 %v6012, %v6054
    %6056 = vdwg.mxu0
    %6057 = vmatprep.subr.bf16.mxu0 %v3983
    %6058 = vmatpush1.bf16.msra.mxu0 %v3982
    %6059 = vmatprep.subr.bf16.mxu0 %v3991
    %6060 = vmatpush1.bf16.msra.mxu0 %v3990
    %6061 = vmatprep.subr.bf16.mxu0 %v3999
    %6062 = vmatpush1.bf16.msra.mxu0 %v3998
    %6063 = vmatprep.subr.bf16.mxu0 %v4007
    %6064 = vmatpush1.bf16.msra.mxu0 %v4006
    %6065 = vmatprep.subr.bf16.mxu0 %v4015
    %6066 = vmatpush1.bf16.msra.mxu0 %v4014
    %6067 = vmatprep.subr.bf16.mxu0 %v4023
    %6068 = vmatpush1.bf16.msra.mxu0 %v4022
    %6069 = vmatprep.subr.bf16.mxu0 %v4031
    %6070 = vmatpush1.bf16.msra.mxu0 %v4030
    %6071 = vmatprep.subr.bf16.mxu0 %v4039
    %6072 = vmatpush1.bf16.msra.mxu0 %v4038
    %6073 = vmatprep.subr.bf16.mxu0 %v4047
    %6074 = vmatpush1.bf16.msra.mxu0 %v4046
    %6075 = vmatprep.subr.bf16.mxu0 %v4055
    %6076 = vmatpush1.bf16.msra.mxu0 %v4054
    %6077 = vmatprep.subr.bf16.mxu0 %v4063
    %6078 = vmatpush1.bf16.msra.mxu0 %v4062
    %6079 = vmatprep.subr.bf16.mxu0 %v4071
    %6080 = vmatpush1.bf16.msra.mxu0 %v4070
    %6081 = vmatprep.subr.bf16.mxu0 %v4079
    %6082 = vmatpush1.bf16.msra.mxu0 %v4078
    %6083 = vmatprep.subr.bf16.mxu0 %v4087
    %6084 = vmatpush1.bf16.msra.mxu0 %v4086
    %6085 = vmatprep.subr.bf16.mxu0 %v4095
    %6086 = vmatpush1.bf16.msra.mxu0 %v4094
    %6087 = vmatprep.subr.bf16.mxu0 %v4103
    %6088 = vmatpush1.bf16.msra.mxu0 %v4102
    %6089 = vmatprep.mubr.bf16.mxu0 %v982
    %6090 = vmatmul.mubr.bf16.gmra.mrb[0].mxu0 %v981
    %v6091 = vpop.f32.mrb[0].mxu0
    %v6092 = vadd.f32 %v6049, %v6091
    %v6093 = vpop.f32.mrb[0].mxu0
    %v6094 = vadd.f32 %v6051, %v6093
    %v6095 = vpop.f32.mrb[0].mxu0
    %v6096 = vadd.f32 %v6053, %v6095
    %v6097 = vpop.f32.mrb[0].mxu0
    %v6098 = vadd.f32 %v6055, %v6097
    %6099 = vdwg.mxu0
    %6100 = vmatprep.subr.bf16.mxu0 %v4111
    %6101 = vmatpush1.bf16.msra.mxu0 %v4110
    %6102 = vmatprep.subr.bf16.mxu0 %v4119
    %6103 = vmatpush1.bf16.msra.mxu0 %v4118
    %6104 = vmatprep.subr.bf16.mxu0 %v4127
    %6105 = vmatpush1.bf16.msra.mxu0 %v4126
    %6106 = vmatprep.subr.bf16.mxu0 %v4135
    %6107 = vmatpush1.bf16.msra.mxu0 %v4134
    %6108 = vmatprep.subr.bf16.mxu0 %v4143
    %6109 = vmatpush1.bf16.msra.mxu0 %v4142
    %6110 = vmatprep.subr.bf16.mxu0 %v4151
    %6111 = vmatpush1.bf16.msra.mxu0 %v4150
    %6112 = vmatprep.subr.bf16.mxu0 %v4159
    %6113 = vmatpush1.bf16.msra.mxu0 %v4158
    %6114 = vmatprep.subr.bf16.mxu0 %v4167
    %6115 = vmatpush1.bf16.msra.mxu0 %v4166
    %6116 = vmatprep.subr.bf16.mxu0 %v4175
    %6117 = vmatpush1.bf16.msra.mxu0 %v4174
    %6118 = vmatprep.subr.bf16.mxu0 %v4183
    %6119 = vmatpush1.bf16.msra.mxu0 %v4182
    %6120 = vmatprep.subr.bf16.mxu0 %v4191
    %6121 = vmatpush1.bf16.msra.mxu0 %v4190
    %6122 = vmatprep.subr.bf16.mxu0 %v4199
    %6123 = vmatpush1.bf16.msra.mxu0 %v4198
    %6124 = vmatprep.subr.bf16.mxu0 %v4207
    %6125 = vmatpush1.bf16.msra.mxu0 %v4206
    %6126 = vmatprep.subr.bf16.mxu0 %v4215
    %6127 = vmatpush1.bf16.msra.mxu0 %v4214
    %6128 = vmatprep.subr.bf16.mxu0 %v4223
    %6129 = vmatpush1.bf16.msra.mxu0 %v4222
    %6130 = vmatprep.subr.bf16.mxu0 %v4231
    %6131 = vmatpush1.bf16.msra.mxu0 %v4230
    %6132 = vmatprep.mubr.bf16.mxu0 %v984
    %6133 = vmatmul.mubr.bf16.gmra.mrb[0].mxu0 %v983
    %v6134 = vpop.f32.mrb[0].mxu0
    %v6135 = vadd.f32 %v6092, %v6134
    %v6136 = vpop.f32.mrb[0].mxu0
    %v6137 = vadd.f32 %v6094, %v6136
    %v6138 = vpop.f32.mrb[0].mxu0
    %v6139 = vadd.f32 %v6096, %v6138
    %v6140 = vpop.f32.mrb[0].mxu0
    %v6141 = vadd.f32 %v6098, %v6140
    %6142 = vdwg.mxu0
    %6143 = vmatprep.subr.bf16.mxu0 %v4239
    %6144 = vmatpush1.bf16.msra.mxu0 %v4238
    %6145 = vmatprep.subr.bf16.mxu0 %v4247
    %6146 = vmatpush1.bf16.msra.mxu0 %v4246
    %6147 = vmatprep.subr.bf16.mxu0 %v4255
    %6148 = vmatpush1.bf16.msra.mxu0 %v4254
    %6149 = vmatprep.subr.bf16.mxu0 %v4263
    %6150 = vmatpush1.bf16.msra.mxu0 %v4262
    %6151 = vmatprep.subr.bf16.mxu0 %v4271
    %6152 = vmatpush1.bf16.msra.mxu0 %v4270
    %6153 = vmatprep.subr.bf16.mxu0 %v4279
    %6154 = vmatpush1.bf16.msra.mxu0 %v4278
    %6155 = vmatprep.subr.bf16.mxu0 %v4287
    %6156 = vmatpush1.bf16.msra.mxu0 %v4286
    %6157 = vmatprep.subr.bf16.mxu0 %v4295
    %6158 = vmatpush1.bf16.msra.mxu0 %v4294
    %6159 = vmatprep.subr.bf16.mxu0 %v4303
    %6160 = vmatpush1.bf16.msra.mxu0 %v4302
    %6161 = vmatprep.subr.bf16.mxu0 %v4311
    %6162 = vmatpush1.bf16.msra.mxu0 %v4310
    %6163 = vmatprep.subr.bf16.mxu0 %v4319
    %6164 = vmatpush1.bf16.msra.mxu0 %v4318
    %6165 = vmatprep.subr.bf16.mxu0 %v4327
    %6166 = vmatpush1.bf16.msra.mxu0 %v4326
    %6167 = vmatprep.subr.bf16.mxu0 %v4335
    %6168 = vmatpush1.bf16.msra.mxu0 %v4334
    %6169 = vmatprep.subr.bf16.mxu0 %v4343
    %6170 = vmatpush1.bf16.msra.mxu0 %v4342
    %6171 = vmatprep.subr.bf16.mxu0 %v4351
    %6172 = vmatpush1.bf16.msra.mxu0 %v4350
    %6173 = vmatprep.subr.bf16.mxu0 %v4359
    %6174 = vmatpush1.bf16.msra.mxu0 %v4358
    %6175 = vmatprep.mubr.bf16.mxu0 %v986
    %6176 = vmatmul.mubr.bf16.gmra.mrb[0].mxu0 %v985
    %v6177 = vpop.f32.mrb[0].mxu0
    %v6178 = vadd.f32 %v6135, %v6177
    %v6179 = vpop.f32.mrb[0].mxu0
    %v6180 = vadd.f32 %v6137, %v6179
    %v6181 = vpop.f32.mrb[0].mxu0
    %v6182 = vadd.f32 %v6139, %v6181
    %v6183 = vpop.f32.mrb[0].mxu0
    %v6184 = vadd.f32 %v6141, %v6183
    %6185 = vdwg.mxu0
    %6186 = vmatprep.subr.bf16.mxu0 %v4367
    %6187 = vmatpush1.bf16.msra.mxu0 %v4366
    %6188 = vmatprep.subr.bf16.mxu0 %v4375
    %6189 = vmatpush1.bf16.msra.mxu0 %v4374
    %6190 = vmatprep.subr.bf16.mxu0 %v4383
    %6191 = vmatpush1.bf16.msra.mxu0 %v4382
    %6192 = vmatprep.subr.bf16.mxu0 %v4391
    %6193 = vmatpush1.bf16.msra.mxu0 %v4390
    %6194 = vmatprep.subr.bf16.mxu0 %v4399
    %6195 = vmatpush1.bf16.msra.mxu0 %v4398
    %6196 = vmatprep.subr.bf16.mxu0 %v4407
    %6197 = vmatpush1.bf16.msra.mxu0 %v4406
    %6198 = vmatprep.subr.bf16.mxu0 %v4415
    %6199 = vmatpush1.bf16.msra.mxu0 %v4414
    %6200 = vmatprep.subr.bf16.mxu0 %v4423
    %6201 = vmatpush1.bf16.msra.mxu0 %v4422
    %6202 = vmatprep.subr.bf16.mxu0 %v4431
    %6203 = vmatpush1.bf16.msra.mxu0 %v4430
    %6204 = vmatprep.subr.bf16.mxu0 %v4439
    %6205 = vmatpush1.bf16.msra.mxu0 %v4438
    %6206 = vmatprep.subr.bf16.mxu0 %v4447
    %6207 = vmatpush1.bf16.msra.mxu0 %v4446
    %6208 = vmatprep.subr.bf16.mxu0 %v4455
    %6209 = vmatpush1.bf16.msra.mxu0 %v4454
    %6210 = vmatprep.subr.bf16.mxu0 0
    %6211 = vmatpush1.bf16.msra.mxu0 0
    %6212 = vmatprep.subr.bf16.mxu0 0
    %6213 = vmatpush1.bf16.msra.mxu0 0
    %6214 = vmatprep.subr.bf16.mxu0 0
    %6215 = vmatpush1.bf16.msra.mxu0 0
    %6216 = vmatprep.subr.bf16.mxu0 0
    %6217 = vmatpush1.bf16.msra.mxu0 0
    %6218 = vmatprep.mubr.bf16.mxu0 %v5324
    %6219 = vmatmul.mubr.bf16.gmra.mrb[0].mxu0 %v987
    %v6220 = vpop.f32.mrb[0].mxu0
    %v6221 = vadd.f32 %v6178, %v6220
    %v6222 = vpop.f32.mrb[0].mxu0
    %v6223 = vadd.f32 %v6180, %v6222
    %v6224 = vpop.f32.mrb[0].mxu0
    %v6225 = vadd.f32 %v6182, %v6224
    %v6226 = vpop.f32.mrb[0].mxu0
    %v6227 = vadd.f32 %v6184, %v6226
    %6228 = vdwg.mxu0
    %6229 = vmatprep.subr.bf16.mxu0 %v3601
    %6230 = vmatpush1.bf16.msra.mxu0 %v3600
    %6231 = vmatprep.subr.bf16.mxu0 %v3609
    %6232 = vmatpush1.bf16.msra.mxu0 %v3608
    %6233 = vmatprep.subr.bf16.mxu0 %v3617
    %6234 = vmatpush1.bf16.msra.mxu0 %v3616
    %6235 = vmatprep.subr.bf16.mxu0 %v3625
    %6236 = vmatpush1.bf16.msra.mxu0 %v3624
    %6237 = vmatprep.subr.bf16.mxu0 %v3633
    %6238 = vmatpush1.bf16.msra.mxu0 %v3632
    %6239 = vmatprep.subr.bf16.mxu0 %v3641
    %6240 = vmatpush1.bf16.msra.mxu0 %v3640
    %6241 = vmatprep.subr.bf16.mxu0 %v3649
    %6242 = vmatpush1.bf16.msra.mxu0 %v3648
    %6243 = vmatprep.subr.bf16.mxu0 %v3657
    %6244 = vmatpush1.bf16.msra.mxu0 %v3656
    %6245 = vmatprep.subr.bf16.mxu0 %v3665
    %6246 = vmatpush1.bf16.msra.mxu0 %v3664
    %6247 = vmatprep.subr.bf16.mxu0 %v3673
    %6248 = vmatpush1.bf16.msra.mxu0 %v3672
    %6249 = vmatprep.subr.bf16.mxu0 %v3681
    %6250 = vmatpush1.bf16.msra.mxu0 %v3680
    %6251 = vmatprep.subr.bf16.mxu0 %v3689
    %6252 = vmatpush1.bf16.msra.mxu0 %v3688
    %6253 = vmatprep.subr.bf16.mxu0 %v3697
    %6254 = vmatpush1.bf16.msra.mxu0 %v3696
    %6255 = vmatprep.subr.bf16.mxu0 %v3705
    %6256 = vmatpush1.bf16.msra.mxu0 %v3704
    %6257 = vmatprep.subr.bf16.mxu0 %v3713
    %6258 = vmatpush1.bf16.msra.mxu0 %v3712
    %6259 = vmatprep.subr.bf16.mxu0 %v3721
    %6260 = vmatpush1.bf16.msra.mxu0 %v3720
    %6261 = vmatprep.mubr.bf16.mxu0 %v976
    %6262 = vmatmul.mubr.bf16.gmra.mrb[0].mxu0 %v975
    %v6263 = vpop.f32.mrb[0].mxu0
    %v6264 = vadd.f32 0.0, %v6263
    %v6265 = vpop.f32.mrb[0].mxu0
    %v6266 = vadd.f32 0.0, %v6265
    %v6267 = vpop.f32.mrb[0].mxu0
    %v6268 = vadd.f32 0.0, %v6267
    %v6269 = vpop.f32.mrb[0].mxu0
    %v6270 = vadd.f32 0.0, %v6269
    %6271 = vdwg.mxu0
    %6272 = vmatprep.subr.bf16.mxu0 %v3729
    %6273 = vmatpush1.bf16.msra.mxu0 %v3728
    %6274 = vmatprep.subr.bf16.mxu0 %v3737
    %6275 = vmatpush1.bf16.msra.mxu0 %v3736
    %6276 = vmatprep.subr.bf16.mxu0 %v3745
    %6277 = vmatpush1.bf16.msra.mxu0 %v3744
    %6278 = vmatprep.subr.bf16.mxu0 %v3753
    %6279 = vmatpush1.bf16.msra.mxu0 %v3752
    %6280 = vmatprep.subr.bf16.mxu0 %v3761
    %6281 = vmatpush1.bf16.msra.mxu0 %v3760
    %6282 = vmatprep.subr.bf16.mxu0 %v3769
    %6283 = vmatpush1.bf16.msra.mxu0 %v3768
    %6284 = vmatprep.subr.bf16.mxu0 %v3777
    %6285 = vmatpush1.bf16.msra.mxu0 %v3776
    %6286 = vmatprep.subr.bf16.mxu0 %v3785
    %6287 = vmatpush1.bf16.msra.mxu0 %v3784
    %6288 = vmatprep.subr.bf16.mxu0 %v3793
    %6289 = vmatpush1.bf16.msra.mxu0 %v3792
    %6290 = vmatprep.subr.bf16.mxu0 %v3801
    %6291 = vmatpush1.bf16.msra.mxu0 %v3800
    %6292 = vmatprep.subr.bf16.mxu0 %v3809
    %6293 = vmatpush1.bf16.msra.mxu0 %v3808
    %6294 = vmatprep.subr.bf16.mxu0 %v3817
    %6295 = vmatpush1.bf16.msra.mxu0 %v3816
    %6296 = vmatprep.subr.bf16.mxu0 %v3825
    %6297 = vmatpush1.bf16.msra.mxu0 %v3824
    %6298 = vmatprep.subr.bf16.mxu0 %v3833
    %6299 = vmatpush1.bf16.msra.mxu0 %v3832
    %6300 = vmatprep.subr.bf16.mxu0 %v3841
    %6301 = vmatpush1.bf16.msra.mxu0 %v3840
    %6302 = vmatprep.subr.bf16.mxu0 %v3849
    %6303 = vmatpush1.bf16.msra.mxu0 %v3848
    %6304 = vmatprep.mubr.bf16.mxu0 %v978
    %6305 = vmatmul.mubr.bf16.gmra.mrb[0].mxu0 %v977
    %v6306 = vpop.f32.mrb[0].mxu0
    %v6307 = vadd.f32 %v6264, %v6306
    %v6308 = vpop.f32.mrb[0].mxu0
    %v6309 = vadd.f32 %v6266, %v6308
    %v6310 = vpop.f32.mrb[0].mxu0
    %v6311 = vadd.f32 %v6268, %v6310
    %v6312 = vpop.f32.mrb[0].mxu0
    %v6313 = vadd.f32 %v6270, %v6312
    %6314 = vdwg.mxu0
    %6315 = vmatprep.subr.bf16.mxu0 %v3857
    %6316 = vmatpush1.bf16.msra.mxu0 %v3856
    %6317 = vmatprep.subr.bf16.mxu0 %v3865
    %6318 = vmatpush1.bf16.msra.mxu0 %v3864
    %6319 = vmatprep.subr.bf16.mxu0 %v3873
    %6320 = vmatpush1.bf16.msra.mxu0 %v3872
    %6321 = vmatprep.subr.bf16.mxu0 %v3881
    %6322 = vmatpush1.bf16.msra.mxu0 %v3880
    %6323 = vmatprep.subr.bf16.mxu0 %v3889
    %6324 = vmatpush1.bf16.msra.mxu0 %v3888
    %6325 = vmatprep.subr.bf16.mxu0 %v3897
    %6326 = vmatpush1.bf16.msra.mxu0 %v3896
    %6327 = vmatprep.subr.bf16.mxu0 %v3905
    %6328 = vmatpush1.bf16.msra.mxu0 %v3904
    %6329 = vmatprep.subr.bf16.mxu0 %v3913
    %6330 = vmatpush1.bf16.msra.mxu0 %v3912
    %6331 = vmatprep.subr.bf16.mxu0 %v3921
    %6332 = vmatpush1.bf16.msra.mxu0 %v3920
    %6333 = vmatprep.subr.bf16.mxu0 %v3929
    %6334 = vmatpush1.bf16.msra.mxu0 %v3928
    %6335 = vmatprep.subr.bf16.mxu0 %v3937
    %6336 = vmatpush1.bf16.msra.mxu0 %v3936
    %6337 = vmatprep.subr.bf16.mxu0 %v3945
    %6338 = vmatpush1.bf16.msra.mxu0 %v3944
    %6339 = vmatprep.subr.bf16.mxu0 %v3953
    %6340 = vmatpush1.bf16.msra.mxu0 %v3952
    %6341 = vmatprep.subr.bf16.mxu0 %v3961
    %6342 = vmatpush1.bf16.msra.mxu0 %v3960
    %6343 = vmatprep.subr.bf16.mxu0 %v3969
    %6344 = vmatpush1.bf16.msra.mxu0 %v3968
    %6345 = vmatprep.subr.bf16.mxu0 %v3977
    %6346 = vmatpush1.bf16.msra.mxu0 %v3976
    %6347 = vmatprep.mubr.bf16.mxu0 %v980
    %6348 = vmatmul.mubr.bf16.gmra.mrb[0].mxu0 %v979
    %v6349 = vpop.f32.mrb[0].mxu0
    %v6350 = vadd.f32 %v6307, %v6349
    %v6351 = vpop.f32.mrb[0].mxu0
    %v6352 = vadd.f32 %v6309, %v6351
    %v6353 = vpop.f32.mrb[0].mxu0
    %v6354 = vadd.f32 %v6311, %v6353
    %v6355 = vpop.f32.mrb[0].mxu0
    %v6356 = vadd.f32 %v6313, %v6355
    %6357 = vdwg.mxu0
    %6358 = vmatprep.subr.bf16.mxu0 %v3985
    %6359 = vmatpush1.bf16.msra.mxu0 %v3984
    %6360 = vmatprep.subr.bf16.mxu0 %v3993
    %6361 = vmatpush1.bf16.msra.mxu0 %v3992
    %6362 = vmatprep.subr.bf16.mxu0 %v4001
    %6363 = vmatpush1.bf16.msra.mxu0 %v4000
    %6364 = vmatprep.subr.bf16.mxu0 %v4009
    %6365 = vmatpush1.bf16.msra.mxu0 %v4008
    %6366 = vmatprep.subr.bf16.mxu0 %v4017
    %6367 = vmatpush1.bf16.msra.mxu0 %v4016
    %6368 = vmatprep.subr.bf16.mxu0 %v4025
    %6369 = vmatpush1.bf16.msra.mxu0 %v4024
    %6370 = vmatprep.subr.bf16.mxu0 %v4033
    %6371 = vmatpush1.bf16.msra.mxu0 %v4032
    %6372 = vmatprep.subr.bf16.mxu0 %v4041
    %6373 = vmatpush1.bf16.msra.mxu0 %v4040
    %6374 = vmatprep.subr.bf16.mxu0 %v4049
    %6375 = vmatpush1.bf16.msra.mxu0 %v4048
    %6376 = vmatprep.subr.bf16.mxu0 %v4057
    %6377 = vmatpush1.bf16.msra.mxu0 %v4056
    %6378 = vmatprep.subr.bf16.mxu0 %v4065
    %6379 = vmatpush1.bf16.msra.mxu0 %v4064
    %6380 = vmatprep.subr.bf16.mxu0 %v4073
    %6381 = vmatpush1.bf16.msra.mxu0 %v4072
    %6382 = vmatprep.subr.bf16.mxu0 %v4081
    %6383 = vmatpush1.bf16.msra.mxu0 %v4080
    %6384 = vmatprep.subr.bf16.mxu0 %v4089
    %6385 = vmatpush1.bf16.msra.mxu0 %v4088
    %6386 = vmatprep.subr.bf16.mxu0 %v4097
    %6387 = vmatpush1.bf16.msra.mxu0 %v4096
    %6388 = vmatprep.subr.bf16.mxu0 %v4105
    %6389 = vmatpush1.bf16.msra.mxu0 %v4104
    %6390 = vmatprep.mubr.bf16.mxu0 %v982
    %6391 = vmatmul.mubr.bf16.gmra.mrb[0].mxu0 %v981
    %v6392 = vpop.f32.mrb[0].mxu0
    %v6393 = vadd.f32 %v6350, %v6392
    %v6394 = vpop.f32.mrb[0].mxu0
    %v6395 = vadd.f32 %v6352, %v6394
    %v6396 = vpop.f32.mrb[0].mxu0
    %v6397 = vadd.f32 %v6354, %v6396
    %v6398 = vpop.f32.mrb[0].mxu0
    %v6399 = vadd.f32 %v6356, %v6398
    %6400 = vdwg.mxu0
    %6401 = vmatprep.subr.bf16.mxu0 %v4113
    %6402 = vmatpush1.bf16.msra.mxu0 %v4112
    %6403 = vmatprep.subr.bf16.mxu0 %v4121
    %6404 = vmatpush1.bf16.msra.mxu0 %v4120
    %6405 = vmatprep.subr.bf16.mxu0 %v4129
    %6406 = vmatpush1.bf16.msra.mxu0 %v4128
    %6407 = vmatprep.subr.bf16.mxu0 %v4137
    %6408 = vmatpush1.bf16.msra.mxu0 %v4136
    %6409 = vmatprep.subr.bf16.mxu0 %v4145
    %6410 = vmatpush1.bf16.msra.mxu0 %v4144
    %6411 = vmatprep.subr.bf16.mxu0 %v4153
    %6412 = vmatpush1.bf16.msra.mxu0 %v4152
    %6413 = vmatprep.subr.bf16.mxu0 %v4161
    %6414 = vmatpush1.bf16.msra.mxu0 %v4160
    %6415 = vmatprep.subr.bf16.mxu0 %v4169
    %6416 = vmatpush1.bf16.msra.mxu0 %v4168
    %6417 = vmatprep.subr.bf16.mxu0 %v4177
    %6418 = vmatpush1.bf16.msra.mxu0 %v4176
    %6419 = vmatprep.subr.bf16.mxu0 %v4185
    %6420 = vmatpush1.bf16.msra.mxu0 %v4184
    %6421 = vmatprep.subr.bf16.mxu0 %v4193
    %6422 = vmatpush1.bf16.msra.mxu0 %v4192
    %6423 = vmatprep.subr.bf16.mxu0 %v4201
    %6424 = vmatpush1.bf16.msra.mxu0 %v4200
    %6425 = vmatprep.subr.bf16.mxu0 %v4209
    %6426 = vmatpush1.bf16.msra.mxu0 %v4208
    %6427 = vmatprep.subr.bf16.mxu0 %v4217
    %6428 = vmatpush1.bf16.msra.mxu0 %v4216
    %6429 = vmatprep.subr.bf16.mxu0 %v4225
    %6430 = vmatpush1.bf16.msra.mxu0 %v4224
    %6431 = vmatprep.subr.bf16.mxu0 %v4233
    %6432 = vmatpush1.bf16.msra.mxu0 %v4232
    %6433 = vmatprep.mubr.bf16.mxu0 %v984
    %6434 = vmatmul.mubr.bf16.gmra.mrb[0].mxu0 %v983
    %v6435 = vpop.f32.mrb[0].mxu0
    %v6436 = vadd.f32 %v6393, %v6435
    %v6437 = vpop.f32.mrb[0].mxu0
    %v6438 = vadd.f32 %v6395, %v6437
    %v6439 = vpop.f32.mrb[0].mxu0
    %v6440 = vadd.f32 %v6397, %v6439
    %v6441 = vpop.f32.mrb[0].mxu0
    %v6442 = vadd.f32 %v6399, %v6441
    %6443 = vdwg.mxu0
    %6444 = vmatprep.subr.bf16.mxu0 %v4241
    %6445 = vmatpush1.bf16.msra.mxu0 %v4240
    %6446 = vmatprep.subr.bf16.mxu0 %v4249
    %6447 = vmatpush1.bf16.msra.mxu0 %v4248
    %6448 = vmatprep.subr.bf16.mxu0 %v4257
    %6449 = vmatpush1.bf16.msra.mxu0 %v4256
    %6450 = vmatprep.subr.bf16.mxu0 %v4265
    %6451 = vmatpush1.bf16.msra.mxu0 %v4264
    %6452 = vmatprep.subr.bf16.mxu0 %v4273
    %6453 = vmatpush1.bf16.msra.mxu0 %v4272
    %6454 = vmatprep.subr.bf16.mxu0 %v4281
    %6455 = vmatpush1.bf16.msra.mxu0 %v4280
    %6456 = vmatprep.subr.bf16.mxu0 %v4289
    %6457 = vmatpush1.bf16.msra.mxu0 %v4288
    %6458 = vmatprep.subr.bf16.mxu0 %v4297
    %6459 = vmatpush1.bf16.msra.mxu0 %v4296
    %6460 = vmatprep.subr.bf16.mxu0 %v4305
    %6461 = vmatpush1.bf16.msra.mxu0 %v4304
    %6462 = vmatprep.subr.bf16.mxu0 %v4313
    %6463 = vmatpush1.bf16.msra.mxu0 %v4312
    %6464 = vmatprep.subr.bf16.mxu0 %v4321
    %6465 = vmatpush1.bf16.msra.mxu0 %v4320
    %6466 = vmatprep.subr.bf16.mxu0 %v4329
    %6467 = vmatpush1.bf16.msra.mxu0 %v4328
    %6468 = vmatprep.subr.bf16.mxu0 %v4337
    %6469 = vmatpush1.bf16.msra.mxu0 %v4336
    %6470 = vmatprep.subr.bf16.mxu0 %v4345
    %6471 = vmatpush1.bf16.msra.mxu0 %v4344
    %6472 = vmatprep.subr.bf16.mxu0 %v4353
    %6473 = vmatpush1.bf16.msra.mxu0 %v4352
    %6474 = vmatprep.subr.bf16.mxu0 %v4361
    %6475 = vmatpush1.bf16.msra.mxu0 %v4360
    %6476 = vmatprep.mubr.bf16.mxu0 %v986
    %6477 = vmatmul.mubr.bf16.gmra.mrb[0].mxu0 %v985
    %v6478 = vpop.f32.mrb[0].mxu0
    %v6479 = vadd.f32 %v6436, %v6478
    %v6480 = vpop.f32.mrb[0].mxu0
    %v6481 = vadd.f32 %v6438, %v6480
    %v6482 = vpop.f32.mrb[0].mxu0
    %v6483 = vadd.f32 %v6440, %v6482
    %v6484 = vpop.f32.mrb[0].mxu0
    %v6485 = vadd.f32 %v6442, %v6484
    %6486 = vdwg.mxu0
    %6487 = vmatprep.subr.bf16.mxu0 %v4369
    %6488 = vmatpush1.bf16.msra.mxu0 %v4368
    %6489 = vmatprep.subr.bf16.mxu0 %v4377
    %6490 = vmatpush1.bf16.msra.mxu0 %v4376
    %6491 = vmatprep.subr.bf16.mxu0 %v4385
    %6492 = vmatpush1.bf16.msra.mxu0 %v4384
    %6493 = vmatprep.subr.bf16.mxu0 %v4393
    %6494 = vmatpush1.bf16.msra.mxu0 %v4392
    %6495 = vmatprep.subr.bf16.mxu0 %v4401
    %6496 = vmatpush1.bf16.msra.mxu0 %v4400
    %6497 = vmatprep.subr.bf16.mxu0 %v4409
    %6498 = vmatpush1.bf16.msra.mxu0 %v4408
    %6499 = vmatprep.subr.bf16.mxu0 %v4417
    %6500 = vmatpush1.bf16.msra.mxu0 %v4416
    %6501 = vmatprep.subr.bf16.mxu0 %v4425
    %6502 = vmatpush1.bf16.msra.mxu0 %v4424
    %6503 = vmatprep.subr.bf16.mxu0 %v4433
    %6504 = vmatpush1.bf16.msra.mxu0 %v4432
    %6505 = vmatprep.subr.bf16.mxu0 %v4441
    %6506 = vmatpush1.bf16.msra.mxu0 %v4440
    %6507 = vmatprep.subr.bf16.mxu0 %v4449
    %6508 = vmatpush1.bf16.msra.mxu0 %v4448
    %6509 = vmatprep.subr.bf16.mxu0 %v4457
    %6510 = vmatpush1.bf16.msra.mxu0 %v4456
    %6511 = vmatprep.subr.bf16.mxu0 0
    %6512 = vmatpush1.bf16.msra.mxu0 0
    %6513 = vmatprep.subr.bf16.mxu0 0
    %6514 = vmatpush1.bf16.msra.mxu0 0
    %6515 = vmatprep.subr.bf16.mxu0 0
    %6516 = vmatpush1.bf16.msra.mxu0 0
    %6517 = vmatprep.subr.bf16.mxu0 0
    %6518 = vmatpush1.bf16.msra.mxu0 0
    %6519 = vmatprep.mubr.bf16.mxu0 %v5324
    %6520 = vmatmul.mubr.bf16.gmra.mrb[0].mxu0 %v987
    %v6521 = vpop.f32.mrb[0].mxu0
    %v6522 = vadd.f32 %v6479, %v6521
    %v6523 = vpop.f32.mrb[0].mxu0
    %v6524 = vadd.f32 %v6481, %v6523
    %v6525 = vpop.f32.mrb[0].mxu0
    %v6526 = vadd.f32 %v6483, %v6525
    %v6527 = vpop.f32.mrb[0].mxu0
    %v6528 = vadd.f32 %v6485, %v6527
    %6529 = vdwg.mxu0
    %v6530 = vld [vmem:[#allocation4] sm:$0xff]
    %v6532 = vlaneseq
    %v6533 = vshrl.u32 %v6532, 7
    %v6534 = vsub.s32 0, %v6533
    %v6535 = vrot.slane %v6530, %v6534
    %v6536 = vlaneseq
    %v6537 = vshrl.u32 %v6536, 7
    %v6538 = vsub.s32 1, %v6537
    %v6539 = vrot.slane %v6530, %v6538
    %v6540 = vlaneseq
    %v6541 = vshrl.u32 %v6540, 7
    %v6542 = vsub.s32 2, %v6541
    %v6543 = vrot.slane %v6530, %v6542
    %v6544 = vlaneseq
    %v6545 = vshrl.u32 %v6544, 7
    %v6546 = vsub.s32 3, %v6545
    %v6547 = vrot.slane %v6530, %v6546
    %v6548 = vlaneseq
    %v6549 = vshrl.u32 %v6548, 7
    %v6550 = vsub.s32 4, %v6549
    %v6551 = vrot.slane %v6530, %v6550
    %v6552 = vlaneseq
    %v6553 = vshrl.u32 %v6552, 7
    %v6554 = vsub.s32 5, %v6553
    %v6555 = vrot.slane %v6530, %v6554
    %v6556 = vlaneseq
    %v6557 = vshrl.u32 %v6556, 7
    %v6558 = vsub.s32 6, %v6557
    %v6559 = vrot.slane %v6530, %v6558
    %v6560 = vlaneseq
    %v6561 = vshrl.u32 %v6560, 7
    %v6562 = vsub.s32 7, %v6561
    %v6563 = vrot.slane %v6530, %v6562
    %v6572 = vmul.f32 %v5619, %v6535
    %v6573 = vmul.f32 %v5621, %v6539
    %v6574 = vmul.f32 %v5920, %v6543
    %v6575 = vmul.f32 %v5922, %v6547
    %v6576 = vmul.f32 %v6221, %v6551
    %v6577 = vmul.f32 %v6223, %v6555
    %v6578 = vmul.f32 %v6522, %v6559
    %v6579 = vmul.f32 %v6524, %v6563
    %v6580 = vmul.f32 %v5623, %v6535
    %v6581 = vmul.f32 %v5625, %v6539
    %v6582 = vmul.f32 %v5924, %v6543
    %v6583 = vmul.f32 %v5926, %v6547
    %v6584 = vmul.f32 %v6225, %v6551
    %v6585 = vmul.f32 %v6227, %v6555
    %v6586 = vmul.f32 %v6526, %v6559
    %v6587 = vmul.f32 %v6528, %v6563
    %v6588 = vld [vmem:[#allocation6] sm:$0xff]
    %v6590 = vlaneseq
    %v6591 = vshrl.u32 %v6590, 7
    %v6592 = vsub.s32 0, %v6591
    %v6593 = vrot.slane %v6588, %v6592
    %v6594 = vlaneseq
    %v6595 = vshrl.u32 %v6594, 7
    %v6596 = vsub.s32 1, %v6595
    %v6597 = vrot.slane %v6588, %v6596
    %v6598 = vlaneseq
    %v6599 = vshrl.u32 %v6598, 7
    %v6600 = vsub.s32 2, %v6599
    %v6601 = vrot.slane %v6588, %v6600
    %v6602 = vlaneseq
    %v6603 = vshrl.u32 %v6602, 7
    %v6604 = vsub.s32 3, %v6603
    %v6605 = vrot.slane %v6588, %v6604
    %v6606 = vlaneseq
    %v6607 = vshrl.u32 %v6606, 7
    %v6608 = vsub.s32 4, %v6607
    %v6609 = vrot.slane %v6588, %v6608
    %v6610 = vlaneseq
    %v6611 = vshrl.u32 %v6610, 7
    %v6612 = vsub.s32 5, %v6611
    %v6613 = vrot.slane %v6588, %v6612
    %v6614 = vlaneseq
    %v6615 = vshrl.u32 %v6614, 7
    %v6616 = vsub.s32 6, %v6615
    %v6617 = vrot.slane %v6588, %v6616
    %v6618 = vlaneseq
    %v6619 = vshrl.u32 %v6618, 7
    %v6620 = vsub.s32 7, %v6619
    %v6621 = vrot.slane %v6588, %v6620
    %v6630 = vadd.f32 %v6572, %v6593
    %v6631 = vadd.f32 %v6573, %v6597
    %v6632 = vadd.f32 %v6574, %v6601
    %v6633 = vadd.f32 %v6575, %v6605
    %v6634 = vadd.f32 %v6576, %v6609
    %v6635 = vadd.f32 %v6577, %v6613
    %v6636 = vadd.f32 %v6578, %v6617
    %v6637 = vadd.f32 %v6579, %v6621
    %v6638 = vadd.f32 %v6580, %v6593
    %v6639 = vadd.f32 %v6581, %v6597
    %v6640 = vadd.f32 %v6582, %v6601
    %v6641 = vadd.f32 %v6583, %v6605
    %v6642 = vadd.f32 %v6584, %v6609
    %v6643 = vadd.f32 %v6585, %v6613
    %v6644 = vadd.f32 %v6586, %v6617
    %v6645 = vadd.f32 %v6587, %v6621
    %v6646 = vmax.f32 %v6630, 0.0
    %v6647 = vmax.f32 %v6631, 0.0
    %v6648 = vmax.f32 %v6632, 0.0
    %v6649 = vmax.f32 %v6633, 0.0
    %v6650 = vmax.f32 %v6634, 0.0
    %v6651 = vmax.f32 %v6635, 0.0
    %v6652 = vmax.f32 %v6636, 0.0
    %v6653 = vmax.f32 %v6637, 0.0
    %v6654 = vmax.f32 %v6638, 0.0
    %v6655 = vmax.f32 %v6639, 0.0
    %v6656 = vmax.f32 %v6640, 0.0
    %v6657 = vmax.f32 %v6641, 0.0
    %v6658 = vmax.f32 %v6642, 0.0
    %v6659 = vmax.f32 %v6643, 0.0
    %v6660 = vmax.f32 %v6644, 0.0
    %v6661 = vmax.f32 %v6645, 0.0
    %v6662 = vmax.f32 %v6646, %v6648
    %v6663 = vmax.f32 %v6647, %v6649
    %v6664 = vmax.f32 %v6654, %v6656
    %v6665 = vmax.f32 %v6655, %v6657
    %v6666 = vmax.f32 %v6650, %v6652
    %v6667 = vmax.f32 %v6651, %v6653
    %v6668 = vmax.f32 %v6658, %v6660
    %v6669 = vmax.f32 %v6659, %v6661
    %v6670 = vmax.f32 %v6662, %v6666
    %v6671 = vmax.f32 %v6663, %v6667
    %v6672 = vmax.f32 %v6664, %v6668
    %v6673 = vmax.f32 %v6665, %v6669
    %v6674 = vpack.c.bf16 %v6672, %v6670
    %v6675 = vpack.c.bf16 %v6673, %v6671
    %v6678 = vunpack.c.l.b16 %v6674
    %v6679 = vunpack.c.l.b16 %v6675
    %v6680 = vunpack.c.h.b16 %v6674
    %v6681 = vunpack.c.h.b16 %v6675
    %v6682 = vpack.c.b16 %v6679, %v6678
    %v6683 = vpack.c.b16 %v6681, %v6680
    %6686 = vst [vmem:[%s4] sm:$0xff] %v6682
    %6687 = vst [vmem:[%s4 + $0x8] sm:$0xff] %v6683
    // Predicated region
    $region30: #{convnet_forward.4} parent=1 // pred_check
      _
    $region31: #{convnet_forward.4} parent=1 // pred_check_branch
      %6689 = sbr.rel (0) target = $region33
    $region32: #{convnet_forward.4} parent=1 // pred_region
      _
    $region33: #{convnet_forward.4} parent=1 // pred_fallthru
      _
    // Predicated region
    $region34: #{convnet_forward.4} parent=1 // pred_check
      _
    $region35: #{convnet_forward.4} parent=1 // pred_check_branch
      %6691 = sbr.rel (0) target = $region37
    $region36: #{convnet_forward.4} parent=1 // pred_region
      _
    $region37: #{convnet_forward.4} parent=1 // pred_fallthru
      _
    %6692 = vsyncpa [#allocation3], 1
    %6693 = vsyncpa [#allocation5], 1

</llo_original>
